<compile_context>
chip_gen: v7x
topology: tpu7x:2x2x1
jax: 0.10.0
libtpu: 0.0.40
codegen_flags: <defaults>
</compile_context>

<pallas_src>
import functools

import jax
import jax.numpy as jnp
from jax.experimental import pallas as pl
from jax.experimental.pallas import tpu as pltpu


_COUT_PAD = 128  # lane-dense padded output-channel width for the final conv


def _fused_subnet_kernel(x_ref, wh_ref, bh_ref, wo_ref, bo_ref, o_ref,
                         act_ref, *, NB, H, W, C, depth):
    """One (batch-block, layer) grid step of the fused SubNet tower.

    x_ref  : (NB, H, W, C)        f32   input activations (NHWC)
    wh_ref : (9*C, C)             bf16  current hidden conv weight (im2col layout)
    bh_ref : (1, C)               f32   current hidden conv bias
    wo_ref : (9*C, COUT_PAD)      bf16  output conv weight (channel-padded)
    bo_ref : (1, COUT_PAD)        f32   output conv bias   (channel-padded)
    o_ref  : (NB*H*W, COUT_PAD)   f32   flat, lane-dense output slab
    act_ref: (NB, H+2, Wp, C)     bf16  VMEM-resident padded activation (carried
                                        across the layer grid axis)
    """
    M = NB * H * W
    l = pl.program_id(1)

    @pl.when(l == 0)
    def _():
        # Zero once per batch block: the halo ring supplies SAME padding for
        # every layer (interior is rewritten each layer, halo never touched).
        act_ref[...] = jnp.zeros_like(act_ref)
        act_ref[:, 1:H + 1, 1:W + 1, :] = x_ref[...].astype(act_ref.dtype)

    def conv3x3(get_w_tap, cout):
        # 9 accumulating MXU matmuls reading tap windows of act_ref directly
        # (no materialized im2col), f32 accumulation.
        acc = jnp.zeros((M, cout), jnp.float32)
        for kh in range(3):
            for kw in range(3):
                patch = act_ref[:, kh:kh + H, kw:kw + W, :].reshape(M, C)
                acc = acc + jnp.dot(patch, get_w_tap(kh * 3 + kw),
                                    preferred_element_type=jnp.float32)
        return acc

    @pl.when(l < depth)
    def _():
        # Hidden layer: conv3x3 + bias + ReLU (f32 math), store bf16 interior.
        y = conv3x3(lambda t: wh_ref[t * C:(t + 1) * C, :], C)
        y = jnp.maximum(y + bh_ref[...], 0.0)
        act_ref[:, 1:H + 1, 1:W + 1, :] = (
            y.reshape(NB, H, W, C).astype(act_ref.dtype))

    @pl.when(l == depth)
    def _():
        # Output layer: conv3x3 + bias, NO activation (matches PyTorch forward).
        y = conv3x3(lambda t: wo_ref[t * C:(t + 1) * C, :], _COUT_PAD)
        o_ref[...] = (y + bo_ref[...]).astype(o_ref.dtype)


def _min_parallel_programs():
    """>=2 batch programs on v7x (2 TensorCores/chip); 1 elsewhere."""
    try:
        kind = jax.devices()[0].device_kind.lower()
        if "v7" in kind or "7x" in kind:
            return 2
    except Exception:
        pass
    return 1


def _pick_batch_block(N, H, W, target_m=1024, min_grid=1):
    """Largest divisor NB of N with NB*H*W <= target_m and N//NB >= min_grid."""
    nb = 1
    for cand in range(1, N + 1):
        if N % cand == 0 and cand * H * W <= target_m and N // cand >= min_grid:
            nb = cand
    return nb


def subnet_forward(x_nchw, params):
    """PyTorch-equivalent SubNet forward. Input/output are NCHW."""
    x = jnp.transpose(x_nchw, (0, 2, 3, 1))          # NCHW -> NHWC
    N, H, W, C = x.shape
    depth = len(params["base"])

    # Pack weights once in im2col (tap-major) layout; bf16 operands, f32 biases.
    wh = jnp.stack([w.reshape(9 * C, C) for w, _ in params["base"]]
                   ).astype(jnp.bfloat16)                        # (depth, 9C, C)
    bh = jnp.stack([b for _, b in params["base"]]
                   ).reshape(depth, 1, C).astype(jnp.float32)    # (depth, 1, C)
    w_out, b_out = params["out"]
    cout = w_out.shape[-1]
    wo = jnp.zeros((9 * C, _COUT_PAD), jnp.bfloat16).at[:, :cout].set(
        w_out.reshape(9 * C, cout).astype(jnp.bfloat16))
    bo = jnp.zeros((1, _COUT_PAD), jnp.float32).at[0, :cout].set(b_out)

    NB = _pick_batch_block(N, H, W, target_m=1024,
                           min_grid=_min_parallel_programs())
    M = NB * H * W
    Wp = ((W + 2 + 7) // 8) * 8                      # sublane-aligned width

    kernel = functools.partial(_fused_subnet_kernel,
                               NB=NB, H=H, W=W, C=C, depth=depth)

    # Advisory cost estimate so XLA can overlap the surrounding transposes.
    flops = 2 * N * H * W * 9 * C * (C * depth + _COUT_PAD)
    bytes_accessed = int(x.size * 4 + wh.size * 2 + bh.size * 4
                         + wo.size * 2 + bo.size * 4
                         + N * H * W * _COUT_PAD * 4)

    # VMEM budget: double-buffered blocks + carried scratch, with headroom.
    vmem_est = (2 * NB * H * W * C * 4            # x block
                + 2 * 9 * C * C * 2               # wh block (per-layer slab)
                + 2 * 9 * C * _COUT_PAD * 2       # wo block
                + 2 * M * _COUT_PAD * 4           # out block
                + NB * (H + 2) * Wp * C * 2       # act scratch (bf16)
                + (2 << 20))
    vmem_limit = int(min(96 << 20, max(32 << 20, 2 * vmem_est)))

    out_flat = pl.pallas_call(
        kernel,
        out_shape=jax.ShapeDtypeStruct((N * H * W, _COUT_PAD), jnp.float32),
        grid=(N // NB, depth + 1),
        in_specs=[
            pl.BlockSpec((NB, H, W, C), lambda n, l: (n, 0, 0, 0)),
            # Per-layer hidden weight slab streamed along the layer axis
            # (index clamped on the final / output-conv step: no extra DMA).
            pl.BlockSpec((None, 9 * C, C),
                         lambda n, l: (jnp.minimum(l, depth - 1), 0, 0)),
            pl.BlockSpec((None, 1, C),
                         lambda n, l: (jnp.minimum(l, depth - 1), 0, 0)),
            pl.BlockSpec((9 * C, _COUT_PAD), lambda n, l: (0, 0)),
            pl.BlockSpec((1, _COUT_PAD), lambda n, l: (0, 0)),
        ],
        out_specs=pl.BlockSpec((M, _COUT_PAD), lambda n, l: (n, 0)),
        scratch_shapes=[
            pltpu.VMEM((NB, H + 2, Wp, C), jnp.bfloat16),  # padded activations
        ],
        compiler_params=pltpu.CompilerParams(
            dimension_semantics=("parallel", "arbitrary"),
            vmem_limit_bytes=vmem_limit),
        cost_estimate=pl.CostEstimate(
            flops=flops, transcendentals=0, bytes_accessed=bytes_accessed),
    )(x, wh, bh, wo, bo)

    out = out_flat[:, :cout].reshape(N, H, W, cout)
    return jnp.transpose(out, (0, 3, 1, 2))          # NHWC -> NCHW


def init_subnet_params(key, mode="centers", classes=80, depth=4, channels=256):
    out_c = {"corners": 2, "centers": 2, "classes": classes}[mode]
    keys = jax.random.split(key, depth + 1)
    base = []
    for i in range(depth):
        kw, kb = jax.random.split(keys[i])
        w = jax.random.normal(kw, (3, 3, channels, channels), jnp.float32) * 0.02
        b = jax.random.normal(kb, (channels,), jnp.float32) * 0.02
        base.append((w, b))
    kw, kb = jax.random.split(keys[depth])
    w_out = jax.random.normal(kw, (3, 3, channels, out_c), jnp.float32) * 0.02
    b_out = jax.random.normal(kb, (out_c,), jnp.float32) * 0.02
    return {"base": base, "out": (w_out, b_out)}


def subnet_reference(x_nchw, params):
    """Pure-JAX reference (XLA conv, f32) for validation."""
    def conv(x, w, b):
        y = jax.lax.conv_general_dilated(
            x, w, window_strides=(1, 1), padding="SAME",
            dimension_numbers=("NHWC", "HWIO", "NHWC"))
        return y + b[None, None, None, :]
    x = jnp.transpose(x_nchw, (0, 2, 3, 1))
    for w, b in params["base"]:
        x = jax.nn.relu(conv(x, w, b))
    w, b = params["out"]
    x = conv(x, w, b)
    return jnp.transpose(x, (0, 3, 1, 2))


if __name__ == "__main__":
    key = jax.random.PRNGKey(0)
    k_x, k_p = jax.random.split(key)

    # Small shapes consistent with the module: channels fixed at 256 by the
    # architecture, batch=2, spatial=8x8, mode='centers' -> 2 output channels.
    x = jax.random.normal(k_x, (2, 256, 8, 8), jnp.float32)
    params = init_subnet_params(k_p, mode="centers", depth=4, channels=256)

    out = jax.block_until_ready(subnet_forward(x, params))
    ref = jax.block_until_ready(subnet_reference(x, params))

    assert out.shape == (2, 2, 8, 8), out.shape
    assert jnp.allclose(out, ref, rtol=3e-2, atol=3e-2), float(
        jnp.max(jnp.abs(out - ref)))
    print("KERNEL_OK")
</pallas_src>

<mosaic_0001>
module attributes {stable_mosaic.version = 11 : i64} {
  func.func @_fused_subnet_kernel(%arg0: i32, %arg1: i32, %arg2: memref<2x8x8x256xf32, #tpu.memory_space<vmem>>, %arg3: memref<1x2304x256xbf16, #tpu.memory_space<vmem>>, %arg4: memref<1x1x256xf32, #tpu.memory_space<vmem>>, %arg5: memref<2304x128xbf16, #tpu.memory_space<vmem>>, %arg6: memref<1x128xf32, #tpu.memory_space<vmem>>, %arg7: memref<128x128xf32, #tpu.memory_space<vmem>>, %arg8: memref<2x10x16x256xbf16, #tpu.memory_space<vmem>>) attributes {dimension_semantics = [#tpu.dimension_semantics<parallel>, #tpu.dimension_semantics<arbitrary>], iteration_bounds = array<i64: 1, 5>, scalar_prefetch = 0 : i64, scratch_operands = 1 : i64, tpu.core_type = #tpu.core_type<tc>, window_params = [{transform_indices = @transform_0, window_bounds = array<i64: 2, 8, 8, 256>}, {transform_indices = @transform_1, window_bounds = array<i64: 1, 2304, 256>}, {transform_indices = @transform_2, window_bounds = array<i64: 1, 1, 256>}, {pipeline_mode = #tpu.pipeline_mode<synchronous>, transform_indices = @transform_3, window_bounds = array<i64: 2304, 128>}, {pipeline_mode = #tpu.pipeline_mode<synchronous>, transform_indices = @transform_4, window_bounds = array<i64: 1, 128>}, {transform_indices = @transform_5, window_bounds = array<i64: 128, 128>}]} {
    %c0_i32 = arith.constant 0 : i32
    %0 = arith.cmpi eq, %arg1, %c0_i32 : i32
    %1 = arith.extui %0 : i1 to i32
    %c0_i32_0 = arith.constant 0 : i32
    %2 = arith.cmpi ne, %1, %c0_i32_0 : i32
    scf.if %2 {
      %cst = arith.constant 0.000000e+00 : bf16
      %9 = vector.broadcast %cst : bf16 to vector<2x10x16x256xbf16>
      %c0 = arith.constant 0 : index
      %c0_4 = arith.constant 0 : index
      %c0_5 = arith.constant 0 : index
      %c0_6 = arith.constant 0 : index
      %10 = vector.load %arg8[%c0, %c0_4, %c0_5, %c0_6] : memref<2x10x16x256xbf16, #tpu.memory_space<vmem>>, vector<2x10x16x256xbf16>
      tpu.vector_store %arg8[%c0, %c0_4, %c0_5, %c0_6], %9 {strides = array<i32>} : memref<2x10x16x256xbf16, #tpu.memory_space<vmem>>, vector<2x10x16x256xbf16>,
      %c0_7 = arith.constant 0 : index
      %c0_8 = arith.constant 0 : index
      %c0_9 = arith.constant 0 : index
      %c0_10 = arith.constant 0 : index
      %11 = vector.load %arg2[%c0_7, %c0_8, %c0_9, %c0_10] : memref<2x8x8x256xf32, #tpu.memory_space<vmem>>, vector<2x8x8x256xf32>
      %12 = arith.truncf %11 : vector<2x8x8x256xf32> to vector<2x8x8x256xbf16>
      %c0_11 = arith.constant 0 : index
      %c1 = arith.constant 1 : index
      %c1_12 = arith.constant 1 : index
      %c0_13 = arith.constant 0 : index
      %13 = vector.load %arg8[%c0_11, %c1, %c1_12, %c0_13] : memref<2x10x16x256xbf16, #tpu.memory_space<vmem>>, vector<2x8x8x256xbf16>
      tpu.vector_store %arg8[%c0_11, %c1, %c1_12, %c0_13], %12 {strides = array<i32>} : memref<2x10x16x256xbf16, #tpu.memory_space<vmem>>, vector<2x8x8x256xbf16>,
    } else {
    }
    %c4_i32 = arith.constant 4 : i32
    %3 = arith.cmpi slt, %arg1, %c4_i32 : i32
    %4 = arith.extui %3 : i1 to i32
    %c0_i32_1 = arith.constant 0 : i32
    %5 = arith.cmpi ne, %4, %c0_i32_1 : i32
    scf.if %5 {
      %cst = arith.constant 0.000000e+00 : f32
      %9 = vector.broadcast %cst : f32 to vector<128x256xf32>
      %c0 = arith.constant 0 : index
      %c0_4 = arith.constant 0 : index
      %c0_5 = arith.constant 0 : index
      %c0_6 = arith.constant 0 : index
      %10 = vector.load %arg8[%c0, %c0_4, %c0_5, %c0_6] : memref<2x10x16x256xbf16, #tpu.memory_space<vmem>>, vector<2x8x8x256xbf16>
      %11 = vector.shape_cast %10 : vector<2x8x8x256xbf16> to vector<128x256xbf16>
      %c0_7 = arith.constant 0 : index
      %c0_8 = arith.constant 0 : index
      %c0_9 = arith.constant 0 : index
      %12 = vector.load %arg3[%c0_7, %c0_8, %c0_9] : memref<1x2304x256xbf16, #tpu.memory_space<vmem>>, vector<1x256x256xbf16>
      %13 = vector.shape_cast %12 : vector<1x256x256xbf16> to vector<256x256xbf16>
      %cst_10 = arith.constant dense<0.000000e+00> : vector<128x256xf32>
      %14 = tpu.matmul %11, %13, %cst_10 {dimension_numbers = #tpu.dot_dimension_numbers<[1], [0], [0], [1], [0, 0, 1, 1], [], []>} : vector<128x256xbf16>, vector<256x256xbf16>, vector<128x256xf32> -> vector<128x256xf32>
      %15 = arith.addf %9, %14 : vector<128x256xf32>
      %c0_11 = arith.constant 0 : index
      %c0_12 = arith.constant 0 : index
      %c1 = arith.constant 1 : index
      %c0_13 = arith.constant 0 : index
      %16 = vector.load %arg8[%c0_11, %c0_12, %c1, %c0_13] : memref<2x10x16x256xbf16, #tpu.memory_space<vmem>>, vector<2x8x8x256xbf16>
      %17 = vector.shape_cast %16 : vector<2x8x8x256xbf16> to vector<128x256xbf16>
      %c0_14 = arith.constant 0 : index
      %c256 = arith.constant 256 : index
      %c0_15 = arith.constant 0 : index
      %18 = vector.load %arg3[%c0_14, %c256, %c0_15] : memref<1x2304x256xbf16, #tpu.memory_space<vmem>>, vector<1x256x256xbf16>
      %19 = vector.shape_cast %18 : vector<1x256x256xbf16> to vector<256x256xbf16>
      %cst_16 = arith.constant dense<0.000000e+00> : vector<128x256xf32>
      %20 = tpu.matmul %17, %19, %cst_16 {dimension_numbers = #tpu.dot_dimension_numbers<[1], [0], [0], [1], [0, 0, 1, 1], [], []>} : vector<128x256xbf16>, vector<256x256xbf16>, vector<128x256xf32> -> vector<128x256xf32>
      %21 = arith.addf %15, %20 : vector<128x256xf32>
      %c0_17 = arith.constant 0 : index
      %c0_18 = arith.constant 0 : index
      %c2 = arith.constant 2 : index
      %c0_19 = arith.constant 0 : index
      %22 = vector.load %arg8[%c0_17, %c0_18, %c2, %c0_19] : memref<2x10x16x256xbf16, #tpu.memory_space<vmem>>, vector<2x8x8x256xbf16>
      %23 = vector.shape_cast %22 : vector<2x8x8x256xbf16> to vector<128x256xbf16>
      %c0_20 = arith.constant 0 : index
      %c512 = arith.constant 512 : index
      %c0_21 = arith.constant 0 : index
      %24 = vector.load %arg3[%c0_20, %c512, %c0_21] : memref<1x2304x256xbf16, #tpu.memory_space<vmem>>, vector<1x256x256xbf16>
      %25 = vector.shape_cast %24 : vector<1x256x256xbf16> to vector<256x256xbf16>
      %cst_22 = arith.constant dense<0.000000e+00> : vector<128x256xf32>
      %26 = tpu.matmul %23, %25, %cst_22 {dimension_numbers = #tpu.dot_dimension_numbers<[1], [0], [0], [1], [0, 0, 1, 1], [], []>} : vector<128x256xbf16>, vector<256x256xbf16>, vector<128x256xf32> -> vector<128x256xf32>
      %27 = arith.addf %21, %26 : vector<128x256xf32>
      %c0_23 = arith.constant 0 : index
      %c1_24 = arith.constant 1 : index
      %c0_25 = arith.constant 0 : index
      %c0_26 = arith.constant 0 : index
      %28 = vector.load %arg8[%c0_23, %c1_24, %c0_25, %c0_26] : memref<2x10x16x256xbf16, #tpu.memory_space<vmem>>, vector<2x8x8x256xbf16>
      %29 = vector.shape_cast %28 : vector<2x8x8x256xbf16> to vector<128x256xbf16>
      %c0_27 = arith.constant 0 : index
      %c768 = arith.constant 768 : index
      %c0_28 = arith.constant 0 : index
      %30 = vector.load %arg3[%c0_27, %c768, %c0_28] : memref<1x2304x256xbf16, #tpu.memory_space<vmem>>, vector<1x256x256xbf16>
      %31 = vector.shape_cast %30 : vector<1x256x256xbf16> to vector<256x256xbf16>
      %cst_29 = arith.constant dense<0.000000e+00> : vector<128x256xf32>
      %32 = tpu.matmul %29, %31, %cst_29 {dimension_numbers = #tpu.dot_dimension_numbers<[1], [0], [0], [1], [0, 0, 1, 1], [], []>} : vector<128x256xbf16>, vector<256x256xbf16>, vector<128x256xf32> -> vector<128x256xf32>
      %33 = arith.addf %27, %32 : vector<128x256xf32>
      %c0_30 = arith.constant 0 : index
      %c1_31 = arith.constant 1 : index
      %c1_32 = arith.constant 1 : index
      %c0_33 = arith.constant 0 : index
      %34 = vector.load %arg8[%c0_30, %c1_31, %c1_32, %c0_33] : memref<2x10x16x256xbf16, #tpu.memory_space<vmem>>, vector<2x8x8x256xbf16>
      %35 = vector.shape_cast %34 : vector<2x8x8x256xbf16> to vector<128x256xbf16>
      %c0_34 = arith.constant 0 : index
      %c1024 = arith.constant 1024 : index
      %c0_35 = arith.constant 0 : index
      %36 = vector.load %arg3[%c0_34, %c1024, %c0_35] : memref<1x2304x256xbf16, #tpu.memory_space<vmem>>, vector<1x256x256xbf16>
      %37 = vector.shape_cast %36 : vector<1x256x256xbf16> to vector<256x256xbf16>
      %cst_36 = arith.constant dense<0.000000e+00> : vector<128x256xf32>
      %38 = tpu.matmul %35, %37, %cst_36 {dimension_numbers = #tpu.dot_dimension_numbers<[1], [0], [0], [1], [0, 0, 1, 1], [], []>} : vector<128x256xbf16>, vector<256x256xbf16>, vector<128x256xf32> -> vector<128x256xf32>
      %39 = arith.addf %33, %38 : vector<128x256xf32>
      %c0_37 = arith.constant 0 : index
      %c1_38 = arith.constant 1 : index
      %c2_39 = arith.constant 2 : index
      %c0_40 = arith.constant 0 : index
      %40 = vector.load %arg8[%c0_37, %c1_38, %c2_39, %c0_40] : memref<2x10x16x256xbf16, #tpu.memory_space<vmem>>, vector<2x8x8x256xbf16>
      %41 = vector.shape_cast %40 : vector<2x8x8x256xbf16> to vector<128x256xbf16>
      %c0_41 = arith.constant 0 : index
      %c1280 = arith.constant 1280 : index
      %c0_42 = arith.constant 0 : index
      %42 = vector.load %arg3[%c0_41, %c1280, %c0_42] : memref<1x2304x256xbf16, #tpu.memory_space<vmem>>, vector<1x256x256xbf16>
      %43 = vector.shape_cast %42 : vector<1x256x256xbf16> to vector<256x256xbf16>
      %cst_43 = arith.constant dense<0.000000e+00> : vector<128x256xf32>
      %44 = tpu.matmul %41, %43, %cst_43 {dimension_numbers = #tpu.dot_dimension_numbers<[1], [0], [0], [1], [0, 0, 1, 1], [], []>} : vector<128x256xbf16>, vector<256x256xbf16>, vector<128x256xf32> -> vector<128x256xf32>
      %45 = arith.addf %39, %44 : vector<128x256xf32>
      %c0_44 = arith.constant 0 : index
      %c2_45 = arith.constant 2 : index
      %c0_46 = arith.constant 0 : index
      %c0_47 = arith.constant 0 : index
      %46 = vector.load %arg8[%c0_44, %c2_45, %c0_46, %c0_47] : memref<2x10x16x256xbf16, #tpu.memory_space<vmem>>, vector<2x8x8x256xbf16>
      %47 = vector.shape_cast %46 : vector<2x8x8x256xbf16> to vector<128x256xbf16>
      %c0_48 = arith.constant 0 : index
      %c1536 = arith.constant 1536 : index
      %c0_49 = arith.constant 0 : index
      %48 = vector.load %arg3[%c0_48, %c1536, %c0_49] : memref<1x2304x256xbf16, #tpu.memory_space<vmem>>, vector<1x256x256xbf16>
      %49 = vector.shape_cast %48 : vector<1x256x256xbf16> to vector<256x256xbf16>
      %cst_50 = arith.constant dense<0.000000e+00> : vector<128x256xf32>
      %50 = tpu.matmul %47, %49, %cst_50 {dimension_numbers = #tpu.dot_dimension_numbers<[1], [0], [0], [1], [0, 0, 1, 1], [], []>} : vector<128x256xbf16>, vector<256x256xbf16>, vector<128x256xf32> -> vector<128x256xf32>
      %51 = arith.addf %45, %50 : vector<128x256xf32>
      %c0_51 = arith.constant 0 : index
      %c2_52 = arith.constant 2 : index
      %c1_53 = arith.constant 1 : index
      %c0_54 = arith.constant 0 : index
      %52 = vector.load %arg8[%c0_51, %c2_52, %c1_53, %c0_54] : memref<2x10x16x256xbf16, #tpu.memory_space<vmem>>, vector<2x8x8x256xbf16>
      %53 = vector.shape_cast %52 : vector<2x8x8x256xbf16> to vector<128x256xbf16>
      %c0_55 = arith.constant 0 : index
      %c1792 = arith.constant 1792 : index
      %c0_56 = arith.constant 0 : index
      %54 = vector.load %arg3[%c0_55, %c1792, %c0_56] : memref<1x2304x256xbf16, #tpu.memory_space<vmem>>, vector<1x256x256xbf16>
      %55 = vector.shape_cast %54 : vector<1x256x256xbf16> to vector<256x256xbf16>
      %cst_57 = arith.constant dense<0.000000e+00> : vector<128x256xf32>
      %56 = tpu.matmul %53, %55, %cst_57 {dimension_numbers = #tpu.dot_dimension_numbers<[1], [0], [0], [1], [0, 0, 1, 1], [], []>} : vector<128x256xbf16>, vector<256x256xbf16>, vector<128x256xf32> -> vector<128x256xf32>
      %57 = arith.addf %51, %56 : vector<128x256xf32>
      %c0_58 = arith.constant 0 : index
      %c2_59 = arith.constant 2 : index
      %c2_60 = arith.constant 2 : index
      %c0_61 = arith.constant 0 : index
      %58 = vector.load %arg8[%c0_58, %c2_59, %c2_60, %c0_61] : memref<2x10x16x256xbf16, #tpu.memory_space<vmem>>, vector<2x8x8x256xbf16>
      %59 = vector.shape_cast %58 : vector<2x8x8x256xbf16> to vector<128x256xbf16>
      %c0_62 = arith.constant 0 : index
      %c2048 = arith.constant 2048 : index
      %c0_63 = arith.constant 0 : index
      %60 = vector.load %arg3[%c0_62, %c2048, %c0_63] : memref<1x2304x256xbf16, #tpu.memory_space<vmem>>, vector<1x256x256xbf16>
      %61 = vector.shape_cast %60 : vector<1x256x256xbf16> to vector<256x256xbf16>
      %cst_64 = arith.constant dense<0.000000e+00> : vector<128x256xf32>
      %62 = tpu.matmul %59, %61, %cst_64 {dimension_numbers = #tpu.dot_dimension_numbers<[1], [0], [0], [1], [0, 0, 1, 1], [], []>} : vector<128x256xbf16>, vector<256x256xbf16>, vector<128x256xf32> -> vector<128x256xf32>
      %63 = arith.addf %57, %62 : vector<128x256xf32>
      %c0_65 = arith.constant 0 : index
      %c0_66 = arith.constant 0 : index
      %c0_67 = arith.constant 0 : index
      %64 = vector.load %arg4[%c0_65, %c0_66, %c0_67] : memref<1x1x256xf32, #tpu.memory_space<vmem>>, vector<1x1x256xf32>
      %65 = vector.shape_cast %64 : vector<1x1x256xf32> to vector<1x256xf32>
      %66 = vector.broadcast %65 : vector<1x256xf32> to vector<128x256xf32>
      %67 = arith.addf %63, %66 : vector<128x256xf32>
      %cst_68 = arith.constant 0.000000e+00 : f32
      %68 = vector.broadcast %cst_68 : f32 to vector<128x256xf32>
      %69 = arith.maximumf %67, %68 : vector<128x256xf32>
      %70 = vector.shape_cast %69 : vector<128x256xf32> to vector<2x8x8x256xf32>
      %71 = arith.truncf %70 : vector<2x8x8x256xf32> to vector<2x8x8x256xbf16>
      %c0_69 = arith.constant 0 : index
      %c1_70 = arith.constant 1 : index
      %c1_71 = arith.constant 1 : index
      %c0_72 = arith.constant 0 : index
      %72 = vector.load %arg8[%c0_69, %c1_70, %c1_71, %c0_72] : memref<2x10x16x256xbf16, #tpu.memory_space<vmem>>, vector<2x8x8x256xbf16>
      tpu.vector_store %arg8[%c0_69, %c1_70, %c1_71, %c0_72], %71 {strides = array<i32>} : memref<2x10x16x256xbf16, #tpu.memory_space<vmem>>, vector<2x8x8x256xbf16>,
    } else {
    }
    %c4_i32_2 = arith.constant 4 : i32
    %6 = arith.cmpi eq, %arg1, %c4_i32_2 : i32
    %7 = arith.extui %6 : i1 to i32
    %c0_i32_3 = arith.constant 0 : i32
    %8 = arith.cmpi ne, %7, %c0_i32_3 : i32
    scf.if %8 {
      %cst = arith.constant 0.000000e+00 : f32
      %9 = vector.broadcast %cst : f32 to vector<128x128xf32>
      %c0 = arith.constant 0 : index
      %c0_4 = arith.constant 0 : index
      %c0_5 = arith.constant 0 : index
      %c0_6 = arith.constant 0 : index
      %10 = vector.load %arg8[%c0, %c0_4, %c0_5, %c0_6] : memref<2x10x16x256xbf16, #tpu.memory_space<vmem>>, vector<2x8x8x256xbf16>
      %11 = vector.shape_cast %10 : vector<2x8x8x256xbf16> to vector<128x256xbf16>
      %c0_7 = arith.constant 0 : index
      %c0_8 = arith.constant 0 : index
      %12 = vector.load %arg5[%c0_7, %c0_8] : memref<2304x128xbf16, #tpu.memory_space<vmem>>, vector<256x128xbf16>
      %cst_9 = arith.constant dense<0.000000e+00> : vector<128x128xf32>
      %13 = tpu.matmul %11, %12, %cst_9 {dimension_numbers = #tpu.dot_dimension_numbers<[1], [0], [0], [1], [0, 0, 1, 1], [], []>} : vector<128x256xbf16>, vector<256x128xbf16>, vector<128x128xf32> -> vector<128x128xf32>
      %14 = arith.addf %9, %13 : vector<128x128xf32>
      %c0_10 = arith.constant 0 : index
      %c0_11 = arith.constant 0 : index
      %c1 = arith.constant 1 : index
      %c0_12 = arith.constant 0 : index
      %15 = vector.load %arg8[%c0_10, %c0_11, %c1, %c0_12] : memref<2x10x16x256xbf16, #tpu.memory_space<vmem>>, vector<2x8x8x256xbf16>
      %16 = vector.shape_cast %15 : vector<2x8x8x256xbf16> to vector<128x256xbf16>
      %c256 = arith.constant 256 : index
      %c0_13 = arith.constant 0 : index
      %17 = vector.load %arg5[%c256, %c0_13] : memref<2304x128xbf16, #tpu.memory_space<vmem>>, vector<256x128xbf16>
      %cst_14 = arith.constant dense<0.000000e+00> : vector<128x128xf32>
      %18 = tpu.matmul %16, %17, %cst_14 {dimension_numbers = #tpu.dot_dimension_numbers<[1], [0], [0], [1], [0, 0, 1, 1], [], []>} : vector<128x256xbf16>, vector<256x128xbf16>, vector<128x128xf32> -> vector<128x128xf32>
      %19 = arith.addf %14, %18 : vector<128x128xf32>
      %c0_15 = arith.constant 0 : index
      %c0_16 = arith.constant 0 : index
      %c2 = arith.constant 2 : index
      %c0_17 = arith.constant 0 : index
      %20 = vector.load %arg8[%c0_15, %c0_16, %c2, %c0_17] : memref<2x10x16x256xbf16, #tpu.memory_space<vmem>>, vector<2x8x8x256xbf16>
      %21 = vector.shape_cast %20 : vector<2x8x8x256xbf16> to vector<128x256xbf16>
      %c512 = arith.constant 512 : index
      %c0_18 = arith.constant 0 : index
      %22 = vector.load %arg5[%c512, %c0_18] : memref<2304x128xbf16, #tpu.memory_space<vmem>>, vector<256x128xbf16>
      %cst_19 = arith.constant dense<0.000000e+00> : vector<128x128xf32>
      %23 = tpu.matmul %21, %22, %cst_19 {dimension_numbers = #tpu.dot_dimension_numbers<[1], [0], [0], [1], [0, 0, 1, 1], [], []>} : vector<128x256xbf16>, vector<256x128xbf16>, vector<128x128xf32> -> vector<128x128xf32>
      %24 = arith.addf %19, %23 : vector<128x128xf32>
      %c0_20 = arith.constant 0 : index
      %c1_21 = arith.constant 1 : index
      %c0_22 = arith.constant 0 : index
      %c0_23 = arith.constant 0 : index
      %25 = vector.load %arg8[%c0_20, %c1_21, %c0_22, %c0_23] : memref<2x10x16x256xbf16, #tpu.memory_space<vmem>>, vector<2x8x8x256xbf16>
      %26 = vector.shape_cast %25 : vector<2x8x8x256xbf16> to vector<128x256xbf16>
      %c768 = arith.constant 768 : index
      %c0_24 = arith.constant 0 : index
      %27 = vector.load %arg5[%c768, %c0_24] : memref<2304x128xbf16, #tpu.memory_space<vmem>>, vector<256x128xbf16>
      %cst_25 = arith.constant dense<0.000000e+00> : vector<128x128xf32>
      %28 = tpu.matmul %26, %27, %cst_25 {dimension_numbers = #tpu.dot_dimension_numbers<[1], [0], [0], [1], [0, 0, 1, 1], [], []>} : vector<128x256xbf16>, vector<256x128xbf16>, vector<128x128xf32> -> vector<128x128xf32>
      %29 = arith.addf %24, %28 : vector<128x128xf32>
      %c0_26 = arith.constant 0 : index
      %c1_27 = arith.constant 1 : index
      %c1_28 = arith.constant 1 : index
      %c0_29 = arith.constant 0 : index
      %30 = vector.load %arg8[%c0_26, %c1_27, %c1_28, %c0_29] : memref<2x10x16x256xbf16, #tpu.memory_space<vmem>>, vector<2x8x8x256xbf16>
      %31 = vector.shape_cast %30 : vector<2x8x8x256xbf16> to vector<128x256xbf16>
      %c1024 = arith.constant 1024 : index
      %c0_30 = arith.constant 0 : index
      %32 = vector.load %arg5[%c1024, %c0_30] : memref<2304x128xbf16, #tpu.memory_space<vmem>>, vector<256x128xbf16>
      %cst_31 = arith.constant dense<0.000000e+00> : vector<128x128xf32>
      %33 = tpu.matmul %31, %32, %cst_31 {dimension_numbers = #tpu.dot_dimension_numbers<[1], [0], [0], [1], [0, 0, 1, 1], [], []>} : vector<128x256xbf16>, vector<256x128xbf16>, vector<128x128xf32> -> vector<128x128xf32>
      %34 = arith.addf %29, %33 : vector<128x128xf32>
      %c0_32 = arith.constant 0 : index
      %c1_33 = arith.constant 1 : index
      %c2_34 = arith.constant 2 : index
      %c0_35 = arith.constant 0 : index
      %35 = vector.load %arg8[%c0_32, %c1_33, %c2_34, %c0_35] : memref<2x10x16x256xbf16, #tpu.memory_space<vmem>>, vector<2x8x8x256xbf16>
      %36 = vector.shape_cast %35 : vector<2x8x8x256xbf16> to vector<128x256xbf16>
      %c1280 = arith.constant 1280 : index
      %c0_36 = arith.constant 0 : index
      %37 = vector.load %arg5[%c1280, %c0_36] : memref<2304x128xbf16, #tpu.memory_space<vmem>>, vector<256x128xbf16>
      %cst_37 = arith.constant dense<0.000000e+00> : vector<128x128xf32>
      %38 = tpu.matmul %36, %37, %cst_37 {dimension_numbers = #tpu.dot_dimension_numbers<[1], [0], [0], [1], [0, 0, 1, 1], [], []>} : vector<128x256xbf16>, vector<256x128xbf16>, vector<128x128xf32> -> vector<128x128xf32>
      %39 = arith.addf %34, %38 : vector<128x128xf32>
      %c0_38 = arith.constant 0 : index
      %c2_39 = arith.constant 2 : index
      %c0_40 = arith.constant 0 : index
      %c0_41 = arith.constant 0 : index
      %40 = vector.load %arg8[%c0_38, %c2_39, %c0_40, %c0_41] : memref<2x10x16x256xbf16, #tpu.memory_space<vmem>>, vector<2x8x8x256xbf16>
      %41 = vector.shape_cast %40 : vector<2x8x8x256xbf16> to vector<128x256xbf16>
      %c1536 = arith.constant 1536 : index
      %c0_42 = arith.constant 0 : index
      %42 = vector.load %arg5[%c1536, %c0_42] : memref<2304x128xbf16, #tpu.memory_space<vmem>>, vector<256x128xbf16>
      %cst_43 = arith.constant dense<0.000000e+00> : vector<128x128xf32>
      %43 = tpu.matmul %41, %42, %cst_43 {dimension_numbers = #tpu.dot_dimension_numbers<[1], [0], [0], [1], [0, 0, 1, 1], [], []>} : vector<128x256xbf16>, vector<256x128xbf16>, vector<128x128xf32> -> vector<128x128xf32>
      %44 = arith.addf %39, %43 : vector<128x128xf32>
      %c0_44 = arith.constant 0 : index
      %c2_45 = arith.constant 2 : index
      %c1_46 = arith.constant 1 : index
      %c0_47 = arith.constant 0 : index
      %45 = vector.load %arg8[%c0_44, %c2_45, %c1_46, %c0_47] : memref<2x10x16x256xbf16, #tpu.memory_space<vmem>>, vector<2x8x8x256xbf16>
      %46 = vector.shape_cast %45 : vector<2x8x8x256xbf16> to vector<128x256xbf16>
      %c1792 = arith.constant 1792 : index
      %c0_48 = arith.constant 0 : index
      %47 = vector.load %arg5[%c1792, %c0_48] : memref<2304x128xbf16, #tpu.memory_space<vmem>>, vector<256x128xbf16>
      %cst_49 = arith.constant dense<0.000000e+00> : vector<128x128xf32>
      %48 = tpu.matmul %46, %47, %cst_49 {dimension_numbers = #tpu.dot_dimension_numbers<[1], [0], [0], [1], [0, 0, 1, 1], [], []>} : vector<128x256xbf16>, vector<256x128xbf16>, vector<128x128xf32> -> vector<128x128xf32>
      %49 = arith.addf %44, %48 : vector<128x128xf32>
      %c0_50 = arith.constant 0 : index
      %c2_51 = arith.constant 2 : index
      %c2_52 = arith.constant 2 : index
      %c0_53 = arith.constant 0 : index
      %50 = vector.load %arg8[%c0_50, %c2_51, %c2_52, %c0_53] : memref<2x10x16x256xbf16, #tpu.memory_space<vmem>>, vector<2x8x8x256xbf16>
      %51 = vector.shape_cast %50 : vector<2x8x8x256xbf16> to vector<128x256xbf16>
      %c2048 = arith.constant 2048 : index
      %c0_54 = arith.constant 0 : index
      %52 = vector.load %arg5[%c2048, %c0_54] : memref<2304x128xbf16, #tpu.memory_space<vmem>>, vector<256x128xbf16>
      %cst_55 = arith.constant dense<0.000000e+00> : vector<128x128xf32>
      %53 = tpu.matmul %51, %52, %cst_55 {dimension_numbers = #tpu.dot_dimension_numbers<[1], [0], [0], [1], [0, 0, 1, 1], [], []>} : vector<128x256xbf16>, vector<256x128xbf16>, vector<128x128xf32> -> vector<128x128xf32>
      %54 = arith.addf %49, %53 : vector<128x128xf32>
      %c0_56 = arith.constant 0 : index
      %c0_57 = arith.constant 0 : index
      %55 = vector.load %arg6[%c0_56, %c0_57] : memref<1x128xf32, #tpu.memory_space<vmem>>, vector<1x128xf32>
      %56 = vector.broadcast %55 : vector<1x128xf32> to vector<128x128xf32>
      %57 = arith.addf %54, %56 : vector<128x128xf32>
      %c0_58 = arith.constant 0 : index
      %c0_59 = arith.constant 0 : index
      %58 = vector.load %arg7[%c0_58, %c0_59] : memref<128x128xf32, #tpu.memory_space<vmem>>, vector<128x128xf32>
      tpu.vector_store %arg7[%c0_58, %c0_59], %57 {strides = array<i32>} : memref<128x128xf32, #tpu.memory_space<vmem>>, vector<128x128xf32>,
    } else {
    }
    return
  }
  func.func @transform_0(%arg0: i32, %arg1: i32) -> (i32, i32, i32, i32) {
    %c0_i32 = arith.constant 0 : i32
    %c0_i32_0 = arith.constant 0 : i32
    %c0_i32_1 = arith.constant 0 : i32
    %c0_i32_2 = arith.constant 0 : i32
    return %arg0, %c0_i32, %c0_i32_0, %c0_i32_1 : i32, i32, i32, i32
  }
  func.func @transform_1(%arg0: i32, %arg1: i32) -> (i32, i32, i32) {
    %c3_i32 = arith.constant 3 : i32
    %0 = arith.minsi %arg1, %c3_i32 : i32
    %c0_i32 = arith.constant 0 : i32
    %c0_i32_0 = arith.constant 0 : i32
    %c0_i32_1 = arith.constant 0 : i32
    return %0, %c0_i32, %c0_i32_0 : i32, i32, i32
  }
  func.func @transform_2(%arg0: i32, %arg1: i32) -> (i32, i32, i32) {
    %c3_i32 = arith.constant 3 : i32
    %0 = arith.minsi %arg1, %c3_i32 : i32
    %c0_i32 = arith.constant 0 : i32
    %c0_i32_0 = arith.constant 0 : i32
    %c0_i32_1 = arith.constant 0 : i32
    return %0, %c0_i32, %c0_i32_0 : i32, i32, i32
  }
  func.func @transform_3(%arg0: i32, %arg1: i32) -> (i32, i32) {
    %c0_i32 = arith.constant 0 : i32
    %c0_i32_0 = arith.constant 0 : i32
    %c0_i32_1 = arith.constant 0 : i32
    return %c0_i32, %c0_i32_0 : i32, i32
  }
  func.func @transform_4(%arg0: i32, %arg1: i32) -> (i32, i32) {
    %c0_i32 = arith.constant 0 : i32
    %c0_i32_0 = arith.constant 0 : i32
    %c0_i32_1 = arith.constant 0 : i32
    return %c0_i32, %c0_i32_0 : i32, i32
  }
  func.func @transform_5(%arg0: i32, %arg1: i32) -> (i32, i32) {
    %c0_i32 = arith.constant 0 : i32
    %c0_i32_0 = arith.constant 0 : i32
    return %arg0, %c0_i32 : i32, i32
  }
}

</mosaic_0001>

<llo_original>
// kernel: tpu_custom_call.1
$region0: #{tpu_custom_call.1}
  #allocation0 [shape = 'u32[]', space=smem, size = 0x4, offset = 0x4, fixed_abs, tag = 'smem constant byte address 0x4 - core index']
  #allocation1 [shape = 'u32[144,128]{1,0:T(1,128)}', space=vmem, size = 0x12000, scoped, tag = 'internal scratch']
  #allocation2 [shape = 'bf16[2,10,16,256]{3,2,1,0:T(16,128)(2,1)}', space=vmem, size = 0x28000, scoped, tag = 'scratch operand']
  %s0 = inlined_call_operand.hbm [shape: f32[2,8,8,256], index: 0, kind: input, shape index: {}]
  %s1 = inlined_call_operand.hbm [shape: bf16[4,2304,256], index: 1, kind: input, shape index: {}]
  %s2 = inlined_call_operand.hbm [shape: f32[4,1,256], index: 2, kind: input, shape index: {}]
  %s3 = inlined_call_operand.hbm [shape: bf16[2304,128], index: 3, kind: input, shape index: {}]
  %s4 = inlined_call_operand.hbm [shape: f32[1,128], index: 4, kind: input, shape index: {}]
  %s5 = inlined_call_operand.hbm [shape: f32[128,128], index: 5, kind: output, shape index: {}]
  %s6 = sld [smem:[#allocation0]]
  $region85: #{tpu_custom_call.1} parent=0
    _
  %s8 = ssub.s32 1, %s6
  %s9 = scalar_select 0, %s8, %s6
  $region1: #{tpu_custom_call.1} parent=0
    #allocation3 [shape = 'u8[131072]{0}', space=vmem, size = 0x20000, scoped, tag = 'input window, operand 0, single buffered']
    #allocation4 [shape = 's32[2]{0}', space=sflag, size = 0x8, scoped, tag = 'scoped memory for tpu_custom_call.1']
    #allocation5 [shape = 's32[2]{0}', space=sflag, size = 0x8, scoped, tag = 'scoped memory for tpu_custom_call.1']
    #allocation6 [shape = 'u8[2359296]{0}', space=vmem, size = 0x240000, scoped, tag = 'input window, operand 1']
    #allocation7 [shape = 's32[2]{0}', space=sflag, size = 0x8, scoped, tag = 'scoped memory for tpu_custom_call.1']
    #allocation8 [shape = 'u8[2048]{0}', space=vmem, size = 0x800, scoped, tag = 'input window, operand 2']
    #allocation9 [shape = 'u8[589824]{0}', space=vmem, size = 0x90000, scoped, tag = 'input window, operand 3, single buffered']
    #allocation10 [shape = 's32[1]{0}', space=sflag, size = 0x4, scoped, tag = 'scoped memory for tpu_custom_call.1']
    #allocation11 [shape = 'u8[512]{0}', space=vmem, size = 0x400, scoped, tag = 'input window, operand 4, single buffered']
    #allocation12 [shape = 'u8[65536]{0}', space=vmem, size = 0x10000, scoped, tag = 'output window, operand 0, single buffered']
    %10 = vsyncpa [#allocation4], 0
    %11 = vsyncpa [#allocation7], 0
    %s12 = scalar_lea.sflag [#allocation7], 1
    %13 = vsyncpa %s12, 0
    %14 = vsyncpa [#allocation10], 0
    %15 = vsyncpa [#allocation5], 0
    loop: start=0, step=1, limit=7
    $region2: #{tpu_custom_call.1} parent=1 // loop_pre_header
      _
    $region3: #{tpu_custom_call.1} parent=1 // loop_header
      %s17 = sphi 0, %s21
      %p18 = scmp.ge.s32.totalorder %s17, 7
      %s24 = sphi 0, %s36
      %s25 = sphi 0, %s32
      %s26 = sphi 0, %s24
      %s27 = sphi 0, %s25
      %s28 = sphi 0, %s26
      %s29 = sphi 0, %s27
      %s39 = sphi 0, %s41
      %s42 = sphi 0, %s39
      %s43 = sphi 0, %s42
      %s59 = sphi 0, %s43
      %s69 = sphi 0, %s71
      %s72 = sphi 0, %s69
      %s73 = sphi 0, %s72
      %s89 = sphi 0, %s73
      %s99 = sphi 0, %s101
      %s102 = sphi 0, %s99
      %s103 = sphi 0, %s102
      %s119 = sphi 0, %s103
      %s123 = sphi 0, %s123
      %s125 = sphi 0, %s123
      %s126 = sphi 0, %s125
      %s140 = sphi 0, %s126
      %s144 = sphi 0, %s144
      %s146 = sphi 0, %s144
      %s147 = sphi 0, %s146
      %s161 = sphi 0, %s147
      %s167 = sphi 0, %s169
      %s170 = sphi 0, %s167
      %s171 = sphi 0, %s170
      %s187 = sphi 0, %s171
    $region4: #{tpu_custom_call.1} parent=1 // loop_header_branch
      %20 = sbr.rel (%p18) target = $region8
    $region5: #{tpu_custom_call.1} parent=1 // loop_body
      %s22 = ssub.s32 %s17, 1
      %s23 = ssub.s32 %s17, 2
      %s30 = sadd.s32 1, %s25
      %p31 = scmp.ge.s32.totalorder %s30, 5
      %s32 = scalar_select %p31, 0, %s30
      %s33 = sadd.s32 1, %s24
      %s34 = scalar_select %p31, %s33, %s24
      %p35 = scmp.ge.s32.totalorder %s34, 1
      %s36 = scalar_select %p35, 0, %s34
      %s37 = ssub.s32 %s24, %s36
      %p38 = scmp.eq.s32.totalorder %s37, 0
      %s40 = sadd.s32 %s39, 1
      %s41 = scalar_select %p38, %s39, %s40
      %p44 = pneg %p38
      %p45 = scmp.eq.s32.totalorder %s17, 4
      %p46 = por %p44, %p45
      %p47 = scmp.ne.s32.totalorder %s39, %s42
      %p48 = scmp.eq.s32.totalorder %s17, 0
      %p49 = por %p47, %p48
      %p50 = scmp.ne.s32.totalorder %s39, %s42
      %p51 = scmp.eq.s32.totalorder %s22, 4
      %p52 = por %p50, %p51
      %p53 = scmp.ne.s32.totalorder %s42, %s43
      %p54 = scmp.eq.s32.totalorder %s22, 0
      %p55 = por %p53, %p54
      %p56 = scmp.ne.s32.totalorder %s42, %s43
      %p57 = scmp.eq.s32.totalorder %s23, 4
      %p58 = por %p56, %p57
      %p60 = scmp.ne.s32.totalorder %s43, %s59
      %p61 = scmp.eq.s32.totalorder %s23, 0
      %p62 = por %p60, %p61
      %p63 = scmp.lt.s32.totalorder %s25, 3
      %s64 = scalar_select %p63, %s25, 3
      %p65 = scmp.lt.s32.totalorder %s32, 3
      %s66 = scalar_select %p65, %s32, 3
      %s67 = ssub.s32 %s64, %s66
      %p68 = scmp.eq.s32.totalorder %s67, 0
      %s70 = sadd.s32 %s69, 1
      %s71 = scalar_select %p68, %s69, %s70
      %p74 = pneg %p68
      %p75 = scmp.eq.s32.totalorder %s17, 4
      %p76 = por %p74, %p75
      %p77 = scmp.ne.s32.totalorder %s69, %s72
      %p78 = scmp.eq.s32.totalorder %s17, 0
      %p79 = por %p77, %p78
      %p80 = scmp.ne.s32.totalorder %s69, %s72
      %p81 = scmp.eq.s32.totalorder %s22, 4
      %p82 = por %p80, %p81
      %p83 = scmp.ne.s32.totalorder %s72, %s73
      %p84 = scmp.eq.s32.totalorder %s22, 0
      %p85 = por %p83, %p84
      %p86 = scmp.ne.s32.totalorder %s72, %s73
      %p87 = scmp.eq.s32.totalorder %s23, 4
      %p88 = por %p86, %p87
      %p90 = scmp.ne.s32.totalorder %s73, %s89
      %p91 = scmp.eq.s32.totalorder %s23, 0
      %p92 = por %p90, %p91
      %p93 = scmp.lt.s32.totalorder %s25, 3
      %s94 = scalar_select %p93, %s25, 3
      %p95 = scmp.lt.s32.totalorder %s32, 3
      %s96 = scalar_select %p95, %s32, 3
      %s97 = ssub.s32 %s94, %s96
      %p98 = scmp.eq.s32.totalorder %s97, 0
      %s100 = sadd.s32 %s99, 1
      %s101 = scalar_select %p98, %s99, %s100
      %p104 = pneg %p98
      %p105 = scmp.eq.s32.totalorder %s17, 4
      %p106 = por %p104, %p105
      %p107 = scmp.ne.s32.totalorder %s99, %s102
      %p108 = scmp.eq.s32.totalorder %s17, 0
      %p109 = por %p107, %p108
      %p110 = scmp.ne.s32.totalorder %s99, %s102
      %p111 = scmp.eq.s32.totalorder %s22, 4
      %p112 = por %p110, %p111
      %p113 = scmp.ne.s32.totalorder %s102, %s103
      %p114 = scmp.eq.s32.totalorder %s22, 0
      %p115 = por %p113, %p114
      %p116 = scmp.ne.s32.totalorder %s102, %s103
      %p117 = scmp.eq.s32.totalorder %s23, 4
      %p118 = por %p116, %p117
      %p120 = scmp.ne.s32.totalorder %s103, %s119
      %p121 = scmp.eq.s32.totalorder %s23, 0
      %p122 = por %p120, %p121
      %s124 = sadd.s32 %s123, 1
      %p127 = scmp.eq.s32.totalorder %s17, 4
      %p128 = scmp.ne.s32.totalorder %s123, %s125
      %p129 = scmp.eq.s32.totalorder %s17, 0
      %p130 = por %p128, %p129
      %p131 = scmp.ne.s32.totalorder %s123, %s125
      %p132 = scmp.eq.s32.totalorder %s22, 4
      %p133 = por %p131, %p132
      %p134 = scmp.ne.s32.totalorder %s125, %s126
      %p135 = scmp.eq.s32.totalorder %s22, 0
      %p136 = por %p134, %p135
      %p137 = scmp.ne.s32.totalorder %s125, %s126
      %p138 = scmp.eq.s32.totalorder %s23, 4
      %p139 = por %p137, %p138
      %p141 = scmp.ne.s32.totalorder %s126, %s140
      %p142 = scmp.eq.s32.totalorder %s23, 0
      %p143 = por %p141, %p142
      %s145 = sadd.s32 %s144, 1
      %p148 = scmp.eq.s32.totalorder %s17, 4
      %p149 = scmp.ne.s32.totalorder %s144, %s146
      %p150 = scmp.eq.s32.totalorder %s17, 0
      %p151 = por %p149, %p150
      %p152 = scmp.ne.s32.totalorder %s144, %s146
      %p153 = scmp.eq.s32.totalorder %s22, 4
      %p154 = por %p152, %p153
      %p155 = scmp.ne.s32.totalorder %s146, %s147
      %p156 = scmp.eq.s32.totalorder %s22, 0
      %p157 = por %p155, %p156
      %p158 = scmp.ne.s32.totalorder %s146, %s147
      %p159 = scmp.eq.s32.totalorder %s23, 4
      %p160 = por %p158, %p159
      %p162 = scmp.ne.s32.totalorder %s147, %s161
      %p163 = scmp.eq.s32.totalorder %s23, 0
      %p164 = por %p162, %p163
      %s165 = ssub.s32 %s24, %s36
      %p166 = scmp.eq.s32.totalorder %s165, 0
      %s168 = sadd.s32 %s167, 1
      %s169 = scalar_select %p166, %s167, %s168
      %p172 = pneg %p166
      %p173 = scmp.eq.s32.totalorder %s17, 4
      %p174 = por %p172, %p173
      %p175 = scmp.ne.s32.totalorder %s167, %s170
      %p176 = scmp.eq.s32.totalorder %s17, 0
      %p177 = por %p175, %p176
      %p178 = scmp.ne.s32.totalorder %s167, %s170
      %p179 = scmp.eq.s32.totalorder %s22, 4
      %p180 = por %p178, %p179
      %p181 = scmp.ne.s32.totalorder %s170, %s171
      %p182 = scmp.eq.s32.totalorder %s22, 0
      %p183 = por %p181, %p182
      %p184 = scmp.ne.s32.totalorder %s170, %s171
      %p185 = scmp.eq.s32.totalorder %s23, 4
      %p186 = por %p184, %p185
      %p188 = scmp.ne.s32.totalorder %s171, %s187
      %p189 = scmp.eq.s32.totalorder %s23, 0
      %p190 = por %p188, %p189
      %p191 = scmp.le.s32.totalorder 1, %s17
      %p192 = scmp.lt.s32.totalorder %s17, 6
      %p193 = pnand %p191, %p192
      %p194 = pneg %p193
      // Predicated region
      $region9: #{tpu_custom_call.1} parent=5 // pred_check
        _
      $region10: #{tpu_custom_call.1} parent=5 // pred_check_branch
        %196 = sbr.rel (%p193) target = $region12
      $region11: #{tpu_custom_call.1} parent=5 // pred_region
        %s197 = ssub.s32 %s17, 1
        // Predicated region
        $region13: #{tpu_custom_call.1} parent=11 // pred_check
          %p198 = pneg %p55
        $region14: #{tpu_custom_call.1} parent=11 // pred_check_branch
          %200 = sbr.rel (%p198) target = $region16
        $region15: #{tpu_custom_call.1} parent=11 // pred_region
          %s201 = smul.u32 2, %s26
          %s203 = ssub.s32 4096, 4096
          %204 = vsyncadd [#allocation4], %s203
          %s205 = smul.addr %s201, 16
          %s206 = smul.addr %s205, 128
          %s207 = scalar_lea.hbm %s0, %s206
          %s208 = sshll.u32 [#allocation3], 4
          %s209 = int_to_ptr.vmem [resolvable:$true] %s208
          %214 = dma.hbm_to_vmem [thread:$0]  %s207, 4096, %s209, [#allocation4], 256, 256, 16
        $region16: #{tpu_custom_call.1} parent=11 // pred_fallthru
          _
        // Predicated region
        $region17: #{tpu_custom_call.1} parent=11 // pred_check
          %p215 = pneg %p136
        $region18: #{tpu_custom_call.1} parent=11 // pred_check_branch
          %217 = sbr.rel (%p215) target = $region20
        $region19: #{tpu_custom_call.1} parent=11 // pred_region
          %s219 = ssub.s32 18432, 18432
          %220 = vsyncadd [#allocation10], %s219
          %s221 = sshll.u32 [#allocation9], 4
          %s222 = int_to_ptr.vmem [resolvable:$true] %s221
          %227 = dma.hbm_to_vmem [thread:$0]  %s3, 18432, %s222, [#allocation10], 64, 64, 4
        $region20: #{tpu_custom_call.1} parent=11 // pred_fallthru
          _
        // Predicated region
        $region21: #{tpu_custom_call.1} parent=11 // pred_check
          %p228 = pneg %p157
        $region22: #{tpu_custom_call.1} parent=11 // pred_check_branch
          %230 = sbr.rel (%p228) target = $region24
        $region23: #{tpu_custom_call.1} parent=11 // pred_region
          %s232 = ssub.s32 16, 16
          %233 = vsyncadd [#allocation10], %s232
          %s235 = sshll.u32 [#allocation11], 4
          %s236 = int_to_ptr.vmem [resolvable:$true] %s235
          %238 = dma.hbm_to_vmem [thread:$0]  %s4, 16, %s236, [#allocation10]
        $region24: #{tpu_custom_call.1} parent=11 // pred_fallthru
          _
      $region12: #{tpu_custom_call.1} parent=5 // pred_fallthru
        _
      %p239 = scmp.lt.s32.totalorder %s17, 5
      // Predicated region
      $region25: #{tpu_custom_call.1} parent=5 // pred_check
        %p240 = pneg %p239
      $region26: #{tpu_custom_call.1} parent=5 // pred_check_branch
        %242 = sbr.rel (%p240) target = $region28
      $region27: #{tpu_custom_call.1} parent=5 // pred_region
        // Predicated region
        $region29: #{tpu_custom_call.1} parent=27 // pred_check
          %p243 = pneg %p79
        $region30: #{tpu_custom_call.1} parent=27 // pred_check_branch
          %245 = sbr.rel (%p243) target = $region32
        $region31: #{tpu_custom_call.1} parent=27 // pred_region
          %s246 = sand.u32 %s17, 1
          %s247 = scalar_lea.sflag [#allocation7], %s246
          %s248 = sand.u32 %s69, 1
          %s249 = smul.addr %s248, 2304
          %s250 = scalar_lea.vmem [#allocation6], %s249
          %p251 = scmp.lt.s32.totalorder %s25, 3
          %s252 = scalar_select %p251, %s25, 3
          %s254 = ssub.s32 36864, 36864
          %255 = vsyncadd %s247, %s254
          %s256 = smul.addr %s252, 576
          %s257 = smul.addr %s256, 64
          %s258 = scalar_lea.hbm %s1, %s257
          %s259 = sshll.u32 %s250, 4
          %s260 = int_to_ptr.vmem [resolvable:$true] %s259
          %265 = dma.hbm_to_vmem [thread:$0]  %s258, 36864, %s260, %s247, 128, 128, 8
        $region32: #{tpu_custom_call.1} parent=27 // pred_fallthru
          _
        // Predicated region
        $region33: #{tpu_custom_call.1} parent=27 // pred_check
          %p266 = pneg %p109
        $region34: #{tpu_custom_call.1} parent=27 // pred_check_branch
          %268 = sbr.rel (%p266) target = $region36
        $region35: #{tpu_custom_call.1} parent=27 // pred_region
          %s269 = sand.u32 %s17, 1
          %s270 = scalar_lea.sflag [#allocation7], %s269
          %s271 = sand.u32 %s99, 1
          %s272 = smul.addr %s271, 2
          %s273 = scalar_lea.vmem [#allocation8], %s272
          %p274 = scmp.lt.s32.totalorder %s25, 3
          %s275 = scalar_select %p274, %s25, 3
          %s277 = ssub.s32 32, 32
          %278 = vsyncadd %s270, %s277
          %s279 = smul.addr %s275, 2
          %s280 = smul.addr %s279, 16
          %s281 = scalar_lea.hbm %s2, %s280
          %s283 = sshll.u32 %s273, 4
          %s284 = int_to_ptr.vmem [resolvable:$true] %s283
          %286 = dma.hbm_to_vmem [thread:$0]  %s281, 32, %s284, %s270
        $region36: #{tpu_custom_call.1} parent=27 // pred_fallthru
          _
      $region28: #{tpu_custom_call.1} parent=5 // pred_fallthru
        _
      %p287 = scmp.le.s32.totalorder 1, %s17
      %p288 = scmp.lt.s32.totalorder %s17, 6
      %p289 = pnand %p287, %p288
      %p290 = pneg %p289
      // Predicated region
      $region37: #{tpu_custom_call.1} parent=5 // pred_check
        _
      $region38: #{tpu_custom_call.1} parent=5 // pred_check_branch
        %292 = sbr.rel (%p289) target = $region40
      $region39: #{tpu_custom_call.1} parent=5 // pred_region
        %s293 = ssub.s32 %s17, 1
        // Predicated region
        $region41: #{tpu_custom_call.1} parent=39 // pred_check
          %p294 = pneg %p55
        $region42: #{tpu_custom_call.1} parent=39 // pred_check_branch
          %296 = sbr.rel (%p294) target = $region44
        $region43: #{tpu_custom_call.1} parent=39 // pred_region
          %297 = dma.done [#allocation4], 4096
        $region44: #{tpu_custom_call.1} parent=39 // pred_fallthru
          _
        %s298 = sand.u32 %s22, 1
        %s299 = scalar_lea.sflag [#allocation7], %s298
        %s300 = sand.u32 %s72, 1
        %s301 = smul.addr %s300, 2304
        %s302 = scalar_lea.vmem [#allocation6], %s301
        // Predicated region
        $region45: #{tpu_custom_call.1} parent=39 // pred_check
          %p303 = pneg %p85
        $region46: #{tpu_custom_call.1} parent=39 // pred_check_branch
          %305 = sbr.rel (%p303) target = $region48
        $region47: #{tpu_custom_call.1} parent=39 // pred_region
          %306 = dma.done %s299, 36864
        $region48: #{tpu_custom_call.1} parent=39 // pred_fallthru
          _
        %s307 = sand.u32 %s22, 1
        %s308 = scalar_lea.sflag [#allocation7], %s307
        %s309 = sand.u32 %s102, 1
        %s310 = smul.addr %s309, 2
        %s311 = scalar_lea.vmem [#allocation8], %s310
        // Predicated region
        $region49: #{tpu_custom_call.1} parent=39 // pred_check
          %p312 = pneg %p115
        $region50: #{tpu_custom_call.1} parent=39 // pred_check_branch
          %314 = sbr.rel (%p312) target = $region52
        $region51: #{tpu_custom_call.1} parent=39 // pred_region
          %315 = dma.done %s308, 32
        $region52: #{tpu_custom_call.1} parent=39 // pred_fallthru
          _
        // Predicated region
        $region53: #{tpu_custom_call.1} parent=39 // pred_check
          %p316 = pneg %p136
        $region54: #{tpu_custom_call.1} parent=39 // pred_check_branch
          %318 = sbr.rel (%p316) target = $region56
        $region55: #{tpu_custom_call.1} parent=39 // pred_region
          %319 = dma.done [#allocation10], 18432
        $region56: #{tpu_custom_call.1} parent=39 // pred_fallthru
          _
        // Predicated region
        $region57: #{tpu_custom_call.1} parent=39 // pred_check
          %p320 = pneg %p157
        $region58: #{tpu_custom_call.1} parent=39 // pred_check_branch
          %322 = sbr.rel (%p320) target = $region60
        $region59: #{tpu_custom_call.1} parent=39 // pred_region
          %323 = dma.done [#allocation10], 16
        $region60: #{tpu_custom_call.1} parent=39 // pred_fallthru
          _
        %p324 = pneg %p55
        %p325 = pneg %p52
        %s326 = sand.u32 %s22, 1
        %s327 = scalar_lea.sflag [#allocation7], %s326
        %s328 = sand.u32 %s72, 1
        %s329 = smul.addr %s328, 2304
        %s330 = scalar_lea.vmem [#allocation6], %s329
        %p331 = pneg %p85
        %p332 = pneg %p82
        %s333 = sand.u32 %s22, 1
        %s334 = scalar_lea.sflag [#allocation7], %s333
        %s335 = sand.u32 %s102, 1
        %s336 = smul.addr %s335, 2
        %s337 = scalar_lea.vmem [#allocation8], %s336
        %p338 = pneg %p115
        %p339 = pneg %p112
        %p340 = pneg %p136
        %p341 = pneg %p133
        %p342 = pneg %p157
        %p343 = pneg %p154
        %p344 = pneg %p183
        %p345 = pneg %p180
        %s346 = smul.u32 2, %s26
        %p347 = scmp.lt.s32.totalorder %s27, 3
        %s348 = scalar_select %p347, %s27, 3
        %p349 = scmp.lt.s32.totalorder %s27, 3
        %s350 = scalar_select %p349, %s27, 3
        %s351 = smul.u32 16, %s26
        %p353 = scmp.eq.s32.totalorder %s27, 0
        // Predicated region
        $region61: #{tpu_custom_call.1} parent=39 // pred_check
          %p354 = pneg %p353
        $region62: #{tpu_custom_call.1} parent=39 // pred_check_branch
          %356 = sbr.rel (%p354) target = $region64
        $region63: #{tpu_custom_call.1} parent=39 // pred_region
          %357 = vst [vmem:[#allocation2] sm:$0xff] 0
          %358 = vst [vmem:[#allocation2 + $0x8] sm:$0xff] 0
          %359 = vst [vmem:[#allocation2 + $0x10] sm:$0xff] 0
          %360 = vst [vmem:[#allocation2 + $0x18] sm:$0xff] 0
          %361 = vst [vmem:[#allocation2 + $0x20] sm:$0xff] 0
          %362 = vst [vmem:[#allocation2 + $0x28] sm:$0xff] 0
          %363 = vst [vmem:[#allocation2 + $0x30] sm:$0xff] 0
          %364 = vst [vmem:[#allocation2 + $0x38] sm:$0xff] 0
          %365 = vst [vmem:[#allocation2 + $0x40] sm:$0xff] 0
          %366 = vst [vmem:[#allocation2 + $0x48] sm:$0xff] 0
          %367 = vst [vmem:[#allocation2 + $0x50] sm:$0xff] 0
          %368 = vst [vmem:[#allocation2 + $0x58] sm:$0xff] 0
          %369 = vst [vmem:[#allocation2 + $0x60] sm:$0xff] 0
          %370 = vst [vmem:[#allocation2 + $0x68] sm:$0xff] 0
          %371 = vst [vmem:[#allocation2 + $0x70] sm:$0xff] 0
          %372 = vst [vmem:[#allocation2 + $0x78] sm:$0xff] 0
          %373 = vst [vmem:[#allocation2 + $0x80] sm:$0xff] 0
          %374 = vst [vmem:[#allocation2 + $0x88] sm:$0xff] 0
          %375 = vst [vmem:[#allocation2 + $0x90] sm:$0xff] 0
          %376 = vst [vmem:[#allocation2 + $0x98] sm:$0xff] 0
          %377 = vst [vmem:[#allocation2 + $0xa0] sm:$0xff] 0
          %378 = vst [vmem:[#allocation2 + $0xa8] sm:$0xff] 0
          %379 = vst [vmem:[#allocation2 + $0xb0] sm:$0xff] 0
          %380 = vst [vmem:[#allocation2 + $0xb8] sm:$0xff] 0
          %381 = vst [vmem:[#allocation2 + $0xc0] sm:$0xff] 0
          %382 = vst [vmem:[#allocation2 + $0xc8] sm:$0xff] 0
          %383 = vst [vmem:[#allocation2 + $0xd0] sm:$0xff] 0
          %384 = vst [vmem:[#allocation2 + $0xd8] sm:$0xff] 0
          %385 = vst [vmem:[#allocation2 + $0xe0] sm:$0xff] 0
          %386 = vst [vmem:[#allocation2 + $0xe8] sm:$0xff] 0
          %387 = vst [vmem:[#allocation2 + $0xf0] sm:$0xff] 0
          %388 = vst [vmem:[#allocation2 + $0xf8] sm:$0xff] 0
          %389 = vst [vmem:[#allocation2 + $0x100] sm:$0xff] 0
          %390 = vst [vmem:[#allocation2 + $0x108] sm:$0xff] 0
          %391 = vst [vmem:[#allocation2 + $0x110] sm:$0xff] 0
          %392 = vst [vmem:[#allocation2 + $0x118] sm:$0xff] 0
          %393 = vst [vmem:[#allocation2 + $0x120] sm:$0xff] 0
          %394 = vst [vmem:[#allocation2 + $0x128] sm:$0xff] 0
          %395 = vst [vmem:[#allocation2 + $0x130] sm:$0xff] 0
          %396 = vst [vmem:[#allocation2 + $0x138] sm:$0xff] 0
          %v397 = vld [vmem:[#allocation3] sm:$0xff]
          %v398 = vld [vmem:[#allocation3 + $0x8] sm:$0xff]
          %v399 = vld [vmem:[#allocation3 + $0x10] sm:$0xff]
          %v400 = vld [vmem:[#allocation3 + $0x18] sm:$0xff]
          %v401 = vld [vmem:[#allocation3 + $0x20] sm:$0xff]
          %v402 = vld [vmem:[#allocation3 + $0x28] sm:$0xff]
          %v403 = vld [vmem:[#allocation3 + $0x30] sm:$0xff]
          %v404 = vld [vmem:[#allocation3 + $0x38] sm:$0xff]
          %v405 = vld [vmem:[#allocation3 + $0x40] sm:$0xff]
          %v406 = vld [vmem:[#allocation3 + $0x48] sm:$0xff]
          %v407 = vld [vmem:[#allocation3 + $0x50] sm:$0xff]
          %v408 = vld [vmem:[#allocation3 + $0x58] sm:$0xff]
          %v409 = vld [vmem:[#allocation3 + $0x60] sm:$0xff]
          %v410 = vld [vmem:[#allocation3 + $0x68] sm:$0xff]
          %v411 = vld [vmem:[#allocation3 + $0x70] sm:$0xff]
          %v412 = vld [vmem:[#allocation3 + $0x78] sm:$0xff]
          %v413 = vld [vmem:[#allocation3 + $0x80] sm:$0xff]
          %v414 = vld [vmem:[#allocation3 + $0x88] sm:$0xff]
          %v415 = vld [vmem:[#allocation3 + $0x90] sm:$0xff]
          %v416 = vld [vmem:[#allocation3 + $0x98] sm:$0xff]
          %v417 = vld [vmem:[#allocation3 + $0xa0] sm:$0xff]
          %v418 = vld [vmem:[#allocation3 + $0xa8] sm:$0xff]
          %v419 = vld [vmem:[#allocation3 + $0xb0] sm:$0xff]
          %v420 = vld [vmem:[#allocation3 + $0xb8] sm:$0xff]
          %v421 = vld [vmem:[#allocation3 + $0xc0] sm:$0xff]
          %v422 = vld [vmem:[#allocation3 + $0xc8] sm:$0xff]
          %v423 = vld [vmem:[#allocation3 + $0xd0] sm:$0xff]
          %v424 = vld [vmem:[#allocation3 + $0xd8] sm:$0xff]
          %v425 = vld [vmem:[#allocation3 + $0xe0] sm:$0xff]
          %v426 = vld [vmem:[#allocation3 + $0xe8] sm:$0xff]
          %v427 = vld [vmem:[#allocation3 + $0xf0] sm:$0xff]
          %v428 = vld [vmem:[#allocation3 + $0xf8] sm:$0xff]
          %v429 = vpack.c.bf16 %v397, %v397
          %v430 = vpack.c.bf16 %v398, %v398
          %v431 = vpack.c.bf16 %v399, %v399
          %v432 = vpack.c.bf16 %v400, %v400
          %v433 = vpack.c.bf16 %v401, %v401
          %v434 = vpack.c.bf16 %v402, %v402
          %v435 = vpack.c.bf16 %v403, %v403
          %v436 = vpack.c.bf16 %v404, %v404
          %v437 = vpack.c.bf16 %v405, %v405
          %v438 = vpack.c.bf16 %v406, %v406
          %v439 = vpack.c.bf16 %v407, %v407
          %v440 = vpack.c.bf16 %v408, %v408
          %v441 = vpack.c.bf16 %v409, %v409
          %v442 = vpack.c.bf16 %v410, %v410
          %v443 = vpack.c.bf16 %v411, %v411
          %v444 = vpack.c.bf16 %v412, %v412
          %v445 = vpack.c.bf16 %v413, %v413
          %v446 = vpack.c.bf16 %v414, %v414
          %v447 = vpack.c.bf16 %v415, %v415
          %v448 = vpack.c.bf16 %v416, %v416
          %v449 = vpack.c.bf16 %v417, %v417
          %v450 = vpack.c.bf16 %v418, %v418
          %v451 = vpack.c.bf16 %v419, %v419
          %v452 = vpack.c.bf16 %v420, %v420
          %v453 = vpack.c.bf16 %v421, %v421
          %v454 = vpack.c.bf16 %v422, %v422
          %v455 = vpack.c.bf16 %v423, %v423
          %v456 = vpack.c.bf16 %v424, %v424
          %v457 = vpack.c.bf16 %v425, %v425
          %v458 = vpack.c.bf16 %v426, %v426
          %v459 = vpack.c.bf16 %v427, %v427
          %v460 = vpack.c.bf16 %v428, %v428
          %v462 = vshrl.u32 %v429, 16
          %v464 = vrot.slane %v462, 7
          %v465 = vshll.u32 %v429, 16
          %v467 = vor.u32 %v464, %v465
          %v469 = vshrl.u32 %v430, 16
          %v471 = vrot.slane %v469, 7
          %v472 = vshll.u32 %v430, 16
          %v474 = vor.u32 %v471, %v472
          %v476 = vshrl.u32 %v431, 16
          %v478 = vrot.slane %v476, 7
          %v479 = vshll.u32 %v431, 16
          %v481 = vor.u32 %v478, %v479
          %v483 = vshrl.u32 %v432, 16
          %v485 = vrot.slane %v483, 7
          %v486 = vshll.u32 %v432, 16
          %v488 = vor.u32 %v485, %v486
          %v490 = vshrl.u32 %v433, 16
          %v492 = vrot.slane %v490, 7
          %v493 = vshll.u32 %v433, 16
          %v495 = vor.u32 %v492, %v493
          %v497 = vshrl.u32 %v434, 16
          %v499 = vrot.slane %v497, 7
          %v500 = vshll.u32 %v434, 16
          %v502 = vor.u32 %v499, %v500
          %v504 = vshrl.u32 %v435, 16
          %v506 = vrot.slane %v504, 7
          %v507 = vshll.u32 %v435, 16
          %v509 = vor.u32 %v506, %v507
          %v511 = vshrl.u32 %v436, 16
          %v513 = vrot.slane %v511, 7
          %v514 = vshll.u32 %v436, 16
          %v516 = vor.u32 %v513, %v514
          %v518 = vshrl.u32 %v437, 16
          %v520 = vrot.slane %v518, 7
          %v521 = vshll.u32 %v437, 16
          %v523 = vor.u32 %v520, %v521
          %v525 = vshrl.u32 %v438, 16
          %v527 = vrot.slane %v525, 7
          %v528 = vshll.u32 %v438, 16
          %v530 = vor.u32 %v527, %v528
          %v532 = vshrl.u32 %v439, 16
          %v534 = vrot.slane %v532, 7
          %v535 = vshll.u32 %v439, 16
          %v537 = vor.u32 %v534, %v535
          %v539 = vshrl.u32 %v440, 16
          %v541 = vrot.slane %v539, 7
          %v542 = vshll.u32 %v440, 16
          %v544 = vor.u32 %v541, %v542
          %v546 = vshrl.u32 %v441, 16
          %v548 = vrot.slane %v546, 7
          %v549 = vshll.u32 %v441, 16
          %v551 = vor.u32 %v548, %v549
          %v553 = vshrl.u32 %v442, 16
          %v555 = vrot.slane %v553, 7
          %v556 = vshll.u32 %v442, 16
          %v558 = vor.u32 %v555, %v556
          %v560 = vshrl.u32 %v443, 16
          %v562 = vrot.slane %v560, 7
          %v563 = vshll.u32 %v443, 16
          %v565 = vor.u32 %v562, %v563
          %v567 = vshrl.u32 %v444, 16
          %v569 = vrot.slane %v567, 7
          %v570 = vshll.u32 %v444, 16
          %v572 = vor.u32 %v569, %v570
          %v574 = vshrl.u32 %v445, 16
          %v576 = vrot.slane %v574, 7
          %v577 = vshll.u32 %v445, 16
          %v579 = vor.u32 %v576, %v577
          %v581 = vshrl.u32 %v446, 16
          %v583 = vrot.slane %v581, 7
          %v584 = vshll.u32 %v446, 16
          %v586 = vor.u32 %v583, %v584
          %v588 = vshrl.u32 %v447, 16
          %v590 = vrot.slane %v588, 7
          %v591 = vshll.u32 %v447, 16
          %v593 = vor.u32 %v590, %v591
          %v595 = vshrl.u32 %v448, 16
          %v597 = vrot.slane %v595, 7
          %v598 = vshll.u32 %v448, 16
          %v600 = vor.u32 %v597, %v598
          %v602 = vshrl.u32 %v449, 16
          %v604 = vrot.slane %v602, 7
          %v605 = vshll.u32 %v449, 16
          %v607 = vor.u32 %v604, %v605
          %v609 = vshrl.u32 %v450, 16
          %v611 = vrot.slane %v609, 7
          %v612 = vshll.u32 %v450, 16
          %v614 = vor.u32 %v611, %v612
          %v616 = vshrl.u32 %v451, 16
          %v618 = vrot.slane %v616, 7
          %v619 = vshll.u32 %v451, 16
          %v621 = vor.u32 %v618, %v619
          %v623 = vshrl.u32 %v452, 16
          %v625 = vrot.slane %v623, 7
          %v626 = vshll.u32 %v452, 16
          %v628 = vor.u32 %v625, %v626
          %v630 = vshrl.u32 %v453, 16
          %v632 = vrot.slane %v630, 7
          %v633 = vshll.u32 %v453, 16
          %v635 = vor.u32 %v632, %v633
          %v637 = vshrl.u32 %v454, 16
          %v639 = vrot.slane %v637, 7
          %v640 = vshll.u32 %v454, 16
          %v642 = vor.u32 %v639, %v640
          %v644 = vshrl.u32 %v455, 16
          %v646 = vrot.slane %v644, 7
          %v647 = vshll.u32 %v455, 16
          %v649 = vor.u32 %v646, %v647
          %v651 = vshrl.u32 %v456, 16
          %v653 = vrot.slane %v651, 7
          %v654 = vshll.u32 %v456, 16
          %v656 = vor.u32 %v653, %v654
          %v658 = vshrl.u32 %v457, 16
          %v660 = vrot.slane %v658, 7
          %v661 = vshll.u32 %v457, 16
          %v663 = vor.u32 %v660, %v661
          %v665 = vshrl.u32 %v458, 16
          %v667 = vrot.slane %v665, 7
          %v668 = vshll.u32 %v458, 16
          %v670 = vor.u32 %v667, %v668
          %v672 = vshrl.u32 %v459, 16
          %v674 = vrot.slane %v672, 7
          %v675 = vshll.u32 %v459, 16
          %v677 = vor.u32 %v674, %v675
          %v679 = vshrl.u32 %v460, 16
          %v681 = vrot.slane %v679, 7
          %v682 = vshll.u32 %v460, 16
          %v684 = vor.u32 %v681, %v682
          %s717 = scalar_lea.vmem [#allocation2], 16
          %vm718 = vcmask 1044480
          %vm719 = vsmask.f32 4354
          %vm720 = vmand %vm718, %vm719
          %v721 = vld [vmem:[%s717] sm:$0x1f]
          %v722 = vsel %vm720, %v467, %v721
          %723 = vst [vmem:[%s717] sm:$0x1f] %v722
          %v724 = vld [vmem:[%s717 + $0x8] sm:$0x1f]
          %v725 = vsel %vm720, %v474, %v724
          %726 = vst [vmem:[%s717 + $0x8] sm:$0x1f] %v725
          %v727 = vld [vmem:[%s717 + $0x10] sm:$0x1f]
          %v728 = vsel %vm720, %v481, %v727
          %729 = vst [vmem:[%s717 + $0x10] sm:$0x1f] %v728
          %v730 = vld [vmem:[%s717 + $0x18] sm:$0x1f]
          %v731 = vsel %vm720, %v488, %v730
          %732 = vst [vmem:[%s717 + $0x18] sm:$0x1f] %v731
          %v733 = vld [vmem:[%s717 + $0x20] sm:$0x1f]
          %v734 = vsel %vm720, %v495, %v733
          %735 = vst [vmem:[%s717 + $0x20] sm:$0x1f] %v734
          %v736 = vld [vmem:[%s717 + $0x28] sm:$0x1f]
          %v737 = vsel %vm720, %v502, %v736
          %738 = vst [vmem:[%s717 + $0x28] sm:$0x1f] %v737
          %v739 = vld [vmem:[%s717 + $0x30] sm:$0x1f]
          %v740 = vsel %vm720, %v509, %v739
          %741 = vst [vmem:[%s717 + $0x30] sm:$0x1f] %v740
          %v742 = vld [vmem:[%s717 + $0x38] sm:$0x1f]
          %v743 = vsel %vm720, %v516, %v742
          %744 = vst [vmem:[%s717 + $0x38] sm:$0x1f] %v743
          %v745 = vld [vmem:[%s717 + $0x40] sm:$0x1f]
          %v746 = vsel %vm720, %v523, %v745
          %747 = vst [vmem:[%s717 + $0x40] sm:$0x1f] %v746
          %v748 = vld [vmem:[%s717 + $0x48] sm:$0x1f]
          %v749 = vsel %vm720, %v530, %v748
          %750 = vst [vmem:[%s717 + $0x48] sm:$0x1f] %v749
          %v751 = vld [vmem:[%s717 + $0x50] sm:$0x1f]
          %v752 = vsel %vm720, %v537, %v751
          %753 = vst [vmem:[%s717 + $0x50] sm:$0x1f] %v752
          %v754 = vld [vmem:[%s717 + $0x58] sm:$0x1f]
          %v755 = vsel %vm720, %v544, %v754
          %756 = vst [vmem:[%s717 + $0x58] sm:$0x1f] %v755
          %v757 = vld [vmem:[%s717 + $0x60] sm:$0x1f]
          %v758 = vsel %vm720, %v551, %v757
          %759 = vst [vmem:[%s717 + $0x60] sm:$0x1f] %v758
          %v760 = vld [vmem:[%s717 + $0x68] sm:$0x1f]
          %v761 = vsel %vm720, %v558, %v760
          %762 = vst [vmem:[%s717 + $0x68] sm:$0x1f] %v761
          %v763 = vld [vmem:[%s717 + $0x70] sm:$0x1f]
          %v764 = vsel %vm720, %v565, %v763
          %765 = vst [vmem:[%s717 + $0x70] sm:$0x1f] %v764
          %v766 = vld [vmem:[%s717 + $0x78] sm:$0x1f]
          %v767 = vsel %vm720, %v572, %v766
          %768 = vst [vmem:[%s717 + $0x78] sm:$0x1f] %v767
          %v769 = vld [vmem:[%s717 + $0xa0] sm:$0x1f]
          %v770 = vsel %vm720, %v579, %v769
          %771 = vst [vmem:[%s717 + $0xa0] sm:$0x1f] %v770
          %v772 = vld [vmem:[%s717 + $0xa8] sm:$0x1f]
          %v773 = vsel %vm720, %v586, %v772
          %774 = vst [vmem:[%s717 + $0xa8] sm:$0x1f] %v773
          %v775 = vld [vmem:[%s717 + $0xb0] sm:$0x1f]
          %v776 = vsel %vm720, %v593, %v775
          %777 = vst [vmem:[%s717 + $0xb0] sm:$0x1f] %v776
          %v778 = vld [vmem:[%s717 + $0xb8] sm:$0x1f]
          %v779 = vsel %vm720, %v600, %v778
          %780 = vst [vmem:[%s717 + $0xb8] sm:$0x1f] %v779
          %v781 = vld [vmem:[%s717 + $0xc0] sm:$0x1f]
          %v782 = vsel %vm720, %v607, %v781
          %783 = vst [vmem:[%s717 + $0xc0] sm:$0x1f] %v782
          %v784 = vld [vmem:[%s717 + $0xc8] sm:$0x1f]
          %v785 = vsel %vm720, %v614, %v784
          %786 = vst [vmem:[%s717 + $0xc8] sm:$0x1f] %v785
          %v787 = vld [vmem:[%s717 + $0xd0] sm:$0x1f]
          %v788 = vsel %vm720, %v621, %v787
          %789 = vst [vmem:[%s717 + $0xd0] sm:$0x1f] %v788
          %v790 = vld [vmem:[%s717 + $0xd8] sm:$0x1f]
          %v791 = vsel %vm720, %v628, %v790
          %792 = vst [vmem:[%s717 + $0xd8] sm:$0x1f] %v791
          %v793 = vld [vmem:[%s717 + $0xe0] sm:$0x1f]
          %v794 = vsel %vm720, %v635, %v793
          %795 = vst [vmem:[%s717 + $0xe0] sm:$0x1f] %v794
          %v796 = vld [vmem:[%s717 + $0xe8] sm:$0x1f]
          %v797 = vsel %vm720, %v642, %v796
          %798 = vst [vmem:[%s717 + $0xe8] sm:$0x1f] %v797
          %v799 = vld [vmem:[%s717 + $0xf0] sm:$0x1f]
          %v800 = vsel %vm720, %v649, %v799
          %801 = vst [vmem:[%s717 + $0xf0] sm:$0x1f] %v800
          %v802 = vld [vmem:[%s717 + $0xf8] sm:$0x1f]
          %v803 = vsel %vm720, %v656, %v802
          %804 = vst [vmem:[%s717 + $0xf8] sm:$0x1f] %v803
          %v805 = vld [vmem:[%s717 + $0x100] sm:$0x1f]
          %v806 = vsel %vm720, %v663, %v805
          %807 = vst [vmem:[%s717 + $0x100] sm:$0x1f] %v806
          %v808 = vld [vmem:[%s717 + $0x108] sm:$0x1f]
          %v809 = vsel %vm720, %v670, %v808
          %810 = vst [vmem:[%s717 + $0x108] sm:$0x1f] %v809
          %v811 = vld [vmem:[%s717 + $0x110] sm:$0x1f]
          %v812 = vsel %vm720, %v677, %v811
          %813 = vst [vmem:[%s717 + $0x110] sm:$0x1f] %v812
          %v814 = vld [vmem:[%s717 + $0x118] sm:$0x1f]
          %v815 = vsel %vm720, %v684, %v814
          %816 = vst [vmem:[%s717 + $0x118] sm:$0x1f] %v815
        $region64: #{tpu_custom_call.1} parent=39 // pred_fallthru
          _
        %p817 = scmp.lt.s32.totalorder %s27, 4
        // Predicated region
        $region65: #{tpu_custom_call.1} parent=39 // pred_check
          %p818 = pneg %p817
        $region66: #{tpu_custom_call.1} parent=39 // pred_check_branch
          %820 = sbr.rel (%p818) target = $region68
        $region67: #{tpu_custom_call.1} parent=39 // pred_region
          %v821 = vld [vmem:[#allocation2] sm:$0xf]
          %v822 = vld [vmem:[#allocation2 + $0x8] sm:$0xf]
          %v823 = vld [vmem:[#allocation2 + $0x10] sm:$0xf]
          %v824 = vld [vmem:[#allocation2 + $0x18] sm:$0xf]
          %v825 = vld [vmem:[#allocation2 + $0x20] sm:$0xf]
          %v826 = vld [vmem:[#allocation2 + $0x28] sm:$0xf]
          %v827 = vld [vmem:[#allocation2 + $0x30] sm:$0xf]
          %v828 = vld [vmem:[#allocation2 + $0x38] sm:$0xf]
          %v829 = vld [vmem:[#allocation2 + $0x40] sm:$0xf]
          %v830 = vld [vmem:[#allocation2 + $0x48] sm:$0xf]
          %v831 = vld [vmem:[#allocation2 + $0x50] sm:$0xf]
          %v832 = vld [vmem:[#allocation2 + $0x58] sm:$0xf]
          %v833 = vld [vmem:[#allocation2 + $0x60] sm:$0xf]
          %v834 = vld [vmem:[#allocation2 + $0x68] sm:$0xf]
          %v835 = vld [vmem:[#allocation2 + $0x70] sm:$0xf]
          %v836 = vld [vmem:[#allocation2 + $0x78] sm:$0xf]
          %v837 = vld [vmem:[#allocation2 + $0xa0] sm:$0xf]
          %v838 = vld [vmem:[#allocation2 + $0xa8] sm:$0xf]
          %v839 = vld [vmem:[#allocation2 + $0xb0] sm:$0xf]
          %v840 = vld [vmem:[#allocation2 + $0xb8] sm:$0xf]
          %v841 = vld [vmem:[#allocation2 + $0xc0] sm:$0xf]
          %v842 = vld [vmem:[#allocation2 + $0xc8] sm:$0xf]
          %v843 = vld [vmem:[#allocation2 + $0xd0] sm:$0xf]
          %v844 = vld [vmem:[#allocation2 + $0xd8] sm:$0xf]
          %v845 = vld [vmem:[#allocation2 + $0xe0] sm:$0xf]
          %v846 = vld [vmem:[#allocation2 + $0xe8] sm:$0xf]
          %v847 = vld [vmem:[#allocation2 + $0xf0] sm:$0xf]
          %v848 = vld [vmem:[#allocation2 + $0xf8] sm:$0xf]
          %v849 = vld [vmem:[#allocation2 + $0x100] sm:$0xf]
          %v850 = vld [vmem:[#allocation2 + $0x108] sm:$0xf]
          %v851 = vld [vmem:[#allocation2 + $0x110] sm:$0xf]
          %v852 = vld [vmem:[#allocation2 + $0x118] sm:$0xf]
          %v885 = vunpack.c.l.b16 %v821
          %v886 = vunpack.c.l.b16 %v822
          %v887 = vunpack.c.l.b16 %v823
          %v888 = vunpack.c.l.b16 %v824
          %v889 = vunpack.c.l.b16 %v825
          %v890 = vunpack.c.l.b16 %v826
          %v891 = vunpack.c.l.b16 %v827
          %v892 = vunpack.c.l.b16 %v828
          %v893 = vunpack.c.l.b16 %v829
          %v894 = vunpack.c.l.b16 %v830
          %v895 = vunpack.c.l.b16 %v831
          %v896 = vunpack.c.l.b16 %v832
          %v897 = vunpack.c.l.b16 %v833
          %v898 = vunpack.c.l.b16 %v834
          %v899 = vunpack.c.l.b16 %v835
          %v900 = vunpack.c.l.b16 %v836
          %v901 = vunpack.c.l.b16 %v837
          %v902 = vunpack.c.l.b16 %v838
          %v903 = vunpack.c.l.b16 %v839
          %v904 = vunpack.c.l.b16 %v840
          %v905 = vunpack.c.l.b16 %v841
          %v906 = vunpack.c.l.b16 %v842
          %v907 = vunpack.c.l.b16 %v843
          %v908 = vunpack.c.l.b16 %v844
          %v909 = vunpack.c.l.b16 %v845
          %v910 = vunpack.c.l.b16 %v846
          %v911 = vunpack.c.l.b16 %v847
          %v912 = vunpack.c.l.b16 %v848
          %v913 = vunpack.c.l.b16 %v849
          %v914 = vunpack.c.l.b16 %v850
          %v915 = vunpack.c.l.b16 %v851
          %v916 = vunpack.c.l.b16 %v852
          %v917 = vld [vmem:[%s302] sm:$0xff]
          %v918 = vld [vmem:[%s302 + $0x8] sm:$0xff]
          %v919 = vld [vmem:[%s302 + $0x10] sm:$0xff]
          %v920 = vld [vmem:[%s302 + $0x18] sm:$0xff]
          %v921 = vld [vmem:[%s302 + $0x20] sm:$0xff]
          %v922 = vld [vmem:[%s302 + $0x28] sm:$0xff]
          %v923 = vld [vmem:[%s302 + $0x30] sm:$0xff]
          %v924 = vld [vmem:[%s302 + $0x38] sm:$0xff]
          %v925 = vld [vmem:[%s302 + $0x40] sm:$0xff]
          %v926 = vld [vmem:[%s302 + $0x48] sm:$0xff]
          %v927 = vld [vmem:[%s302 + $0x50] sm:$0xff]
          %v928 = vld [vmem:[%s302 + $0x58] sm:$0xff]
          %v929 = vld [vmem:[%s302 + $0x60] sm:$0xff]
          %v930 = vld [vmem:[%s302 + $0x68] sm:$0xff]
          %v931 = vld [vmem:[%s302 + $0x70] sm:$0xff]
          %v932 = vld [vmem:[%s302 + $0x78] sm:$0xff]
          %v933 = vld [vmem:[%s302 + $0x80] sm:$0xff]
          %v934 = vld [vmem:[%s302 + $0x88] sm:$0xff]
          %v935 = vld [vmem:[%s302 + $0x90] sm:$0xff]
          %v936 = vld [vmem:[%s302 + $0x98] sm:$0xff]
          %v937 = vld [vmem:[%s302 + $0xa0] sm:$0xff]
          %v938 = vld [vmem:[%s302 + $0xa8] sm:$0xff]
          %v939 = vld [vmem:[%s302 + $0xb0] sm:$0xff]
          %v940 = vld [vmem:[%s302 + $0xb8] sm:$0xff]
          %v941 = vld [vmem:[%s302 + $0xc0] sm:$0xff]
          %v942 = vld [vmem:[%s302 + $0xc8] sm:$0xff]
          %v943 = vld [vmem:[%s302 + $0xd0] sm:$0xff]
          %v944 = vld [vmem:[%s302 + $0xd8] sm:$0xff]
          %v945 = vld [vmem:[%s302 + $0xe0] sm:$0xff]
          %v946 = vld [vmem:[%s302 + $0xe8] sm:$0xff]
          %v947 = vld [vmem:[%s302 + $0xf0] sm:$0xff]
          %v948 = vld [vmem:[%s302 + $0xf8] sm:$0xff]
          %v949 = vld [vmem:[#allocation2] sm:$0x1f]
          %v950 = vld [vmem:[#allocation2 + $0x8] sm:$0x1f]
          %v951 = vld [vmem:[#allocation2 + $0x10] sm:$0x1f]
          %v952 = vld [vmem:[#allocation2 + $0x18] sm:$0x1f]
          %v953 = vld [vmem:[#allocation2 + $0x20] sm:$0x1f]
          %v954 = vld [vmem:[#allocation2 + $0x28] sm:$0x1f]
          %v955 = vld [vmem:[#allocation2 + $0x30] sm:$0x1f]
          %v956 = vld [vmem:[#allocation2 + $0x38] sm:$0x1f]
          %v957 = vld [vmem:[#allocation2 + $0x40] sm:$0x1f]
          %v958 = vld [vmem:[#allocation2 + $0x48] sm:$0x1f]
          %v959 = vld [vmem:[#allocation2 + $0x50] sm:$0x1f]
          %v960 = vld [vmem:[#allocation2 + $0x58] sm:$0x1f]
          %v961 = vld [vmem:[#allocation2 + $0x60] sm:$0x1f]
          %v962 = vld [vmem:[#allocation2 + $0x68] sm:$0x1f]
          %v963 = vld [vmem:[#allocation2 + $0x70] sm:$0x1f]
          %v964 = vld [vmem:[#allocation2 + $0x78] sm:$0x1f]
          %v965 = vld [vmem:[#allocation2 + $0xa0] sm:$0x1f]
          %v966 = vld [vmem:[#allocation2 + $0xa8] sm:$0x1f]
          %v967 = vld [vmem:[#allocation2 + $0xb0] sm:$0x1f]
          %v968 = vld [vmem:[#allocation2 + $0xb8] sm:$0x1f]
          %v969 = vld [vmem:[#allocation2 + $0xc0] sm:$0x1f]
          %v970 = vld [vmem:[#allocation2 + $0xc8] sm:$0x1f]
          %v971 = vld [vmem:[#allocation2 + $0xd0] sm:$0x1f]
          %v972 = vld [vmem:[#allocation2 + $0xd8] sm:$0x1f]
          %v973 = vld [vmem:[#allocation2 + $0xe0] sm:$0x1f]
          %v974 = vld [vmem:[#allocation2 + $0xe8] sm:$0x1f]
          %v975 = vld [vmem:[#allocation2 + $0xf0] sm:$0x1f]
          %v976 = vld [vmem:[#allocation2 + $0xf8] sm:$0x1f]
          %v977 = vld [vmem:[#allocation2 + $0x100] sm:$0x1f]
          %v978 = vld [vmem:[#allocation2 + $0x108] sm:$0x1f]
          %v979 = vld [vmem:[#allocation2 + $0x110] sm:$0x1f]
          %v980 = vld [vmem:[#allocation2 + $0x118] sm:$0x1f]
          %v1013 = vunpack.c.l.b16 %v949
          %v1014 = vunpack.c.l.b16 %v950
          %v1015 = vunpack.c.h.b16 %v949
          %v1016 = vunpack.c.h.b16 %v950
          %v1017 = vunpack.c.l.b16 %v951
          %v1018 = vunpack.c.l.b16 %v952
          %v1019 = vunpack.c.h.b16 %v951
          %v1020 = vunpack.c.h.b16 %v952
          %v1021 = vunpack.c.l.b16 %v953
          %v1022 = vunpack.c.l.b16 %v954
          %v1023 = vunpack.c.h.b16 %v953
          %v1024 = vunpack.c.h.b16 %v954
          %v1025 = vunpack.c.l.b16 %v955
          %v1026 = vunpack.c.l.b16 %v956
          %v1027 = vunpack.c.h.b16 %v955
          %v1028 = vunpack.c.h.b16 %v956
          %v1029 = vunpack.c.l.b16 %v957
          %v1030 = vunpack.c.l.b16 %v958
          %v1031 = vunpack.c.h.b16 %v957
          %v1032 = vunpack.c.h.b16 %v958
          %v1033 = vunpack.c.l.b16 %v959
          %v1034 = vunpack.c.l.b16 %v960
          %v1035 = vunpack.c.h.b16 %v959
          %v1036 = vunpack.c.h.b16 %v960
          %v1037 = vunpack.c.l.b16 %v961
          %v1038 = vunpack.c.l.b16 %v962
          %v1039 = vunpack.c.h.b16 %v961
          %v1040 = vunpack.c.h.b16 %v962
          %v1041 = vunpack.c.l.b16 %v963
          %v1042 = vunpack.c.l.b16 %v964
          %v1043 = vunpack.c.h.b16 %v963
          %v1044 = vunpack.c.h.b16 %v964
          %v1045 = vunpack.c.l.b16 %v965
          %v1046 = vunpack.c.l.b16 %v966
          %v1047 = vunpack.c.h.b16 %v965
          %v1048 = vunpack.c.h.b16 %v966
          %v1049 = vunpack.c.l.b16 %v967
          %v1050 = vunpack.c.l.b16 %v968
          %v1051 = vunpack.c.h.b16 %v967
          %v1052 = vunpack.c.h.b16 %v968
          %v1053 = vunpack.c.l.b16 %v969
          %v1054 = vunpack.c.l.b16 %v970
          %v1055 = vunpack.c.h.b16 %v969
          %v1056 = vunpack.c.h.b16 %v970
          %v1057 = vunpack.c.l.b16 %v971
          %v1058 = vunpack.c.l.b16 %v972
          %v1059 = vunpack.c.h.b16 %v971
          %v1060 = vunpack.c.h.b16 %v972
          %v1061 = vunpack.c.l.b16 %v973
          %v1062 = vunpack.c.l.b16 %v974
          %v1063 = vunpack.c.h.b16 %v973
          %v1064 = vunpack.c.h.b16 %v974
          %v1065 = vunpack.c.l.b16 %v975
          %v1066 = vunpack.c.l.b16 %v976
          %v1067 = vunpack.c.h.b16 %v975
          %v1068 = vunpack.c.h.b16 %v976
          %v1069 = vunpack.c.l.b16 %v977
          %v1070 = vunpack.c.l.b16 %v978
          %v1071 = vunpack.c.h.b16 %v977
          %v1072 = vunpack.c.h.b16 %v978
          %v1073 = vunpack.c.l.b16 %v979
          %v1074 = vunpack.c.l.b16 %v980
          %v1075 = vunpack.c.h.b16 %v979
          %v1076 = vunpack.c.h.b16 %v980
          %v1077 = vpack.c.b16 %v1014, %v1013
          %v1078 = vpack.c.b16 %v1016, %v1015
          %v1079 = vpack.c.b16 %v1018, %v1017
          %v1080 = vpack.c.b16 %v1020, %v1019
          %v1081 = vpack.c.b16 %v1022, %v1021
          %v1082 = vpack.c.b16 %v1024, %v1023
          %v1083 = vpack.c.b16 %v1026, %v1025
          %v1084 = vpack.c.b16 %v1028, %v1027
          %v1085 = vpack.c.b16 %v1030, %v1029
          %v1086 = vpack.c.b16 %v1032, %v1031
          %v1087 = vpack.c.b16 %v1034, %v1033
          %v1088 = vpack.c.b16 %v1036, %v1035
          %v1089 = vpack.c.b16 %v1038, %v1037
          %v1090 = vpack.c.b16 %v1040, %v1039
          %v1091 = vpack.c.b16 %v1042, %v1041
          %v1092 = vpack.c.b16 %v1044, %v1043
          %v1093 = vpack.c.b16 %v1046, %v1045
          %v1094 = vpack.c.b16 %v1048, %v1047
          %v1095 = vpack.c.b16 %v1050, %v1049
          %v1096 = vpack.c.b16 %v1052, %v1051
          %v1097 = vpack.c.b16 %v1054, %v1053
          %v1098 = vpack.c.b16 %v1056, %v1055
          %v1099 = vpack.c.b16 %v1058, %v1057
          %v1100 = vpack.c.b16 %v1060, %v1059
          %v1101 = vpack.c.b16 %v1062, %v1061
          %v1102 = vpack.c.b16 %v1064, %v1063
          %v1103 = vpack.c.b16 %v1066, %v1065
          %v1104 = vpack.c.b16 %v1068, %v1067
          %v1105 = vpack.c.b16 %v1070, %v1069
          %v1106 = vpack.c.b16 %v1072, %v1071
          %v1107 = vpack.c.b16 %v1074, %v1073
          %v1108 = vpack.c.b16 %v1076, %v1075
          %vm1109 = vsmask.f32 3328
          %vm1110 = vsmask.f32 7440
          %vm1111 = vmor %vm1109, %vm1110
          %v1113 = vshrl.u32 %v1077, 16
          %v1115 = vrot.slane %v1113, 4
          %v1116 = vshll.u32 %v1077, 16
          %v1118 = vrot.slane %v1116, 5
          %v1119 = vor.u32 %v1115, %v1118
          %v1120 = vrot.slane %v1119, 4
          %v1122 = vshll.u32 %v1078, 16
          %v1124 = vrot.slane %v1122, 5
          %v1125 = vsel %vm1111, %v1120, %v1124
          %v1127 = vshrl.u32 %v1079, 16
          %v1129 = vrot.slane %v1127, 4
          %v1130 = vshll.u32 %v1079, 16
          %v1132 = vrot.slane %v1130, 5
          %v1133 = vor.u32 %v1129, %v1132
          %v1134 = vrot.slane %v1133, 4
          %v1136 = vshll.u32 %v1080, 16
          %v1138 = vrot.slane %v1136, 5
          %v1139 = vsel %vm1111, %v1134, %v1138
          %v1141 = vshrl.u32 %v1081, 16
          %v1143 = vrot.slane %v1141, 4
          %v1144 = vshll.u32 %v1081, 16
          %v1146 = vrot.slane %v1144, 5
          %v1147 = vor.u32 %v1143, %v1146
          %v1148 = vrot.slane %v1147, 4
          %v1150 = vshll.u32 %v1082, 16
          %v1152 = vrot.slane %v1150, 5
          %v1153 = vsel %vm1111, %v1148, %v1152
          %v1155 = vshrl.u32 %v1083, 16
          %v1157 = vrot.slane %v1155, 4
          %v1158 = vshll.u32 %v1083, 16
          %v1160 = vrot.slane %v1158, 5
          %v1161 = vor.u32 %v1157, %v1160
          %v1162 = vrot.slane %v1161, 4
          %v1164 = vshll.u32 %v1084, 16
          %v1166 = vrot.slane %v1164, 5
          %v1167 = vsel %vm1111, %v1162, %v1166
          %v1169 = vshrl.u32 %v1085, 16
          %v1171 = vrot.slane %v1169, 4
          %v1172 = vshll.u32 %v1085, 16
          %v1174 = vrot.slane %v1172, 5
          %v1175 = vor.u32 %v1171, %v1174
          %v1176 = vrot.slane %v1175, 4
          %v1178 = vshll.u32 %v1086, 16
          %v1180 = vrot.slane %v1178, 5
          %v1181 = vsel %vm1111, %v1176, %v1180
          %v1183 = vshrl.u32 %v1087, 16
          %v1185 = vrot.slane %v1183, 4
          %v1186 = vshll.u32 %v1087, 16
          %v1188 = vrot.slane %v1186, 5
          %v1189 = vor.u32 %v1185, %v1188
          %v1190 = vrot.slane %v1189, 4
          %v1192 = vshll.u32 %v1088, 16
          %v1194 = vrot.slane %v1192, 5
          %v1195 = vsel %vm1111, %v1190, %v1194
          %v1197 = vshrl.u32 %v1089, 16
          %v1199 = vrot.slane %v1197, 4
          %v1200 = vshll.u32 %v1089, 16
          %v1202 = vrot.slane %v1200, 5
          %v1203 = vor.u32 %v1199, %v1202
          %v1204 = vrot.slane %v1203, 4
          %v1206 = vshll.u32 %v1090, 16
          %v1208 = vrot.slane %v1206, 5
          %v1209 = vsel %vm1111, %v1204, %v1208
          %v1211 = vshrl.u32 %v1091, 16
          %v1213 = vrot.slane %v1211, 4
          %v1214 = vshll.u32 %v1091, 16
          %v1216 = vrot.slane %v1214, 5
          %v1217 = vor.u32 %v1213, %v1216
          %v1218 = vrot.slane %v1217, 4
          %v1220 = vshll.u32 %v1092, 16
          %v1222 = vrot.slane %v1220, 5
          %v1223 = vsel %vm1111, %v1218, %v1222
          %v1225 = vshrl.u32 %v1093, 16
          %v1227 = vrot.slane %v1225, 4
          %v1228 = vshll.u32 %v1093, 16
          %v1230 = vrot.slane %v1228, 5
          %v1231 = vor.u32 %v1227, %v1230
          %v1232 = vrot.slane %v1231, 4
          %v1234 = vshll.u32 %v1094, 16
          %v1236 = vrot.slane %v1234, 5
          %v1237 = vsel %vm1111, %v1232, %v1236
          %v1239 = vshrl.u32 %v1095, 16
          %v1241 = vrot.slane %v1239, 4
          %v1242 = vshll.u32 %v1095, 16
          %v1244 = vrot.slane %v1242, 5
          %v1245 = vor.u32 %v1241, %v1244
          %v1246 = vrot.slane %v1245, 4
          %v1248 = vshll.u32 %v1096, 16
          %v1250 = vrot.slane %v1248, 5
          %v1251 = vsel %vm1111, %v1246, %v1250
          %v1253 = vshrl.u32 %v1097, 16
          %v1255 = vrot.slane %v1253, 4
          %v1256 = vshll.u32 %v1097, 16
          %v1258 = vrot.slane %v1256, 5
          %v1259 = vor.u32 %v1255, %v1258
          %v1260 = vrot.slane %v1259, 4
          %v1262 = vshll.u32 %v1098, 16
          %v1264 = vrot.slane %v1262, 5
          %v1265 = vsel %vm1111, %v1260, %v1264
          %v1267 = vshrl.u32 %v1099, 16
          %v1269 = vrot.slane %v1267, 4
          %v1270 = vshll.u32 %v1099, 16
          %v1272 = vrot.slane %v1270, 5
          %v1273 = vor.u32 %v1269, %v1272
          %v1274 = vrot.slane %v1273, 4
          %v1276 = vshll.u32 %v1100, 16
          %v1278 = vrot.slane %v1276, 5
          %v1279 = vsel %vm1111, %v1274, %v1278
          %v1281 = vshrl.u32 %v1101, 16
          %v1283 = vrot.slane %v1281, 4
          %v1284 = vshll.u32 %v1101, 16
          %v1286 = vrot.slane %v1284, 5
          %v1287 = vor.u32 %v1283, %v1286
          %v1288 = vrot.slane %v1287, 4
          %v1290 = vshll.u32 %v1102, 16
          %v1292 = vrot.slane %v1290, 5
          %v1293 = vsel %vm1111, %v1288, %v1292
          %v1295 = vshrl.u32 %v1103, 16
          %v1297 = vrot.slane %v1295, 4
          %v1298 = vshll.u32 %v1103, 16
          %v1300 = vrot.slane %v1298, 5
          %v1301 = vor.u32 %v1297, %v1300
          %v1302 = vrot.slane %v1301, 4
          %v1304 = vshll.u32 %v1104, 16
          %v1306 = vrot.slane %v1304, 5
          %v1307 = vsel %vm1111, %v1302, %v1306
          %v1309 = vshrl.u32 %v1105, 16
          %v1311 = vrot.slane %v1309, 4
          %v1312 = vshll.u32 %v1105, 16
          %v1314 = vrot.slane %v1312, 5
          %v1315 = vor.u32 %v1311, %v1314
          %v1316 = vrot.slane %v1315, 4
          %v1318 = vshll.u32 %v1106, 16
          %v1320 = vrot.slane %v1318, 5
          %v1321 = vsel %vm1111, %v1316, %v1320
          %v1323 = vshrl.u32 %v1107, 16
          %v1325 = vrot.slane %v1323, 4
          %v1326 = vshll.u32 %v1107, 16
          %v1328 = vrot.slane %v1326, 5
          %v1329 = vor.u32 %v1325, %v1328
          %v1330 = vrot.slane %v1329, 4
          %v1332 = vshll.u32 %v1108, 16
          %v1334 = vrot.slane %v1332, 5
          %v1335 = vsel %vm1111, %v1330, %v1334
          %v1336 = vld [vmem:[%s302 + $0x100] sm:$0xff]
          %v1337 = vld [vmem:[%s302 + $0x108] sm:$0xff]
          %v1338 = vld [vmem:[%s302 + $0x110] sm:$0xff]
          %v1339 = vld [vmem:[%s302 + $0x118] sm:$0xff]
          %v1340 = vld [vmem:[%s302 + $0x120] sm:$0xff]
          %v1341 = vld [vmem:[%s302 + $0x128] sm:$0xff]
          %v1342 = vld [vmem:[%s302 + $0x130] sm:$0xff]
          %v1343 = vld [vmem:[%s302 + $0x138] sm:$0xff]
          %v1344 = vld [vmem:[%s302 + $0x140] sm:$0xff]
          %v1345 = vld [vmem:[%s302 + $0x148] sm:$0xff]
          %v1346 = vld [vmem:[%s302 + $0x150] sm:$0xff]
          %v1347 = vld [vmem:[%s302 + $0x158] sm:$0xff]
          %v1348 = vld [vmem:[%s302 + $0x160] sm:$0xff]
          %v1349 = vld [vmem:[%s302 + $0x168] sm:$0xff]
          %v1350 = vld [vmem:[%s302 + $0x170] sm:$0xff]
          %v1351 = vld [vmem:[%s302 + $0x178] sm:$0xff]
          %v1352 = vld [vmem:[%s302 + $0x180] sm:$0xff]
          %v1353 = vld [vmem:[%s302 + $0x188] sm:$0xff]
          %v1354 = vld [vmem:[%s302 + $0x190] sm:$0xff]
          %v1355 = vld [vmem:[%s302 + $0x198] sm:$0xff]
          %v1356 = vld [vmem:[%s302 + $0x1a0] sm:$0xff]
          %v1357 = vld [vmem:[%s302 + $0x1a8] sm:$0xff]
          %v1358 = vld [vmem:[%s302 + $0x1b0] sm:$0xff]
          %v1359 = vld [vmem:[%s302 + $0x1b8] sm:$0xff]
          %v1360 = vld [vmem:[%s302 + $0x1c0] sm:$0xff]
          %v1361 = vld [vmem:[%s302 + $0x1c8] sm:$0xff]
          %v1362 = vld [vmem:[%s302 + $0x1d0] sm:$0xff]
          %v1363 = vld [vmem:[%s302 + $0x1d8] sm:$0xff]
          %v1364 = vld [vmem:[%s302 + $0x1e0] sm:$0xff]
          %v1365 = vld [vmem:[%s302 + $0x1e8] sm:$0xff]
          %v1366 = vld [vmem:[%s302 + $0x1f0] sm:$0xff]
          %v1367 = vld [vmem:[%s302 + $0x1f8] sm:$0xff]
          %v1368 = vunpack.c.l.b16 %v1125
          %v1369 = vunpack.c.h.b16 %v1125
          %v1370 = vunpack.c.l.b16 %v1139
          %v1371 = vunpack.c.h.b16 %v1139
          %v1372 = vunpack.c.l.b16 %v1153
          %v1373 = vunpack.c.h.b16 %v1153
          %v1374 = vunpack.c.l.b16 %v1167
          %v1375 = vunpack.c.h.b16 %v1167
          %v1376 = vunpack.c.l.b16 %v1181
          %v1377 = vunpack.c.h.b16 %v1181
          %v1378 = vunpack.c.l.b16 %v1195
          %v1379 = vunpack.c.h.b16 %v1195
          %v1380 = vunpack.c.l.b16 %v1209
          %v1381 = vunpack.c.h.b16 %v1209
          %v1382 = vunpack.c.l.b16 %v1223
          %v1383 = vunpack.c.h.b16 %v1223
          %v1384 = vunpack.c.l.b16 %v1237
          %v1385 = vunpack.c.h.b16 %v1237
          %v1386 = vunpack.c.l.b16 %v1251
          %v1387 = vunpack.c.h.b16 %v1251
          %v1388 = vunpack.c.l.b16 %v1265
          %v1389 = vunpack.c.h.b16 %v1265
          %v1390 = vunpack.c.l.b16 %v1279
          %v1391 = vunpack.c.h.b16 %v1279
          %v1392 = vunpack.c.l.b16 %v1293
          %v1393 = vunpack.c.h.b16 %v1293
          %v1394 = vunpack.c.l.b16 %v1307
          %v1395 = vunpack.c.h.b16 %v1307
          %v1396 = vunpack.c.l.b16 %v1321
          %v1397 = vunpack.c.h.b16 %v1321
          %v1398 = vunpack.c.l.b16 %v1335
          %v1399 = vunpack.c.h.b16 %v1335
          %v1400 = vpack.c.b16 %v1370, %v1368
          %v1401 = vpack.c.b16 %v1371, %v1369
          %v1402 = vpack.c.b16 %v1374, %v1372
          %v1403 = vpack.c.b16 %v1375, %v1373
          %v1404 = vpack.c.b16 %v1378, %v1376
          %v1405 = vpack.c.b16 %v1379, %v1377
          %v1406 = vpack.c.b16 %v1382, %v1380
          %v1407 = vpack.c.b16 %v1383, %v1381
          %v1408 = vpack.c.b16 %v1386, %v1384
          %v1409 = vpack.c.b16 %v1387, %v1385
          %v1410 = vpack.c.b16 %v1390, %v1388
          %v1411 = vpack.c.b16 %v1391, %v1389
          %v1412 = vpack.c.b16 %v1394, %v1392
          %v1413 = vpack.c.b16 %v1395, %v1393
          %v1414 = vpack.c.b16 %v1398, %v1396
          %v1415 = vpack.c.b16 %v1399, %v1397
          %v1464 = vunpack.c.l.b16 %v1336
          %v1465 = vunpack.c.h.b16 %v1336
          %v1466 = vunpack.c.l.b16 %v1337
          %v1467 = vunpack.c.h.b16 %v1337
          %v1468 = vunpack.c.l.b16 %v1338
          %v1469 = vunpack.c.h.b16 %v1338
          %v1470 = vunpack.c.l.b16 %v1339
          %v1471 = vunpack.c.h.b16 %v1339
          %v1472 = vunpack.c.l.b16 %v1340
          %v1473 = vunpack.c.h.b16 %v1340
          %v1474 = vunpack.c.l.b16 %v1341
          %v1475 = vunpack.c.h.b16 %v1341
          %v1476 = vunpack.c.l.b16 %v1342
          %v1477 = vunpack.c.h.b16 %v1342
          %v1478 = vunpack.c.l.b16 %v1343
          %v1479 = vunpack.c.h.b16 %v1343
          %v1480 = vunpack.c.l.b16 %v1344
          %v1481 = vunpack.c.h.b16 %v1344
          %v1482 = vunpack.c.l.b16 %v1345
          %v1483 = vunpack.c.h.b16 %v1345
          %v1484 = vunpack.c.l.b16 %v1346
          %v1485 = vunpack.c.h.b16 %v1346
          %v1486 = vunpack.c.l.b16 %v1347
          %v1487 = vunpack.c.h.b16 %v1347
          %v1488 = vunpack.c.l.b16 %v1348
          %v1489 = vunpack.c.h.b16 %v1348
          %v1490 = vunpack.c.l.b16 %v1349
          %v1491 = vunpack.c.h.b16 %v1349
          %v1492 = vunpack.c.l.b16 %v1350
          %v1493 = vunpack.c.h.b16 %v1350
          %v1494 = vunpack.c.l.b16 %v1351
          %v1495 = vunpack.c.h.b16 %v1351
          %v1496 = vunpack.c.l.b16 %v1352
          %v1497 = vunpack.c.h.b16 %v1352
          %v1498 = vunpack.c.l.b16 %v1353
          %v1499 = vunpack.c.h.b16 %v1353
          %v1500 = vunpack.c.l.b16 %v1354
          %v1501 = vunpack.c.h.b16 %v1354
          %v1502 = vunpack.c.l.b16 %v1355
          %v1503 = vunpack.c.h.b16 %v1355
          %v1504 = vunpack.c.l.b16 %v1356
          %v1505 = vunpack.c.h.b16 %v1356
          %v1506 = vunpack.c.l.b16 %v1357
          %v1507 = vunpack.c.h.b16 %v1357
          %v1508 = vunpack.c.l.b16 %v1358
          %v1509 = vunpack.c.h.b16 %v1358
          %v1510 = vunpack.c.l.b16 %v1359
          %v1511 = vunpack.c.h.b16 %v1359
          %v1512 = vunpack.c.l.b16 %v1360
          %v1513 = vunpack.c.h.b16 %v1360
          %v1514 = vunpack.c.l.b16 %v1361
          %v1515 = vunpack.c.h.b16 %v1361
          %v1516 = vunpack.c.l.b16 %v1362
          %v1517 = vunpack.c.h.b16 %v1362
          %v1518 = vunpack.c.l.b16 %v1363
          %v1519 = vunpack.c.h.b16 %v1363
          %v1520 = vunpack.c.l.b16 %v1364
          %v1521 = vunpack.c.h.b16 %v1364
          %v1522 = vunpack.c.l.b16 %v1365
          %v1523 = vunpack.c.h.b16 %v1365
          %v1524 = vunpack.c.l.b16 %v1366
          %v1525 = vunpack.c.h.b16 %v1366
          %v1526 = vunpack.c.l.b16 %v1367
          %v1527 = vunpack.c.h.b16 %v1367
          %v1528 = vpack.c.b16 %v1466, %v1464
          %v1529 = vpack.c.b16 %v1467, %v1465
          %v1530 = vpack.c.b16 %v1470, %v1468
          %v1531 = vpack.c.b16 %v1471, %v1469
          %v1532 = vpack.c.b16 %v1474, %v1472
          %v1533 = vpack.c.b16 %v1475, %v1473
          %v1534 = vpack.c.b16 %v1478, %v1476
          %v1535 = vpack.c.b16 %v1479, %v1477
          %v1536 = vpack.c.b16 %v1482, %v1480
          %v1537 = vpack.c.b16 %v1483, %v1481
          %v1538 = vpack.c.b16 %v1486, %v1484
          %v1539 = vpack.c.b16 %v1487, %v1485
          %v1540 = vpack.c.b16 %v1490, %v1488
          %v1541 = vpack.c.b16 %v1491, %v1489
          %v1542 = vpack.c.b16 %v1494, %v1492
          %v1543 = vpack.c.b16 %v1495, %v1493
          %v1544 = vpack.c.b16 %v1498, %v1496
          %v1545 = vpack.c.b16 %v1499, %v1497
          %v1546 = vpack.c.b16 %v1502, %v1500
          %v1547 = vpack.c.b16 %v1503, %v1501
          %v1548 = vpack.c.b16 %v1506, %v1504
          %v1549 = vpack.c.b16 %v1507, %v1505
          %v1550 = vpack.c.b16 %v1510, %v1508
          %v1551 = vpack.c.b16 %v1511, %v1509
          %v1552 = vpack.c.b16 %v1514, %v1512
          %v1553 = vpack.c.b16 %v1515, %v1513
          %v1554 = vpack.c.b16 %v1518, %v1516
          %v1555 = vpack.c.b16 %v1519, %v1517
          %v1556 = vpack.c.b16 %v1522, %v1520
          %v1557 = vpack.c.b16 %v1523, %v1521
          %v1558 = vpack.c.b16 %v1526, %v1524
          %v1559 = vpack.c.b16 %v1527, %v1525
          %1592 = vmatprep.subr.bf16.mxu0 %v1529
          %1593 = vmatpush1.bf16.msra.mxu0 %v1528
          %1594 = vmatprep.subr.bf16.mxu0 %v1531
          %1595 = vmatpush1.bf16.msra.mxu0 %v1530
          %1596 = vmatprep.subr.bf16.mxu0 %v1533
          %1597 = vmatpush1.bf16.msra.mxu0 %v1532
          %1598 = vmatprep.subr.bf16.mxu0 %v1535
          %1599 = vmatpush1.bf16.msra.mxu0 %v1534
          %1600 = vmatprep.subr.bf16.mxu0 %v1537
          %1601 = vmatpush1.bf16.msra.mxu0 %v1536
          %1602 = vmatprep.subr.bf16.mxu0 %v1539
          %1603 = vmatpush1.bf16.msra.mxu0 %v1538
          %1604 = vmatprep.subr.bf16.mxu0 %v1541
          %1605 = vmatpush1.bf16.msra.mxu0 %v1540
          %1606 = vmatprep.subr.bf16.mxu0 %v1543
          %1607 = vmatpush1.bf16.msra.mxu0 %v1542
          %1608 = vmatprep.subr.bf16.mxu0 %v1545
          %1609 = vmatpush1.bf16.msra.mxu0 %v1544
          %1610 = vmatprep.subr.bf16.mxu0 %v1547
          %1611 = vmatpush1.bf16.msra.mxu0 %v1546
          %1612 = vmatprep.subr.bf16.mxu0 %v1549
          %1613 = vmatpush1.bf16.msra.mxu0 %v1548
          %1614 = vmatprep.subr.bf16.mxu0 %v1551
          %1615 = vmatpush1.bf16.msra.mxu0 %v1550
          %1616 = vmatprep.subr.bf16.mxu0 %v1553
          %1617 = vmatpush1.bf16.msra.mxu0 %v1552
          %1618 = vmatprep.subr.bf16.mxu0 %v1555
          %1619 = vmatpush1.bf16.msra.mxu0 %v1554
          %1620 = vmatprep.subr.bf16.mxu0 %v1557
          %1621 = vmatpush1.bf16.msra.mxu0 %v1556
          %1622 = vmatprep.subr.bf16.mxu0 %v1559
          %1623 = vmatpush1.bf16.msra.mxu0 %v1558
          %1624 = vmatprep.mubr.bf16.mxu0 %v1401
          %1625 = vmatmul.mubr.bf16.gmra.mrb[0].mxu0 %v1400
          %v1626 = vpop.f32.mrb[0].mxu0
          %v1627 = vadd.f32 0.0, %v1626
          %v1628 = vpop.f32.mrb[0].mxu0
          %v1629 = vadd.f32 0.0, %v1628
          %v1630 = vpop.f32.mrb[0].mxu0
          %v1631 = vadd.f32 0.0, %v1630
          %v1632 = vpop.f32.mrb[0].mxu0
          %v1633 = vadd.f32 0.0, %v1632
          %1634 = vmatprep.mubr.bf16.mxu0 %v1403
          %1635 = vmatmul.mubr.bf16.gmra.mrb[0].mxu0 %v1402
          %v1636 = vpop.f32.mrb[0].mxu0
          %v1637 = vadd.f32 0.0, %v1636
          %v1638 = vpop.f32.mrb[0].mxu0
          %v1639 = vadd.f32 0.0, %v1638
          %v1640 = vpop.f32.mrb[0].mxu0
          %v1641 = vadd.f32 0.0, %v1640
          %v1642 = vpop.f32.mrb[0].mxu0
          %v1643 = vadd.f32 0.0, %v1642
          %1644 = vmatprep.mubr.bf16.mxu0 %v1405
          %1645 = vmatmul.mubr.bf16.gmra.mrb[0].mxu0 %v1404
          %v1646 = vpop.f32.mrb[0].mxu0
          %v1647 = vadd.f32 0.0, %v1646
          %v1648 = vpop.f32.mrb[0].mxu0
          %v1649 = vadd.f32 0.0, %v1648
          %v1650 = vpop.f32.mrb[0].mxu0
          %v1651 = vadd.f32 0.0, %v1650
          %v1652 = vpop.f32.mrb[0].mxu0
          %v1653 = vadd.f32 0.0, %v1652
          %1654 = vmatprep.mubr.bf16.mxu0 %v1407
          %1655 = vmatmul.mubr.bf16.gmra.mrb[0].mxu0 %v1406
          %v1656 = vpop.f32.mrb[0].mxu0
          %v1657 = vadd.f32 0.0, %v1656
          %v1658 = vpop.f32.mrb[0].mxu0
          %v1659 = vadd.f32 0.0, %v1658
          %v1660 = vpop.f32.mrb[0].mxu0
          %v1661 = vadd.f32 0.0, %v1660
          %v1662 = vpop.f32.mrb[0].mxu0
          %v1663 = vadd.f32 0.0, %v1662
          %1664 = vmatprep.mubr.bf16.mxu0 %v1409
          %1665 = vmatmul.mubr.bf16.gmra.mrb[0].mxu0 %v1408
          %v1666 = vpop.f32.mrb[0].mxu0
          %v1667 = vadd.f32 0.0, %v1666
          %v1668 = vpop.f32.mrb[0].mxu0
          %v1669 = vadd.f32 0.0, %v1668
          %v1670 = vpop.f32.mrb[0].mxu0
          %v1671 = vadd.f32 0.0, %v1670
          %v1672 = vpop.f32.mrb[0].mxu0
          %v1673 = vadd.f32 0.0, %v1672
          %1674 = vmatprep.mubr.bf16.mxu0 %v1411
          %1675 = vmatmul.mubr.bf16.gmra.mrb[0].mxu0 %v1410
          %v1676 = vpop.f32.mrb[0].mxu0
          %v1677 = vadd.f32 0.0, %v1676
          %v1678 = vpop.f32.mrb[0].mxu0
          %v1679 = vadd.f32 0.0, %v1678
          %v1680 = vpop.f32.mrb[0].mxu0
          %v1681 = vadd.f32 0.0, %v1680
          %v1682 = vpop.f32.mrb[0].mxu0
          %v1683 = vadd.f32 0.0, %v1682
          %1684 = vmatprep.mubr.bf16.mxu0 %v1413
          %1685 = vmatmul.mubr.bf16.gmra.mrb[0].mxu0 %v1412
          %v1686 = vpop.f32.mrb[0].mxu0
          %v1687 = vadd.f32 0.0, %v1686
          %v1688 = vpop.f32.mrb[0].mxu0
          %v1689 = vadd.f32 0.0, %v1688
          %v1690 = vpop.f32.mrb[0].mxu0
          %v1691 = vadd.f32 0.0, %v1690
          %v1692 = vpop.f32.mrb[0].mxu0
          %v1693 = vadd.f32 0.0, %v1692
          %1694 = vmatprep.mubr.bf16.mxu0 %v1415
          %1695 = vmatmul.mubr.bf16.gmra.mrb[0].mxu0 %v1414
          %v1696 = vpop.f32.mrb[0].mxu0
          %v1697 = vadd.f32 0.0, %v1696
          %v1698 = vpop.f32.mrb[0].mxu0
          %v1699 = vadd.f32 0.0, %v1698
          %v1700 = vpop.f32.mrb[0].mxu0
          %v1701 = vadd.f32 0.0, %v1700
          %v1702 = vpop.f32.mrb[0].mxu0
          %v1703 = vadd.f32 0.0, %v1702
          %1704 = vdwg.mxu0
          %v1705 = vpack.c.b16 %v887, %v885
          %v1706 = vpack.c.b16 %v888, %v886
          %v1707 = vpack.c.b16 %v891, %v889
          %v1708 = vpack.c.b16 %v892, %v890
          %v1709 = vpack.c.b16 %v895, %v893
          %v1710 = vpack.c.b16 %v896, %v894
          %v1711 = vpack.c.b16 %v899, %v897
          %v1712 = vpack.c.b16 %v900, %v898
          %v1713 = vpack.c.b16 %v903, %v901
          %v1714 = vpack.c.b16 %v904, %v902
          %v1715 = vpack.c.b16 %v907, %v905
          %v1716 = vpack.c.b16 %v908, %v906
          %v1717 = vpack.c.b16 %v911, %v909
          %v1718 = vpack.c.b16 %v912, %v910
          %v1719 = vpack.c.b16 %v915, %v913
          %v1720 = vpack.c.b16 %v916, %v914
          %v1769 = vunpack.c.l.b16 %v917
          %v1770 = vunpack.c.h.b16 %v917
          %v1771 = vunpack.c.l.b16 %v918
          %v1772 = vunpack.c.h.b16 %v918
          %v1773 = vunpack.c.l.b16 %v919
          %v1774 = vunpack.c.h.b16 %v919
          %v1775 = vunpack.c.l.b16 %v920
          %v1776 = vunpack.c.h.b16 %v920
          %v1777 = vunpack.c.l.b16 %v921
          %v1778 = vunpack.c.h.b16 %v921
          %v1779 = vunpack.c.l.b16 %v922
          %v1780 = vunpack.c.h.b16 %v922
          %v1781 = vunpack.c.l.b16 %v923
          %v1782 = vunpack.c.h.b16 %v923
          %v1783 = vunpack.c.l.b16 %v924
          %v1784 = vunpack.c.h.b16 %v924
          %v1785 = vunpack.c.l.b16 %v925
          %v1786 = vunpack.c.h.b16 %v925
          %v1787 = vunpack.c.l.b16 %v926
          %v1788 = vunpack.c.h.b16 %v926
          %v1789 = vunpack.c.l.b16 %v927
          %v1790 = vunpack.c.h.b16 %v927
          %v1791 = vunpack.c.l.b16 %v928
          %v1792 = vunpack.c.h.b16 %v928
          %v1793 = vunpack.c.l.b16 %v929
          %v1794 = vunpack.c.h.b16 %v929
          %v1795 = vunpack.c.l.b16 %v930
          %v1796 = vunpack.c.h.b16 %v930
          %v1797 = vunpack.c.l.b16 %v931
          %v1798 = vunpack.c.h.b16 %v931
          %v1799 = vunpack.c.l.b16 %v932
          %v1800 = vunpack.c.h.b16 %v932
          %v1801 = vunpack.c.l.b16 %v933
          %v1802 = vunpack.c.h.b16 %v933
          %v1803 = vunpack.c.l.b16 %v934
          %v1804 = vunpack.c.h.b16 %v934
          %v1805 = vunpack.c.l.b16 %v935
          %v1806 = vunpack.c.h.b16 %v935
          %v1807 = vunpack.c.l.b16 %v936
          %v1808 = vunpack.c.h.b16 %v936
          %v1809 = vunpack.c.l.b16 %v937
          %v1810 = vunpack.c.h.b16 %v937
          %v1811 = vunpack.c.l.b16 %v938
          %v1812 = vunpack.c.h.b16 %v938
          %v1813 = vunpack.c.l.b16 %v939
          %v1814 = vunpack.c.h.b16 %v939
          %v1815 = vunpack.c.l.b16 %v940
          %v1816 = vunpack.c.h.b16 %v940
          %v1817 = vunpack.c.l.b16 %v941
          %v1818 = vunpack.c.h.b16 %v941
          %v1819 = vunpack.c.l.b16 %v942
          %v1820 = vunpack.c.h.b16 %v942
          %v1821 = vunpack.c.l.b16 %v943
          %v1822 = vunpack.c.h.b16 %v943
          %v1823 = vunpack.c.l.b16 %v944
          %v1824 = vunpack.c.h.b16 %v944
          %v1825 = vunpack.c.l.b16 %v945
          %v1826 = vunpack.c.h.b16 %v945
          %v1827 = vunpack.c.l.b16 %v946
          %v1828 = vunpack.c.h.b16 %v946
          %v1829 = vunpack.c.l.b16 %v947
          %v1830 = vunpack.c.h.b16 %v947
          %v1831 = vunpack.c.l.b16 %v948
          %v1832 = vunpack.c.h.b16 %v948
          %v1833 = vpack.c.b16 %v1771, %v1769
          %v1834 = vpack.c.b16 %v1772, %v1770
          %v1835 = vpack.c.b16 %v1775, %v1773
          %v1836 = vpack.c.b16 %v1776, %v1774
          %v1837 = vpack.c.b16 %v1779, %v1777
          %v1838 = vpack.c.b16 %v1780, %v1778
          %v1839 = vpack.c.b16 %v1783, %v1781
          %v1840 = vpack.c.b16 %v1784, %v1782
          %v1841 = vpack.c.b16 %v1787, %v1785
          %v1842 = vpack.c.b16 %v1788, %v1786
          %v1843 = vpack.c.b16 %v1791, %v1789
          %v1844 = vpack.c.b16 %v1792, %v1790
          %v1845 = vpack.c.b16 %v1795, %v1793
          %v1846 = vpack.c.b16 %v1796, %v1794
          %v1847 = vpack.c.b16 %v1799, %v1797
          %v1848 = vpack.c.b16 %v1800, %v1798
          %v1849 = vpack.c.b16 %v1803, %v1801
          %v1850 = vpack.c.b16 %v1804, %v1802
          %v1851 = vpack.c.b16 %v1807, %v1805
          %v1852 = vpack.c.b16 %v1808, %v1806
          %v1853 = vpack.c.b16 %v1811, %v1809
          %v1854 = vpack.c.b16 %v1812, %v1810
          %v1855 = vpack.c.b16 %v1815, %v1813
          %v1856 = vpack.c.b16 %v1816, %v1814
          %v1857 = vpack.c.b16 %v1819, %v1817
          %v1858 = vpack.c.b16 %v1820, %v1818
          %v1859 = vpack.c.b16 %v1823, %v1821
          %v1860 = vpack.c.b16 %v1824, %v1822
          %v1861 = vpack.c.b16 %v1827, %v1825
          %v1862 = vpack.c.b16 %v1828, %v1826
          %v1863 = vpack.c.b16 %v1831, %v1829
          %v1864 = vpack.c.b16 %v1832, %v1830
          %1897 = vmatprep.subr.bf16.mxu0 %v1834
          %1898 = vmatpush1.bf16.msra.mxu0 %v1833
          %1899 = vmatprep.subr.bf16.mxu0 %v1836
          %1900 = vmatpush1.bf16.msra.mxu0 %v1835
          %1901 = vmatprep.subr.bf16.mxu0 %v1838
          %1902 = vmatpush1.bf16.msra.mxu0 %v1837
          %1903 = vmatprep.subr.bf16.mxu0 %v1840
          %1904 = vmatpush1.bf16.msra.mxu0 %v1839
          %1905 = vmatprep.subr.bf16.mxu0 %v1842
          %1906 = vmatpush1.bf16.msra.mxu0 %v1841
          %1907 = vmatprep.subr.bf16.mxu0 %v1844
          %1908 = vmatpush1.bf16.msra.mxu0 %v1843
          %1909 = vmatprep.subr.bf16.mxu0 %v1846
          %1910 = vmatpush1.bf16.msra.mxu0 %v1845
          %1911 = vmatprep.subr.bf16.mxu0 %v1848
          %1912 = vmatpush1.bf16.msra.mxu0 %v1847
          %1913 = vmatprep.subr.bf16.mxu0 %v1850
          %1914 = vmatpush1.bf16.msra.mxu0 %v1849
          %1915 = vmatprep.subr.bf16.mxu0 %v1852
          %1916 = vmatpush1.bf16.msra.mxu0 %v1851
          %1917 = vmatprep.subr.bf16.mxu0 %v1854
          %1918 = vmatpush1.bf16.msra.mxu0 %v1853
          %1919 = vmatprep.subr.bf16.mxu0 %v1856
          %1920 = vmatpush1.bf16.msra.mxu0 %v1855
          %1921 = vmatprep.subr.bf16.mxu0 %v1858
          %1922 = vmatpush1.bf16.msra.mxu0 %v1857
          %1923 = vmatprep.subr.bf16.mxu0 %v1860
          %1924 = vmatpush1.bf16.msra.mxu0 %v1859
          %1925 = vmatprep.subr.bf16.mxu0 %v1862
          %1926 = vmatpush1.bf16.msra.mxu0 %v1861
          %1927 = vmatprep.subr.bf16.mxu0 %v1864
          %1928 = vmatpush1.bf16.msra.mxu0 %v1863
          %1929 = vmatprep.mubr.bf16.mxu0 %v1706
          %1930 = vmatmul.mubr.bf16.gmra.mrb[0].mxu0 %v1705
          %v1931 = vpop.f32.mrb[0].mxu0
          %v1932 = vadd.f32 %v1627, %v1931
          %v1933 = vpop.f32.mrb[0].mxu0
          %v1934 = vadd.f32 %v1629, %v1933
          %v1935 = vpop.f32.mrb[0].mxu0
          %v1936 = vadd.f32 %v1631, %v1935
          %v1937 = vpop.f32.mrb[0].mxu0
          %v1938 = vadd.f32 %v1633, %v1937
          %1939 = vmatprep.mubr.bf16.mxu0 %v1708
          %1940 = vmatmul.mubr.bf16.gmra.mrb[0].mxu0 %v1707
          %v1941 = vpop.f32.mrb[0].mxu0
          %v1942 = vadd.f32 %v1637, %v1941
          %v1943 = vpop.f32.mrb[0].mxu0
          %v1944 = vadd.f32 %v1639, %v1943
          %v1945 = vpop.f32.mrb[0].mxu0
          %v1946 = vadd.f32 %v1641, %v1945
          %v1947 = vpop.f32.mrb[0].mxu0
          %v1948 = vadd.f32 %v1643, %v1947
          %1949 = vmatprep.mubr.bf16.mxu0 %v1710
          %1950 = vmatmul.mubr.bf16.gmra.mrb[0].mxu0 %v1709
          %v1951 = vpop.f32.mrb[0].mxu0
          %v1952 = vadd.f32 %v1647, %v1951
          %v1953 = vpop.f32.mrb[0].mxu0
          %v1954 = vadd.f32 %v1649, %v1953
          %v1955 = vpop.f32.mrb[0].mxu0
          %v1956 = vadd.f32 %v1651, %v1955
          %v1957 = vpop.f32.mrb[0].mxu0
          %v1958 = vadd.f32 %v1653, %v1957
          %1959 = vmatprep.mubr.bf16.mxu0 %v1712
          %1960 = vmatmul.mubr.bf16.gmra.mrb[0].mxu0 %v1711
          %v1961 = vpop.f32.mrb[0].mxu0
          %v1962 = vadd.f32 %v1657, %v1961
          %v1963 = vpop.f32.mrb[0].mxu0
          %v1964 = vadd.f32 %v1659, %v1963
          %v1965 = vpop.f32.mrb[0].mxu0
          %v1966 = vadd.f32 %v1661, %v1965
          %v1967 = vpop.f32.mrb[0].mxu0
          %v1968 = vadd.f32 %v1663, %v1967
          %1969 = vmatprep.mubr.bf16.mxu0 %v1714
          %1970 = vmatmul.mubr.bf16.gmra.mrb[0].mxu0 %v1713
          %v1971 = vpop.f32.mrb[0].mxu0
          %v1972 = vadd.f32 %v1667, %v1971
          %v1973 = vpop.f32.mrb[0].mxu0
          %v1974 = vadd.f32 %v1669, %v1973
          %v1975 = vpop.f32.mrb[0].mxu0
          %v1976 = vadd.f32 %v1671, %v1975
          %v1977 = vpop.f32.mrb[0].mxu0
          %v1978 = vadd.f32 %v1673, %v1977
          %1979 = vmatprep.mubr.bf16.mxu0 %v1716
          %1980 = vmatmul.mubr.bf16.gmra.mrb[0].mxu0 %v1715
          %v1981 = vpop.f32.mrb[0].mxu0
          %v1982 = vadd.f32 %v1677, %v1981
          %v1983 = vpop.f32.mrb[0].mxu0
          %v1984 = vadd.f32 %v1679, %v1983
          %v1985 = vpop.f32.mrb[0].mxu0
          %v1986 = vadd.f32 %v1681, %v1985
          %v1987 = vpop.f32.mrb[0].mxu0
          %v1988 = vadd.f32 %v1683, %v1987
          %1989 = vmatprep.mubr.bf16.mxu0 %v1718
          %1990 = vmatmul.mubr.bf16.gmra.mrb[0].mxu0 %v1717
          %v1991 = vpop.f32.mrb[0].mxu0
          %v1992 = vadd.f32 %v1687, %v1991
          %v1993 = vpop.f32.mrb[0].mxu0
          %v1994 = vadd.f32 %v1689, %v1993
          %v1995 = vpop.f32.mrb[0].mxu0
          %v1996 = vadd.f32 %v1691, %v1995
          %v1997 = vpop.f32.mrb[0].mxu0
          %v1998 = vadd.f32 %v1693, %v1997
          %1999 = vmatprep.mubr.bf16.mxu0 %v1720
          %2000 = vmatmul.mubr.bf16.gmra.mrb[0].mxu0 %v1719
          %v2001 = vpop.f32.mrb[0].mxu0
          %v2002 = vadd.f32 %v1697, %v2001
          %v2003 = vpop.f32.mrb[0].mxu0
          %v2004 = vadd.f32 %v1699, %v2003
          %v2005 = vpop.f32.mrb[0].mxu0
          %v2006 = vadd.f32 %v1701, %v2005
          %v2007 = vpop.f32.mrb[0].mxu0
          %v2008 = vadd.f32 %v1703, %v2007
          %2009 = vdwg.mxu0
          %v2010 = vld [vmem:[#allocation2] sm:$0x1e]
          %v2011 = vld [vmem:[#allocation2 + $0x8] sm:$0x1e]
          %v2012 = vld [vmem:[#allocation2 + $0x10] sm:$0x1e]
          %v2013 = vld [vmem:[#allocation2 + $0x18] sm:$0x1e]
          %v2014 = vld [vmem:[#allocation2 + $0x20] sm:$0x1e]
          %v2015 = vld [vmem:[#allocation2 + $0x28] sm:$0x1e]
          %v2016 = vld [vmem:[#allocation2 + $0x30] sm:$0x1e]
          %v2017 = vld [vmem:[#allocation2 + $0x38] sm:$0x1e]
          %v2018 = vld [vmem:[#allocation2 + $0x40] sm:$0x1e]
          %v2019 = vld [vmem:[#allocation2 + $0x48] sm:$0x1e]
          %v2020 = vld [vmem:[#allocation2 + $0x50] sm:$0x1e]
          %v2021 = vld [vmem:[#allocation2 + $0x58] sm:$0x1e]
          %v2022 = vld [vmem:[#allocation2 + $0x60] sm:$0x1e]
          %v2023 = vld [vmem:[#allocation2 + $0x68] sm:$0x1e]
          %v2024 = vld [vmem:[#allocation2 + $0x70] sm:$0x1e]
          %v2025 = vld [vmem:[#allocation2 + $0x78] sm:$0x1e]
          %v2026 = vld [vmem:[#allocation2 + $0xa0] sm:$0x1e]
          %v2027 = vld [vmem:[#allocation2 + $0xa8] sm:$0x1e]
          %v2028 = vld [vmem:[#allocation2 + $0xb0] sm:$0x1e]
          %v2029 = vld [vmem:[#allocation2 + $0xb8] sm:$0x1e]
          %v2030 = vld [vmem:[#allocation2 + $0xc0] sm:$0x1e]
          %v2031 = vld [vmem:[#allocation2 + $0xc8] sm:$0x1e]
          %v2032 = vld [vmem:[#allocation2 + $0xd0] sm:$0x1e]
          %v2033 = vld [vmem:[#allocation2 + $0xd8] sm:$0x1e]
          %v2034 = vld [vmem:[#allocation2 + $0xe0] sm:$0x1e]
          %v2035 = vld [vmem:[#allocation2 + $0xe8] sm:$0x1e]
          %v2036 = vld [vmem:[#allocation2 + $0xf0] sm:$0x1e]
          %v2037 = vld [vmem:[#allocation2 + $0xf8] sm:$0x1e]
          %v2038 = vld [vmem:[#allocation2 + $0x100] sm:$0x1e]
          %v2039 = vld [vmem:[#allocation2 + $0x108] sm:$0x1e]
          %v2040 = vld [vmem:[#allocation2 + $0x110] sm:$0x1e]
          %v2041 = vld [vmem:[#allocation2 + $0x118] sm:$0x1e]
          %v2074 = vunpack.c.l.b16 %v2010
          %v2075 = vunpack.c.l.b16 %v2011
          %v2076 = vunpack.c.h.b16 %v2010
          %v2077 = vunpack.c.h.b16 %v2011
          %v2078 = vunpack.c.l.b16 %v2012
          %v2079 = vunpack.c.l.b16 %v2013
          %v2080 = vunpack.c.h.b16 %v2012
          %v2081 = vunpack.c.h.b16 %v2013
          %v2082 = vunpack.c.l.b16 %v2014
          %v2083 = vunpack.c.l.b16 %v2015
          %v2084 = vunpack.c.h.b16 %v2014
          %v2085 = vunpack.c.h.b16 %v2015
          %v2086 = vunpack.c.l.b16 %v2016
          %v2087 = vunpack.c.l.b16 %v2017
          %v2088 = vunpack.c.h.b16 %v2016
          %v2089 = vunpack.c.h.b16 %v2017
          %v2090 = vunpack.c.l.b16 %v2018
          %v2091 = vunpack.c.l.b16 %v2019
          %v2092 = vunpack.c.h.b16 %v2018
          %v2093 = vunpack.c.h.b16 %v2019
          %v2094 = vunpack.c.l.b16 %v2020
          %v2095 = vunpack.c.l.b16 %v2021
          %v2096 = vunpack.c.h.b16 %v2020
          %v2097 = vunpack.c.h.b16 %v2021
          %v2098 = vunpack.c.l.b16 %v2022
          %v2099 = vunpack.c.l.b16 %v2023
          %v2100 = vunpack.c.h.b16 %v2022
          %v2101 = vunpack.c.h.b16 %v2023
          %v2102 = vunpack.c.l.b16 %v2024
          %v2103 = vunpack.c.l.b16 %v2025
          %v2104 = vunpack.c.h.b16 %v2024
          %v2105 = vunpack.c.h.b16 %v2025
          %v2106 = vunpack.c.l.b16 %v2026
          %v2107 = vunpack.c.l.b16 %v2027
          %v2108 = vunpack.c.h.b16 %v2026
          %v2109 = vunpack.c.h.b16 %v2027
          %v2110 = vunpack.c.l.b16 %v2028
          %v2111 = vunpack.c.l.b16 %v2029
          %v2112 = vunpack.c.h.b16 %v2028
          %v2113 = vunpack.c.h.b16 %v2029
          %v2114 = vunpack.c.l.b16 %v2030
          %v2115 = vunpack.c.l.b16 %v2031
          %v2116 = vunpack.c.h.b16 %v2030
          %v2117 = vunpack.c.h.b16 %v2031
          %v2118 = vunpack.c.l.b16 %v2032
          %v2119 = vunpack.c.l.b16 %v2033
          %v2120 = vunpack.c.h.b16 %v2032
          %v2121 = vunpack.c.h.b16 %v2033
          %v2122 = vunpack.c.l.b16 %v2034
          %v2123 = vunpack.c.l.b16 %v2035
          %v2124 = vunpack.c.h.b16 %v2034
          %v2125 = vunpack.c.h.b16 %v2035
          %v2126 = vunpack.c.l.b16 %v2036
          %v2127 = vunpack.c.l.b16 %v2037
          %v2128 = vunpack.c.h.b16 %v2036
          %v2129 = vunpack.c.h.b16 %v2037
          %v2130 = vunpack.c.l.b16 %v2038
          %v2131 = vunpack.c.l.b16 %v2039
          %v2132 = vunpack.c.h.b16 %v2038
          %v2133 = vunpack.c.h.b16 %v2039
          %v2134 = vunpack.c.l.b16 %v2040
          %v2135 = vunpack.c.l.b16 %v2041
          %v2136 = vunpack.c.h.b16 %v2040
          %v2137 = vunpack.c.h.b16 %v2041
          %v2138 = vpack.c.b16 %v2075, %v2074
          %v2139 = vpack.c.b16 %v2077, %v2076
          %v2140 = vpack.c.b16 %v2079, %v2078
          %v2141 = vpack.c.b16 %v2081, %v2080
          %v2142 = vpack.c.b16 %v2083, %v2082
          %v2143 = vpack.c.b16 %v2085, %v2084
          %v2144 = vpack.c.b16 %v2087, %v2086
          %v2145 = vpack.c.b16 %v2089, %v2088
          %v2146 = vpack.c.b16 %v2091, %v2090
          %v2147 = vpack.c.b16 %v2093, %v2092
          %v2148 = vpack.c.b16 %v2095, %v2094
          %v2149 = vpack.c.b16 %v2097, %v2096
          %v2150 = vpack.c.b16 %v2099, %v2098
          %v2151 = vpack.c.b16 %v2101, %v2100
          %v2152 = vpack.c.b16 %v2103, %v2102
          %v2153 = vpack.c.b16 %v2105, %v2104
          %v2154 = vpack.c.b16 %v2107, %v2106
          %v2155 = vpack.c.b16 %v2109, %v2108
          %v2156 = vpack.c.b16 %v2111, %v2110
          %v2157 = vpack.c.b16 %v2113, %v2112
          %v2158 = vpack.c.b16 %v2115, %v2114
          %v2159 = vpack.c.b16 %v2117, %v2116
          %v2160 = vpack.c.b16 %v2119, %v2118
          %v2161 = vpack.c.b16 %v2121, %v2120
          %v2162 = vpack.c.b16 %v2123, %v2122
          %v2163 = vpack.c.b16 %v2125, %v2124
          %v2164 = vpack.c.b16 %v2127, %v2126
          %v2165 = vpack.c.b16 %v2129, %v2128
          %v2166 = vpack.c.b16 %v2131, %v2130
          %v2167 = vpack.c.b16 %v2133, %v2132
          %v2168 = vpack.c.b16 %v2135, %v2134
          %v2169 = vpack.c.b16 %v2137, %v2136
          %vm2170 = vcmask 1042432
          %vm2171 = vcmask 1046532
          %vm2172 = vmor %vm2170, %vm2171
          %v2173 = vrot.slane %v2138, 5
          %v2174 = vrot.slane %v2173, 4
          %v2175 = vrot.slane %v2139, 5
          %v2176 = vsel %vm2172, %v2174, %v2175
          %v2177 = vrot.slane %v2140, 5
          %v2178 = vrot.slane %v2177, 4
          %v2179 = vrot.slane %v2141, 5
          %v2180 = vsel %vm2172, %v2178, %v2179
          %v2181 = vrot.slane %v2142, 5
          %v2182 = vrot.slane %v2181, 4
          %v2183 = vrot.slane %v2143, 5
          %v2184 = vsel %vm2172, %v2182, %v2183
          %v2185 = vrot.slane %v2144, 5
          %v2186 = vrot.slane %v2185, 4
          %v2187 = vrot.slane %v2145, 5
          %v2188 = vsel %vm2172, %v2186, %v2187
          %v2189 = vrot.slane %v2146, 5
          %v2190 = vrot.slane %v2189, 4
          %v2191 = vrot.slane %v2147, 5
          %v2192 = vsel %vm2172, %v2190, %v2191
          %v2193 = vrot.slane %v2148, 5
          %v2194 = vrot.slane %v2193, 4
          %v2195 = vrot.slane %v2149, 5
          %v2196 = vsel %vm2172, %v2194, %v2195
          %v2197 = vrot.slane %v2150, 5
          %v2198 = vrot.slane %v2197, 4
          %v2199 = vrot.slane %v2151, 5
          %v2200 = vsel %vm2172, %v2198, %v2199
          %v2201 = vrot.slane %v2152, 5
          %v2202 = vrot.slane %v2201, 4
          %v2203 = vrot.slane %v2153, 5
          %v2204 = vsel %vm2172, %v2202, %v2203
          %v2205 = vrot.slane %v2154, 5
          %v2206 = vrot.slane %v2205, 4
          %v2207 = vrot.slane %v2155, 5
          %v2208 = vsel %vm2172, %v2206, %v2207
          %v2209 = vrot.slane %v2156, 5
          %v2210 = vrot.slane %v2209, 4
          %v2211 = vrot.slane %v2157, 5
          %v2212 = vsel %vm2172, %v2210, %v2211
          %v2213 = vrot.slane %v2158, 5
          %v2214 = vrot.slane %v2213, 4
          %v2215 = vrot.slane %v2159, 5
          %v2216 = vsel %vm2172, %v2214, %v2215
          %v2217 = vrot.slane %v2160, 5
          %v2218 = vrot.slane %v2217, 4
          %v2219 = vrot.slane %v2161, 5
          %v2220 = vsel %vm2172, %v2218, %v2219
          %v2221 = vrot.slane %v2162, 5
          %v2222 = vrot.slane %v2221, 4
          %v2223 = vrot.slane %v2163, 5
          %v2224 = vsel %vm2172, %v2222, %v2223
          %v2225 = vrot.slane %v2164, 5
          %v2226 = vrot.slane %v2225, 4
          %v2227 = vrot.slane %v2165, 5
          %v2228 = vsel %vm2172, %v2226, %v2227
          %v2229 = vrot.slane %v2166, 5
          %v2230 = vrot.slane %v2229, 4
          %v2231 = vrot.slane %v2167, 5
          %v2232 = vsel %vm2172, %v2230, %v2231
          %v2233 = vrot.slane %v2168, 5
          %v2234 = vrot.slane %v2233, 4
          %v2235 = vrot.slane %v2169, 5
          %v2236 = vsel %vm2172, %v2234, %v2235
          %v2237 = vld [vmem:[%s302 + $0x200] sm:$0xff]
          %v2238 = vld [vmem:[%s302 + $0x208] sm:$0xff]
          %v2239 = vld [vmem:[%s302 + $0x210] sm:$0xff]
          %v2240 = vld [vmem:[%s302 + $0x218] sm:$0xff]
          %v2241 = vld [vmem:[%s302 + $0x220] sm:$0xff]
          %v2242 = vld [vmem:[%s302 + $0x228] sm:$0xff]
          %v2243 = vld [vmem:[%s302 + $0x230] sm:$0xff]
          %v2244 = vld [vmem:[%s302 + $0x238] sm:$0xff]
          %v2245 = vld [vmem:[%s302 + $0x240] sm:$0xff]
          %v2246 = vld [vmem:[%s302 + $0x248] sm:$0xff]
          %v2247 = vld [vmem:[%s302 + $0x250] sm:$0xff]
          %v2248 = vld [vmem:[%s302 + $0x258] sm:$0xff]
          %v2249 = vld [vmem:[%s302 + $0x260] sm:$0xff]
          %v2250 = vld [vmem:[%s302 + $0x268] sm:$0xff]
          %v2251 = vld [vmem:[%s302 + $0x270] sm:$0xff]
          %v2252 = vld [vmem:[%s302 + $0x278] sm:$0xff]
          %v2253 = vld [vmem:[%s302 + $0x280] sm:$0xff]
          %v2254 = vld [vmem:[%s302 + $0x288] sm:$0xff]
          %v2255 = vld [vmem:[%s302 + $0x290] sm:$0xff]
          %v2256 = vld [vmem:[%s302 + $0x298] sm:$0xff]
          %v2257 = vld [vmem:[%s302 + $0x2a0] sm:$0xff]
          %v2258 = vld [vmem:[%s302 + $0x2a8] sm:$0xff]
          %v2259 = vld [vmem:[%s302 + $0x2b0] sm:$0xff]
          %v2260 = vld [vmem:[%s302 + $0x2b8] sm:$0xff]
          %v2261 = vld [vmem:[%s302 + $0x2c0] sm:$0xff]
          %v2262 = vld [vmem:[%s302 + $0x2c8] sm:$0xff]
          %v2263 = vld [vmem:[%s302 + $0x2d0] sm:$0xff]
          %v2264 = vld [vmem:[%s302 + $0x2d8] sm:$0xff]
          %v2265 = vld [vmem:[%s302 + $0x2e0] sm:$0xff]
          %v2266 = vld [vmem:[%s302 + $0x2e8] sm:$0xff]
          %v2267 = vld [vmem:[%s302 + $0x2f0] sm:$0xff]
          %v2268 = vld [vmem:[%s302 + $0x2f8] sm:$0xff]
          %v2269 = vunpack.c.l.b16 %v2176
          %v2270 = vunpack.c.h.b16 %v2176
          %v2271 = vunpack.c.l.b16 %v2180
          %v2272 = vunpack.c.h.b16 %v2180
          %v2273 = vunpack.c.l.b16 %v2184
          %v2274 = vunpack.c.h.b16 %v2184
          %v2275 = vunpack.c.l.b16 %v2188
          %v2276 = vunpack.c.h.b16 %v2188
          %v2277 = vunpack.c.l.b16 %v2192
          %v2278 = vunpack.c.h.b16 %v2192
          %v2279 = vunpack.c.l.b16 %v2196
          %v2280 = vunpack.c.h.b16 %v2196
          %v2281 = vunpack.c.l.b16 %v2200
          %v2282 = vunpack.c.h.b16 %v2200
          %v2283 = vunpack.c.l.b16 %v2204
          %v2284 = vunpack.c.h.b16 %v2204
          %v2285 = vunpack.c.l.b16 %v2208
          %v2286 = vunpack.c.h.b16 %v2208
          %v2287 = vunpack.c.l.b16 %v2212
          %v2288 = vunpack.c.h.b16 %v2212
          %v2289 = vunpack.c.l.b16 %v2216
          %v2290 = vunpack.c.h.b16 %v2216
          %v2291 = vunpack.c.l.b16 %v2220
          %v2292 = vunpack.c.h.b16 %v2220
          %v2293 = vunpack.c.l.b16 %v2224
          %v2294 = vunpack.c.h.b16 %v2224
          %v2295 = vunpack.c.l.b16 %v2228
          %v2296 = vunpack.c.h.b16 %v2228
          %v2297 = vunpack.c.l.b16 %v2232
          %v2298 = vunpack.c.h.b16 %v2232
          %v2299 = vunpack.c.l.b16 %v2236
          %v2300 = vunpack.c.h.b16 %v2236
          %v2301 = vpack.c.b16 %v2271, %v2269
          %v2302 = vpack.c.b16 %v2272, %v2270
          %v2303 = vpack.c.b16 %v2275, %v2273
          %v2304 = vpack.c.b16 %v2276, %v2274
          %v2305 = vpack.c.b16 %v2279, %v2277
          %v2306 = vpack.c.b16 %v2280, %v2278
          %v2307 = vpack.c.b16 %v2283, %v2281
          %v2308 = vpack.c.b16 %v2284, %v2282
          %v2309 = vpack.c.b16 %v2287, %v2285
          %v2310 = vpack.c.b16 %v2288, %v2286
          %v2311 = vpack.c.b16 %v2291, %v2289
          %v2312 = vpack.c.b16 %v2292, %v2290
          %v2313 = vpack.c.b16 %v2295, %v2293
          %v2314 = vpack.c.b16 %v2296, %v2294
          %v2315 = vpack.c.b16 %v2299, %v2297
          %v2316 = vpack.c.b16 %v2300, %v2298
          %v2365 = vunpack.c.l.b16 %v2237
          %v2366 = vunpack.c.h.b16 %v2237
          %v2367 = vunpack.c.l.b16 %v2238
          %v2368 = vunpack.c.h.b16 %v2238
          %v2369 = vunpack.c.l.b16 %v2239
          %v2370 = vunpack.c.h.b16 %v2239
          %v2371 = vunpack.c.l.b16 %v2240
          %v2372 = vunpack.c.h.b16 %v2240
          %v2373 = vunpack.c.l.b16 %v2241
          %v2374 = vunpack.c.h.b16 %v2241
          %v2375 = vunpack.c.l.b16 %v2242
          %v2376 = vunpack.c.h.b16 %v2242
          %v2377 = vunpack.c.l.b16 %v2243
          %v2378 = vunpack.c.h.b16 %v2243
          %v2379 = vunpack.c.l.b16 %v2244
          %v2380 = vunpack.c.h.b16 %v2244
          %v2381 = vunpack.c.l.b16 %v2245
          %v2382 = vunpack.c.h.b16 %v2245
          %v2383 = vunpack.c.l.b16 %v2246
          %v2384 = vunpack.c.h.b16 %v2246
          %v2385 = vunpack.c.l.b16 %v2247
          %v2386 = vunpack.c.h.b16 %v2247
          %v2387 = vunpack.c.l.b16 %v2248
          %v2388 = vunpack.c.h.b16 %v2248
          %v2389 = vunpack.c.l.b16 %v2249
          %v2390 = vunpack.c.h.b16 %v2249
          %v2391 = vunpack.c.l.b16 %v2250
          %v2392 = vunpack.c.h.b16 %v2250
          %v2393 = vunpack.c.l.b16 %v2251
          %v2394 = vunpack.c.h.b16 %v2251
          %v2395 = vunpack.c.l.b16 %v2252
          %v2396 = vunpack.c.h.b16 %v2252
          %v2397 = vunpack.c.l.b16 %v2253
          %v2398 = vunpack.c.h.b16 %v2253
          %v2399 = vunpack.c.l.b16 %v2254
          %v2400 = vunpack.c.h.b16 %v2254
          %v2401 = vunpack.c.l.b16 %v2255
          %v2402 = vunpack.c.h.b16 %v2255
          %v2403 = vunpack.c.l.b16 %v2256
          %v2404 = vunpack.c.h.b16 %v2256
          %v2405 = vunpack.c.l.b16 %v2257
          %v2406 = vunpack.c.h.b16 %v2257
          %v2407 = vunpack.c.l.b16 %v2258
          %v2408 = vunpack.c.h.b16 %v2258
          %v2409 = vunpack.c.l.b16 %v2259
          %v2410 = vunpack.c.h.b16 %v2259
          %v2411 = vunpack.c.l.b16 %v2260
          %v2412 = vunpack.c.h.b16 %v2260
          %v2413 = vunpack.c.l.b16 %v2261
          %v2414 = vunpack.c.h.b16 %v2261
          %v2415 = vunpack.c.l.b16 %v2262
          %v2416 = vunpack.c.h.b16 %v2262
          %v2417 = vunpack.c.l.b16 %v2263
          %v2418 = vunpack.c.h.b16 %v2263
          %v2419 = vunpack.c.l.b16 %v2264
          %v2420 = vunpack.c.h.b16 %v2264
          %v2421 = vunpack.c.l.b16 %v2265
          %v2422 = vunpack.c.h.b16 %v2265
          %v2423 = vunpack.c.l.b16 %v2266
          %v2424 = vunpack.c.h.b16 %v2266
          %v2425 = vunpack.c.l.b16 %v2267
          %v2426 = vunpack.c.h.b16 %v2267
          %v2427 = vunpack.c.l.b16 %v2268
          %v2428 = vunpack.c.h.b16 %v2268
          %v2429 = vpack.c.b16 %v2367, %v2365
          %v2430 = vpack.c.b16 %v2368, %v2366
          %v2431 = vpack.c.b16 %v2371, %v2369
          %v2432 = vpack.c.b16 %v2372, %v2370
          %v2433 = vpack.c.b16 %v2375, %v2373
          %v2434 = vpack.c.b16 %v2376, %v2374
          %v2435 = vpack.c.b16 %v2379, %v2377
          %v2436 = vpack.c.b16 %v2380, %v2378
          %v2437 = vpack.c.b16 %v2383, %v2381
          %v2438 = vpack.c.b16 %v2384, %v2382
          %v2439 = vpack.c.b16 %v2387, %v2385
          %v2440 = vpack.c.b16 %v2388, %v2386
          %v2441 = vpack.c.b16 %v2391, %v2389
          %v2442 = vpack.c.b16 %v2392, %v2390
          %v2443 = vpack.c.b16 %v2395, %v2393
          %v2444 = vpack.c.b16 %v2396, %v2394
          %v2445 = vpack.c.b16 %v2399, %v2397
          %v2446 = vpack.c.b16 %v2400, %v2398
          %v2447 = vpack.c.b16 %v2403, %v2401
          %v2448 = vpack.c.b16 %v2404, %v2402
          %v2449 = vpack.c.b16 %v2407, %v2405
          %v2450 = vpack.c.b16 %v2408, %v2406
          %v2451 = vpack.c.b16 %v2411, %v2409
          %v2452 = vpack.c.b16 %v2412, %v2410
          %v2453 = vpack.c.b16 %v2415, %v2413
          %v2454 = vpack.c.b16 %v2416, %v2414
          %v2455 = vpack.c.b16 %v2419, %v2417
          %v2456 = vpack.c.b16 %v2420, %v2418
          %v2457 = vpack.c.b16 %v2423, %v2421
          %v2458 = vpack.c.b16 %v2424, %v2422
          %v2459 = vpack.c.b16 %v2427, %v2425
          %v2460 = vpack.c.b16 %v2428, %v2426
          %2493 = vmatprep.subr.bf16.mxu0 %v2430
          %2494 = vmatpush1.bf16.msra.mxu0 %v2429
          %2495 = vmatprep.subr.bf16.mxu0 %v2432
          %2496 = vmatpush1.bf16.msra.mxu0 %v2431
          %2497 = vmatprep.subr.bf16.mxu0 %v2434
          %2498 = vmatpush1.bf16.msra.mxu0 %v2433
          %2499 = vmatprep.subr.bf16.mxu0 %v2436
          %2500 = vmatpush1.bf16.msra.mxu0 %v2435
          %2501 = vmatprep.subr.bf16.mxu0 %v2438
          %2502 = vmatpush1.bf16.msra.mxu0 %v2437
          %2503 = vmatprep.subr.bf16.mxu0 %v2440
          %2504 = vmatpush1.bf16.msra.mxu0 %v2439
          %2505 = vmatprep.subr.bf16.mxu0 %v2442
          %2506 = vmatpush1.bf16.msra.mxu0 %v2441
          %2507 = vmatprep.subr.bf16.mxu0 %v2444
          %2508 = vmatpush1.bf16.msra.mxu0 %v2443
          %2509 = vmatprep.subr.bf16.mxu0 %v2446
          %2510 = vmatpush1.bf16.msra.mxu0 %v2445
          %2511 = vmatprep.subr.bf16.mxu0 %v2448
          %2512 = vmatpush1.bf16.msra.mxu0 %v2447
          %2513 = vmatprep.subr.bf16.mxu0 %v2450
          %2514 = vmatpush1.bf16.msra.mxu0 %v2449
          %2515 = vmatprep.subr.bf16.mxu0 %v2452
          %2516 = vmatpush1.bf16.msra.mxu0 %v2451
          %2517 = vmatprep.subr.bf16.mxu0 %v2454
          %2518 = vmatpush1.bf16.msra.mxu0 %v2453
          %2519 = vmatprep.subr.bf16.mxu0 %v2456
          %2520 = vmatpush1.bf16.msra.mxu0 %v2455
          %2521 = vmatprep.subr.bf16.mxu0 %v2458
          %2522 = vmatpush1.bf16.msra.mxu0 %v2457
          %2523 = vmatprep.subr.bf16.mxu0 %v2460
          %2524 = vmatpush1.bf16.msra.mxu0 %v2459
          %2525 = vmatprep.mubr.bf16.mxu0 %v2302
          %2526 = vmatmul.mubr.bf16.gmra.mrb[0].mxu0 %v2301
          %v2527 = vpop.f32.mrb[0].mxu0
          %v2528 = vadd.f32 0.0, %v2527
          %v2529 = vpop.f32.mrb[0].mxu0
          %v2530 = vadd.f32 0.0, %v2529
          %v2531 = vpop.f32.mrb[0].mxu0
          %v2532 = vadd.f32 0.0, %v2531
          %v2533 = vpop.f32.mrb[0].mxu0
          %v2534 = vadd.f32 0.0, %v2533
          %2535 = vmatprep.mubr.bf16.mxu0 %v2304
          %2536 = vmatmul.mubr.bf16.gmra.mrb[0].mxu0 %v2303
          %v2537 = vpop.f32.mrb[0].mxu0
          %v2538 = vadd.f32 0.0, %v2537
          %v2539 = vpop.f32.mrb[0].mxu0
          %v2540 = vadd.f32 0.0, %v2539
          %v2541 = vpop.f32.mrb[0].mxu0
          %v2542 = vadd.f32 0.0, %v2541
          %v2543 = vpop.f32.mrb[0].mxu0
          %v2544 = vadd.f32 0.0, %v2543
          %2545 = vmatprep.mubr.bf16.mxu0 %v2306
          %2546 = vmatmul.mubr.bf16.gmra.mrb[0].mxu0 %v2305
          %v2547 = vpop.f32.mrb[0].mxu0
          %v2548 = vadd.f32 0.0, %v2547
          %v2549 = vpop.f32.mrb[0].mxu0
          %v2550 = vadd.f32 0.0, %v2549
          %v2551 = vpop.f32.mrb[0].mxu0
          %v2552 = vadd.f32 0.0, %v2551
          %v2553 = vpop.f32.mrb[0].mxu0
          %v2554 = vadd.f32 0.0, %v2553
          %2555 = vmatprep.mubr.bf16.mxu0 %v2308
          %2556 = vmatmul.mubr.bf16.gmra.mrb[0].mxu0 %v2307
          %v2557 = vpop.f32.mrb[0].mxu0
          %v2558 = vadd.f32 0.0, %v2557
          %v2559 = vpop.f32.mrb[0].mxu0
          %v2560 = vadd.f32 0.0, %v2559
          %v2561 = vpop.f32.mrb[0].mxu0
          %v2562 = vadd.f32 0.0, %v2561
          %v2563 = vpop.f32.mrb[0].mxu0
          %v2564 = vadd.f32 0.0, %v2563
          %2565 = vmatprep.mubr.bf16.mxu0 %v2310
          %2566 = vmatmul.mubr.bf16.gmra.mrb[0].mxu0 %v2309
          %v2567 = vpop.f32.mrb[0].mxu0
          %v2568 = vadd.f32 0.0, %v2567
          %v2569 = vpop.f32.mrb[0].mxu0
          %v2570 = vadd.f32 0.0, %v2569
          %v2571 = vpop.f32.mrb[0].mxu0
          %v2572 = vadd.f32 0.0, %v2571
          %v2573 = vpop.f32.mrb[0].mxu0
          %v2574 = vadd.f32 0.0, %v2573
          %2575 = vmatprep.mubr.bf16.mxu0 %v2312
          %2576 = vmatmul.mubr.bf16.gmra.mrb[0].mxu0 %v2311
          %v2577 = vpop.f32.mrb[0].mxu0
          %v2578 = vadd.f32 0.0, %v2577
          %v2579 = vpop.f32.mrb[0].mxu0
          %v2580 = vadd.f32 0.0, %v2579
          %v2581 = vpop.f32.mrb[0].mxu0
          %v2582 = vadd.f32 0.0, %v2581
          %v2583 = vpop.f32.mrb[0].mxu0
          %v2584 = vadd.f32 0.0, %v2583
          %2585 = vmatprep.mubr.bf16.mxu0 %v2314
          %2586 = vmatmul.mubr.bf16.gmra.mrb[0].mxu0 %v2313
          %v2587 = vpop.f32.mrb[0].mxu0
          %v2588 = vadd.f32 0.0, %v2587
          %v2589 = vpop.f32.mrb[0].mxu0
          %v2590 = vadd.f32 0.0, %v2589
          %v2591 = vpop.f32.mrb[0].mxu0
          %v2592 = vadd.f32 0.0, %v2591
          %v2593 = vpop.f32.mrb[0].mxu0
          %v2594 = vadd.f32 0.0, %v2593
          %2595 = vmatprep.mubr.bf16.mxu0 %v2316
          %2596 = vmatmul.mubr.bf16.gmra.mrb[0].mxu0 %v2315
          %v2597 = vpop.f32.mrb[0].mxu0
          %v2598 = vadd.f32 0.0, %v2597
          %v2599 = vpop.f32.mrb[0].mxu0
          %v2600 = vadd.f32 0.0, %v2599
          %v2601 = vpop.f32.mrb[0].mxu0
          %v2602 = vadd.f32 0.0, %v2601
          %v2603 = vpop.f32.mrb[0].mxu0
          %v2604 = vadd.f32 0.0, %v2603
          %2605 = vdwg.mxu0
          %v2606 = vadd.f32 %v1932, %v2528
          %v2607 = vadd.f32 %v1934, %v2530
          %v2608 = vadd.f32 %v1936, %v2532
          %v2609 = vadd.f32 %v1938, %v2534
          %v2610 = vadd.f32 %v1942, %v2538
          %v2611 = vadd.f32 %v1944, %v2540
          %v2612 = vadd.f32 %v1946, %v2542
          %v2613 = vadd.f32 %v1948, %v2544
          %v2614 = vadd.f32 %v1952, %v2548
          %v2615 = vadd.f32 %v1954, %v2550
          %v2616 = vadd.f32 %v1956, %v2552
          %v2617 = vadd.f32 %v1958, %v2554
          %v2618 = vadd.f32 %v1962, %v2558
          %v2619 = vadd.f32 %v1964, %v2560
          %v2620 = vadd.f32 %v1966, %v2562
          %v2621 = vadd.f32 %v1968, %v2564
          %v2622 = vadd.f32 %v1972, %v2568
          %v2623 = vadd.f32 %v1974, %v2570
          %v2624 = vadd.f32 %v1976, %v2572
          %v2625 = vadd.f32 %v1978, %v2574
          %v2626 = vadd.f32 %v1982, %v2578
          %v2627 = vadd.f32 %v1984, %v2580
          %v2628 = vadd.f32 %v1986, %v2582
          %v2629 = vadd.f32 %v1988, %v2584
          %v2630 = vadd.f32 %v1992, %v2588
          %v2631 = vadd.f32 %v1994, %v2590
          %v2632 = vadd.f32 %v1996, %v2592
          %v2633 = vadd.f32 %v1998, %v2594
          %v2634 = vadd.f32 %v2002, %v2598
          %v2635 = vadd.f32 %v2004, %v2600
          %v2636 = vadd.f32 %v2006, %v2602
          %v2637 = vadd.f32 %v2008, %v2604
          %s2638 = scalar_lea.vmem [#allocation2], 16
          %v2639 = vld [vmem:[%s2638] sm:$0xf]
          %v2640 = vld [vmem:[%s2638 + $0x8] sm:$0xf]
          %v2641 = vld [vmem:[%s2638 + $0x10] sm:$0xf]
          %v2642 = vld [vmem:[%s2638 + $0x18] sm:$0xf]
          %v2643 = vld [vmem:[%s2638 + $0x20] sm:$0xf]
          %v2644 = vld [vmem:[%s2638 + $0x28] sm:$0xf]
          %v2645 = vld [vmem:[%s2638 + $0x30] sm:$0xf]
          %v2646 = vld [vmem:[%s2638 + $0x38] sm:$0xf]
          %v2647 = vld [vmem:[%s2638 + $0x40] sm:$0xf]
          %v2648 = vld [vmem:[%s2638 + $0x48] sm:$0xf]
          %v2649 = vld [vmem:[%s2638 + $0x50] sm:$0xf]
          %v2650 = vld [vmem:[%s2638 + $0x58] sm:$0xf]
          %v2651 = vld [vmem:[%s2638 + $0x60] sm:$0xf]
          %v2652 = vld [vmem:[%s2638 + $0x68] sm:$0xf]
          %v2653 = vld [vmem:[%s2638 + $0x70] sm:$0xf]
          %v2654 = vld [vmem:[%s2638 + $0x78] sm:$0xf]
          %v2655 = vld [vmem:[%s2638 + $0xa0] sm:$0xf]
          %v2656 = vld [vmem:[%s2638 + $0xa8] sm:$0xf]
          %v2657 = vld [vmem:[%s2638 + $0xb0] sm:$0xf]
          %v2658 = vld [vmem:[%s2638 + $0xb8] sm:$0xf]
          %v2659 = vld [vmem:[%s2638 + $0xc0] sm:$0xf]
          %v2660 = vld [vmem:[%s2638 + $0xc8] sm:$0xf]
          %v2661 = vld [vmem:[%s2638 + $0xd0] sm:$0xf]
          %v2662 = vld [vmem:[%s2638 + $0xd8] sm:$0xf]
          %v2663 = vld [vmem:[%s2638 + $0xe0] sm:$0xf]
          %v2664 = vld [vmem:[%s2638 + $0xe8] sm:$0xf]
          %v2665 = vld [vmem:[%s2638 + $0xf0] sm:$0xf]
          %v2666 = vld [vmem:[%s2638 + $0xf8] sm:$0xf]
          %v2667 = vld [vmem:[%s2638 + $0x100] sm:$0xf]
          %v2668 = vld [vmem:[%s2638 + $0x108] sm:$0xf]
          %v2669 = vld [vmem:[%s2638 + $0x110] sm:$0xf]
          %v2670 = vld [vmem:[%s2638 + $0x118] sm:$0xf]
          %v2703 = vunpack.c.l.b16 %v2639
          %v2704 = vunpack.c.l.b16 %v2640
          %v2705 = vunpack.c.l.b16 %v2641
          %v2706 = vunpack.c.l.b16 %v2642
          %v2707 = vunpack.c.l.b16 %v2643
          %v2708 = vunpack.c.l.b16 %v2644
          %v2709 = vunpack.c.l.b16 %v2645
          %v2710 = vunpack.c.l.b16 %v2646
          %v2711 = vunpack.c.l.b16 %v2647
          %v2712 = vunpack.c.l.b16 %v2648
          %v2713 = vunpack.c.l.b16 %v2649
          %v2714 = vunpack.c.l.b16 %v2650
          %v2715 = vunpack.c.l.b16 %v2651
          %v2716 = vunpack.c.l.b16 %v2652
          %v2717 = vunpack.c.l.b16 %v2653
          %v2718 = vunpack.c.l.b16 %v2654
          %v2719 = vunpack.c.l.b16 %v2655
          %v2720 = vunpack.c.l.b16 %v2656
          %v2721 = vunpack.c.l.b16 %v2657
          %v2722 = vunpack.c.l.b16 %v2658
          %v2723 = vunpack.c.l.b16 %v2659
          %v2724 = vunpack.c.l.b16 %v2660
          %v2725 = vunpack.c.l.b16 %v2661
          %v2726 = vunpack.c.l.b16 %v2662
          %v2727 = vunpack.c.l.b16 %v2663
          %v2728 = vunpack.c.l.b16 %v2664
          %v2729 = vunpack.c.l.b16 %v2665
          %v2730 = vunpack.c.l.b16 %v2666
          %v2731 = vunpack.c.l.b16 %v2667
          %v2732 = vunpack.c.l.b16 %v2668
          %v2733 = vunpack.c.l.b16 %v2669
          %v2734 = vunpack.c.l.b16 %v2670
          %v2735 = vld [vmem:[%s302 + $0x300] sm:$0xff]
          %v2736 = vld [vmem:[%s302 + $0x308] sm:$0xff]
          %v2737 = vld [vmem:[%s302 + $0x310] sm:$0xff]
          %v2738 = vld [vmem:[%s302 + $0x318] sm:$0xff]
          %v2739 = vld [vmem:[%s302 + $0x320] sm:$0xff]
          %v2740 = vld [vmem:[%s302 + $0x328] sm:$0xff]
          %v2741 = vld [vmem:[%s302 + $0x330] sm:$0xff]
          %v2742 = vld [vmem:[%s302 + $0x338] sm:$0xff]
          %v2743 = vld [vmem:[%s302 + $0x340] sm:$0xff]
          %v2744 = vld [vmem:[%s302 + $0x348] sm:$0xff]
          %v2745 = vld [vmem:[%s302 + $0x350] sm:$0xff]
          %v2746 = vld [vmem:[%s302 + $0x358] sm:$0xff]
          %v2747 = vld [vmem:[%s302 + $0x360] sm:$0xff]
          %v2748 = vld [vmem:[%s302 + $0x368] sm:$0xff]
          %v2749 = vld [vmem:[%s302 + $0x370] sm:$0xff]
          %v2750 = vld [vmem:[%s302 + $0x378] sm:$0xff]
          %v2751 = vld [vmem:[%s302 + $0x380] sm:$0xff]
          %v2752 = vld [vmem:[%s302 + $0x388] sm:$0xff]
          %v2753 = vld [vmem:[%s302 + $0x390] sm:$0xff]
          %v2754 = vld [vmem:[%s302 + $0x398] sm:$0xff]
          %v2755 = vld [vmem:[%s302 + $0x3a0] sm:$0xff]
          %v2756 = vld [vmem:[%s302 + $0x3a8] sm:$0xff]
          %v2757 = vld [vmem:[%s302 + $0x3b0] sm:$0xff]
          %v2758 = vld [vmem:[%s302 + $0x3b8] sm:$0xff]
          %v2759 = vld [vmem:[%s302 + $0x3c0] sm:$0xff]
          %v2760 = vld [vmem:[%s302 + $0x3c8] sm:$0xff]
          %v2761 = vld [vmem:[%s302 + $0x3d0] sm:$0xff]
          %v2762 = vld [vmem:[%s302 + $0x3d8] sm:$0xff]
          %v2763 = vld [vmem:[%s302 + $0x3e0] sm:$0xff]
          %v2764 = vld [vmem:[%s302 + $0x3e8] sm:$0xff]
          %v2765 = vld [vmem:[%s302 + $0x3f0] sm:$0xff]
          %v2766 = vld [vmem:[%s302 + $0x3f8] sm:$0xff]
          %v2767 = vpack.c.b16 %v2705, %v2703
          %v2768 = vpack.c.b16 %v2706, %v2704
          %v2769 = vpack.c.b16 %v2709, %v2707
          %v2770 = vpack.c.b16 %v2710, %v2708
          %v2771 = vpack.c.b16 %v2713, %v2711
          %v2772 = vpack.c.b16 %v2714, %v2712
          %v2773 = vpack.c.b16 %v2717, %v2715
          %v2774 = vpack.c.b16 %v2718, %v2716
          %v2775 = vpack.c.b16 %v2721, %v2719
          %v2776 = vpack.c.b16 %v2722, %v2720
          %v2777 = vpack.c.b16 %v2725, %v2723
          %v2778 = vpack.c.b16 %v2726, %v2724
          %v2779 = vpack.c.b16 %v2729, %v2727
          %v2780 = vpack.c.b16 %v2730, %v2728
          %v2781 = vpack.c.b16 %v2733, %v2731
          %v2782 = vpack.c.b16 %v2734, %v2732
          %v2831 = vunpack.c.l.b16 %v2735
          %v2832 = vunpack.c.h.b16 %v2735
          %v2833 = vunpack.c.l.b16 %v2736
          %v2834 = vunpack.c.h.b16 %v2736
          %v2835 = vunpack.c.l.b16 %v2737
          %v2836 = vunpack.c.h.b16 %v2737
          %v2837 = vunpack.c.l.b16 %v2738
          %v2838 = vunpack.c.h.b16 %v2738
          %v2839 = vunpack.c.l.b16 %v2739
          %v2840 = vunpack.c.h.b16 %v2739
          %v2841 = vunpack.c.l.b16 %v2740
          %v2842 = vunpack.c.h.b16 %v2740
          %v2843 = vunpack.c.l.b16 %v2741
          %v2844 = vunpack.c.h.b16 %v2741
          %v2845 = vunpack.c.l.b16 %v2742
          %v2846 = vunpack.c.h.b16 %v2742
          %v2847 = vunpack.c.l.b16 %v2743
          %v2848 = vunpack.c.h.b16 %v2743
          %v2849 = vunpack.c.l.b16 %v2744
          %v2850 = vunpack.c.h.b16 %v2744
          %v2851 = vunpack.c.l.b16 %v2745
          %v2852 = vunpack.c.h.b16 %v2745
          %v2853 = vunpack.c.l.b16 %v2746
          %v2854 = vunpack.c.h.b16 %v2746
          %v2855 = vunpack.c.l.b16 %v2747
          %v2856 = vunpack.c.h.b16 %v2747
          %v2857 = vunpack.c.l.b16 %v2748
          %v2858 = vunpack.c.h.b16 %v2748
          %v2859 = vunpack.c.l.b16 %v2749
          %v2860 = vunpack.c.h.b16 %v2749
          %v2861 = vunpack.c.l.b16 %v2750
          %v2862 = vunpack.c.h.b16 %v2750
          %v2863 = vunpack.c.l.b16 %v2751
          %v2864 = vunpack.c.h.b16 %v2751
          %v2865 = vunpack.c.l.b16 %v2752
          %v2866 = vunpack.c.h.b16 %v2752
          %v2867 = vunpack.c.l.b16 %v2753
          %v2868 = vunpack.c.h.b16 %v2753
          %v2869 = vunpack.c.l.b16 %v2754
          %v2870 = vunpack.c.h.b16 %v2754
          %v2871 = vunpack.c.l.b16 %v2755
          %v2872 = vunpack.c.h.b16 %v2755
          %v2873 = vunpack.c.l.b16 %v2756
          %v2874 = vunpack.c.h.b16 %v2756
          %v2875 = vunpack.c.l.b16 %v2757
          %v2876 = vunpack.c.h.b16 %v2757
          %v2877 = vunpack.c.l.b16 %v2758
          %v2878 = vunpack.c.h.b16 %v2758
          %v2879 = vunpack.c.l.b16 %v2759
          %v2880 = vunpack.c.h.b16 %v2759
          %v2881 = vunpack.c.l.b16 %v2760
          %v2882 = vunpack.c.h.b16 %v2760
          %v2883 = vunpack.c.l.b16 %v2761
          %v2884 = vunpack.c.h.b16 %v2761
          %v2885 = vunpack.c.l.b16 %v2762
          %v2886 = vunpack.c.h.b16 %v2762
          %v2887 = vunpack.c.l.b16 %v2763
          %v2888 = vunpack.c.h.b16 %v2763
          %v2889 = vunpack.c.l.b16 %v2764
          %v2890 = vunpack.c.h.b16 %v2764
          %v2891 = vunpack.c.l.b16 %v2765
          %v2892 = vunpack.c.h.b16 %v2765
          %v2893 = vunpack.c.l.b16 %v2766
          %v2894 = vunpack.c.h.b16 %v2766
          %v2895 = vpack.c.b16 %v2833, %v2831
          %v2896 = vpack.c.b16 %v2834, %v2832
          %v2897 = vpack.c.b16 %v2837, %v2835
          %v2898 = vpack.c.b16 %v2838, %v2836
          %v2899 = vpack.c.b16 %v2841, %v2839
          %v2900 = vpack.c.b16 %v2842, %v2840
          %v2901 = vpack.c.b16 %v2845, %v2843
          %v2902 = vpack.c.b16 %v2846, %v2844
          %v2903 = vpack.c.b16 %v2849, %v2847
          %v2904 = vpack.c.b16 %v2850, %v2848
          %v2905 = vpack.c.b16 %v2853, %v2851
          %v2906 = vpack.c.b16 %v2854, %v2852
          %v2907 = vpack.c.b16 %v2857, %v2855
          %v2908 = vpack.c.b16 %v2858, %v2856
          %v2909 = vpack.c.b16 %v2861, %v2859
          %v2910 = vpack.c.b16 %v2862, %v2860
          %v2911 = vpack.c.b16 %v2865, %v2863
          %v2912 = vpack.c.b16 %v2866, %v2864
          %v2913 = vpack.c.b16 %v2869, %v2867
          %v2914 = vpack.c.b16 %v2870, %v2868
          %v2915 = vpack.c.b16 %v2873, %v2871
          %v2916 = vpack.c.b16 %v2874, %v2872
          %v2917 = vpack.c.b16 %v2877, %v2875
          %v2918 = vpack.c.b16 %v2878, %v2876
          %v2919 = vpack.c.b16 %v2881, %v2879
          %v2920 = vpack.c.b16 %v2882, %v2880
          %v2921 = vpack.c.b16 %v2885, %v2883
          %v2922 = vpack.c.b16 %v2886, %v2884
          %v2923 = vpack.c.b16 %v2889, %v2887
          %v2924 = vpack.c.b16 %v2890, %v2888
          %v2925 = vpack.c.b16 %v2893, %v2891
          %v2926 = vpack.c.b16 %v2894, %v2892
          %2959 = vmatprep.subr.bf16.mxu0 %v2896
          %2960 = vmatpush1.bf16.msra.mxu0 %v2895
          %2961 = vmatprep.subr.bf16.mxu0 %v2898
          %2962 = vmatpush1.bf16.msra.mxu0 %v2897
          %2963 = vmatprep.subr.bf16.mxu0 %v2900
          %2964 = vmatpush1.bf16.msra.mxu0 %v2899
          %2965 = vmatprep.subr.bf16.mxu0 %v2902
          %2966 = vmatpush1.bf16.msra.mxu0 %v2901
          %2967 = vmatprep.subr.bf16.mxu0 %v2904
          %2968 = vmatpush1.bf16.msra.mxu0 %v2903
          %2969 = vmatprep.subr.bf16.mxu0 %v2906
          %2970 = vmatpush1.bf16.msra.mxu0 %v2905
          %2971 = vmatprep.subr.bf16.mxu0 %v2908
          %2972 = vmatpush1.bf16.msra.mxu0 %v2907
          %2973 = vmatprep.subr.bf16.mxu0 %v2910
          %2974 = vmatpush1.bf16.msra.mxu0 %v2909
          %2975 = vmatprep.subr.bf16.mxu0 %v2912
          %2976 = vmatpush1.bf16.msra.mxu0 %v2911
          %2977 = vmatprep.subr.bf16.mxu0 %v2914
          %2978 = vmatpush1.bf16.msra.mxu0 %v2913
          %2979 = vmatprep.subr.bf16.mxu0 %v2916
          %2980 = vmatpush1.bf16.msra.mxu0 %v2915
          %2981 = vmatprep.subr.bf16.mxu0 %v2918
          %2982 = vmatpush1.bf16.msra.mxu0 %v2917
          %2983 = vmatprep.subr.bf16.mxu0 %v2920
          %2984 = vmatpush1.bf16.msra.mxu0 %v2919
          %2985 = vmatprep.subr.bf16.mxu0 %v2922
          %2986 = vmatpush1.bf16.msra.mxu0 %v2921
          %2987 = vmatprep.subr.bf16.mxu0 %v2924
          %2988 = vmatpush1.bf16.msra.mxu0 %v2923
          %2989 = vmatprep.subr.bf16.mxu0 %v2926
          %2990 = vmatpush1.bf16.msra.mxu0 %v2925
          %2991 = vmatprep.mubr.bf16.mxu0 %v2768
          %2992 = vmatmul.mubr.bf16.gmra.mrb[0].mxu0 %v2767
          %v2993 = vpop.f32.mrb[0].mxu0
          %v2994 = vadd.f32 0.0, %v2993
          %v2995 = vpop.f32.mrb[0].mxu0
          %v2996 = vadd.f32 0.0, %v2995
          %v2997 = vpop.f32.mrb[0].mxu0
          %v2998 = vadd.f32 0.0, %v2997
          %v2999 = vpop.f32.mrb[0].mxu0
          %v3000 = vadd.f32 0.0, %v2999
          %3001 = vmatprep.mubr.bf16.mxu0 %v2770
          %3002 = vmatmul.mubr.bf16.gmra.mrb[0].mxu0 %v2769
          %v3003 = vpop.f32.mrb[0].mxu0
          %v3004 = vadd.f32 0.0, %v3003
          %v3005 = vpop.f32.mrb[0].mxu0
          %v3006 = vadd.f32 0.0, %v3005
          %v3007 = vpop.f32.mrb[0].mxu0
          %v3008 = vadd.f32 0.0, %v3007
          %v3009 = vpop.f32.mrb[0].mxu0
          %v3010 = vadd.f32 0.0, %v3009
          %3011 = vmatprep.mubr.bf16.mxu0 %v2772
          %3012 = vmatmul.mubr.bf16.gmra.mrb[0].mxu0 %v2771
          %v3013 = vpop.f32.mrb[0].mxu0
          %v3014 = vadd.f32 0.0, %v3013
          %v3015 = vpop.f32.mrb[0].mxu0
          %v3016 = vadd.f32 0.0, %v3015
          %v3017 = vpop.f32.mrb[0].mxu0
          %v3018 = vadd.f32 0.0, %v3017
          %v3019 = vpop.f32.mrb[0].mxu0
          %v3020 = vadd.f32 0.0, %v3019
          %3021 = vmatprep.mubr.bf16.mxu0 %v2774
          %3022 = vmatmul.mubr.bf16.gmra.mrb[0].mxu0 %v2773
          %v3023 = vpop.f32.mrb[0].mxu0
          %v3024 = vadd.f32 0.0, %v3023
          %v3025 = vpop.f32.mrb[0].mxu0
          %v3026 = vadd.f32 0.0, %v3025
          %v3027 = vpop.f32.mrb[0].mxu0
          %v3028 = vadd.f32 0.0, %v3027
          %v3029 = vpop.f32.mrb[0].mxu0
          %v3030 = vadd.f32 0.0, %v3029
          %3031 = vmatprep.mubr.bf16.mxu0 %v2776
          %3032 = vmatmul.mubr.bf16.gmra.mrb[0].mxu0 %v2775
          %v3033 = vpop.f32.mrb[0].mxu0
          %v3034 = vadd.f32 0.0, %v3033
          %v3035 = vpop.f32.mrb[0].mxu0
          %v3036 = vadd.f32 0.0, %v3035
          %v3037 = vpop.f32.mrb[0].mxu0
          %v3038 = vadd.f32 0.0, %v3037
          %v3039 = vpop.f32.mrb[0].mxu0
          %v3040 = vadd.f32 0.0, %v3039
          %3041 = vmatprep.mubr.bf16.mxu0 %v2778
          %3042 = vmatmul.mubr.bf16.gmra.mrb[0].mxu0 %v2777
          %v3043 = vpop.f32.mrb[0].mxu0
          %v3044 = vadd.f32 0.0, %v3043
          %v3045 = vpop.f32.mrb[0].mxu0
          %v3046 = vadd.f32 0.0, %v3045
          %v3047 = vpop.f32.mrb[0].mxu0
          %v3048 = vadd.f32 0.0, %v3047
          %v3049 = vpop.f32.mrb[0].mxu0
          %v3050 = vadd.f32 0.0, %v3049
          %3051 = vmatprep.mubr.bf16.mxu0 %v2780
          %3052 = vmatmul.mubr.bf16.gmra.mrb[0].mxu0 %v2779
          %v3053 = vpop.f32.mrb[0].mxu0
          %v3054 = vadd.f32 0.0, %v3053
          %v3055 = vpop.f32.mrb[0].mxu0
          %v3056 = vadd.f32 0.0, %v3055
          %v3057 = vpop.f32.mrb[0].mxu0
          %v3058 = vadd.f32 0.0, %v3057
          %v3059 = vpop.f32.mrb[0].mxu0
          %v3060 = vadd.f32 0.0, %v3059
          %3061 = vmatprep.mubr.bf16.mxu0 %v2782
          %3062 = vmatmul.mubr.bf16.gmra.mrb[0].mxu0 %v2781
          %v3063 = vpop.f32.mrb[0].mxu0
          %v3064 = vadd.f32 0.0, %v3063
          %v3065 = vpop.f32.mrb[0].mxu0
          %v3066 = vadd.f32 0.0, %v3065
          %v3067 = vpop.f32.mrb[0].mxu0
          %v3068 = vadd.f32 0.0, %v3067
          %v3069 = vpop.f32.mrb[0].mxu0
          %v3070 = vadd.f32 0.0, %v3069
          %3071 = vdwg.mxu0
          %v3072 = vadd.f32 %v2606, %v2994
          %v3073 = vadd.f32 %v2607, %v2996
          %v3074 = vadd.f32 %v2608, %v2998
          %v3075 = vadd.f32 %v2609, %v3000
          %v3076 = vadd.f32 %v2610, %v3004
          %v3077 = vadd.f32 %v2611, %v3006
          %v3078 = vadd.f32 %v2612, %v3008
          %v3079 = vadd.f32 %v2613, %v3010
          %v3080 = vadd.f32 %v2614, %v3014
          %v3081 = vadd.f32 %v2615, %v3016
          %v3082 = vadd.f32 %v2616, %v3018
          %v3083 = vadd.f32 %v2617, %v3020
          %v3084 = vadd.f32 %v2618, %v3024
          %v3085 = vadd.f32 %v2619, %v3026
          %v3086 = vadd.f32 %v2620, %v3028
          %v3087 = vadd.f32 %v2621, %v3030
          %v3088 = vadd.f32 %v2622, %v3034
          %v3089 = vadd.f32 %v2623, %v3036
          %v3090 = vadd.f32 %v2624, %v3038
          %v3091 = vadd.f32 %v2625, %v3040
          %v3092 = vadd.f32 %v2626, %v3044
          %v3093 = vadd.f32 %v2627, %v3046
          %v3094 = vadd.f32 %v2628, %v3048
          %v3095 = vadd.f32 %v2629, %v3050
          %v3096 = vadd.f32 %v2630, %v3054
          %v3097 = vadd.f32 %v2631, %v3056
          %v3098 = vadd.f32 %v2632, %v3058
          %v3099 = vadd.f32 %v2633, %v3060
          %v3100 = vadd.f32 %v2634, %v3064
          %v3101 = vadd.f32 %v2635, %v3066
          %v3102 = vadd.f32 %v2636, %v3068
          %v3103 = vadd.f32 %v2637, %v3070
          %v3104 = vld [vmem:[%s2638] sm:$0x1f]
          %v3105 = vld [vmem:[%s2638 + $0x8] sm:$0x1f]
          %v3106 = vld [vmem:[%s2638 + $0x10] sm:$0x1f]
          %v3107 = vld [vmem:[%s2638 + $0x18] sm:$0x1f]
          %v3108 = vld [vmem:[%s2638 + $0x20] sm:$0x1f]
          %v3109 = vld [vmem:[%s2638 + $0x28] sm:$0x1f]
          %v3110 = vld [vmem:[%s2638 + $0x30] sm:$0x1f]
          %v3111 = vld [vmem:[%s2638 + $0x38] sm:$0x1f]
          %v3112 = vld [vmem:[%s2638 + $0x40] sm:$0x1f]
          %v3113 = vld [vmem:[%s2638 + $0x48] sm:$0x1f]
          %v3114 = vld [vmem:[%s2638 + $0x50] sm:$0x1f]
          %v3115 = vld [vmem:[%s2638 + $0x58] sm:$0x1f]
          %v3116 = vld [vmem:[%s2638 + $0x60] sm:$0x1f]
          %v3117 = vld [vmem:[%s2638 + $0x68] sm:$0x1f]
          %v3118 = vld [vmem:[%s2638 + $0x70] sm:$0x1f]
          %v3119 = vld [vmem:[%s2638 + $0x78] sm:$0x1f]
          %v3120 = vld [vmem:[%s2638 + $0xa0] sm:$0x1f]
          %v3121 = vld [vmem:[%s2638 + $0xa8] sm:$0x1f]
          %v3122 = vld [vmem:[%s2638 + $0xb0] sm:$0x1f]
          %v3123 = vld [vmem:[%s2638 + $0xb8] sm:$0x1f]
          %v3124 = vld [vmem:[%s2638 + $0xc0] sm:$0x1f]
          %v3125 = vld [vmem:[%s2638 + $0xc8] sm:$0x1f]
          %v3126 = vld [vmem:[%s2638 + $0xd0] sm:$0x1f]
          %v3127 = vld [vmem:[%s2638 + $0xd8] sm:$0x1f]
          %v3128 = vld [vmem:[%s2638 + $0xe0] sm:$0x1f]
          %v3129 = vld [vmem:[%s2638 + $0xe8] sm:$0x1f]
          %v3130 = vld [vmem:[%s2638 + $0xf0] sm:$0x1f]
          %v3131 = vld [vmem:[%s2638 + $0xf8] sm:$0x1f]
          %v3132 = vld [vmem:[%s2638 + $0x100] sm:$0x1f]
          %v3133 = vld [vmem:[%s2638 + $0x108] sm:$0x1f]
          %v3134 = vld [vmem:[%s2638 + $0x110] sm:$0x1f]
          %v3135 = vld [vmem:[%s2638 + $0x118] sm:$0x1f]
          %v3168 = vunpack.c.l.b16 %v3104
          %v3169 = vunpack.c.l.b16 %v3105
          %v3170 = vunpack.c.h.b16 %v3104
          %v3171 = vunpack.c.h.b16 %v3105
          %v3172 = vunpack.c.l.b16 %v3106
          %v3173 = vunpack.c.l.b16 %v3107
          %v3174 = vunpack.c.h.b16 %v3106
          %v3175 = vunpack.c.h.b16 %v3107
          %v3176 = vunpack.c.l.b16 %v3108
          %v3177 = vunpack.c.l.b16 %v3109
          %v3178 = vunpack.c.h.b16 %v3108
          %v3179 = vunpack.c.h.b16 %v3109
          %v3180 = vunpack.c.l.b16 %v3110
          %v3181 = vunpack.c.l.b16 %v3111
          %v3182 = vunpack.c.h.b16 %v3110
          %v3183 = vunpack.c.h.b16 %v3111
          %v3184 = vunpack.c.l.b16 %v3112
          %v3185 = vunpack.c.l.b16 %v3113
          %v3186 = vunpack.c.h.b16 %v3112
          %v3187 = vunpack.c.h.b16 %v3113
          %v3188 = vunpack.c.l.b16 %v3114
          %v3189 = vunpack.c.l.b16 %v3115
          %v3190 = vunpack.c.h.b16 %v3114
          %v3191 = vunpack.c.h.b16 %v3115
          %v3192 = vunpack.c.l.b16 %v3116
          %v3193 = vunpack.c.l.b16 %v3117
          %v3194 = vunpack.c.h.b16 %v3116
          %v3195 = vunpack.c.h.b16 %v3117
          %v3196 = vunpack.c.l.b16 %v3118
          %v3197 = vunpack.c.l.b16 %v3119
          %v3198 = vunpack.c.h.b16 %v3118
          %v3199 = vunpack.c.h.b16 %v3119
          %v3200 = vunpack.c.l.b16 %v3120
          %v3201 = vunpack.c.l.b16 %v3121
          %v3202 = vunpack.c.h.b16 %v3120
          %v3203 = vunpack.c.h.b16 %v3121
          %v3204 = vunpack.c.l.b16 %v3122
          %v3205 = vunpack.c.l.b16 %v3123
          %v3206 = vunpack.c.h.b16 %v3122
          %v3207 = vunpack.c.h.b16 %v3123
          %v3208 = vunpack.c.l.b16 %v3124
          %v3209 = vunpack.c.l.b16 %v3125
          %v3210 = vunpack.c.h.b16 %v3124
          %v3211 = vunpack.c.h.b16 %v3125
          %v3212 = vunpack.c.l.b16 %v3126
          %v3213 = vunpack.c.l.b16 %v3127
          %v3214 = vunpack.c.h.b16 %v3126
          %v3215 = vunpack.c.h.b16 %v3127
          %v3216 = vunpack.c.l.b16 %v3128
          %v3217 = vunpack.c.l.b16 %v3129
          %v3218 = vunpack.c.h.b16 %v3128
          %v3219 = vunpack.c.h.b16 %v3129
          %v3220 = vunpack.c.l.b16 %v3130
          %v3221 = vunpack.c.l.b16 %v3131
          %v3222 = vunpack.c.h.b16 %v3130
          %v3223 = vunpack.c.h.b16 %v3131
          %v3224 = vunpack.c.l.b16 %v3132
          %v3225 = vunpack.c.l.b16 %v3133
          %v3226 = vunpack.c.h.b16 %v3132
          %v3227 = vunpack.c.h.b16 %v3133
          %v3228 = vunpack.c.l.b16 %v3134
          %v3229 = vunpack.c.l.b16 %v3135
          %v3230 = vunpack.c.h.b16 %v3134
          %v3231 = vunpack.c.h.b16 %v3135
          %v3232 = vpack.c.b16 %v3169, %v3168
          %v3233 = vpack.c.b16 %v3171, %v3170
          %v3234 = vpack.c.b16 %v3173, %v3172
          %v3235 = vpack.c.b16 %v3175, %v3174
          %v3236 = vpack.c.b16 %v3177, %v3176
          %v3237 = vpack.c.b16 %v3179, %v3178
          %v3238 = vpack.c.b16 %v3181, %v3180
          %v3239 = vpack.c.b16 %v3183, %v3182
          %v3240 = vpack.c.b16 %v3185, %v3184
          %v3241 = vpack.c.b16 %v3187, %v3186
          %v3242 = vpack.c.b16 %v3189, %v3188
          %v3243 = vpack.c.b16 %v3191, %v3190
          %v3244 = vpack.c.b16 %v3193, %v3192
          %v3245 = vpack.c.b16 %v3195, %v3194
          %v3246 = vpack.c.b16 %v3197, %v3196
          %v3247 = vpack.c.b16 %v3199, %v3198
          %v3248 = vpack.c.b16 %v3201, %v3200
          %v3249 = vpack.c.b16 %v3203, %v3202
          %v3250 = vpack.c.b16 %v3205, %v3204
          %v3251 = vpack.c.b16 %v3207, %v3206
          %v3252 = vpack.c.b16 %v3209, %v3208
          %v3253 = vpack.c.b16 %v3211, %v3210
          %v3254 = vpack.c.b16 %v3213, %v3212
          %v3255 = vpack.c.b16 %v3215, %v3214
          %v3256 = vpack.c.b16 %v3217, %v3216
          %v3257 = vpack.c.b16 %v3219, %v3218
          %v3258 = vpack.c.b16 %v3221, %v3220
          %v3259 = vpack.c.b16 %v3223, %v3222
          %v3260 = vpack.c.b16 %v3225, %v3224
          %v3261 = vpack.c.b16 %v3227, %v3226
          %v3262 = vpack.c.b16 %v3229, %v3228
          %v3263 = vpack.c.b16 %v3231, %v3230
          %v3265 = vshrl.u32 %v3232, 16
          %v3267 = vrot.slane %v3265, 4
          %v3268 = vshll.u32 %v3232, 16
          %v3270 = vrot.slane %v3268, 5
          %v3271 = vor.u32 %v3267, %v3270
          %v3272 = vrot.slane %v3271, 4
          %v3274 = vshll.u32 %v3233, 16
          %v3276 = vrot.slane %v3274, 5
          %v3277 = vsel %vm1111, %v3272, %v3276
          %v3279 = vshrl.u32 %v3234, 16
          %v3281 = vrot.slane %v3279, 4
          %v3282 = vshll.u32 %v3234, 16
          %v3284 = vrot.slane %v3282, 5
          %v3285 = vor.u32 %v3281, %v3284
          %v3286 = vrot.slane %v3285, 4
          %v3288 = vshll.u32 %v3235, 16
          %v3290 = vrot.slane %v3288, 5
          %v3291 = vsel %vm1111, %v3286, %v3290
          %v3293 = vshrl.u32 %v3236, 16
          %v3295 = vrot.slane %v3293, 4
          %v3296 = vshll.u32 %v3236, 16
          %v3298 = vrot.slane %v3296, 5
          %v3299 = vor.u32 %v3295, %v3298
          %v3300 = vrot.slane %v3299, 4
          %v3302 = vshll.u32 %v3237, 16
          %v3304 = vrot.slane %v3302, 5
          %v3305 = vsel %vm1111, %v3300, %v3304
          %v3307 = vshrl.u32 %v3238, 16
          %v3309 = vrot.slane %v3307, 4
          %v3310 = vshll.u32 %v3238, 16
          %v3312 = vrot.slane %v3310, 5
          %v3313 = vor.u32 %v3309, %v3312
          %v3314 = vrot.slane %v3313, 4
          %v3316 = vshll.u32 %v3239, 16
          %v3318 = vrot.slane %v3316, 5
          %v3319 = vsel %vm1111, %v3314, %v3318
          %v3321 = vshrl.u32 %v3240, 16
          %v3323 = vrot.slane %v3321, 4
          %v3324 = vshll.u32 %v3240, 16
          %v3326 = vrot.slane %v3324, 5
          %v3327 = vor.u32 %v3323, %v3326
          %v3328 = vrot.slane %v3327, 4
          %v3330 = vshll.u32 %v3241, 16
          %v3332 = vrot.slane %v3330, 5
          %v3333 = vsel %vm1111, %v3328, %v3332
          %v3335 = vshrl.u32 %v3242, 16
          %v3337 = vrot.slane %v3335, 4
          %v3338 = vshll.u32 %v3242, 16
          %v3340 = vrot.slane %v3338, 5
          %v3341 = vor.u32 %v3337, %v3340
          %v3342 = vrot.slane %v3341, 4
          %v3344 = vshll.u32 %v3243, 16
          %v3346 = vrot.slane %v3344, 5
          %v3347 = vsel %vm1111, %v3342, %v3346
          %v3349 = vshrl.u32 %v3244, 16
          %v3351 = vrot.slane %v3349, 4
          %v3352 = vshll.u32 %v3244, 16
          %v3354 = vrot.slane %v3352, 5
          %v3355 = vor.u32 %v3351, %v3354
          %v3356 = vrot.slane %v3355, 4
          %v3358 = vshll.u32 %v3245, 16
          %v3360 = vrot.slane %v3358, 5
          %v3361 = vsel %vm1111, %v3356, %v3360
          %v3363 = vshrl.u32 %v3246, 16
          %v3365 = vrot.slane %v3363, 4
          %v3366 = vshll.u32 %v3246, 16
          %v3368 = vrot.slane %v3366, 5
          %v3369 = vor.u32 %v3365, %v3368
          %v3370 = vrot.slane %v3369, 4
          %v3372 = vshll.u32 %v3247, 16
          %v3374 = vrot.slane %v3372, 5
          %v3375 = vsel %vm1111, %v3370, %v3374
          %v3377 = vshrl.u32 %v3248, 16
          %v3379 = vrot.slane %v3377, 4
          %v3380 = vshll.u32 %v3248, 16
          %v3382 = vrot.slane %v3380, 5
          %v3383 = vor.u32 %v3379, %v3382
          %v3384 = vrot.slane %v3383, 4
          %v3386 = vshll.u32 %v3249, 16
          %v3388 = vrot.slane %v3386, 5
          %v3389 = vsel %vm1111, %v3384, %v3388
          %v3391 = vshrl.u32 %v3250, 16
          %v3393 = vrot.slane %v3391, 4
          %v3394 = vshll.u32 %v3250, 16
          %v3396 = vrot.slane %v3394, 5
          %v3397 = vor.u32 %v3393, %v3396
          %v3398 = vrot.slane %v3397, 4
          %v3400 = vshll.u32 %v3251, 16
          %v3402 = vrot.slane %v3400, 5
          %v3403 = vsel %vm1111, %v3398, %v3402
          %v3405 = vshrl.u32 %v3252, 16
          %v3407 = vrot.slane %v3405, 4
          %v3408 = vshll.u32 %v3252, 16
          %v3410 = vrot.slane %v3408, 5
          %v3411 = vor.u32 %v3407, %v3410
          %v3412 = vrot.slane %v3411, 4
          %v3414 = vshll.u32 %v3253, 16
          %v3416 = vrot.slane %v3414, 5
          %v3417 = vsel %vm1111, %v3412, %v3416
          %v3419 = vshrl.u32 %v3254, 16
          %v3421 = vrot.slane %v3419, 4
          %v3422 = vshll.u32 %v3254, 16
          %v3424 = vrot.slane %v3422, 5
          %v3425 = vor.u32 %v3421, %v3424
          %v3426 = vrot.slane %v3425, 4
          %v3428 = vshll.u32 %v3255, 16
          %v3430 = vrot.slane %v3428, 5
          %v3431 = vsel %vm1111, %v3426, %v3430
          %v3433 = vshrl.u32 %v3256, 16
          %v3435 = vrot.slane %v3433, 4
          %v3436 = vshll.u32 %v3256, 16
          %v3438 = vrot.slane %v3436, 5
          %v3439 = vor.u32 %v3435, %v3438
          %v3440 = vrot.slane %v3439, 4
          %v3442 = vshll.u32 %v3257, 16
          %v3444 = vrot.slane %v3442, 5
          %v3445 = vsel %vm1111, %v3440, %v3444
          %v3447 = vshrl.u32 %v3258, 16
          %v3449 = vrot.slane %v3447, 4
          %v3450 = vshll.u32 %v3258, 16
          %v3452 = vrot.slane %v3450, 5
          %v3453 = vor.u32 %v3449, %v3452
          %v3454 = vrot.slane %v3453, 4
          %v3456 = vshll.u32 %v3259, 16
          %v3458 = vrot.slane %v3456, 5
          %v3459 = vsel %vm1111, %v3454, %v3458
          %v3461 = vshrl.u32 %v3260, 16
          %v3463 = vrot.slane %v3461, 4
          %v3464 = vshll.u32 %v3260, 16
          %v3466 = vrot.slane %v3464, 5
          %v3467 = vor.u32 %v3463, %v3466
          %v3468 = vrot.slane %v3467, 4
          %v3470 = vshll.u32 %v3261, 16
          %v3472 = vrot.slane %v3470, 5
          %v3473 = vsel %vm1111, %v3468, %v3472
          %v3475 = vshrl.u32 %v3262, 16
          %v3477 = vrot.slane %v3475, 4
          %v3478 = vshll.u32 %v3262, 16
          %v3480 = vrot.slane %v3478, 5
          %v3481 = vor.u32 %v3477, %v3480
          %v3482 = vrot.slane %v3481, 4
          %v3484 = vshll.u32 %v3263, 16
          %v3486 = vrot.slane %v3484, 5
          %v3487 = vsel %vm1111, %v3482, %v3486
          %v3488 = vld [vmem:[%s302 + $0x400] sm:$0xff]
          %v3489 = vld [vmem:[%s302 + $0x408] sm:$0xff]
          %v3490 = vld [vmem:[%s302 + $0x410] sm:$0xff]
          %v3491 = vld [vmem:[%s302 + $0x418] sm:$0xff]
          %v3492 = vld [vmem:[%s302 + $0x420] sm:$0xff]
          %v3493 = vld [vmem:[%s302 + $0x428] sm:$0xff]
          %v3494 = vld [vmem:[%s302 + $0x430] sm:$0xff]
          %v3495 = vld [vmem:[%s302 + $0x438] sm:$0xff]
          %v3496 = vld [vmem:[%s302 + $0x440] sm:$0xff]
          %v3497 = vld [vmem:[%s302 + $0x448] sm:$0xff]
          %v3498 = vld [vmem:[%s302 + $0x450] sm:$0xff]
          %v3499 = vld [vmem:[%s302 + $0x458] sm:$0xff]
          %v3500 = vld [vmem:[%s302 + $0x460] sm:$0xff]
          %v3501 = vld [vmem:[%s302 + $0x468] sm:$0xff]
          %v3502 = vld [vmem:[%s302 + $0x470] sm:$0xff]
          %v3503 = vld [vmem:[%s302 + $0x478] sm:$0xff]
          %v3504 = vld [vmem:[%s302 + $0x480] sm:$0xff]
          %v3505 = vld [vmem:[%s302 + $0x488] sm:$0xff]
          %v3506 = vld [vmem:[%s302 + $0x490] sm:$0xff]
          %v3507 = vld [vmem:[%s302 + $0x498] sm:$0xff]
          %v3508 = vld [vmem:[%s302 + $0x4a0] sm:$0xff]
          %v3509 = vld [vmem:[%s302 + $0x4a8] sm:$0xff]
          %v3510 = vld [vmem:[%s302 + $0x4b0] sm:$0xff]
          %v3511 = vld [vmem:[%s302 + $0x4b8] sm:$0xff]
          %v3512 = vld [vmem:[%s302 + $0x4c0] sm:$0xff]
          %v3513 = vld [vmem:[%s302 + $0x4c8] sm:$0xff]
          %v3514 = vld [vmem:[%s302 + $0x4d0] sm:$0xff]
          %v3515 = vld [vmem:[%s302 + $0x4d8] sm:$0xff]
          %v3516 = vld [vmem:[%s302 + $0x4e0] sm:$0xff]
          %v3517 = vld [vmem:[%s302 + $0x4e8] sm:$0xff]
          %v3518 = vld [vmem:[%s302 + $0x4f0] sm:$0xff]
          %v3519 = vld [vmem:[%s302 + $0x4f8] sm:$0xff]
          %v3520 = vunpack.c.l.b16 %v3277
          %v3521 = vunpack.c.h.b16 %v3277
          %v3522 = vunpack.c.l.b16 %v3291
          %v3523 = vunpack.c.h.b16 %v3291
          %v3524 = vunpack.c.l.b16 %v3305
          %v3525 = vunpack.c.h.b16 %v3305
          %v3526 = vunpack.c.l.b16 %v3319
          %v3527 = vunpack.c.h.b16 %v3319
          %v3528 = vunpack.c.l.b16 %v3333
          %v3529 = vunpack.c.h.b16 %v3333
          %v3530 = vunpack.c.l.b16 %v3347
          %v3531 = vunpack.c.h.b16 %v3347
          %v3532 = vunpack.c.l.b16 %v3361
          %v3533 = vunpack.c.h.b16 %v3361
          %v3534 = vunpack.c.l.b16 %v3375
          %v3535 = vunpack.c.h.b16 %v3375
          %v3536 = vunpack.c.l.b16 %v3389
          %v3537 = vunpack.c.h.b16 %v3389
          %v3538 = vunpack.c.l.b16 %v3403
          %v3539 = vunpack.c.h.b16 %v3403
          %v3540 = vunpack.c.l.b16 %v3417
          %v3541 = vunpack.c.h.b16 %v3417
          %v3542 = vunpack.c.l.b16 %v3431
          %v3543 = vunpack.c.h.b16 %v3431
          %v3544 = vunpack.c.l.b16 %v3445
          %v3545 = vunpack.c.h.b16 %v3445
          %v3546 = vunpack.c.l.b16 %v3459
          %v3547 = vunpack.c.h.b16 %v3459
          %v3548 = vunpack.c.l.b16 %v3473
          %v3549 = vunpack.c.h.b16 %v3473
          %v3550 = vunpack.c.l.b16 %v3487
          %v3551 = vunpack.c.h.b16 %v3487
          %v3552 = vpack.c.b16 %v3522, %v3520
          %v3553 = vpack.c.b16 %v3523, %v3521
          %v3554 = vpack.c.b16 %v3526, %v3524
          %v3555 = vpack.c.b16 %v3527, %v3525
          %v3556 = vpack.c.b16 %v3530, %v3528
          %v3557 = vpack.c.b16 %v3531, %v3529
          %v3558 = vpack.c.b16 %v3534, %v3532
          %v3559 = vpack.c.b16 %v3535, %v3533
          %v3560 = vpack.c.b16 %v3538, %v3536
          %v3561 = vpack.c.b16 %v3539, %v3537
          %v3562 = vpack.c.b16 %v3542, %v3540
          %v3563 = vpack.c.b16 %v3543, %v3541
          %v3564 = vpack.c.b16 %v3546, %v3544
          %v3565 = vpack.c.b16 %v3547, %v3545
          %v3566 = vpack.c.b16 %v3550, %v3548
          %v3567 = vpack.c.b16 %v3551, %v3549
          %v3616 = vunpack.c.l.b16 %v3488
          %v3617 = vunpack.c.h.b16 %v3488
          %v3618 = vunpack.c.l.b16 %v3489
          %v3619 = vunpack.c.h.b16 %v3489
          %v3620 = vunpack.c.l.b16 %v3490
          %v3621 = vunpack.c.h.b16 %v3490
          %v3622 = vunpack.c.l.b16 %v3491
          %v3623 = vunpack.c.h.b16 %v3491
          %v3624 = vunpack.c.l.b16 %v3492
          %v3625 = vunpack.c.h.b16 %v3492
          %v3626 = vunpack.c.l.b16 %v3493
          %v3627 = vunpack.c.h.b16 %v3493
          %v3628 = vunpack.c.l.b16 %v3494
          %v3629 = vunpack.c.h.b16 %v3494
          %v3630 = vunpack.c.l.b16 %v3495
          %v3631 = vunpack.c.h.b16 %v3495
          %v3632 = vunpack.c.l.b16 %v3496
          %v3633 = vunpack.c.h.b16 %v3496
          %v3634 = vunpack.c.l.b16 %v3497
          %v3635 = vunpack.c.h.b16 %v3497
          %v3636 = vunpack.c.l.b16 %v3498
          %v3637 = vunpack.c.h.b16 %v3498
          %v3638 = vunpack.c.l.b16 %v3499
          %v3639 = vunpack.c.h.b16 %v3499
          %v3640 = vunpack.c.l.b16 %v3500
          %v3641 = vunpack.c.h.b16 %v3500
          %v3642 = vunpack.c.l.b16 %v3501
          %v3643 = vunpack.c.h.b16 %v3501
          %v3644 = vunpack.c.l.b16 %v3502
          %v3645 = vunpack.c.h.b16 %v3502
          %v3646 = vunpack.c.l.b16 %v3503
          %v3647 = vunpack.c.h.b16 %v3503
          %v3648 = vunpack.c.l.b16 %v3504
          %v3649 = vunpack.c.h.b16 %v3504
          %v3650 = vunpack.c.l.b16 %v3505
          %v3651 = vunpack.c.h.b16 %v3505
          %v3652 = vunpack.c.l.b16 %v3506
          %v3653 = vunpack.c.h.b16 %v3506
          %v3654 = vunpack.c.l.b16 %v3507
          %v3655 = vunpack.c.h.b16 %v3507
          %v3656 = vunpack.c.l.b16 %v3508
          %v3657 = vunpack.c.h.b16 %v3508
          %v3658 = vunpack.c.l.b16 %v3509
          %v3659 = vunpack.c.h.b16 %v3509
          %v3660 = vunpack.c.l.b16 %v3510
          %v3661 = vunpack.c.h.b16 %v3510
          %v3662 = vunpack.c.l.b16 %v3511
          %v3663 = vunpack.c.h.b16 %v3511
          %v3664 = vunpack.c.l.b16 %v3512
          %v3665 = vunpack.c.h.b16 %v3512
          %v3666 = vunpack.c.l.b16 %v3513
          %v3667 = vunpack.c.h.b16 %v3513
          %v3668 = vunpack.c.l.b16 %v3514
          %v3669 = vunpack.c.h.b16 %v3514
          %v3670 = vunpack.c.l.b16 %v3515
          %v3671 = vunpack.c.h.b16 %v3515
          %v3672 = vunpack.c.l.b16 %v3516
          %v3673 = vunpack.c.h.b16 %v3516
          %v3674 = vunpack.c.l.b16 %v3517
          %v3675 = vunpack.c.h.b16 %v3517
          %v3676 = vunpack.c.l.b16 %v3518
          %v3677 = vunpack.c.h.b16 %v3518
          %v3678 = vunpack.c.l.b16 %v3519
          %v3679 = vunpack.c.h.b16 %v3519
          %v3680 = vpack.c.b16 %v3618, %v3616
          %v3681 = vpack.c.b16 %v3619, %v3617
          %v3682 = vpack.c.b16 %v3622, %v3620
          %v3683 = vpack.c.b16 %v3623, %v3621
          %v3684 = vpack.c.b16 %v3626, %v3624
          %v3685 = vpack.c.b16 %v3627, %v3625
          %v3686 = vpack.c.b16 %v3630, %v3628
          %v3687 = vpack.c.b16 %v3631, %v3629
          %v3688 = vpack.c.b16 %v3634, %v3632
          %v3689 = vpack.c.b16 %v3635, %v3633
          %v3690 = vpack.c.b16 %v3638, %v3636
          %v3691 = vpack.c.b16 %v3639, %v3637
          %v3692 = vpack.c.b16 %v3642, %v3640
          %v3693 = vpack.c.b16 %v3643, %v3641
          %v3694 = vpack.c.b16 %v3646, %v3644
          %v3695 = vpack.c.b16 %v3647, %v3645
          %v3696 = vpack.c.b16 %v3650, %v3648
          %v3697 = vpack.c.b16 %v3651, %v3649
          %v3698 = vpack.c.b16 %v3654, %v3652
          %v3699 = vpack.c.b16 %v3655, %v3653
          %v3700 = vpack.c.b16 %v3658, %v3656
          %v3701 = vpack.c.b16 %v3659, %v3657
          %v3702 = vpack.c.b16 %v3662, %v3660
          %v3703 = vpack.c.b16 %v3663, %v3661
          %v3704 = vpack.c.b16 %v3666, %v3664
          %v3705 = vpack.c.b16 %v3667, %v3665
          %v3706 = vpack.c.b16 %v3670, %v3668
          %v3707 = vpack.c.b16 %v3671, %v3669
          %v3708 = vpack.c.b16 %v3674, %v3672
          %v3709 = vpack.c.b16 %v3675, %v3673
          %v3710 = vpack.c.b16 %v3678, %v3676
          %v3711 = vpack.c.b16 %v3679, %v3677
          %3744 = vmatprep.subr.bf16.mxu0 %v3681
          %3745 = vmatpush1.bf16.msra.mxu0 %v3680
          %3746 = vmatprep.subr.bf16.mxu0 %v3683
          %3747 = vmatpush1.bf16.msra.mxu0 %v3682
          %3748 = vmatprep.subr.bf16.mxu0 %v3685
          %3749 = vmatpush1.bf16.msra.mxu0 %v3684
          %3750 = vmatprep.subr.bf16.mxu0 %v3687
          %3751 = vmatpush1.bf16.msra.mxu0 %v3686
          %3752 = vmatprep.subr.bf16.mxu0 %v3689
          %3753 = vmatpush1.bf16.msra.mxu0 %v3688
          %3754 = vmatprep.subr.bf16.mxu0 %v3691
          %3755 = vmatpush1.bf16.msra.mxu0 %v3690
          %3756 = vmatprep.subr.bf16.mxu0 %v3693
          %3757 = vmatpush1.bf16.msra.mxu0 %v3692
          %3758 = vmatprep.subr.bf16.mxu0 %v3695
          %3759 = vmatpush1.bf16.msra.mxu0 %v3694
          %3760 = vmatprep.subr.bf16.mxu0 %v3697
          %3761 = vmatpush1.bf16.msra.mxu0 %v3696
          %3762 = vmatprep.subr.bf16.mxu0 %v3699
          %3763 = vmatpush1.bf16.msra.mxu0 %v3698
          %3764 = vmatprep.subr.bf16.mxu0 %v3701
          %3765 = vmatpush1.bf16.msra.mxu0 %v3700
          %3766 = vmatprep.subr.bf16.mxu0 %v3703
          %3767 = vmatpush1.bf16.msra.mxu0 %v3702
          %3768 = vmatprep.subr.bf16.mxu0 %v3705
          %3769 = vmatpush1.bf16.msra.mxu0 %v3704
          %3770 = vmatprep.subr.bf16.mxu0 %v3707
          %3771 = vmatpush1.bf16.msra.mxu0 %v3706
          %3772 = vmatprep.subr.bf16.mxu0 %v3709
          %3773 = vmatpush1.bf16.msra.mxu0 %v3708
          %3774 = vmatprep.subr.bf16.mxu0 %v3711
          %3775 = vmatpush1.bf16.msra.mxu0 %v3710
          %3776 = vmatprep.mubr.bf16.mxu0 %v3553
          %3777 = vmatmul.mubr.bf16.gmra.mrb[0].mxu0 %v3552
          %v3778 = vpop.f32.mrb[0].mxu0
          %v3779 = vadd.f32 0.0, %v3778
          %v3780 = vpop.f32.mrb[0].mxu0
          %v3781 = vadd.f32 0.0, %v3780
          %v3782 = vpop.f32.mrb[0].mxu0
          %v3783 = vadd.f32 0.0, %v3782
          %v3784 = vpop.f32.mrb[0].mxu0
          %v3785 = vadd.f32 0.0, %v3784
          %3786 = vmatprep.mubr.bf16.mxu0 %v3555
          %3787 = vmatmul.mubr.bf16.gmra.mrb[0].mxu0 %v3554
          %v3788 = vpop.f32.mrb[0].mxu0
          %v3789 = vadd.f32 0.0, %v3788
          %v3790 = vpop.f32.mrb[0].mxu0
          %v3791 = vadd.f32 0.0, %v3790
          %v3792 = vpop.f32.mrb[0].mxu0
          %v3793 = vadd.f32 0.0, %v3792
          %v3794 = vpop.f32.mrb[0].mxu0
          %v3795 = vadd.f32 0.0, %v3794
          %3796 = vmatprep.mubr.bf16.mxu0 %v3557
          %3797 = vmatmul.mubr.bf16.gmra.mrb[0].mxu0 %v3556
          %v3798 = vpop.f32.mrb[0].mxu0
          %v3799 = vadd.f32 0.0, %v3798
          %v3800 = vpop.f32.mrb[0].mxu0
          %v3801 = vadd.f32 0.0, %v3800
          %v3802 = vpop.f32.mrb[0].mxu0
          %v3803 = vadd.f32 0.0, %v3802
          %v3804 = vpop.f32.mrb[0].mxu0
          %v3805 = vadd.f32 0.0, %v3804
          %3806 = vmatprep.mubr.bf16.mxu0 %v3559
          %3807 = vmatmul.mubr.bf16.gmra.mrb[0].mxu0 %v3558
          %v3808 = vpop.f32.mrb[0].mxu0
          %v3809 = vadd.f32 0.0, %v3808
          %v3810 = vpop.f32.mrb[0].mxu0
          %v3811 = vadd.f32 0.0, %v3810
          %v3812 = vpop.f32.mrb[0].mxu0
          %v3813 = vadd.f32 0.0, %v3812
          %v3814 = vpop.f32.mrb[0].mxu0
          %v3815 = vadd.f32 0.0, %v3814
          %3816 = vmatprep.mubr.bf16.mxu0 %v3561
          %3817 = vmatmul.mubr.bf16.gmra.mrb[0].mxu0 %v3560
          %v3818 = vpop.f32.mrb[0].mxu0
          %v3819 = vadd.f32 0.0, %v3818
          %v3820 = vpop.f32.mrb[0].mxu0
          %v3821 = vadd.f32 0.0, %v3820
          %v3822 = vpop.f32.mrb[0].mxu0
          %v3823 = vadd.f32 0.0, %v3822
          %v3824 = vpop.f32.mrb[0].mxu0
          %v3825 = vadd.f32 0.0, %v3824
          %3826 = vmatprep.mubr.bf16.mxu0 %v3563
          %3827 = vmatmul.mubr.bf16.gmra.mrb[0].mxu0 %v3562
          %v3828 = vpop.f32.mrb[0].mxu0
          %v3829 = vadd.f32 0.0, %v3828
          %v3830 = vpop.f32.mrb[0].mxu0
          %v3831 = vadd.f32 0.0, %v3830
          %v3832 = vpop.f32.mrb[0].mxu0
          %v3833 = vadd.f32 0.0, %v3832
          %v3834 = vpop.f32.mrb[0].mxu0
          %v3835 = vadd.f32 0.0, %v3834
          %3836 = vmatprep.mubr.bf16.mxu0 %v3565
          %3837 = vmatmul.mubr.bf16.gmra.mrb[0].mxu0 %v3564
          %v3838 = vpop.f32.mrb[0].mxu0
          %v3839 = vadd.f32 0.0, %v3838
          %v3840 = vpop.f32.mrb[0].mxu0
          %v3841 = vadd.f32 0.0, %v3840
          %v3842 = vpop.f32.mrb[0].mxu0
          %v3843 = vadd.f32 0.0, %v3842
          %v3844 = vpop.f32.mrb[0].mxu0
          %v3845 = vadd.f32 0.0, %v3844
          %3846 = vmatprep.mubr.bf16.mxu0 %v3567
          %3847 = vmatmul.mubr.bf16.gmra.mrb[0].mxu0 %v3566
          %v3848 = vpop.f32.mrb[0].mxu0
          %v3849 = vadd.f32 0.0, %v3848
          %v3850 = vpop.f32.mrb[0].mxu0
          %v3851 = vadd.f32 0.0, %v3850
          %v3852 = vpop.f32.mrb[0].mxu0
          %v3853 = vadd.f32 0.0, %v3852
          %v3854 = vpop.f32.mrb[0].mxu0
          %v3855 = vadd.f32 0.0, %v3854
          %3856 = vdwg.mxu0
          %v3857 = vadd.f32 %v3072, %v3779
          %v3858 = vadd.f32 %v3073, %v3781
          %v3859 = vadd.f32 %v3074, %v3783
          %v3860 = vadd.f32 %v3075, %v3785
          %v3861 = vadd.f32 %v3076, %v3789
          %v3862 = vadd.f32 %v3077, %v3791
          %v3863 = vadd.f32 %v3078, %v3793
          %v3864 = vadd.f32 %v3079, %v3795
          %v3865 = vadd.f32 %v3080, %v3799
          %v3866 = vadd.f32 %v3081, %v3801
          %v3867 = vadd.f32 %v3082, %v3803
          %v3868 = vadd.f32 %v3083, %v3805
          %v3869 = vadd.f32 %v3084, %v3809
          %v3870 = vadd.f32 %v3085, %v3811
          %v3871 = vadd.f32 %v3086, %v3813
          %v3872 = vadd.f32 %v3087, %v3815
          %v3873 = vadd.f32 %v3088, %v3819
          %v3874 = vadd.f32 %v3089, %v3821
          %v3875 = vadd.f32 %v3090, %v3823
          %v3876 = vadd.f32 %v3091, %v3825
          %v3877 = vadd.f32 %v3092, %v3829
          %v3878 = vadd.f32 %v3093, %v3831
          %v3879 = vadd.f32 %v3094, %v3833
          %v3880 = vadd.f32 %v3095, %v3835
          %v3881 = vadd.f32 %v3096, %v3839
          %v3882 = vadd.f32 %v3097, %v3841
          %v3883 = vadd.f32 %v3098, %v3843
          %v3884 = vadd.f32 %v3099, %v3845
          %v3885 = vadd.f32 %v3100, %v3849
          %v3886 = vadd.f32 %v3101, %v3851
          %v3887 = vadd.f32 %v3102, %v3853
          %v3888 = vadd.f32 %v3103, %v3855
          %v3889 = vld [vmem:[%s2638] sm:$0x1e]
          %v3890 = vld [vmem:[%s2638 + $0x8] sm:$0x1e]
          %v3891 = vld [vmem:[%s2638 + $0x10] sm:$0x1e]
          %v3892 = vld [vmem:[%s2638 + $0x18] sm:$0x1e]
          %v3893 = vld [vmem:[%s2638 + $0x20] sm:$0x1e]
          %v3894 = vld [vmem:[%s2638 + $0x28] sm:$0x1e]
          %v3895 = vld [vmem:[%s2638 + $0x30] sm:$0x1e]
          %v3896 = vld [vmem:[%s2638 + $0x38] sm:$0x1e]
          %v3897 = vld [vmem:[%s2638 + $0x40] sm:$0x1e]
          %v3898 = vld [vmem:[%s2638 + $0x48] sm:$0x1e]
          %v3899 = vld [vmem:[%s2638 + $0x50] sm:$0x1e]
          %v3900 = vld [vmem:[%s2638 + $0x58] sm:$0x1e]
          %v3901 = vld [vmem:[%s2638 + $0x60] sm:$0x1e]
          %v3902 = vld [vmem:[%s2638 + $0x68] sm:$0x1e]
          %v3903 = vld [vmem:[%s2638 + $0x70] sm:$0x1e]
          %v3904 = vld [vmem:[%s2638 + $0x78] sm:$0x1e]
          %v3905 = vld [vmem:[%s2638 + $0xa0] sm:$0x1e]
          %v3906 = vld [vmem:[%s2638 + $0xa8] sm:$0x1e]
          %v3907 = vld [vmem:[%s2638 + $0xb0] sm:$0x1e]
          %v3908 = vld [vmem:[%s2638 + $0xb8] sm:$0x1e]
          %v3909 = vld [vmem:[%s2638 + $0xc0] sm:$0x1e]
          %v3910 = vld [vmem:[%s2638 + $0xc8] sm:$0x1e]
          %v3911 = vld [vmem:[%s2638 + $0xd0] sm:$0x1e]
          %v3912 = vld [vmem:[%s2638 + $0xd8] sm:$0x1e]
          %v3913 = vld [vmem:[%s2638 + $0xe0] sm:$0x1e]
          %v3914 = vld [vmem:[%s2638 + $0xe8] sm:$0x1e]
          %v3915 = vld [vmem:[%s2638 + $0xf0] sm:$0x1e]
          %v3916 = vld [vmem:[%s2638 + $0xf8] sm:$0x1e]
          %v3917 = vld [vmem:[%s2638 + $0x100] sm:$0x1e]
          %v3918 = vld [vmem:[%s2638 + $0x108] sm:$0x1e]
          %v3919 = vld [vmem:[%s2638 + $0x110] sm:$0x1e]
          %v3920 = vld [vmem:[%s2638 + $0x118] sm:$0x1e]
          %v3953 = vunpack.c.l.b16 %v3889
          %v3954 = vunpack.c.l.b16 %v3890
          %v3955 = vunpack.c.h.b16 %v3889
          %v3956 = vunpack.c.h.b16 %v3890
          %v3957 = vunpack.c.l.b16 %v3891
          %v3958 = vunpack.c.l.b16 %v3892
          %v3959 = vunpack.c.h.b16 %v3891
          %v3960 = vunpack.c.h.b16 %v3892
          %v3961 = vunpack.c.l.b16 %v3893
          %v3962 = vunpack.c.l.b16 %v3894
          %v3963 = vunpack.c.h.b16 %v3893
          %v3964 = vunpack.c.h.b16 %v3894
          %v3965 = vunpack.c.l.b16 %v3895
          %v3966 = vunpack.c.l.b16 %v3896
          %v3967 = vunpack.c.h.b16 %v3895
          %v3968 = vunpack.c.h.b16 %v3896
          %v3969 = vunpack.c.l.b16 %v3897
          %v3970 = vunpack.c.l.b16 %v3898
          %v3971 = vunpack.c.h.b16 %v3897
          %v3972 = vunpack.c.h.b16 %v3898
          %v3973 = vunpack.c.l.b16 %v3899
          %v3974 = vunpack.c.l.b16 %v3900
          %v3975 = vunpack.c.h.b16 %v3899
          %v3976 = vunpack.c.h.b16 %v3900
          %v3977 = vunpack.c.l.b16 %v3901
          %v3978 = vunpack.c.l.b16 %v3902
          %v3979 = vunpack.c.h.b16 %v3901
          %v3980 = vunpack.c.h.b16 %v3902
          %v3981 = vunpack.c.l.b16 %v3903
          %v3982 = vunpack.c.l.b16 %v3904
          %v3983 = vunpack.c.h.b16 %v3903
          %v3984 = vunpack.c.h.b16 %v3904
          %v3985 = vunpack.c.l.b16 %v3905
          %v3986 = vunpack.c.l.b16 %v3906
          %v3987 = vunpack.c.h.b16 %v3905
          %v3988 = vunpack.c.h.b16 %v3906
          %v3989 = vunpack.c.l.b16 %v3907
          %v3990 = vunpack.c.l.b16 %v3908
          %v3991 = vunpack.c.h.b16 %v3907
          %v3992 = vunpack.c.h.b16 %v3908
          %v3993 = vunpack.c.l.b16 %v3909
          %v3994 = vunpack.c.l.b16 %v3910
          %v3995 = vunpack.c.h.b16 %v3909
          %v3996 = vunpack.c.h.b16 %v3910
          %v3997 = vunpack.c.l.b16 %v3911
          %v3998 = vunpack.c.l.b16 %v3912
          %v3999 = vunpack.c.h.b16 %v3911
          %v4000 = vunpack.c.h.b16 %v3912
          %v4001 = vunpack.c.l.b16 %v3913
          %v4002 = vunpack.c.l.b16 %v3914
          %v4003 = vunpack.c.h.b16 %v3913
          %v4004 = vunpack.c.h.b16 %v3914
          %v4005 = vunpack.c.l.b16 %v3915
          %v4006 = vunpack.c.l.b16 %v3916
          %v4007 = vunpack.c.h.b16 %v3915
          %v4008 = vunpack.c.h.b16 %v3916
          %v4009 = vunpack.c.l.b16 %v3917
          %v4010 = vunpack.c.l.b16 %v3918
          %v4011 = vunpack.c.h.b16 %v3917
          %v4012 = vunpack.c.h.b16 %v3918
          %v4013 = vunpack.c.l.b16 %v3919
          %v4014 = vunpack.c.l.b16 %v3920
          %v4015 = vunpack.c.h.b16 %v3919
          %v4016 = vunpack.c.h.b16 %v3920
          %v4017 = vpack.c.b16 %v3954, %v3953
          %v4018 = vpack.c.b16 %v3956, %v3955
          %v4019 = vpack.c.b16 %v3958, %v3957
          %v4020 = vpack.c.b16 %v3960, %v3959
          %v4021 = vpack.c.b16 %v3962, %v3961
          %v4022 = vpack.c.b16 %v3964, %v3963
          %v4023 = vpack.c.b16 %v3966, %v3965
          %v4024 = vpack.c.b16 %v3968, %v3967
          %v4025 = vpack.c.b16 %v3970, %v3969
          %v4026 = vpack.c.b16 %v3972, %v3971
          %v4027 = vpack.c.b16 %v3974, %v3973
          %v4028 = vpack.c.b16 %v3976, %v3975
          %v4029 = vpack.c.b16 %v3978, %v3977
          %v4030 = vpack.c.b16 %v3980, %v3979
          %v4031 = vpack.c.b16 %v3982, %v3981
          %v4032 = vpack.c.b16 %v3984, %v3983
          %v4033 = vpack.c.b16 %v3986, %v3985
          %v4034 = vpack.c.b16 %v3988, %v3987
          %v4035 = vpack.c.b16 %v3990, %v3989
          %v4036 = vpack.c.b16 %v3992, %v3991
          %v4037 = vpack.c.b16 %v3994, %v3993
          %v4038 = vpack.c.b16 %v3996, %v3995
          %v4039 = vpack.c.b16 %v3998, %v3997
          %v4040 = vpack.c.b16 %v4000, %v3999
          %v4041 = vpack.c.b16 %v4002, %v4001
          %v4042 = vpack.c.b16 %v4004, %v4003
          %v4043 = vpack.c.b16 %v4006, %v4005
          %v4044 = vpack.c.b16 %v4008, %v4007
          %v4045 = vpack.c.b16 %v4010, %v4009
          %v4046 = vpack.c.b16 %v4012, %v4011
          %v4047 = vpack.c.b16 %v4014, %v4013
          %v4048 = vpack.c.b16 %v4016, %v4015
          %v4049 = vrot.slane %v4017, 5
          %v4050 = vrot.slane %v4049, 4
          %v4051 = vrot.slane %v4018, 5
          %v4052 = vsel %vm2172, %v4050, %v4051
          %v4053 = vrot.slane %v4019, 5
          %v4054 = vrot.slane %v4053, 4
          %v4055 = vrot.slane %v4020, 5
          %v4056 = vsel %vm2172, %v4054, %v4055
          %v4057 = vrot.slane %v4021, 5
          %v4058 = vrot.slane %v4057, 4
          %v4059 = vrot.slane %v4022, 5
          %v4060 = vsel %vm2172, %v4058, %v4059
          %v4061 = vrot.slane %v4023, 5
          %v4062 = vrot.slane %v4061, 4
          %v4063 = vrot.slane %v4024, 5
          %v4064 = vsel %vm2172, %v4062, %v4063
          %v4065 = vrot.slane %v4025, 5
          %v4066 = vrot.slane %v4065, 4
          %v4067 = vrot.slane %v4026, 5
          %v4068 = vsel %vm2172, %v4066, %v4067
          %v4069 = vrot.slane %v4027, 5
          %v4070 = vrot.slane %v4069, 4
          %v4071 = vrot.slane %v4028, 5
          %v4072 = vsel %vm2172, %v4070, %v4071
          %v4073 = vrot.slane %v4029, 5
          %v4074 = vrot.slane %v4073, 4
          %v4075 = vrot.slane %v4030, 5
          %v4076 = vsel %vm2172, %v4074, %v4075
          %v4077 = vrot.slane %v4031, 5
          %v4078 = vrot.slane %v4077, 4
          %v4079 = vrot.slane %v4032, 5
          %v4080 = vsel %vm2172, %v4078, %v4079
          %v4081 = vrot.slane %v4033, 5
          %v4082 = vrot.slane %v4081, 4
          %v4083 = vrot.slane %v4034, 5
          %v4084 = vsel %vm2172, %v4082, %v4083
          %v4085 = vrot.slane %v4035, 5
          %v4086 = vrot.slane %v4085, 4
          %v4087 = vrot.slane %v4036, 5
          %v4088 = vsel %vm2172, %v4086, %v4087
          %v4089 = vrot.slane %v4037, 5
          %v4090 = vrot.slane %v4089, 4
          %v4091 = vrot.slane %v4038, 5
          %v4092 = vsel %vm2172, %v4090, %v4091
          %v4093 = vrot.slane %v4039, 5
          %v4094 = vrot.slane %v4093, 4
          %v4095 = vrot.slane %v4040, 5
          %v4096 = vsel %vm2172, %v4094, %v4095
          %v4097 = vrot.slane %v4041, 5
          %v4098 = vrot.slane %v4097, 4
          %v4099 = vrot.slane %v4042, 5
          %v4100 = vsel %vm2172, %v4098, %v4099
          %v4101 = vrot.slane %v4043, 5
          %v4102 = vrot.slane %v4101, 4
          %v4103 = vrot.slane %v4044, 5
          %v4104 = vsel %vm2172, %v4102, %v4103
          %v4105 = vrot.slane %v4045, 5
          %v4106 = vrot.slane %v4105, 4
          %v4107 = vrot.slane %v4046, 5
          %v4108 = vsel %vm2172, %v4106, %v4107
          %v4109 = vrot.slane %v4047, 5
          %v4110 = vrot.slane %v4109, 4
          %v4111 = vrot.slane %v4048, 5
          %v4112 = vsel %vm2172, %v4110, %v4111
          %v4113 = vld [vmem:[%s302 + $0x500] sm:$0xff]
          %v4114 = vld [vmem:[%s302 + $0x508] sm:$0xff]
          %v4115 = vld [vmem:[%s302 + $0x510] sm:$0xff]
          %v4116 = vld [vmem:[%s302 + $0x518] sm:$0xff]
          %v4117 = vld [vmem:[%s302 + $0x520] sm:$0xff]
          %v4118 = vld [vmem:[%s302 + $0x528] sm:$0xff]
          %v4119 = vld [vmem:[%s302 + $0x530] sm:$0xff]
          %v4120 = vld [vmem:[%s302 + $0x538] sm:$0xff]
          %v4121 = vld [vmem:[%s302 + $0x540] sm:$0xff]
          %v4122 = vld [vmem:[%s302 + $0x548] sm:$0xff]
          %v4123 = vld [vmem:[%s302 + $0x550] sm:$0xff]
          %v4124 = vld [vmem:[%s302 + $0x558] sm:$0xff]
          %v4125 = vld [vmem:[%s302 + $0x560] sm:$0xff]
          %v4126 = vld [vmem:[%s302 + $0x568] sm:$0xff]
          %v4127 = vld [vmem:[%s302 + $0x570] sm:$0xff]
          %v4128 = vld [vmem:[%s302 + $0x578] sm:$0xff]
          %v4129 = vld [vmem:[%s302 + $0x580] sm:$0xff]
          %v4130 = vld [vmem:[%s302 + $0x588] sm:$0xff]
          %v4131 = vld [vmem:[%s302 + $0x590] sm:$0xff]
          %v4132 = vld [vmem:[%s302 + $0x598] sm:$0xff]
          %v4133 = vld [vmem:[%s302 + $0x5a0] sm:$0xff]
          %v4134 = vld [vmem:[%s302 + $0x5a8] sm:$0xff]
          %v4135 = vld [vmem:[%s302 + $0x5b0] sm:$0xff]
          %v4136 = vld [vmem:[%s302 + $0x5b8] sm:$0xff]
          %v4137 = vld [vmem:[%s302 + $0x5c0] sm:$0xff]
          %v4138 = vld [vmem:[%s302 + $0x5c8] sm:$0xff]
          %v4139 = vld [vmem:[%s302 + $0x5d0] sm:$0xff]
          %v4140 = vld [vmem:[%s302 + $0x5d8] sm:$0xff]
          %v4141 = vld [vmem:[%s302 + $0x5e0] sm:$0xff]
          %v4142 = vld [vmem:[%s302 + $0x5e8] sm:$0xff]
          %v4143 = vld [vmem:[%s302 + $0x5f0] sm:$0xff]
          %v4144 = vld [vmem:[%s302 + $0x5f8] sm:$0xff]
          %v4145 = vunpack.c.l.b16 %v4052
          %v4146 = vunpack.c.h.b16 %v4052
          %v4147 = vunpack.c.l.b16 %v4056
          %v4148 = vunpack.c.h.b16 %v4056
          %v4149 = vunpack.c.l.b16 %v4060
          %v4150 = vunpack.c.h.b16 %v4060
          %v4151 = vunpack.c.l.b16 %v4064
          %v4152 = vunpack.c.h.b16 %v4064
          %v4153 = vunpack.c.l.b16 %v4068
          %v4154 = vunpack.c.h.b16 %v4068
          %v4155 = vunpack.c.l.b16 %v4072
          %v4156 = vunpack.c.h.b16 %v4072
          %v4157 = vunpack.c.l.b16 %v4076
          %v4158 = vunpack.c.h.b16 %v4076
          %v4159 = vunpack.c.l.b16 %v4080
          %v4160 = vunpack.c.h.b16 %v4080
          %v4161 = vunpack.c.l.b16 %v4084
          %v4162 = vunpack.c.h.b16 %v4084
          %v4163 = vunpack.c.l.b16 %v4088
          %v4164 = vunpack.c.h.b16 %v4088
          %v4165 = vunpack.c.l.b16 %v4092
          %v4166 = vunpack.c.h.b16 %v4092
          %v4167 = vunpack.c.l.b16 %v4096
          %v4168 = vunpack.c.h.b16 %v4096
          %v4169 = vunpack.c.l.b16 %v4100
          %v4170 = vunpack.c.h.b16 %v4100
          %v4171 = vunpack.c.l.b16 %v4104
          %v4172 = vunpack.c.h.b16 %v4104
          %v4173 = vunpack.c.l.b16 %v4108
          %v4174 = vunpack.c.h.b16 %v4108
          %v4175 = vunpack.c.l.b16 %v4112
          %v4176 = vunpack.c.h.b16 %v4112
          %v4177 = vpack.c.b16 %v4147, %v4145
          %v4178 = vpack.c.b16 %v4148, %v4146
          %v4179 = vpack.c.b16 %v4151, %v4149
          %v4180 = vpack.c.b16 %v4152, %v4150
          %v4181 = vpack.c.b16 %v4155, %v4153
          %v4182 = vpack.c.b16 %v4156, %v4154
          %v4183 = vpack.c.b16 %v4159, %v4157
          %v4184 = vpack.c.b16 %v4160, %v4158
          %v4185 = vpack.c.b16 %v4163, %v4161
          %v4186 = vpack.c.b16 %v4164, %v4162
          %v4187 = vpack.c.b16 %v4167, %v4165
          %v4188 = vpack.c.b16 %v4168, %v4166
          %v4189 = vpack.c.b16 %v4171, %v4169
          %v4190 = vpack.c.b16 %v4172, %v4170
          %v4191 = vpack.c.b16 %v4175, %v4173
          %v4192 = vpack.c.b16 %v4176, %v4174
          %v4241 = vunpack.c.l.b16 %v4113
          %v4242 = vunpack.c.h.b16 %v4113
          %v4243 = vunpack.c.l.b16 %v4114
          %v4244 = vunpack.c.h.b16 %v4114
          %v4245 = vunpack.c.l.b16 %v4115
          %v4246 = vunpack.c.h.b16 %v4115
          %v4247 = vunpack.c.l.b16 %v4116
          %v4248 = vunpack.c.h.b16 %v4116
          %v4249 = vunpack.c.l.b16 %v4117
          %v4250 = vunpack.c.h.b16 %v4117
          %v4251 = vunpack.c.l.b16 %v4118
          %v4252 = vunpack.c.h.b16 %v4118
          %v4253 = vunpack.c.l.b16 %v4119
          %v4254 = vunpack.c.h.b16 %v4119
          %v4255 = vunpack.c.l.b16 %v4120
          %v4256 = vunpack.c.h.b16 %v4120
          %v4257 = vunpack.c.l.b16 %v4121
          %v4258 = vunpack.c.h.b16 %v4121
          %v4259 = vunpack.c.l.b16 %v4122
          %v4260 = vunpack.c.h.b16 %v4122
          %v4261 = vunpack.c.l.b16 %v4123
          %v4262 = vunpack.c.h.b16 %v4123
          %v4263 = vunpack.c.l.b16 %v4124
          %v4264 = vunpack.c.h.b16 %v4124
          %v4265 = vunpack.c.l.b16 %v4125
          %v4266 = vunpack.c.h.b16 %v4125
          %v4267 = vunpack.c.l.b16 %v4126
          %v4268 = vunpack.c.h.b16 %v4126
          %v4269 = vunpack.c.l.b16 %v4127
          %v4270 = vunpack.c.h.b16 %v4127
          %v4271 = vunpack.c.l.b16 %v4128
          %v4272 = vunpack.c.h.b16 %v4128
          %v4273 = vunpack.c.l.b16 %v4129
          %v4274 = vunpack.c.h.b16 %v4129
          %v4275 = vunpack.c.l.b16 %v4130
          %v4276 = vunpack.c.h.b16 %v4130
          %v4277 = vunpack.c.l.b16 %v4131
          %v4278 = vunpack.c.h.b16 %v4131
          %v4279 = vunpack.c.l.b16 %v4132
          %v4280 = vunpack.c.h.b16 %v4132
          %v4281 = vunpack.c.l.b16 %v4133
          %v4282 = vunpack.c.h.b16 %v4133
          %v4283 = vunpack.c.l.b16 %v4134
          %v4284 = vunpack.c.h.b16 %v4134
          %v4285 = vunpack.c.l.b16 %v4135
          %v4286 = vunpack.c.h.b16 %v4135
          %v4287 = vunpack.c.l.b16 %v4136
          %v4288 = vunpack.c.h.b16 %v4136
          %v4289 = vunpack.c.l.b16 %v4137
          %v4290 = vunpack.c.h.b16 %v4137
          %v4291 = vunpack.c.l.b16 %v4138
          %v4292 = vunpack.c.h.b16 %v4138
          %v4293 = vunpack.c.l.b16 %v4139
          %v4294 = vunpack.c.h.b16 %v4139
          %v4295 = vunpack.c.l.b16 %v4140
          %v4296 = vunpack.c.h.b16 %v4140
          %v4297 = vunpack.c.l.b16 %v4141
          %v4298 = vunpack.c.h.b16 %v4141
          %v4299 = vunpack.c.l.b16 %v4142
          %v4300 = vunpack.c.h.b16 %v4142
          %v4301 = vunpack.c.l.b16 %v4143
          %v4302 = vunpack.c.h.b16 %v4143
          %v4303 = vunpack.c.l.b16 %v4144
          %v4304 = vunpack.c.h.b16 %v4144
          %v4305 = vpack.c.b16 %v4243, %v4241
          %v4306 = vpack.c.b16 %v4244, %v4242
          %v4307 = vpack.c.b16 %v4247, %v4245
          %v4308 = vpack.c.b16 %v4248, %v4246
          %v4309 = vpack.c.b16 %v4251, %v4249
          %v4310 = vpack.c.b16 %v4252, %v4250
          %v4311 = vpack.c.b16 %v4255, %v4253
          %v4312 = vpack.c.b16 %v4256, %v4254
          %v4313 = vpack.c.b16 %v4259, %v4257
          %v4314 = vpack.c.b16 %v4260, %v4258
          %v4315 = vpack.c.b16 %v4263, %v4261
          %v4316 = vpack.c.b16 %v4264, %v4262
          %v4317 = vpack.c.b16 %v4267, %v4265
          %v4318 = vpack.c.b16 %v4268, %v4266
          %v4319 = vpack.c.b16 %v4271, %v4269
          %v4320 = vpack.c.b16 %v4272, %v4270
          %v4321 = vpack.c.b16 %v4275, %v4273
          %v4322 = vpack.c.b16 %v4276, %v4274
          %v4323 = vpack.c.b16 %v4279, %v4277
          %v4324 = vpack.c.b16 %v4280, %v4278
          %v4325 = vpack.c.b16 %v4283, %v4281
          %v4326 = vpack.c.b16 %v4284, %v4282
          %v4327 = vpack.c.b16 %v4287, %v4285
          %v4328 = vpack.c.b16 %v4288, %v4286
          %v4329 = vpack.c.b16 %v4291, %v4289
          %v4330 = vpack.c.b16 %v4292, %v4290
          %v4331 = vpack.c.b16 %v4295, %v4293
          %v4332 = vpack.c.b16 %v4296, %v4294
          %v4333 = vpack.c.b16 %v4299, %v4297
          %v4334 = vpack.c.b16 %v4300, %v4298
          %v4335 = vpack.c.b16 %v4303, %v4301
          %v4336 = vpack.c.b16 %v4304, %v4302
          %4369 = vmatprep.subr.bf16.mxu0 %v4306
          %4370 = vmatpush1.bf16.msra.mxu0 %v4305
          %4371 = vmatprep.subr.bf16.mxu0 %v4308
          %4372 = vmatpush1.bf16.msra.mxu0 %v4307
          %4373 = vmatprep.subr.bf16.mxu0 %v4310
          %4374 = vmatpush1.bf16.msra.mxu0 %v4309
          %4375 = vmatprep.subr.bf16.mxu0 %v4312
          %4376 = vmatpush1.bf16.msra.mxu0 %v4311
          %4377 = vmatprep.subr.bf16.mxu0 %v4314
          %4378 = vmatpush1.bf16.msra.mxu0 %v4313
          %4379 = vmatprep.subr.bf16.mxu0 %v4316
          %4380 = vmatpush1.bf16.msra.mxu0 %v4315
          %4381 = vmatprep.subr.bf16.mxu0 %v4318
          %4382 = vmatpush1.bf16.msra.mxu0 %v4317
          %4383 = vmatprep.subr.bf16.mxu0 %v4320
          %4384 = vmatpush1.bf16.msra.mxu0 %v4319
          %4385 = vmatprep.subr.bf16.mxu0 %v4322
          %4386 = vmatpush1.bf16.msra.mxu0 %v4321
          %4387 = vmatprep.subr.bf16.mxu0 %v4324
          %4388 = vmatpush1.bf16.msra.mxu0 %v4323
          %4389 = vmatprep.subr.bf16.mxu0 %v4326
          %4390 = vmatpush1.bf16.msra.mxu0 %v4325
          %4391 = vmatprep.subr.bf16.mxu0 %v4328
          %4392 = vmatpush1.bf16.msra.mxu0 %v4327
          %4393 = vmatprep.subr.bf16.mxu0 %v4330
          %4394 = vmatpush1.bf16.msra.mxu0 %v4329
          %4395 = vmatprep.subr.bf16.mxu0 %v4332
          %4396 = vmatpush1.bf16.msra.mxu0 %v4331
          %4397 = vmatprep.subr.bf16.mxu0 %v4334
          %4398 = vmatpush1.bf16.msra.mxu0 %v4333
          %4399 = vmatprep.subr.bf16.mxu0 %v4336
          %4400 = vmatpush1.bf16.msra.mxu0 %v4335
          %4401 = vmatprep.mubr.bf16.mxu0 %v4178
          %4402 = vmatmul.mubr.bf16.gmra.mrb[0].mxu0 %v4177
          %v4403 = vpop.f32.mrb[0].mxu0
          %v4404 = vadd.f32 0.0, %v4403
          %v4405 = vpop.f32.mrb[0].mxu0
          %v4406 = vadd.f32 0.0, %v4405
          %v4407 = vpop.f32.mrb[0].mxu0
          %v4408 = vadd.f32 0.0, %v4407
          %v4409 = vpop.f32.mrb[0].mxu0
          %v4410 = vadd.f32 0.0, %v4409
          %4411 = vmatprep.mubr.bf16.mxu0 %v4180
          %4412 = vmatmul.mubr.bf16.gmra.mrb[0].mxu0 %v4179
          %v4413 = vpop.f32.mrb[0].mxu0
          %v4414 = vadd.f32 0.0, %v4413
          %v4415 = vpop.f32.mrb[0].mxu0
          %v4416 = vadd.f32 0.0, %v4415
          %v4417 = vpop.f32.mrb[0].mxu0
          %v4418 = vadd.f32 0.0, %v4417
          %v4419 = vpop.f32.mrb[0].mxu0
          %v4420 = vadd.f32 0.0, %v4419
          %4421 = vmatprep.mubr.bf16.mxu0 %v4182
          %4422 = vmatmul.mubr.bf16.gmra.mrb[0].mxu0 %v4181
          %v4423 = vpop.f32.mrb[0].mxu0
          %v4424 = vadd.f32 0.0, %v4423
          %v4425 = vpop.f32.mrb[0].mxu0
          %v4426 = vadd.f32 0.0, %v4425
          %v4427 = vpop.f32.mrb[0].mxu0
          %v4428 = vadd.f32 0.0, %v4427
          %v4429 = vpop.f32.mrb[0].mxu0
          %v4430 = vadd.f32 0.0, %v4429
          %4431 = vmatprep.mubr.bf16.mxu0 %v4184
          %4432 = vmatmul.mubr.bf16.gmra.mrb[0].mxu0 %v4183
          %v4433 = vpop.f32.mrb[0].mxu0
          %v4434 = vadd.f32 0.0, %v4433
          %v4435 = vpop.f32.mrb[0].mxu0
          %v4436 = vadd.f32 0.0, %v4435
          %v4437 = vpop.f32.mrb[0].mxu0
          %v4438 = vadd.f32 0.0, %v4437
          %v4439 = vpop.f32.mrb[0].mxu0
          %v4440 = vadd.f32 0.0, %v4439
          %4441 = vmatprep.mubr.bf16.mxu0 %v4186
          %4442 = vmatmul.mubr.bf16.gmra.mrb[0].mxu0 %v4185
          %v4443 = vpop.f32.mrb[0].mxu0
          %v4444 = vadd.f32 0.0, %v4443
          %v4445 = vpop.f32.mrb[0].mxu0
          %v4446 = vadd.f32 0.0, %v4445
          %v4447 = vpop.f32.mrb[0].mxu0
          %v4448 = vadd.f32 0.0, %v4447
          %v4449 = vpop.f32.mrb[0].mxu0
          %v4450 = vadd.f32 0.0, %v4449
          %4451 = vmatprep.mubr.bf16.mxu0 %v4188
          %4452 = vmatmul.mubr.bf16.gmra.mrb[0].mxu0 %v4187
          %v4453 = vpop.f32.mrb[0].mxu0
          %v4454 = vadd.f32 0.0, %v4453
          %v4455 = vpop.f32.mrb[0].mxu0
          %v4456 = vadd.f32 0.0, %v4455
          %v4457 = vpop.f32.mrb[0].mxu0
          %v4458 = vadd.f32 0.0, %v4457
          %v4459 = vpop.f32.mrb[0].mxu0
          %v4460 = vadd.f32 0.0, %v4459
          %4461 = vmatprep.mubr.bf16.mxu0 %v4190
          %4462 = vmatmul.mubr.bf16.gmra.mrb[0].mxu0 %v4189
          %v4463 = vpop.f32.mrb[0].mxu0
          %v4464 = vadd.f32 0.0, %v4463
          %v4465 = vpop.f32.mrb[0].mxu0
          %v4466 = vadd.f32 0.0, %v4465
          %v4467 = vpop.f32.mrb[0].mxu0
          %v4468 = vadd.f32 0.0, %v4467
          %v4469 = vpop.f32.mrb[0].mxu0
          %v4470 = vadd.f32 0.0, %v4469
          %4471 = vmatprep.mubr.bf16.mxu0 %v4192
          %4472 = vmatmul.mubr.bf16.gmra.mrb[0].mxu0 %v4191
          %v4473 = vpop.f32.mrb[0].mxu0
          %v4474 = vadd.f32 0.0, %v4473
          %v4475 = vpop.f32.mrb[0].mxu0
          %v4476 = vadd.f32 0.0, %v4475
          %v4477 = vpop.f32.mrb[0].mxu0
          %v4478 = vadd.f32 0.0, %v4477
          %v4479 = vpop.f32.mrb[0].mxu0
          %v4480 = vadd.f32 0.0, %v4479
          %4481 = vdwg.mxu0
          %v4482 = vadd.f32 %v3857, %v4404
          %v4483 = vadd.f32 %v3858, %v4406
          %v4484 = vadd.f32 %v3859, %v4408
          %v4485 = vadd.f32 %v3860, %v4410
          %v4486 = vadd.f32 %v3861, %v4414
          %v4487 = vadd.f32 %v3862, %v4416
          %v4488 = vadd.f32 %v3863, %v4418
          %v4489 = vadd.f32 %v3864, %v4420
          %v4490 = vadd.f32 %v3865, %v4424
          %v4491 = vadd.f32 %v3866, %v4426
          %v4492 = vadd.f32 %v3867, %v4428
          %v4493 = vadd.f32 %v3868, %v4430
          %v4494 = vadd.f32 %v3869, %v4434
          %v4495 = vadd.f32 %v3870, %v4436
          %v4496 = vadd.f32 %v3871, %v4438
          %v4497 = vadd.f32 %v3872, %v4440
          %v4498 = vadd.f32 %v3873, %v4444
          %v4499 = vadd.f32 %v3874, %v4446
          %v4500 = vadd.f32 %v3875, %v4448
          %v4501 = vadd.f32 %v3876, %v4450
          %v4502 = vadd.f32 %v3877, %v4454
          %v4503 = vadd.f32 %v3878, %v4456
          %v4504 = vadd.f32 %v3879, %v4458
          %v4505 = vadd.f32 %v3880, %v4460
          %v4506 = vadd.f32 %v3881, %v4464
          %v4507 = vadd.f32 %v3882, %v4466
          %v4508 = vadd.f32 %v3883, %v4468
          %v4509 = vadd.f32 %v3884, %v4470
          %v4510 = vadd.f32 %v3885, %v4474
          %v4511 = vadd.f32 %v3886, %v4476
          %v4512 = vadd.f32 %v3887, %v4478
          %v4513 = vadd.f32 %v3888, %v4480
          %s4514 = scalar_lea.vmem [#allocation2], 32
          %v4515 = vld [vmem:[%s4514] sm:$0xf]
          %v4516 = vld [vmem:[%s4514 + $0x8] sm:$0xf]
          %v4517 = vld [vmem:[%s4514 + $0x10] sm:$0xf]
          %v4518 = vld [vmem:[%s4514 + $0x18] sm:$0xf]
          %v4519 = vld [vmem:[%s4514 + $0x20] sm:$0xf]
          %v4520 = vld [vmem:[%s4514 + $0x28] sm:$0xf]
          %v4521 = vld [vmem:[%s4514 + $0x30] sm:$0xf]
          %v4522 = vld [vmem:[%s4514 + $0x38] sm:$0xf]
          %v4523 = vld [vmem:[%s4514 + $0x40] sm:$0xf]
          %v4524 = vld [vmem:[%s4514 + $0x48] sm:$0xf]
          %v4525 = vld [vmem:[%s4514 + $0x50] sm:$0xf]
          %v4526 = vld [vmem:[%s4514 + $0x58] sm:$0xf]
          %v4527 = vld [vmem:[%s4514 + $0x60] sm:$0xf]
          %v4528 = vld [vmem:[%s4514 + $0x68] sm:$0xf]
          %v4529 = vld [vmem:[%s4514 + $0x70] sm:$0xf]
          %v4530 = vld [vmem:[%s4514 + $0x78] sm:$0xf]
          %v4531 = vld [vmem:[%s4514 + $0xa0] sm:$0xf]
          %v4532 = vld [vmem:[%s4514 + $0xa8] sm:$0xf]
          %v4533 = vld [vmem:[%s4514 + $0xb0] sm:$0xf]
          %v4534 = vld [vmem:[%s4514 + $0xb8] sm:$0xf]
          %v4535 = vld [vmem:[%s4514 + $0xc0] sm:$0xf]
          %v4536 = vld [vmem:[%s4514 + $0xc8] sm:$0xf]
          %v4537 = vld [vmem:[%s4514 + $0xd0] sm:$0xf]
          %v4538 = vld [vmem:[%s4514 + $0xd8] sm:$0xf]
          %v4539 = vld [vmem:[%s4514 + $0xe0] sm:$0xf]
          %v4540 = vld [vmem:[%s4514 + $0xe8] sm:$0xf]
          %v4541 = vld [vmem:[%s4514 + $0xf0] sm:$0xf]
          %v4542 = vld [vmem:[%s4514 + $0xf8] sm:$0xf]
          %v4543 = vld [vmem:[%s4514 + $0x100] sm:$0xf]
          %v4544 = vld [vmem:[%s4514 + $0x108] sm:$0xf]
          %v4545 = vld [vmem:[%s4514 + $0x110] sm:$0xf]
          %v4546 = vld [vmem:[%s4514 + $0x118] sm:$0xf]
          %v4579 = vunpack.c.l.b16 %v4515
          %v4580 = vunpack.c.l.b16 %v4516
          %v4581 = vunpack.c.l.b16 %v4517
          %v4582 = vunpack.c.l.b16 %v4518
          %v4583 = vunpack.c.l.b16 %v4519
          %v4584 = vunpack.c.l.b16 %v4520
          %v4585 = vunpack.c.l.b16 %v4521
          %v4586 = vunpack.c.l.b16 %v4522
          %v4587 = vunpack.c.l.b16 %v4523
          %v4588 = vunpack.c.l.b16 %v4524
          %v4589 = vunpack.c.l.b16 %v4525
          %v4590 = vunpack.c.l.b16 %v4526
          %v4591 = vunpack.c.l.b16 %v4527
          %v4592 = vunpack.c.l.b16 %v4528
          %v4593 = vunpack.c.l.b16 %v4529
          %v4594 = vunpack.c.l.b16 %v4530
          %v4595 = vunpack.c.l.b16 %v4531
          %v4596 = vunpack.c.l.b16 %v4532
          %v4597 = vunpack.c.l.b16 %v4533
          %v4598 = vunpack.c.l.b16 %v4534
          %v4599 = vunpack.c.l.b16 %v4535
          %v4600 = vunpack.c.l.b16 %v4536
          %v4601 = vunpack.c.l.b16 %v4537
          %v4602 = vunpack.c.l.b16 %v4538
          %v4603 = vunpack.c.l.b16 %v4539
          %v4604 = vunpack.c.l.b16 %v4540
          %v4605 = vunpack.c.l.b16 %v4541
          %v4606 = vunpack.c.l.b16 %v4542
          %v4607 = vunpack.c.l.b16 %v4543
          %v4608 = vunpack.c.l.b16 %v4544
          %v4609 = vunpack.c.l.b16 %v4545
          %v4610 = vunpack.c.l.b16 %v4546
          %v4611 = vld [vmem:[%s302 + $0x600] sm:$0xff]
          %v4612 = vld [vmem:[%s302 + $0x608] sm:$0xff]
          %v4613 = vld [vmem:[%s302 + $0x610] sm:$0xff]
          %v4614 = vld [vmem:[%s302 + $0x618] sm:$0xff]
          %v4615 = vld [vmem:[%s302 + $0x620] sm:$0xff]
          %v4616 = vld [vmem:[%s302 + $0x628] sm:$0xff]
          %v4617 = vld [vmem:[%s302 + $0x630] sm:$0xff]
          %v4618 = vld [vmem:[%s302 + $0x638] sm:$0xff]
          %v4619 = vld [vmem:[%s302 + $0x640] sm:$0xff]
          %v4620 = vld [vmem:[%s302 + $0x648] sm:$0xff]
          %v4621 = vld [vmem:[%s302 + $0x650] sm:$0xff]
          %v4622 = vld [vmem:[%s302 + $0x658] sm:$0xff]
          %v4623 = vld [vmem:[%s302 + $0x660] sm:$0xff]
          %v4624 = vld [vmem:[%s302 + $0x668] sm:$0xff]
          %v4625 = vld [vmem:[%s302 + $0x670] sm:$0xff]
          %v4626 = vld [vmem:[%s302 + $0x678] sm:$0xff]
          %v4627 = vld [vmem:[%s302 + $0x680] sm:$0xff]
          %v4628 = vld [vmem:[%s302 + $0x688] sm:$0xff]
          %v4629 = vld [vmem:[%s302 + $0x690] sm:$0xff]
          %v4630 = vld [vmem:[%s302 + $0x698] sm:$0xff]
          %v4631 = vld [vmem:[%s302 + $0x6a0] sm:$0xff]
          %v4632 = vld [vmem:[%s302 + $0x6a8] sm:$0xff]
          %v4633 = vld [vmem:[%s302 + $0x6b0] sm:$0xff]
          %v4634 = vld [vmem:[%s302 + $0x6b8] sm:$0xff]
          %v4635 = vld [vmem:[%s302 + $0x6c0] sm:$0xff]
          %v4636 = vld [vmem:[%s302 + $0x6c8] sm:$0xff]
          %v4637 = vld [vmem:[%s302 + $0x6d0] sm:$0xff]
          %v4638 = vld [vmem:[%s302 + $0x6d8] sm:$0xff]
          %v4639 = vld [vmem:[%s302 + $0x6e0] sm:$0xff]
          %v4640 = vld [vmem:[%s302 + $0x6e8] sm:$0xff]
          %v4641 = vld [vmem:[%s302 + $0x6f0] sm:$0xff]
          %v4642 = vld [vmem:[%s302 + $0x6f8] sm:$0xff]
          %v4643 = vpack.c.b16 %v4581, %v4579
          %v4644 = vpack.c.b16 %v4582, %v4580
          %v4645 = vpack.c.b16 %v4585, %v4583
          %v4646 = vpack.c.b16 %v4586, %v4584
          %v4647 = vpack.c.b16 %v4589, %v4587
          %v4648 = vpack.c.b16 %v4590, %v4588
          %v4649 = vpack.c.b16 %v4593, %v4591
          %v4650 = vpack.c.b16 %v4594, %v4592
          %v4651 = vpack.c.b16 %v4597, %v4595
          %v4652 = vpack.c.b16 %v4598, %v4596
          %v4653 = vpack.c.b16 %v4601, %v4599
          %v4654 = vpack.c.b16 %v4602, %v4600
          %v4655 = vpack.c.b16 %v4605, %v4603
          %v4656 = vpack.c.b16 %v4606, %v4604
          %v4657 = vpack.c.b16 %v4609, %v4607
          %v4658 = vpack.c.b16 %v4610, %v4608
          %v4707 = vunpack.c.l.b16 %v4611
          %v4708 = vunpack.c.h.b16 %v4611
          %v4709 = vunpack.c.l.b16 %v4612
          %v4710 = vunpack.c.h.b16 %v4612
          %v4711 = vunpack.c.l.b16 %v4613
          %v4712 = vunpack.c.h.b16 %v4613
          %v4713 = vunpack.c.l.b16 %v4614
          %v4714 = vunpack.c.h.b16 %v4614
          %v4715 = vunpack.c.l.b16 %v4615
          %v4716 = vunpack.c.h.b16 %v4615
          %v4717 = vunpack.c.l.b16 %v4616
          %v4718 = vunpack.c.h.b16 %v4616
          %v4719 = vunpack.c.l.b16 %v4617
          %v4720 = vunpack.c.h.b16 %v4617
          %v4721 = vunpack.c.l.b16 %v4618
          %v4722 = vunpack.c.h.b16 %v4618
          %v4723 = vunpack.c.l.b16 %v4619
          %v4724 = vunpack.c.h.b16 %v4619
          %v4725 = vunpack.c.l.b16 %v4620
          %v4726 = vunpack.c.h.b16 %v4620
          %v4727 = vunpack.c.l.b16 %v4621
          %v4728 = vunpack.c.h.b16 %v4621
          %v4729 = vunpack.c.l.b16 %v4622
          %v4730 = vunpack.c.h.b16 %v4622
          %v4731 = vunpack.c.l.b16 %v4623
          %v4732 = vunpack.c.h.b16 %v4623
          %v4733 = vunpack.c.l.b16 %v4624
          %v4734 = vunpack.c.h.b16 %v4624
          %v4735 = vunpack.c.l.b16 %v4625
          %v4736 = vunpack.c.h.b16 %v4625
          %v4737 = vunpack.c.l.b16 %v4626
          %v4738 = vunpack.c.h.b16 %v4626
          %v4739 = vunpack.c.l.b16 %v4627
          %v4740 = vunpack.c.h.b16 %v4627
          %v4741 = vunpack.c.l.b16 %v4628
          %v4742 = vunpack.c.h.b16 %v4628
          %v4743 = vunpack.c.l.b16 %v4629
          %v4744 = vunpack.c.h.b16 %v4629
          %v4745 = vunpack.c.l.b16 %v4630
          %v4746 = vunpack.c.h.b16 %v4630
          %v4747 = vunpack.c.l.b16 %v4631
          %v4748 = vunpack.c.h.b16 %v4631
          %v4749 = vunpack.c.l.b16 %v4632
          %v4750 = vunpack.c.h.b16 %v4632
          %v4751 = vunpack.c.l.b16 %v4633
          %v4752 = vunpack.c.h.b16 %v4633
          %v4753 = vunpack.c.l.b16 %v4634
          %v4754 = vunpack.c.h.b16 %v4634
          %v4755 = vunpack.c.l.b16 %v4635
          %v4756 = vunpack.c.h.b16 %v4635
          %v4757 = vunpack.c.l.b16 %v4636
          %v4758 = vunpack.c.h.b16 %v4636
          %v4759 = vunpack.c.l.b16 %v4637
          %v4760 = vunpack.c.h.b16 %v4637
          %v4761 = vunpack.c.l.b16 %v4638
          %v4762 = vunpack.c.h.b16 %v4638
          %v4763 = vunpack.c.l.b16 %v4639
          %v4764 = vunpack.c.h.b16 %v4639
          %v4765 = vunpack.c.l.b16 %v4640
          %v4766 = vunpack.c.h.b16 %v4640
          %v4767 = vunpack.c.l.b16 %v4641
          %v4768 = vunpack.c.h.b16 %v4641
          %v4769 = vunpack.c.l.b16 %v4642
          %v4770 = vunpack.c.h.b16 %v4642
          %v4771 = vpack.c.b16 %v4709, %v4707
          %v4772 = vpack.c.b16 %v4710, %v4708
          %v4773 = vpack.c.b16 %v4713, %v4711
          %v4774 = vpack.c.b16 %v4714, %v4712
          %v4775 = vpack.c.b16 %v4717, %v4715
          %v4776 = vpack.c.b16 %v4718, %v4716
          %v4777 = vpack.c.b16 %v4721, %v4719
          %v4778 = vpack.c.b16 %v4722, %v4720
          %v4779 = vpack.c.b16 %v4725, %v4723
          %v4780 = vpack.c.b16 %v4726, %v4724
          %v4781 = vpack.c.b16 %v4729, %v4727
          %v4782 = vpack.c.b16 %v4730, %v4728
          %v4783 = vpack.c.b16 %v4733, %v4731
          %v4784 = vpack.c.b16 %v4734, %v4732
          %v4785 = vpack.c.b16 %v4737, %v4735
          %v4786 = vpack.c.b16 %v4738, %v4736
          %v4787 = vpack.c.b16 %v4741, %v4739
          %v4788 = vpack.c.b16 %v4742, %v4740
          %v4789 = vpack.c.b16 %v4745, %v4743
          %v4790 = vpack.c.b16 %v4746, %v4744
          %v4791 = vpack.c.b16 %v4749, %v4747
          %v4792 = vpack.c.b16 %v4750, %v4748
          %v4793 = vpack.c.b16 %v4753, %v4751
          %v4794 = vpack.c.b16 %v4754, %v4752
          %v4795 = vpack.c.b16 %v4757, %v4755
          %v4796 = vpack.c.b16 %v4758, %v4756
          %v4797 = vpack.c.b16 %v4761, %v4759
          %v4798 = vpack.c.b16 %v4762, %v4760
          %v4799 = vpack.c.b16 %v4765, %v4763
          %v4800 = vpack.c.b16 %v4766, %v4764
          %v4801 = vpack.c.b16 %v4769, %v4767
          %v4802 = vpack.c.b16 %v4770, %v4768
          %4835 = vmatprep.subr.bf16.mxu0 %v4772
          %4836 = vmatpush1.bf16.msra.mxu0 %v4771
          %4837 = vmatprep.subr.bf16.mxu0 %v4774
          %4838 = vmatpush1.bf16.msra.mxu0 %v4773
          %4839 = vmatprep.subr.bf16.mxu0 %v4776
          %4840 = vmatpush1.bf16.msra.mxu0 %v4775
          %4841 = vmatprep.subr.bf16.mxu0 %v4778
          %4842 = vmatpush1.bf16.msra.mxu0 %v4777
          %4843 = vmatprep.subr.bf16.mxu0 %v4780
          %4844 = vmatpush1.bf16.msra.mxu0 %v4779
          %4845 = vmatprep.subr.bf16.mxu0 %v4782
          %4846 = vmatpush1.bf16.msra.mxu0 %v4781
          %4847 = vmatprep.subr.bf16.mxu0 %v4784
          %4848 = vmatpush1.bf16.msra.mxu0 %v4783
          %4849 = vmatprep.subr.bf16.mxu0 %v4786
          %4850 = vmatpush1.bf16.msra.mxu0 %v4785
          %4851 = vmatprep.subr.bf16.mxu0 %v4788
          %4852 = vmatpush1.bf16.msra.mxu0 %v4787
          %4853 = vmatprep.subr.bf16.mxu0 %v4790
          %4854 = vmatpush1.bf16.msra.mxu0 %v4789
          %4855 = vmatprep.subr.bf16.mxu0 %v4792
          %4856 = vmatpush1.bf16.msra.mxu0 %v4791
          %4857 = vmatprep.subr.bf16.mxu0 %v4794
          %4858 = vmatpush1.bf16.msra.mxu0 %v4793
          %4859 = vmatprep.subr.bf16.mxu0 %v4796
          %4860 = vmatpush1.bf16.msra.mxu0 %v4795
          %4861 = vmatprep.subr.bf16.mxu0 %v4798
          %4862 = vmatpush1.bf16.msra.mxu0 %v4797
          %4863 = vmatprep.subr.bf16.mxu0 %v4800
          %4864 = vmatpush1.bf16.msra.mxu0 %v4799
          %4865 = vmatprep.subr.bf16.mxu0 %v4802
          %4866 = vmatpush1.bf16.msra.mxu0 %v4801
          %4867 = vmatprep.mubr.bf16.mxu0 %v4644
          %4868 = vmatmul.mubr.bf16.gmra.mrb[0].mxu0 %v4643
          %v4869 = vpop.f32.mrb[0].mxu0
          %v4870 = vadd.f32 0.0, %v4869
          %v4871 = vpop.f32.mrb[0].mxu0
          %v4872 = vadd.f32 0.0, %v4871
          %v4873 = vpop.f32.mrb[0].mxu0
          %v4874 = vadd.f32 0.0, %v4873
          %v4875 = vpop.f32.mrb[0].mxu0
          %v4876 = vadd.f32 0.0, %v4875
          %4877 = vmatprep.mubr.bf16.mxu0 %v4646
          %4878 = vmatmul.mubr.bf16.gmra.mrb[0].mxu0 %v4645
          %v4879 = vpop.f32.mrb[0].mxu0
          %v4880 = vadd.f32 0.0, %v4879
          %v4881 = vpop.f32.mrb[0].mxu0
          %v4882 = vadd.f32 0.0, %v4881
          %v4883 = vpop.f32.mrb[0].mxu0
          %v4884 = vadd.f32 0.0, %v4883
          %v4885 = vpop.f32.mrb[0].mxu0
          %v4886 = vadd.f32 0.0, %v4885
          %4887 = vmatprep.mubr.bf16.mxu0 %v4648
          %4888 = vmatmul.mubr.bf16.gmra.mrb[0].mxu0 %v4647
          %v4889 = vpop.f32.mrb[0].mxu0
          %v4890 = vadd.f32 0.0, %v4889
          %v4891 = vpop.f32.mrb[0].mxu0
          %v4892 = vadd.f32 0.0, %v4891
          %v4893 = vpop.f32.mrb[0].mxu0
          %v4894 = vadd.f32 0.0, %v4893
          %v4895 = vpop.f32.mrb[0].mxu0
          %v4896 = vadd.f32 0.0, %v4895
          %4897 = vmatprep.mubr.bf16.mxu0 %v4650
          %4898 = vmatmul.mubr.bf16.gmra.mrb[0].mxu0 %v4649
          %v4899 = vpop.f32.mrb[0].mxu0
          %v4900 = vadd.f32 0.0, %v4899
          %v4901 = vpop.f32.mrb[0].mxu0
          %v4902 = vadd.f32 0.0, %v4901
          %v4903 = vpop.f32.mrb[0].mxu0
          %v4904 = vadd.f32 0.0, %v4903
          %v4905 = vpop.f32.mrb[0].mxu0
          %v4906 = vadd.f32 0.0, %v4905
          %4907 = vmatprep.mubr.bf16.mxu0 %v4652
          %4908 = vmatmul.mubr.bf16.gmra.mrb[0].mxu0 %v4651
          %v4909 = vpop.f32.mrb[0].mxu0
          %v4910 = vadd.f32 0.0, %v4909
          %v4911 = vpop.f32.mrb[0].mxu0
          %v4912 = vadd.f32 0.0, %v4911
          %v4913 = vpop.f32.mrb[0].mxu0
          %v4914 = vadd.f32 0.0, %v4913
          %v4915 = vpop.f32.mrb[0].mxu0
          %v4916 = vadd.f32 0.0, %v4915
          %4917 = vmatprep.mubr.bf16.mxu0 %v4654
          %4918 = vmatmul.mubr.bf16.gmra.mrb[0].mxu0 %v4653
          %v4919 = vpop.f32.mrb[0].mxu0
          %v4920 = vadd.f32 0.0, %v4919
          %v4921 = vpop.f32.mrb[0].mxu0
          %v4922 = vadd.f32 0.0, %v4921
          %v4923 = vpop.f32.mrb[0].mxu0
          %v4924 = vadd.f32 0.0, %v4923
          %v4925 = vpop.f32.mrb[0].mxu0
          %v4926 = vadd.f32 0.0, %v4925
          %4927 = vmatprep.mubr.bf16.mxu0 %v4656
          %4928 = vmatmul.mubr.bf16.gmra.mrb[0].mxu0 %v4655
          %v4929 = vpop.f32.mrb[0].mxu0
          %v4930 = vadd.f32 0.0, %v4929
          %v4931 = vpop.f32.mrb[0].mxu0
          %v4932 = vadd.f32 0.0, %v4931
          %v4933 = vpop.f32.mrb[0].mxu0
          %v4934 = vadd.f32 0.0, %v4933
          %v4935 = vpop.f32.mrb[0].mxu0
          %v4936 = vadd.f32 0.0, %v4935
          %4937 = vmatprep.mubr.bf16.mxu0 %v4658
          %4938 = vmatmul.mubr.bf16.gmra.mrb[0].mxu0 %v4657
          %v4939 = vpop.f32.mrb[0].mxu0
          %v4940 = vadd.f32 0.0, %v4939
          %v4941 = vpop.f32.mrb[0].mxu0
          %v4942 = vadd.f32 0.0, %v4941
          %v4943 = vpop.f32.mrb[0].mxu0
          %v4944 = vadd.f32 0.0, %v4943
          %v4945 = vpop.f32.mrb[0].mxu0
          %v4946 = vadd.f32 0.0, %v4945
          %4947 = vdwg.mxu0
          %v4948 = vadd.f32 %v4482, %v4870
          %v4949 = vadd.f32 %v4483, %v4872
          %v4950 = vadd.f32 %v4484, %v4874
          %v4951 = vadd.f32 %v4485, %v4876
          %v4952 = vadd.f32 %v4486, %v4880
          %v4953 = vadd.f32 %v4487, %v4882
          %v4954 = vadd.f32 %v4488, %v4884
          %v4955 = vadd.f32 %v4489, %v4886
          %v4956 = vadd.f32 %v4490, %v4890
          %v4957 = vadd.f32 %v4491, %v4892
          %v4958 = vadd.f32 %v4492, %v4894
          %v4959 = vadd.f32 %v4493, %v4896
          %v4960 = vadd.f32 %v4494, %v4900
          %v4961 = vadd.f32 %v4495, %v4902
          %v4962 = vadd.f32 %v4496, %v4904
          %v4963 = vadd.f32 %v4497, %v4906
          %v4964 = vadd.f32 %v4498, %v4910
          %v4965 = vadd.f32 %v4499, %v4912
          %v4966 = vadd.f32 %v4500, %v4914
          %v4967 = vadd.f32 %v4501, %v4916
          %v4968 = vadd.f32 %v4502, %v4920
          %v4969 = vadd.f32 %v4503, %v4922
          %v4970 = vadd.f32 %v4504, %v4924
          %v4971 = vadd.f32 %v4505, %v4926
          %v4972 = vadd.f32 %v4506, %v4930
          %v4973 = vadd.f32 %v4507, %v4932
          %v4974 = vadd.f32 %v4508, %v4934
          %v4975 = vadd.f32 %v4509, %v4936
          %v4976 = vadd.f32 %v4510, %v4940
          %v4977 = vadd.f32 %v4511, %v4942
          %v4978 = vadd.f32 %v4512, %v4944
          %v4979 = vadd.f32 %v4513, %v4946
          %v4980 = vld [vmem:[%s4514] sm:$0x1f]
          %v4981 = vld [vmem:[%s4514 + $0x8] sm:$0x1f]
          %v4982 = vld [vmem:[%s4514 + $0x10] sm:$0x1f]
          %v4983 = vld [vmem:[%s4514 + $0x18] sm:$0x1f]
          %v4984 = vld [vmem:[%s4514 + $0x20] sm:$0x1f]
          %v4985 = vld [vmem:[%s4514 + $0x28] sm:$0x1f]
          %v4986 = vld [vmem:[%s4514 + $0x30] sm:$0x1f]
          %v4987 = vld [vmem:[%s4514 + $0x38] sm:$0x1f]
          %v4988 = vld [vmem:[%s4514 + $0x40] sm:$0x1f]
          %v4989 = vld [vmem:[%s4514 + $0x48] sm:$0x1f]
          %v4990 = vld [vmem:[%s4514 + $0x50] sm:$0x1f]
          %v4991 = vld [vmem:[%s4514 + $0x58] sm:$0x1f]
          %v4992 = vld [vmem:[%s4514 + $0x60] sm:$0x1f]
          %v4993 = vld [vmem:[%s4514 + $0x68] sm:$0x1f]
          %v4994 = vld [vmem:[%s4514 + $0x70] sm:$0x1f]
          %v4995 = vld [vmem:[%s4514 + $0x78] sm:$0x1f]
          %v4996 = vld [vmem:[%s4514 + $0xa0] sm:$0x1f]
          %v4997 = vld [vmem:[%s4514 + $0xa8] sm:$0x1f]
          %v4998 = vld [vmem:[%s4514 + $0xb0] sm:$0x1f]
          %v4999 = vld [vmem:[%s4514 + $0xb8] sm:$0x1f]
          %v5000 = vld [vmem:[%s4514 + $0xc0] sm:$0x1f]
          %v5001 = vld [vmem:[%s4514 + $0xc8] sm:$0x1f]
          %v5002 = vld [vmem:[%s4514 + $0xd0] sm:$0x1f]
          %v5003 = vld [vmem:[%s4514 + $0xd8] sm:$0x1f]
          %v5004 = vld [vmem:[%s4514 + $0xe0] sm:$0x1f]
          %v5005 = vld [vmem:[%s4514 + $0xe8] sm:$0x1f]
          %v5006 = vld [vmem:[%s4514 + $0xf0] sm:$0x1f]
          %v5007 = vld [vmem:[%s4514 + $0xf8] sm:$0x1f]
          %v5008 = vld [vmem:[%s4514 + $0x100] sm:$0x1f]
          %v5009 = vld [vmem:[%s4514 + $0x108] sm:$0x1f]
          %v5010 = vld [vmem:[%s4514 + $0x110] sm:$0x1f]
          %v5011 = vld [vmem:[%s4514 + $0x118] sm:$0x1f]
          %v5044 = vunpack.c.l.b16 %v4980
          %v5045 = vunpack.c.l.b16 %v4981
          %v5046 = vunpack.c.h.b16 %v4980
          %v5047 = vunpack.c.h.b16 %v4981
          %v5048 = vunpack.c.l.b16 %v4982
          %v5049 = vunpack.c.l.b16 %v4983
          %v5050 = vunpack.c.h.b16 %v4982
          %v5051 = vunpack.c.h.b16 %v4983
          %v5052 = vunpack.c.l.b16 %v4984
          %v5053 = vunpack.c.l.b16 %v4985
          %v5054 = vunpack.c.h.b16 %v4984
          %v5055 = vunpack.c.h.b16 %v4985
          %v5056 = vunpack.c.l.b16 %v4986
          %v5057 = vunpack.c.l.b16 %v4987
          %v5058 = vunpack.c.h.b16 %v4986
          %v5059 = vunpack.c.h.b16 %v4987
          %v5060 = vunpack.c.l.b16 %v4988
          %v5061 = vunpack.c.l.b16 %v4989
          %v5062 = vunpack.c.h.b16 %v4988
          %v5063 = vunpack.c.h.b16 %v4989
          %v5064 = vunpack.c.l.b16 %v4990
          %v5065 = vunpack.c.l.b16 %v4991
          %v5066 = vunpack.c.h.b16 %v4990
          %v5067 = vunpack.c.h.b16 %v4991
          %v5068 = vunpack.c.l.b16 %v4992
          %v5069 = vunpack.c.l.b16 %v4993
          %v5070 = vunpack.c.h.b16 %v4992
          %v5071 = vunpack.c.h.b16 %v4993
          %v5072 = vunpack.c.l.b16 %v4994
          %v5073 = vunpack.c.l.b16 %v4995
          %v5074 = vunpack.c.h.b16 %v4994
          %v5075 = vunpack.c.h.b16 %v4995
          %v5076 = vunpack.c.l.b16 %v4996
          %v5077 = vunpack.c.l.b16 %v4997
          %v5078 = vunpack.c.h.b16 %v4996
          %v5079 = vunpack.c.h.b16 %v4997
          %v5080 = vunpack.c.l.b16 %v4998
          %v5081 = vunpack.c.l.b16 %v4999
          %v5082 = vunpack.c.h.b16 %v4998
          %v5083 = vunpack.c.h.b16 %v4999
          %v5084 = vunpack.c.l.b16 %v5000
          %v5085 = vunpack.c.l.b16 %v5001
          %v5086 = vunpack.c.h.b16 %v5000
          %v5087 = vunpack.c.h.b16 %v5001
          %v5088 = vunpack.c.l.b16 %v5002
          %v5089 = vunpack.c.l.b16 %v5003
          %v5090 = vunpack.c.h.b16 %v5002
          %v5091 = vunpack.c.h.b16 %v5003
          %v5092 = vunpack.c.l.b16 %v5004
          %v5093 = vunpack.c.l.b16 %v5005
          %v5094 = vunpack.c.h.b16 %v5004
          %v5095 = vunpack.c.h.b16 %v5005
          %v5096 = vunpack.c.l.b16 %v5006
          %v5097 = vunpack.c.l.b16 %v5007
          %v5098 = vunpack.c.h.b16 %v5006
          %v5099 = vunpack.c.h.b16 %v5007
          %v5100 = vunpack.c.l.b16 %v5008
          %v5101 = vunpack.c.l.b16 %v5009
          %v5102 = vunpack.c.h.b16 %v5008
          %v5103 = vunpack.c.h.b16 %v5009
          %v5104 = vunpack.c.l.b16 %v5010
          %v5105 = vunpack.c.l.b16 %v5011
          %v5106 = vunpack.c.h.b16 %v5010
          %v5107 = vunpack.c.h.b16 %v5011
          %v5108 = vpack.c.b16 %v5045, %v5044
          %v5109 = vpack.c.b16 %v5047, %v5046
          %v5110 = vpack.c.b16 %v5049, %v5048
          %v5111 = vpack.c.b16 %v5051, %v5050
          %v5112 = vpack.c.b16 %v5053, %v5052
          %v5113 = vpack.c.b16 %v5055, %v5054
          %v5114 = vpack.c.b16 %v5057, %v5056
          %v5115 = vpack.c.b16 %v5059, %v5058
          %v5116 = vpack.c.b16 %v5061, %v5060
          %v5117 = vpack.c.b16 %v5063, %v5062
          %v5118 = vpack.c.b16 %v5065, %v5064
          %v5119 = vpack.c.b16 %v5067, %v5066
          %v5120 = vpack.c.b16 %v5069, %v5068
          %v5121 = vpack.c.b16 %v5071, %v5070
          %v5122 = vpack.c.b16 %v5073, %v5072
          %v5123 = vpack.c.b16 %v5075, %v5074
          %v5124 = vpack.c.b16 %v5077, %v5076
          %v5125 = vpack.c.b16 %v5079, %v5078
          %v5126 = vpack.c.b16 %v5081, %v5080
          %v5127 = vpack.c.b16 %v5083, %v5082
          %v5128 = vpack.c.b16 %v5085, %v5084
          %v5129 = vpack.c.b16 %v5087, %v5086
          %v5130 = vpack.c.b16 %v5089, %v5088
          %v5131 = vpack.c.b16 %v5091, %v5090
          %v5132 = vpack.c.b16 %v5093, %v5092
          %v5133 = vpack.c.b16 %v5095, %v5094
          %v5134 = vpack.c.b16 %v5097, %v5096
          %v5135 = vpack.c.b16 %v5099, %v5098
          %v5136 = vpack.c.b16 %v5101, %v5100
          %v5137 = vpack.c.b16 %v5103, %v5102
          %v5138 = vpack.c.b16 %v5105, %v5104
          %v5139 = vpack.c.b16 %v5107, %v5106
          %v5141 = vshrl.u32 %v5108, 16
          %v5143 = vrot.slane %v5141, 4
          %v5144 = vshll.u32 %v5108, 16
          %v5146 = vrot.slane %v5144, 5
          %v5147 = vor.u32 %v5143, %v5146
          %v5148 = vrot.slane %v5147, 4
          %v5150 = vshll.u32 %v5109, 16
          %v5152 = vrot.slane %v5150, 5
          %v5153 = vsel %vm1111, %v5148, %v5152
          %v5155 = vshrl.u32 %v5110, 16
          %v5157 = vrot.slane %v5155, 4
          %v5158 = vshll.u32 %v5110, 16
          %v5160 = vrot.slane %v5158, 5
          %v5161 = vor.u32 %v5157, %v5160
          %v5162 = vrot.slane %v5161, 4
          %v5164 = vshll.u32 %v5111, 16
          %v5166 = vrot.slane %v5164, 5
          %v5167 = vsel %vm1111, %v5162, %v5166
          %v5169 = vshrl.u32 %v5112, 16
          %v5171 = vrot.slane %v5169, 4
          %v5172 = vshll.u32 %v5112, 16
          %v5174 = vrot.slane %v5172, 5
          %v5175 = vor.u32 %v5171, %v5174
          %v5176 = vrot.slane %v5175, 4
          %v5178 = vshll.u32 %v5113, 16
          %v5180 = vrot.slane %v5178, 5
          %v5181 = vsel %vm1111, %v5176, %v5180
          %v5183 = vshrl.u32 %v5114, 16
          %v5185 = vrot.slane %v5183, 4
          %v5186 = vshll.u32 %v5114, 16
          %v5188 = vrot.slane %v5186, 5
          %v5189 = vor.u32 %v5185, %v5188
          %v5190 = vrot.slane %v5189, 4
          %v5192 = vshll.u32 %v5115, 16
          %v5194 = vrot.slane %v5192, 5
          %v5195 = vsel %vm1111, %v5190, %v5194
          %v5197 = vshrl.u32 %v5116, 16
          %v5199 = vrot.slane %v5197, 4
          %v5200 = vshll.u32 %v5116, 16
          %v5202 = vrot.slane %v5200, 5
          %v5203 = vor.u32 %v5199, %v5202
          %v5204 = vrot.slane %v5203, 4
          %v5206 = vshll.u32 %v5117, 16
          %v5208 = vrot.slane %v5206, 5
          %v5209 = vsel %vm1111, %v5204, %v5208
          %v5211 = vshrl.u32 %v5118, 16
          %v5213 = vrot.slane %v5211, 4
          %v5214 = vshll.u32 %v5118, 16
          %v5216 = vrot.slane %v5214, 5
          %v5217 = vor.u32 %v5213, %v5216
          %v5218 = vrot.slane %v5217, 4
          %v5220 = vshll.u32 %v5119, 16
          %v5222 = vrot.slane %v5220, 5
          %v5223 = vsel %vm1111, %v5218, %v5222
          %v5225 = vshrl.u32 %v5120, 16
          %v5227 = vrot.slane %v5225, 4
          %v5228 = vshll.u32 %v5120, 16
          %v5230 = vrot.slane %v5228, 5
          %v5231 = vor.u32 %v5227, %v5230
          %v5232 = vrot.slane %v5231, 4
          %v5234 = vshll.u32 %v5121, 16
          %v5236 = vrot.slane %v5234, 5
          %v5237 = vsel %vm1111, %v5232, %v5236
          %v5239 = vshrl.u32 %v5122, 16
          %v5241 = vrot.slane %v5239, 4
          %v5242 = vshll.u32 %v5122, 16
          %v5244 = vrot.slane %v5242, 5
          %v5245 = vor.u32 %v5241, %v5244
          %v5246 = vrot.slane %v5245, 4
          %v5248 = vshll.u32 %v5123, 16
          %v5250 = vrot.slane %v5248, 5
          %v5251 = vsel %vm1111, %v5246, %v5250
          %v5253 = vshrl.u32 %v5124, 16
          %v5255 = vrot.slane %v5253, 4
          %v5256 = vshll.u32 %v5124, 16
          %v5258 = vrot.slane %v5256, 5
          %v5259 = vor.u32 %v5255, %v5258
          %v5260 = vrot.slane %v5259, 4
          %v5262 = vshll.u32 %v5125, 16
          %v5264 = vrot.slane %v5262, 5
          %v5265 = vsel %vm1111, %v5260, %v5264
          %v5267 = vshrl.u32 %v5126, 16
          %v5269 = vrot.slane %v5267, 4
          %v5270 = vshll.u32 %v5126, 16
          %v5272 = vrot.slane %v5270, 5
          %v5273 = vor.u32 %v5269, %v5272
          %v5274 = vrot.slane %v5273, 4
          %v5276 = vshll.u32 %v5127, 16
          %v5278 = vrot.slane %v5276, 5
          %v5279 = vsel %vm1111, %v5274, %v5278
          %v5281 = vshrl.u32 %v5128, 16
          %v5283 = vrot.slane %v5281, 4
          %v5284 = vshll.u32 %v5128, 16
          %v5286 = vrot.slane %v5284, 5
          %v5287 = vor.u32 %v5283, %v5286
          %v5288 = vrot.slane %v5287, 4
          %v5290 = vshll.u32 %v5129, 16
          %v5292 = vrot.slane %v5290, 5
          %v5293 = vsel %vm1111, %v5288, %v5292
          %v5295 = vshrl.u32 %v5130, 16
          %v5297 = vrot.slane %v5295, 4
          %v5298 = vshll.u32 %v5130, 16
          %v5300 = vrot.slane %v5298, 5
          %v5301 = vor.u32 %v5297, %v5300
          %v5302 = vrot.slane %v5301, 4
          %v5304 = vshll.u32 %v5131, 16
          %v5306 = vrot.slane %v5304, 5
          %v5307 = vsel %vm1111, %v5302, %v5306
          %v5309 = vshrl.u32 %v5132, 16
          %v5311 = vrot.slane %v5309, 4
          %v5312 = vshll.u32 %v5132, 16
          %v5314 = vrot.slane %v5312, 5
          %v5315 = vor.u32 %v5311, %v5314
          %v5316 = vrot.slane %v5315, 4
          %v5318 = vshll.u32 %v5133, 16
          %v5320 = vrot.slane %v5318, 5
          %v5321 = vsel %vm1111, %v5316, %v5320
          %v5323 = vshrl.u32 %v5134, 16
          %v5325 = vrot.slane %v5323, 4
          %v5326 = vshll.u32 %v5134, 16
          %v5328 = vrot.slane %v5326, 5
          %v5329 = vor.u32 %v5325, %v5328
          %v5330 = vrot.slane %v5329, 4
          %v5332 = vshll.u32 %v5135, 16
          %v5334 = vrot.slane %v5332, 5
          %v5335 = vsel %vm1111, %v5330, %v5334
          %v5337 = vshrl.u32 %v5136, 16
          %v5339 = vrot.slane %v5337, 4
          %v5340 = vshll.u32 %v5136, 16
          %v5342 = vrot.slane %v5340, 5
          %v5343 = vor.u32 %v5339, %v5342
          %v5344 = vrot.slane %v5343, 4
          %v5346 = vshll.u32 %v5137, 16
          %v5348 = vrot.slane %v5346, 5
          %v5349 = vsel %vm1111, %v5344, %v5348
          %v5351 = vshrl.u32 %v5138, 16
          %v5353 = vrot.slane %v5351, 4
          %v5354 = vshll.u32 %v5138, 16
          %v5356 = vrot.slane %v5354, 5
          %v5357 = vor.u32 %v5353, %v5356
          %v5358 = vrot.slane %v5357, 4
          %v5360 = vshll.u32 %v5139, 16
          %v5362 = vrot.slane %v5360, 5
          %v5363 = vsel %vm1111, %v5358, %v5362
          %v5364 = vld [vmem:[%s302 + $0x700] sm:$0xff]
          %v5365 = vld [vmem:[%s302 + $0x708] sm:$0xff]
          %v5366 = vld [vmem:[%s302 + $0x710] sm:$0xff]
          %v5367 = vld [vmem:[%s302 + $0x718] sm:$0xff]
          %v5368 = vld [vmem:[%s302 + $0x720] sm:$0xff]
          %v5369 = vld [vmem:[%s302 + $0x728] sm:$0xff]
          %v5370 = vld [vmem:[%s302 + $0x730] sm:$0xff]
          %v5371 = vld [vmem:[%s302 + $0x738] sm:$0xff]
          %v5372 = vld [vmem:[%s302 + $0x740] sm:$0xff]
          %v5373 = vld [vmem:[%s302 + $0x748] sm:$0xff]
          %v5374 = vld [vmem:[%s302 + $0x750] sm:$0xff]
          %v5375 = vld [vmem:[%s302 + $0x758] sm:$0xff]
          %v5376 = vld [vmem:[%s302 + $0x760] sm:$0xff]
          %v5377 = vld [vmem:[%s302 + $0x768] sm:$0xff]
          %v5378 = vld [vmem:[%s302 + $0x770] sm:$0xff]
          %v5379 = vld [vmem:[%s302 + $0x778] sm:$0xff]
          %v5380 = vld [vmem:[%s302 + $0x780] sm:$0xff]
          %v5381 = vld [vmem:[%s302 + $0x788] sm:$0xff]
          %v5382 = vld [vmem:[%s302 + $0x790] sm:$0xff]
          %v5383 = vld [vmem:[%s302 + $0x798] sm:$0xff]
          %v5384 = vld [vmem:[%s302 + $0x7a0] sm:$0xff]
          %v5385 = vld [vmem:[%s302 + $0x7a8] sm:$0xff]
          %v5386 = vld [vmem:[%s302 + $0x7b0] sm:$0xff]
          %v5387 = vld [vmem:[%s302 + $0x7b8] sm:$0xff]
          %v5388 = vld [vmem:[%s302 + $0x7c0] sm:$0xff]
          %v5389 = vld [vmem:[%s302 + $0x7c8] sm:$0xff]
          %v5390 = vld [vmem:[%s302 + $0x7d0] sm:$0xff]
          %v5391 = vld [vmem:[%s302 + $0x7d8] sm:$0xff]
          %v5392 = vld [vmem:[%s302 + $0x7e0] sm:$0xff]
          %v5393 = vld [vmem:[%s302 + $0x7e8] sm:$0xff]
          %v5394 = vld [vmem:[%s302 + $0x7f0] sm:$0xff]
          %v5395 = vld [vmem:[%s302 + $0x7f8] sm:$0xff]
          %v5396 = vunpack.c.l.b16 %v5153
          %v5397 = vunpack.c.h.b16 %v5153
          %v5398 = vunpack.c.l.b16 %v5167
          %v5399 = vunpack.c.h.b16 %v5167
          %v5400 = vunpack.c.l.b16 %v5181
          %v5401 = vunpack.c.h.b16 %v5181
          %v5402 = vunpack.c.l.b16 %v5195
          %v5403 = vunpack.c.h.b16 %v5195
          %v5404 = vunpack.c.l.b16 %v5209
          %v5405 = vunpack.c.h.b16 %v5209
          %v5406 = vunpack.c.l.b16 %v5223
          %v5407 = vunpack.c.h.b16 %v5223
          %v5408 = vunpack.c.l.b16 %v5237
          %v5409 = vunpack.c.h.b16 %v5237
          %v5410 = vunpack.c.l.b16 %v5251
          %v5411 = vunpack.c.h.b16 %v5251
          %v5412 = vunpack.c.l.b16 %v5265
          %v5413 = vunpack.c.h.b16 %v5265
          %v5414 = vunpack.c.l.b16 %v5279
          %v5415 = vunpack.c.h.b16 %v5279
          %v5416 = vunpack.c.l.b16 %v5293
          %v5417 = vunpack.c.h.b16 %v5293
          %v5418 = vunpack.c.l.b16 %v5307
          %v5419 = vunpack.c.h.b16 %v5307
          %v5420 = vunpack.c.l.b16 %v5321
          %v5421 = vunpack.c.h.b16 %v5321
          %v5422 = vunpack.c.l.b16 %v5335
          %v5423 = vunpack.c.h.b16 %v5335
          %v5424 = vunpack.c.l.b16 %v5349
          %v5425 = vunpack.c.h.b16 %v5349
          %v5426 = vunpack.c.l.b16 %v5363
          %v5427 = vunpack.c.h.b16 %v5363
          %v5428 = vpack.c.b16 %v5398, %v5396
          %v5429 = vpack.c.b16 %v5399, %v5397
          %v5430 = vpack.c.b16 %v5402, %v5400
          %v5431 = vpack.c.b16 %v5403, %v5401
          %v5432 = vpack.c.b16 %v5406, %v5404
          %v5433 = vpack.c.b16 %v5407, %v5405
          %v5434 = vpack.c.b16 %v5410, %v5408
          %v5435 = vpack.c.b16 %v5411, %v5409
          %v5436 = vpack.c.b16 %v5414, %v5412
          %v5437 = vpack.c.b16 %v5415, %v5413
          %v5438 = vpack.c.b16 %v5418, %v5416
          %v5439 = vpack.c.b16 %v5419, %v5417
          %v5440 = vpack.c.b16 %v5422, %v5420
          %v5441 = vpack.c.b16 %v5423, %v5421
          %v5442 = vpack.c.b16 %v5426, %v5424
          %v5443 = vpack.c.b16 %v5427, %v5425
          %v5492 = vunpack.c.l.b16 %v5364
          %v5493 = vunpack.c.h.b16 %v5364
          %v5494 = vunpack.c.l.b16 %v5365
          %v5495 = vunpack.c.h.b16 %v5365
          %v5496 = vunpack.c.l.b16 %v5366
          %v5497 = vunpack.c.h.b16 %v5366
          %v5498 = vunpack.c.l.b16 %v5367
          %v5499 = vunpack.c.h.b16 %v5367
          %v5500 = vunpack.c.l.b16 %v5368
          %v5501 = vunpack.c.h.b16 %v5368
          %v5502 = vunpack.c.l.b16 %v5369
          %v5503 = vunpack.c.h.b16 %v5369
          %v5504 = vunpack.c.l.b16 %v5370
          %v5505 = vunpack.c.h.b16 %v5370
          %v5506 = vunpack.c.l.b16 %v5371
          %v5507 = vunpack.c.h.b16 %v5371
          %v5508 = vunpack.c.l.b16 %v5372
          %v5509 = vunpack.c.h.b16 %v5372
          %v5510 = vunpack.c.l.b16 %v5373
          %v5511 = vunpack.c.h.b16 %v5373
          %v5512 = vunpack.c.l.b16 %v5374
          %v5513 = vunpack.c.h.b16 %v5374
          %v5514 = vunpack.c.l.b16 %v5375
          %v5515 = vunpack.c.h.b16 %v5375
          %v5516 = vunpack.c.l.b16 %v5376
          %v5517 = vunpack.c.h.b16 %v5376
          %v5518 = vunpack.c.l.b16 %v5377
          %v5519 = vunpack.c.h.b16 %v5377
          %v5520 = vunpack.c.l.b16 %v5378
          %v5521 = vunpack.c.h.b16 %v5378
          %v5522 = vunpack.c.l.b16 %v5379
          %v5523 = vunpack.c.h.b16 %v5379
          %v5524 = vunpack.c.l.b16 %v5380
          %v5525 = vunpack.c.h.b16 %v5380
          %v5526 = vunpack.c.l.b16 %v5381
          %v5527 = vunpack.c.h.b16 %v5381
          %v5528 = vunpack.c.l.b16 %v5382
          %v5529 = vunpack.c.h.b16 %v5382
          %v5530 = vunpack.c.l.b16 %v5383
          %v5531 = vunpack.c.h.b16 %v5383
          %v5532 = vunpack.c.l.b16 %v5384
          %v5533 = vunpack.c.h.b16 %v5384
          %v5534 = vunpack.c.l.b16 %v5385
          %v5535 = vunpack.c.h.b16 %v5385
          %v5536 = vunpack.c.l.b16 %v5386
          %v5537 = vunpack.c.h.b16 %v5386
          %v5538 = vunpack.c.l.b16 %v5387
          %v5539 = vunpack.c.h.b16 %v5387
          %v5540 = vunpack.c.l.b16 %v5388
          %v5541 = vunpack.c.h.b16 %v5388
          %v5542 = vunpack.c.l.b16 %v5389
          %v5543 = vunpack.c.h.b16 %v5389
          %v5544 = vunpack.c.l.b16 %v5390
          %v5545 = vunpack.c.h.b16 %v5390
          %v5546 = vunpack.c.l.b16 %v5391
          %v5547 = vunpack.c.h.b16 %v5391
          %v5548 = vunpack.c.l.b16 %v5392
          %v5549 = vunpack.c.h.b16 %v5392
          %v5550 = vunpack.c.l.b16 %v5393
          %v5551 = vunpack.c.h.b16 %v5393
          %v5552 = vunpack.c.l.b16 %v5394
          %v5553 = vunpack.c.h.b16 %v5394
          %v5554 = vunpack.c.l.b16 %v5395
          %v5555 = vunpack.c.h.b16 %v5395
          %v5556 = vpack.c.b16 %v5494, %v5492
          %v5557 = vpack.c.b16 %v5495, %v5493
          %v5558 = vpack.c.b16 %v5498, %v5496
          %v5559 = vpack.c.b16 %v5499, %v5497
          %v5560 = vpack.c.b16 %v5502, %v5500
          %v5561 = vpack.c.b16 %v5503, %v5501
          %v5562 = vpack.c.b16 %v5506, %v5504
          %v5563 = vpack.c.b16 %v5507, %v5505
          %v5564 = vpack.c.b16 %v5510, %v5508
          %v5565 = vpack.c.b16 %v5511, %v5509
          %v5566 = vpack.c.b16 %v5514, %v5512
          %v5567 = vpack.c.b16 %v5515, %v5513
          %v5568 = vpack.c.b16 %v5518, %v5516
          %v5569 = vpack.c.b16 %v5519, %v5517
          %v5570 = vpack.c.b16 %v5522, %v5520
          %v5571 = vpack.c.b16 %v5523, %v5521
          %v5572 = vpack.c.b16 %v5526, %v5524
          %v5573 = vpack.c.b16 %v5527, %v5525
          %v5574 = vpack.c.b16 %v5530, %v5528
          %v5575 = vpack.c.b16 %v5531, %v5529
          %v5576 = vpack.c.b16 %v5534, %v5532
          %v5577 = vpack.c.b16 %v5535, %v5533
          %v5578 = vpack.c.b16 %v5538, %v5536
          %v5579 = vpack.c.b16 %v5539, %v5537
          %v5580 = vpack.c.b16 %v5542, %v5540
          %v5581 = vpack.c.b16 %v5543, %v5541
          %v5582 = vpack.c.b16 %v5546, %v5544
          %v5583 = vpack.c.b16 %v5547, %v5545
          %v5584 = vpack.c.b16 %v5550, %v5548
          %v5585 = vpack.c.b16 %v5551, %v5549
          %v5586 = vpack.c.b16 %v5554, %v5552
          %v5587 = vpack.c.b16 %v5555, %v5553
          %5620 = vmatprep.subr.bf16.mxu0 %v5557
          %5621 = vmatpush1.bf16.msra.mxu0 %v5556
          %5622 = vmatprep.subr.bf16.mxu0 %v5559
          %5623 = vmatpush1.bf16.msra.mxu0 %v5558
          %5624 = vmatprep.subr.bf16.mxu0 %v5561
          %5625 = vmatpush1.bf16.msra.mxu0 %v5560
          %5626 = vmatprep.subr.bf16.mxu0 %v5563
          %5627 = vmatpush1.bf16.msra.mxu0 %v5562
          %5628 = vmatprep.subr.bf16.mxu0 %v5565
          %5629 = vmatpush1.bf16.msra.mxu0 %v5564
          %5630 = vmatprep.subr.bf16.mxu0 %v5567
          %5631 = vmatpush1.bf16.msra.mxu0 %v5566
          %5632 = vmatprep.subr.bf16.mxu0 %v5569
          %5633 = vmatpush1.bf16.msra.mxu0 %v5568
          %5634 = vmatprep.subr.bf16.mxu0 %v5571
          %5635 = vmatpush1.bf16.msra.mxu0 %v5570
          %5636 = vmatprep.subr.bf16.mxu0 %v5573
          %5637 = vmatpush1.bf16.msra.mxu0 %v5572
          %5638 = vmatprep.subr.bf16.mxu0 %v5575
          %5639 = vmatpush1.bf16.msra.mxu0 %v5574
          %5640 = vmatprep.subr.bf16.mxu0 %v5577
          %5641 = vmatpush1.bf16.msra.mxu0 %v5576
          %5642 = vmatprep.subr.bf16.mxu0 %v5579
          %5643 = vmatpush1.bf16.msra.mxu0 %v5578
          %5644 = vmatprep.subr.bf16.mxu0 %v5581
          %5645 = vmatpush1.bf16.msra.mxu0 %v5580
          %5646 = vmatprep.subr.bf16.mxu0 %v5583
          %5647 = vmatpush1.bf16.msra.mxu0 %v5582
          %5648 = vmatprep.subr.bf16.mxu0 %v5585
          %5649 = vmatpush1.bf16.msra.mxu0 %v5584
          %5650 = vmatprep.subr.bf16.mxu0 %v5587
          %5651 = vmatpush1.bf16.msra.mxu0 %v5586
          %5652 = vmatprep.mubr.bf16.mxu0 %v5429
          %5653 = vmatmul.mubr.bf16.gmra.mrb[0].mxu0 %v5428
          %v5654 = vpop.f32.mrb[0].mxu0
          %v5655 = vadd.f32 0.0, %v5654
          %v5656 = vpop.f32.mrb[0].mxu0
          %v5657 = vadd.f32 0.0, %v5656
          %v5658 = vpop.f32.mrb[0].mxu0
          %v5659 = vadd.f32 0.0, %v5658
          %v5660 = vpop.f32.mrb[0].mxu0
          %v5661 = vadd.f32 0.0, %v5660
          %5662 = vmatprep.mubr.bf16.mxu0 %v5431
          %5663 = vmatmul.mubr.bf16.gmra.mrb[0].mxu0 %v5430
          %v5664 = vpop.f32.mrb[0].mxu0
          %v5665 = vadd.f32 0.0, %v5664
          %v5666 = vpop.f32.mrb[0].mxu0
          %v5667 = vadd.f32 0.0, %v5666
          %v5668 = vpop.f32.mrb[0].mxu0
          %v5669 = vadd.f32 0.0, %v5668
          %v5670 = vpop.f32.mrb[0].mxu0
          %v5671 = vadd.f32 0.0, %v5670
          %5672 = vmatprep.mubr.bf16.mxu0 %v5433
          %5673 = vmatmul.mubr.bf16.gmra.mrb[0].mxu0 %v5432
          %v5674 = vpop.f32.mrb[0].mxu0
          %v5675 = vadd.f32 0.0, %v5674
          %v5676 = vpop.f32.mrb[0].mxu0
          %v5677 = vadd.f32 0.0, %v5676
          %v5678 = vpop.f32.mrb[0].mxu0
          %v5679 = vadd.f32 0.0, %v5678
          %v5680 = vpop.f32.mrb[0].mxu0
          %v5681 = vadd.f32 0.0, %v5680
          %5682 = vmatprep.mubr.bf16.mxu0 %v5435
          %5683 = vmatmul.mubr.bf16.gmra.mrb[0].mxu0 %v5434
          %v5684 = vpop.f32.mrb[0].mxu0
          %v5685 = vadd.f32 0.0, %v5684
          %v5686 = vpop.f32.mrb[0].mxu0
          %v5687 = vadd.f32 0.0, %v5686
          %v5688 = vpop.f32.mrb[0].mxu0
          %v5689 = vadd.f32 0.0, %v5688
          %v5690 = vpop.f32.mrb[0].mxu0
          %v5691 = vadd.f32 0.0, %v5690
          %5692 = vmatprep.mubr.bf16.mxu0 %v5437
          %5693 = vmatmul.mubr.bf16.gmra.mrb[0].mxu0 %v5436
          %v5694 = vpop.f32.mrb[0].mxu0
          %v5695 = vadd.f32 0.0, %v5694
          %v5696 = vpop.f32.mrb[0].mxu0
          %v5697 = vadd.f32 0.0, %v5696
          %v5698 = vpop.f32.mrb[0].mxu0
          %v5699 = vadd.f32 0.0, %v5698
          %v5700 = vpop.f32.mrb[0].mxu0
          %v5701 = vadd.f32 0.0, %v5700
          %5702 = vmatprep.mubr.bf16.mxu0 %v5439
          %5703 = vmatmul.mubr.bf16.gmra.mrb[0].mxu0 %v5438
          %v5704 = vpop.f32.mrb[0].mxu0
          %v5705 = vadd.f32 0.0, %v5704
          %v5706 = vpop.f32.mrb[0].mxu0
          %v5707 = vadd.f32 0.0, %v5706
          %v5708 = vpop.f32.mrb[0].mxu0
          %v5709 = vadd.f32 0.0, %v5708
          %v5710 = vpop.f32.mrb[0].mxu0
          %v5711 = vadd.f32 0.0, %v5710
          %5712 = vmatprep.mubr.bf16.mxu0 %v5441
          %5713 = vmatmul.mubr.bf16.gmra.mrb[0].mxu0 %v5440
          %v5714 = vpop.f32.mrb[0].mxu0
          %v5715 = vadd.f32 0.0, %v5714
          %v5716 = vpop.f32.mrb[0].mxu0
          %v5717 = vadd.f32 0.0, %v5716
          %v5718 = vpop.f32.mrb[0].mxu0
          %v5719 = vadd.f32 0.0, %v5718
          %v5720 = vpop.f32.mrb[0].mxu0
          %v5721 = vadd.f32 0.0, %v5720
          %5722 = vmatprep.mubr.bf16.mxu0 %v5443
          %5723 = vmatmul.mubr.bf16.gmra.mrb[0].mxu0 %v5442
          %v5724 = vpop.f32.mrb[0].mxu0
          %v5725 = vadd.f32 0.0, %v5724
          %v5726 = vpop.f32.mrb[0].mxu0
          %v5727 = vadd.f32 0.0, %v5726
          %v5728 = vpop.f32.mrb[0].mxu0
          %v5729 = vadd.f32 0.0, %v5728
          %v5730 = vpop.f32.mrb[0].mxu0
          %v5731 = vadd.f32 0.0, %v5730
          %5732 = vdwg.mxu0
          %v5733 = vadd.f32 %v4948, %v5655
          %v5734 = vadd.f32 %v4949, %v5657
          %v5735 = vadd.f32 %v4950, %v5659
          %v5736 = vadd.f32 %v4951, %v5661
          %v5737 = vadd.f32 %v4952, %v5665
          %v5738 = vadd.f32 %v4953, %v5667
          %v5739 = vadd.f32 %v4954, %v5669
          %v5740 = vadd.f32 %v4955, %v5671
          %v5741 = vadd.f32 %v4956, %v5675
          %v5742 = vadd.f32 %v4957, %v5677
          %v5743 = vadd.f32 %v4958, %v5679
          %v5744 = vadd.f32 %v4959, %v5681
          %v5745 = vadd.f32 %v4960, %v5685
          %v5746 = vadd.f32 %v4961, %v5687
          %v5747 = vadd.f32 %v4962, %v5689
          %v5748 = vadd.f32 %v4963, %v5691
          %v5749 = vadd.f32 %v4964, %v5695
          %v5750 = vadd.f32 %v4965, %v5697
          %v5751 = vadd.f32 %v4966, %v5699
          %v5752 = vadd.f32 %v4967, %v5701
          %v5753 = vadd.f32 %v4968, %v5705
          %v5754 = vadd.f32 %v4969, %v5707
          %v5755 = vadd.f32 %v4970, %v5709
          %v5756 = vadd.f32 %v4971, %v5711
          %v5757 = vadd.f32 %v4972, %v5715
          %v5758 = vadd.f32 %v4973, %v5717
          %v5759 = vadd.f32 %v4974, %v5719
          %v5760 = vadd.f32 %v4975, %v5721
          %v5761 = vadd.f32 %v4976, %v5725
          %v5762 = vadd.f32 %v4977, %v5727
          %v5763 = vadd.f32 %v4978, %v5729
          %v5764 = vadd.f32 %v4979, %v5731
          %v5765 = vld [vmem:[%s4514] sm:$0x1e]
          %v5766 = vld [vmem:[%s4514 + $0x8] sm:$0x1e]
          %v5767 = vld [vmem:[%s4514 + $0x10] sm:$0x1e]
          %v5768 = vld [vmem:[%s4514 + $0x18] sm:$0x1e]
          %v5769 = vld [vmem:[%s4514 + $0x20] sm:$0x1e]
          %v5770 = vld [vmem:[%s4514 + $0x28] sm:$0x1e]
          %v5771 = vld [vmem:[%s4514 + $0x30] sm:$0x1e]
          %v5772 = vld [vmem:[%s4514 + $0x38] sm:$0x1e]
          %v5773 = vld [vmem:[%s4514 + $0x40] sm:$0x1e]
          %v5774 = vld [vmem:[%s4514 + $0x48] sm:$0x1e]
          %v5775 = vld [vmem:[%s4514 + $0x50] sm:$0x1e]
          %v5776 = vld [vmem:[%s4514 + $0x58] sm:$0x1e]
          %v5777 = vld [vmem:[%s4514 + $0x60] sm:$0x1e]
          %v5778 = vld [vmem:[%s4514 + $0x68] sm:$0x1e]
          %v5779 = vld [vmem:[%s4514 + $0x70] sm:$0x1e]
          %v5780 = vld [vmem:[%s4514 + $0x78] sm:$0x1e]
          %v5781 = vld [vmem:[%s4514 + $0xa0] sm:$0x1e]
          %v5782 = vld [vmem:[%s4514 + $0xa8] sm:$0x1e]
          %v5783 = vld [vmem:[%s4514 + $0xb0] sm:$0x1e]
          %v5784 = vld [vmem:[%s4514 + $0xb8] sm:$0x1e]
          %v5785 = vld [vmem:[%s4514 + $0xc0] sm:$0x1e]
          %v5786 = vld [vmem:[%s4514 + $0xc8] sm:$0x1e]
          %v5787 = vld [vmem:[%s4514 + $0xd0] sm:$0x1e]
          %v5788 = vld [vmem:[%s4514 + $0xd8] sm:$0x1e]
          %v5789 = vld [vmem:[%s4514 + $0xe0] sm:$0x1e]
          %v5790 = vld [vmem:[%s4514 + $0xe8] sm:$0x1e]
          %v5791 = vld [vmem:[%s4514 + $0xf0] sm:$0x1e]
          %v5792 = vld [vmem:[%s4514 + $0xf8] sm:$0x1e]
          %v5793 = vld [vmem:[%s4514 + $0x100] sm:$0x1e]
          %v5794 = vld [vmem:[%s4514 + $0x108] sm:$0x1e]
          %v5795 = vld [vmem:[%s4514 + $0x110] sm:$0x1e]
          %v5796 = vld [vmem:[%s4514 + $0x118] sm:$0x1e]
          %v5829 = vunpack.c.l.b16 %v5765
          %v5830 = vunpack.c.l.b16 %v5766
          %v5831 = vunpack.c.h.b16 %v5765
          %v5832 = vunpack.c.h.b16 %v5766
          %v5833 = vunpack.c.l.b16 %v5767
          %v5834 = vunpack.c.l.b16 %v5768
          %v5835 = vunpack.c.h.b16 %v5767
          %v5836 = vunpack.c.h.b16 %v5768
          %v5837 = vunpack.c.l.b16 %v5769
          %v5838 = vunpack.c.l.b16 %v5770
          %v5839 = vunpack.c.h.b16 %v5769
          %v5840 = vunpack.c.h.b16 %v5770
          %v5841 = vunpack.c.l.b16 %v5771
          %v5842 = vunpack.c.l.b16 %v5772
          %v5843 = vunpack.c.h.b16 %v5771
          %v5844 = vunpack.c.h.b16 %v5772
          %v5845 = vunpack.c.l.b16 %v5773
          %v5846 = vunpack.c.l.b16 %v5774
          %v5847 = vunpack.c.h.b16 %v5773
          %v5848 = vunpack.c.h.b16 %v5774
          %v5849 = vunpack.c.l.b16 %v5775
          %v5850 = vunpack.c.l.b16 %v5776
          %v5851 = vunpack.c.h.b16 %v5775
          %v5852 = vunpack.c.h.b16 %v5776
          %v5853 = vunpack.c.l.b16 %v5777
          %v5854 = vunpack.c.l.b16 %v5778
          %v5855 = vunpack.c.h.b16 %v5777
          %v5856 = vunpack.c.h.b16 %v5778
          %v5857 = vunpack.c.l.b16 %v5779
          %v5858 = vunpack.c.l.b16 %v5780
          %v5859 = vunpack.c.h.b16 %v5779
          %v5860 = vunpack.c.h.b16 %v5780
          %v5861 = vunpack.c.l.b16 %v5781
          %v5862 = vunpack.c.l.b16 %v5782
          %v5863 = vunpack.c.h.b16 %v5781
          %v5864 = vunpack.c.h.b16 %v5782
          %v5865 = vunpack.c.l.b16 %v5783
          %v5866 = vunpack.c.l.b16 %v5784
          %v5867 = vunpack.c.h.b16 %v5783
          %v5868 = vunpack.c.h.b16 %v5784
          %v5869 = vunpack.c.l.b16 %v5785
          %v5870 = vunpack.c.l.b16 %v5786
          %v5871 = vunpack.c.h.b16 %v5785
          %v5872 = vunpack.c.h.b16 %v5786
          %v5873 = vunpack.c.l.b16 %v5787
          %v5874 = vunpack.c.l.b16 %v5788
          %v5875 = vunpack.c.h.b16 %v5787
          %v5876 = vunpack.c.h.b16 %v5788
          %v5877 = vunpack.c.l.b16 %v5789
          %v5878 = vunpack.c.l.b16 %v5790
          %v5879 = vunpack.c.h.b16 %v5789
          %v5880 = vunpack.c.h.b16 %v5790
          %v5881 = vunpack.c.l.b16 %v5791
          %v5882 = vunpack.c.l.b16 %v5792
          %v5883 = vunpack.c.h.b16 %v5791
          %v5884 = vunpack.c.h.b16 %v5792
          %v5885 = vunpack.c.l.b16 %v5793
          %v5886 = vunpack.c.l.b16 %v5794
          %v5887 = vunpack.c.h.b16 %v5793
          %v5888 = vunpack.c.h.b16 %v5794
          %v5889 = vunpack.c.l.b16 %v5795
          %v5890 = vunpack.c.l.b16 %v5796
          %v5891 = vunpack.c.h.b16 %v5795
          %v5892 = vunpack.c.h.b16 %v5796
          %v5893 = vpack.c.b16 %v5830, %v5829
          %v5894 = vpack.c.b16 %v5832, %v5831
          %v5895 = vpack.c.b16 %v5834, %v5833
          %v5896 = vpack.c.b16 %v5836, %v5835
          %v5897 = vpack.c.b16 %v5838, %v5837
          %v5898 = vpack.c.b16 %v5840, %v5839
          %v5899 = vpack.c.b16 %v5842, %v5841
          %v5900 = vpack.c.b16 %v5844, %v5843
          %v5901 = vpack.c.b16 %v5846, %v5845
          %v5902 = vpack.c.b16 %v5848, %v5847
          %v5903 = vpack.c.b16 %v5850, %v5849
          %v5904 = vpack.c.b16 %v5852, %v5851
          %v5905 = vpack.c.b16 %v5854, %v5853
          %v5906 = vpack.c.b16 %v5856, %v5855
          %v5907 = vpack.c.b16 %v5858, %v5857
          %v5908 = vpack.c.b16 %v5860, %v5859
          %v5909 = vpack.c.b16 %v5862, %v5861
          %v5910 = vpack.c.b16 %v5864, %v5863
          %v5911 = vpack.c.b16 %v5866, %v5865
          %v5912 = vpack.c.b16 %v5868, %v5867
          %v5913 = vpack.c.b16 %v5870, %v5869
          %v5914 = vpack.c.b16 %v5872, %v5871
          %v5915 = vpack.c.b16 %v5874, %v5873
          %v5916 = vpack.c.b16 %v5876, %v5875
          %v5917 = vpack.c.b16 %v5878, %v5877
          %v5918 = vpack.c.b16 %v5880, %v5879
          %v5919 = vpack.c.b16 %v5882, %v5881
          %v5920 = vpack.c.b16 %v5884, %v5883
          %v5921 = vpack.c.b16 %v5886, %v5885
          %v5922 = vpack.c.b16 %v5888, %v5887
          %v5923 = vpack.c.b16 %v5890, %v5889
          %v5924 = vpack.c.b16 %v5892, %v5891
          %v5925 = vrot.slane %v5893, 5
          %v5926 = vrot.slane %v5925, 4
          %v5927 = vrot.slane %v5894, 5
          %v5928 = vsel %vm2172, %v5926, %v5927
          %v5929 = vrot.slane %v5895, 5
          %v5930 = vrot.slane %v5929, 4
          %v5931 = vrot.slane %v5896, 5
          %v5932 = vsel %vm2172, %v5930, %v5931
          %v5933 = vrot.slane %v5897, 5
          %v5934 = vrot.slane %v5933, 4
          %v5935 = vrot.slane %v5898, 5
          %v5936 = vsel %vm2172, %v5934, %v5935
          %v5937 = vrot.slane %v5899, 5
          %v5938 = vrot.slane %v5937, 4
          %v5939 = vrot.slane %v5900, 5
          %v5940 = vsel %vm2172, %v5938, %v5939
          %v5941 = vrot.slane %v5901, 5
          %v5942 = vrot.slane %v5941, 4
          %v5943 = vrot.slane %v5902, 5
          %v5944 = vsel %vm2172, %v5942, %v5943
          %v5945 = vrot.slane %v5903, 5
          %v5946 = vrot.slane %v5945, 4
          %v5947 = vrot.slane %v5904, 5
          %v5948 = vsel %vm2172, %v5946, %v5947
          %v5949 = vrot.slane %v5905, 5
          %v5950 = vrot.slane %v5949, 4
          %v5951 = vrot.slane %v5906, 5
          %v5952 = vsel %vm2172, %v5950, %v5951
          %v5953 = vrot.slane %v5907, 5
          %v5954 = vrot.slane %v5953, 4
          %v5955 = vrot.slane %v5908, 5
          %v5956 = vsel %vm2172, %v5954, %v5955
          %v5957 = vrot.slane %v5909, 5
          %v5958 = vrot.slane %v5957, 4
          %v5959 = vrot.slane %v5910, 5
          %v5960 = vsel %vm2172, %v5958, %v5959
          %v5961 = vrot.slane %v5911, 5
          %v5962 = vrot.slane %v5961, 4
          %v5963 = vrot.slane %v5912, 5
          %v5964 = vsel %vm2172, %v5962, %v5963
          %v5965 = vrot.slane %v5913, 5
          %v5966 = vrot.slane %v5965, 4
          %v5967 = vrot.slane %v5914, 5
          %v5968 = vsel %vm2172, %v5966, %v5967
          %v5969 = vrot.slane %v5915, 5
          %v5970 = vrot.slane %v5969, 4
          %v5971 = vrot.slane %v5916, 5
          %v5972 = vsel %vm2172, %v5970, %v5971
          %v5973 = vrot.slane %v5917, 5
          %v5974 = vrot.slane %v5973, 4
          %v5975 = vrot.slane %v5918, 5
          %v5976 = vsel %vm2172, %v5974, %v5975
          %v5977 = vrot.slane %v5919, 5
          %v5978 = vrot.slane %v5977, 4
          %v5979 = vrot.slane %v5920, 5
          %v5980 = vsel %vm2172, %v5978, %v5979
          %v5981 = vrot.slane %v5921, 5
          %v5982 = vrot.slane %v5981, 4
          %v5983 = vrot.slane %v5922, 5
          %v5984 = vsel %vm2172, %v5982, %v5983
          %v5985 = vrot.slane %v5923, 5
          %v5986 = vrot.slane %v5985, 4
          %v5987 = vrot.slane %v5924, 5
          %v5988 = vsel %vm2172, %v5986, %v5987
          %v5989 = vld [vmem:[%s302 + $0x800] sm:$0xff]
          %v5990 = vld [vmem:[%s302 + $0x808] sm:$0xff]
          %v5991 = vld [vmem:[%s302 + $0x810] sm:$0xff]
          %v5992 = vld [vmem:[%s302 + $0x818] sm:$0xff]
          %v5993 = vld [vmem:[%s302 + $0x820] sm:$0xff]
          %v5994 = vld [vmem:[%s302 + $0x828] sm:$0xff]
          %v5995 = vld [vmem:[%s302 + $0x830] sm:$0xff]
          %v5996 = vld [vmem:[%s302 + $0x838] sm:$0xff]
          %v5997 = vld [vmem:[%s302 + $0x840] sm:$0xff]
          %v5998 = vld [vmem:[%s302 + $0x848] sm:$0xff]
          %v5999 = vld [vmem:[%s302 + $0x850] sm:$0xff]
          %v6000 = vld [vmem:[%s302 + $0x858] sm:$0xff]
          %v6001 = vld [vmem:[%s302 + $0x860] sm:$0xff]
          %v6002 = vld [vmem:[%s302 + $0x868] sm:$0xff]
          %v6003 = vld [vmem:[%s302 + $0x870] sm:$0xff]
          %v6004 = vld [vmem:[%s302 + $0x878] sm:$0xff]
          %v6005 = vld [vmem:[%s302 + $0x880] sm:$0xff]
          %v6006 = vld [vmem:[%s302 + $0x888] sm:$0xff]
          %v6007 = vld [vmem:[%s302 + $0x890] sm:$0xff]
          %v6008 = vld [vmem:[%s302 + $0x898] sm:$0xff]
          %v6009 = vld [vmem:[%s302 + $0x8a0] sm:$0xff]
          %v6010 = vld [vmem:[%s302 + $0x8a8] sm:$0xff]
          %v6011 = vld [vmem:[%s302 + $0x8b0] sm:$0xff]
          %v6012 = vld [vmem:[%s302 + $0x8b8] sm:$0xff]
          %v6013 = vld [vmem:[%s302 + $0x8c0] sm:$0xff]
          %v6014 = vld [vmem:[%s302 + $0x8c8] sm:$0xff]
          %v6015 = vld [vmem:[%s302 + $0x8d0] sm:$0xff]
          %v6016 = vld [vmem:[%s302 + $0x8d8] sm:$0xff]
          %v6017 = vld [vmem:[%s302 + $0x8e0] sm:$0xff]
          %v6018 = vld [vmem:[%s302 + $0x8e8] sm:$0xff]
          %v6019 = vld [vmem:[%s302 + $0x8f0] sm:$0xff]
          %v6020 = vld [vmem:[%s302 + $0x8f8] sm:$0xff]
          %v6021 = vunpack.c.l.b16 %v5928
          %v6022 = vunpack.c.h.b16 %v5928
          %v6023 = vunpack.c.l.b16 %v5932
          %v6024 = vunpack.c.h.b16 %v5932
          %v6025 = vunpack.c.l.b16 %v5936
          %v6026 = vunpack.c.h.b16 %v5936
          %v6027 = vunpack.c.l.b16 %v5940
          %v6028 = vunpack.c.h.b16 %v5940
          %v6029 = vunpack.c.l.b16 %v5944
          %v6030 = vunpack.c.h.b16 %v5944
          %v6031 = vunpack.c.l.b16 %v5948
          %v6032 = vunpack.c.h.b16 %v5948
          %v6033 = vunpack.c.l.b16 %v5952
          %v6034 = vunpack.c.h.b16 %v5952
          %v6035 = vunpack.c.l.b16 %v5956
          %v6036 = vunpack.c.h.b16 %v5956
          %v6037 = vunpack.c.l.b16 %v5960
          %v6038 = vunpack.c.h.b16 %v5960
          %v6039 = vunpack.c.l.b16 %v5964
          %v6040 = vunpack.c.h.b16 %v5964
          %v6041 = vunpack.c.l.b16 %v5968
          %v6042 = vunpack.c.h.b16 %v5968
          %v6043 = vunpack.c.l.b16 %v5972
          %v6044 = vunpack.c.h.b16 %v5972
          %v6045 = vunpack.c.l.b16 %v5976
          %v6046 = vunpack.c.h.b16 %v5976
          %v6047 = vunpack.c.l.b16 %v5980
          %v6048 = vunpack.c.h.b16 %v5980
          %v6049 = vunpack.c.l.b16 %v5984
          %v6050 = vunpack.c.h.b16 %v5984
          %v6051 = vunpack.c.l.b16 %v5988
          %v6052 = vunpack.c.h.b16 %v5988
          %v6053 = vpack.c.b16 %v6023, %v6021
          %v6054 = vpack.c.b16 %v6024, %v6022
          %v6055 = vpack.c.b16 %v6027, %v6025
          %v6056 = vpack.c.b16 %v6028, %v6026
          %v6057 = vpack.c.b16 %v6031, %v6029
          %v6058 = vpack.c.b16 %v6032, %v6030
          %v6059 = vpack.c.b16 %v6035, %v6033
          %v6060 = vpack.c.b16 %v6036, %v6034
          %v6061 = vpack.c.b16 %v6039, %v6037
          %v6062 = vpack.c.b16 %v6040, %v6038
          %v6063 = vpack.c.b16 %v6043, %v6041
          %v6064 = vpack.c.b16 %v6044, %v6042
          %v6065 = vpack.c.b16 %v6047, %v6045
          %v6066 = vpack.c.b16 %v6048, %v6046
          %v6067 = vpack.c.b16 %v6051, %v6049
          %v6068 = vpack.c.b16 %v6052, %v6050
          %v6117 = vunpack.c.l.b16 %v5989
          %v6118 = vunpack.c.h.b16 %v5989
          %v6119 = vunpack.c.l.b16 %v5990
          %v6120 = vunpack.c.h.b16 %v5990
          %v6121 = vunpack.c.l.b16 %v5991
          %v6122 = vunpack.c.h.b16 %v5991
          %v6123 = vunpack.c.l.b16 %v5992
          %v6124 = vunpack.c.h.b16 %v5992
          %v6125 = vunpack.c.l.b16 %v5993
          %v6126 = vunpack.c.h.b16 %v5993
          %v6127 = vunpack.c.l.b16 %v5994
          %v6128 = vunpack.c.h.b16 %v5994
          %v6129 = vunpack.c.l.b16 %v5995
          %v6130 = vunpack.c.h.b16 %v5995
          %v6131 = vunpack.c.l.b16 %v5996
          %v6132 = vunpack.c.h.b16 %v5996
          %v6133 = vunpack.c.l.b16 %v5997
          %v6134 = vunpack.c.h.b16 %v5997
          %v6135 = vunpack.c.l.b16 %v5998
          %v6136 = vunpack.c.h.b16 %v5998
          %v6137 = vunpack.c.l.b16 %v5999
          %v6138 = vunpack.c.h.b16 %v5999
          %v6139 = vunpack.c.l.b16 %v6000
          %v6140 = vunpack.c.h.b16 %v6000
          %v6141 = vunpack.c.l.b16 %v6001
          %v6142 = vunpack.c.h.b16 %v6001
          %v6143 = vunpack.c.l.b16 %v6002
          %v6144 = vunpack.c.h.b16 %v6002
          %v6145 = vunpack.c.l.b16 %v6003
          %v6146 = vunpack.c.h.b16 %v6003
          %v6147 = vunpack.c.l.b16 %v6004
          %v6148 = vunpack.c.h.b16 %v6004
          %v6149 = vunpack.c.l.b16 %v6005
          %v6150 = vunpack.c.h.b16 %v6005
          %v6151 = vunpack.c.l.b16 %v6006
          %v6152 = vunpack.c.h.b16 %v6006
          %v6153 = vunpack.c.l.b16 %v6007
          %v6154 = vunpack.c.h.b16 %v6007
          %v6155 = vunpack.c.l.b16 %v6008
          %v6156 = vunpack.c.h.b16 %v6008
          %v6157 = vunpack.c.l.b16 %v6009
          %v6158 = vunpack.c.h.b16 %v6009
          %v6159 = vunpack.c.l.b16 %v6010
          %v6160 = vunpack.c.h.b16 %v6010
          %v6161 = vunpack.c.l.b16 %v6011
          %v6162 = vunpack.c.h.b16 %v6011
          %v6163 = vunpack.c.l.b16 %v6012
          %v6164 = vunpack.c.h.b16 %v6012
          %v6165 = vunpack.c.l.b16 %v6013
          %v6166 = vunpack.c.h.b16 %v6013
          %v6167 = vunpack.c.l.b16 %v6014
          %v6168 = vunpack.c.h.b16 %v6014
          %v6169 = vunpack.c.l.b16 %v6015
          %v6170 = vunpack.c.h.b16 %v6015
          %v6171 = vunpack.c.l.b16 %v6016
          %v6172 = vunpack.c.h.b16 %v6016
          %v6173 = vunpack.c.l.b16 %v6017
          %v6174 = vunpack.c.h.b16 %v6017
          %v6175 = vunpack.c.l.b16 %v6018
          %v6176 = vunpack.c.h.b16 %v6018
          %v6177 = vunpack.c.l.b16 %v6019
          %v6178 = vunpack.c.h.b16 %v6019
          %v6179 = vunpack.c.l.b16 %v6020
          %v6180 = vunpack.c.h.b16 %v6020
          %v6181 = vpack.c.b16 %v6119, %v6117
          %v6182 = vpack.c.b16 %v6120, %v6118
          %v6183 = vpack.c.b16 %v6123, %v6121
          %v6184 = vpack.c.b16 %v6124, %v6122
          %v6185 = vpack.c.b16 %v6127, %v6125
          %v6186 = vpack.c.b16 %v6128, %v6126
          %v6187 = vpack.c.b16 %v6131, %v6129
          %v6188 = vpack.c.b16 %v6132, %v6130
          %v6189 = vpack.c.b16 %v6135, %v6133
          %v6190 = vpack.c.b16 %v6136, %v6134
          %v6191 = vpack.c.b16 %v6139, %v6137
          %v6192 = vpack.c.b16 %v6140, %v6138
          %v6193 = vpack.c.b16 %v6143, %v6141
          %v6194 = vpack.c.b16 %v6144, %v6142
          %v6195 = vpack.c.b16 %v6147, %v6145
          %v6196 = vpack.c.b16 %v6148, %v6146
          %v6197 = vpack.c.b16 %v6151, %v6149
          %v6198 = vpack.c.b16 %v6152, %v6150
          %v6199 = vpack.c.b16 %v6155, %v6153
          %v6200 = vpack.c.b16 %v6156, %v6154
          %v6201 = vpack.c.b16 %v6159, %v6157
          %v6202 = vpack.c.b16 %v6160, %v6158
          %v6203 = vpack.c.b16 %v6163, %v6161
          %v6204 = vpack.c.b16 %v6164, %v6162
          %v6205 = vpack.c.b16 %v6167, %v6165
          %v6206 = vpack.c.b16 %v6168, %v6166
          %v6207 = vpack.c.b16 %v6171, %v6169
          %v6208 = vpack.c.b16 %v6172, %v6170
          %v6209 = vpack.c.b16 %v6175, %v6173
          %v6210 = vpack.c.b16 %v6176, %v6174
          %v6211 = vpack.c.b16 %v6179, %v6177
          %v6212 = vpack.c.b16 %v6180, %v6178
          %6245 = vmatprep.subr.bf16.mxu0 %v6182
          %6246 = vmatpush1.bf16.msra.mxu0 %v6181
          %6247 = vmatprep.subr.bf16.mxu0 %v6184
          %6248 = vmatpush1.bf16.msra.mxu0 %v6183
          %6249 = vmatprep.subr.bf16.mxu0 %v6186
          %6250 = vmatpush1.bf16.msra.mxu0 %v6185
          %6251 = vmatprep.subr.bf16.mxu0 %v6188
          %6252 = vmatpush1.bf16.msra.mxu0 %v6187
          %6253 = vmatprep.subr.bf16.mxu0 %v6190
          %6254 = vmatpush1.bf16.msra.mxu0 %v6189
          %6255 = vmatprep.subr.bf16.mxu0 %v6192
          %6256 = vmatpush1.bf16.msra.mxu0 %v6191
          %6257 = vmatprep.subr.bf16.mxu0 %v6194
          %6258 = vmatpush1.bf16.msra.mxu0 %v6193
          %6259 = vmatprep.subr.bf16.mxu0 %v6196
          %6260 = vmatpush1.bf16.msra.mxu0 %v6195
          %6261 = vmatprep.subr.bf16.mxu0 %v6198
          %6262 = vmatpush1.bf16.msra.mxu0 %v6197
          %6263 = vmatprep.subr.bf16.mxu0 %v6200
          %6264 = vmatpush1.bf16.msra.mxu0 %v6199
          %6265 = vmatprep.subr.bf16.mxu0 %v6202
          %6266 = vmatpush1.bf16.msra.mxu0 %v6201
          %6267 = vmatprep.subr.bf16.mxu0 %v6204
          %6268 = vmatpush1.bf16.msra.mxu0 %v6203
          %6269 = vmatprep.subr.bf16.mxu0 %v6206
          %6270 = vmatpush1.bf16.msra.mxu0 %v6205
          %6271 = vmatprep.subr.bf16.mxu0 %v6208
          %6272 = vmatpush1.bf16.msra.mxu0 %v6207
          %6273 = vmatprep.subr.bf16.mxu0 %v6210
          %6274 = vmatpush1.bf16.msra.mxu0 %v6209
          %6275 = vmatprep.subr.bf16.mxu0 %v6212
          %6276 = vmatpush1.bf16.msra.mxu0 %v6211
          %6277 = vmatprep.mubr.bf16.mxu0 %v6054
          %6278 = vmatmul.mubr.bf16.gmra.mrb[0].mxu0 %v6053
          %v6279 = vpop.f32.mrb[0].mxu0
          %v6280 = vadd.f32 0.0, %v6279
          %v6281 = vpop.f32.mrb[0].mxu0
          %v6282 = vadd.f32 0.0, %v6281
          %v6283 = vpop.f32.mrb[0].mxu0
          %v6284 = vadd.f32 0.0, %v6283
          %v6285 = vpop.f32.mrb[0].mxu0
          %v6286 = vadd.f32 0.0, %v6285
          %6287 = vmatprep.mubr.bf16.mxu0 %v6056
          %6288 = vmatmul.mubr.bf16.gmra.mrb[0].mxu0 %v6055
          %v6289 = vpop.f32.mrb[0].mxu0
          %v6290 = vadd.f32 0.0, %v6289
          %v6291 = vpop.f32.mrb[0].mxu0
          %v6292 = vadd.f32 0.0, %v6291
          %v6293 = vpop.f32.mrb[0].mxu0
          %v6294 = vadd.f32 0.0, %v6293
          %v6295 = vpop.f32.mrb[0].mxu0
          %v6296 = vadd.f32 0.0, %v6295
          %6297 = vmatprep.mubr.bf16.mxu0 %v6058
          %6298 = vmatmul.mubr.bf16.gmra.mrb[0].mxu0 %v6057
          %v6299 = vpop.f32.mrb[0].mxu0
          %v6300 = vadd.f32 0.0, %v6299
          %v6301 = vpop.f32.mrb[0].mxu0
          %v6302 = vadd.f32 0.0, %v6301
          %v6303 = vpop.f32.mrb[0].mxu0
          %v6304 = vadd.f32 0.0, %v6303
          %v6305 = vpop.f32.mrb[0].mxu0
          %v6306 = vadd.f32 0.0, %v6305
          %6307 = vmatprep.mubr.bf16.mxu0 %v6060
          %6308 = vmatmul.mubr.bf16.gmra.mrb[0].mxu0 %v6059
          %v6309 = vpop.f32.mrb[0].mxu0
          %v6310 = vadd.f32 0.0, %v6309
          %v6311 = vpop.f32.mrb[0].mxu0
          %v6312 = vadd.f32 0.0, %v6311
          %v6313 = vpop.f32.mrb[0].mxu0
          %v6314 = vadd.f32 0.0, %v6313
          %v6315 = vpop.f32.mrb[0].mxu0
          %v6316 = vadd.f32 0.0, %v6315
          %6317 = vmatprep.mubr.bf16.mxu0 %v6062
          %6318 = vmatmul.mubr.bf16.gmra.mrb[0].mxu0 %v6061
          %v6319 = vpop.f32.mrb[0].mxu0
          %v6320 = vadd.f32 0.0, %v6319
          %v6321 = vpop.f32.mrb[0].mxu0
          %v6322 = vadd.f32 0.0, %v6321
          %v6323 = vpop.f32.mrb[0].mxu0
          %v6324 = vadd.f32 0.0, %v6323
          %v6325 = vpop.f32.mrb[0].mxu0
          %v6326 = vadd.f32 0.0, %v6325
          %6327 = vmatprep.mubr.bf16.mxu0 %v6064
          %6328 = vmatmul.mubr.bf16.gmra.mrb[0].mxu0 %v6063
          %v6329 = vpop.f32.mrb[0].mxu0
          %v6330 = vadd.f32 0.0, %v6329
          %v6331 = vpop.f32.mrb[0].mxu0
          %v6332 = vadd.f32 0.0, %v6331
          %v6333 = vpop.f32.mrb[0].mxu0
          %v6334 = vadd.f32 0.0, %v6333
          %v6335 = vpop.f32.mrb[0].mxu0
          %v6336 = vadd.f32 0.0, %v6335
          %6337 = vmatprep.mubr.bf16.mxu0 %v6066
          %6338 = vmatmul.mubr.bf16.gmra.mrb[0].mxu0 %v6065
          %v6339 = vpop.f32.mrb[0].mxu0
          %v6340 = vadd.f32 0.0, %v6339
          %v6341 = vpop.f32.mrb[0].mxu0
          %v6342 = vadd.f32 0.0, %v6341
          %v6343 = vpop.f32.mrb[0].mxu0
          %v6344 = vadd.f32 0.0, %v6343
          %v6345 = vpop.f32.mrb[0].mxu0
          %v6346 = vadd.f32 0.0, %v6345
          %6347 = vmatprep.mubr.bf16.mxu0 %v6068
          %6348 = vmatmul.mubr.bf16.gmra.mrb[0].mxu0 %v6067
          %v6349 = vpop.f32.mrb[0].mxu0
          %v6350 = vadd.f32 0.0, %v6349
          %v6351 = vpop.f32.mrb[0].mxu0
          %v6352 = vadd.f32 0.0, %v6351
          %v6353 = vpop.f32.mrb[0].mxu0
          %v6354 = vadd.f32 0.0, %v6353
          %v6355 = vpop.f32.mrb[0].mxu0
          %v6356 = vadd.f32 0.0, %v6355
          %6357 = vdwg.mxu0
          %v6358 = vadd.f32 %v5733, %v6280
          %v6359 = vadd.f32 %v5734, %v6282
          %v6360 = vadd.f32 %v5735, %v6284
          %v6361 = vadd.f32 %v5736, %v6286
          %v6362 = vadd.f32 %v5737, %v6290
          %v6363 = vadd.f32 %v5738, %v6292
          %v6364 = vadd.f32 %v5739, %v6294
          %v6365 = vadd.f32 %v5740, %v6296
          %v6366 = vadd.f32 %v5741, %v6300
          %v6367 = vadd.f32 %v5742, %v6302
          %v6368 = vadd.f32 %v5743, %v6304
          %v6369 = vadd.f32 %v5744, %v6306
          %v6370 = vadd.f32 %v5745, %v6310
          %v6371 = vadd.f32 %v5746, %v6312
          %v6372 = vadd.f32 %v5747, %v6314
          %v6373 = vadd.f32 %v5748, %v6316
          %v6374 = vadd.f32 %v5749, %v6320
          %v6375 = vadd.f32 %v5750, %v6322
          %v6376 = vadd.f32 %v5751, %v6324
          %v6377 = vadd.f32 %v5752, %v6326
          %v6378 = vadd.f32 %v5753, %v6330
          %v6379 = vadd.f32 %v5754, %v6332
          %v6380 = vadd.f32 %v5755, %v6334
          %v6381 = vadd.f32 %v5756, %v6336
          %v6382 = vadd.f32 %v5757, %v6340
          %v6383 = vadd.f32 %v5758, %v6342
          %v6384 = vadd.f32 %v5759, %v6344
          %v6385 = vadd.f32 %v5760, %v6346
          %v6386 = vadd.f32 %v5761, %v6350
          %v6387 = vadd.f32 %v5762, %v6352
          %v6388 = vadd.f32 %v5763, %v6354
          %v6389 = vadd.f32 %v5764, %v6356
          %v6390 = vld [vmem:[%s311] sm:$0x3]
          %v6392 = vlaneseq
          %v6393 = vshrl.u32 %v6392, 7
          %v6394 = vsub.s32 0, %v6393
          %v6395 = vrot.slane %v6390, %v6394
          %v6396 = vlaneseq
          %v6397 = vshrl.u32 %v6396, 7
          %v6398 = vsub.s32 1, %v6397
          %v6399 = vrot.slane %v6390, %v6398
          %v6402 = vadd.f32 %v6358, %v6395
          %v6403 = vadd.f32 %v6359, %v6399
          %v6404 = vadd.f32 %v6360, %v6395
          %v6405 = vadd.f32 %v6361, %v6399
          %v6406 = vadd.f32 %v6362, %v6395
          %v6407 = vadd.f32 %v6363, %v6399
          %v6408 = vadd.f32 %v6364, %v6395
          %v6409 = vadd.f32 %v6365, %v6399
          %v6410 = vadd.f32 %v6366, %v6395
          %v6411 = vadd.f32 %v6367, %v6399
          %v6412 = vadd.f32 %v6368, %v6395
          %v6413 = vadd.f32 %v6369, %v6399
          %v6414 = vadd.f32 %v6370, %v6395
          %v6415 = vadd.f32 %v6371, %v6399
          %v6416 = vadd.f32 %v6372, %v6395
          %v6417 = vadd.f32 %v6373, %v6399
          %v6418 = vadd.f32 %v6374, %v6395
          %v6419 = vadd.f32 %v6375, %v6399
          %v6420 = vadd.f32 %v6376, %v6395
          %v6421 = vadd.f32 %v6377, %v6399
          %v6422 = vadd.f32 %v6378, %v6395
          %v6423 = vadd.f32 %v6379, %v6399
          %v6424 = vadd.f32 %v6380, %v6395
          %v6425 = vadd.f32 %v6381, %v6399
          %v6426 = vadd.f32 %v6382, %v6395
          %v6427 = vadd.f32 %v6383, %v6399
          %v6428 = vadd.f32 %v6384, %v6395
          %v6429 = vadd.f32 %v6385, %v6399
          %v6430 = vadd.f32 %v6386, %v6395
          %v6431 = vadd.f32 %v6387, %v6399
          %v6432 = vadd.f32 %v6388, %v6395
          %v6433 = vadd.f32 %v6389, %v6399
          %v6434 = vmax.f32 %v6402, 0.0
          %v6435 = vmax.f32 %v6403, 0.0
          %v6436 = vmax.f32 %v6404, 0.0
          %v6437 = vmax.f32 %v6405, 0.0
          %v6438 = vmax.f32 %v6406, 0.0
          %v6439 = vmax.f32 %v6407, 0.0
          %v6440 = vmax.f32 %v6408, 0.0
          %v6441 = vmax.f32 %v6409, 0.0
          %v6442 = vmax.f32 %v6410, 0.0
          %v6443 = vmax.f32 %v6411, 0.0
          %v6444 = vmax.f32 %v6412, 0.0
          %v6445 = vmax.f32 %v6413, 0.0
          %v6446 = vmax.f32 %v6414, 0.0
          %v6447 = vmax.f32 %v6415, 0.0
          %v6448 = vmax.f32 %v6416, 0.0
          %v6449 = vmax.f32 %v6417, 0.0
          %v6450 = vmax.f32 %v6418, 0.0
          %v6451 = vmax.f32 %v6419, 0.0
          %v6452 = vmax.f32 %v6420, 0.0
          %v6453 = vmax.f32 %v6421, 0.0
          %v6454 = vmax.f32 %v6422, 0.0
          %v6455 = vmax.f32 %v6423, 0.0
          %v6456 = vmax.f32 %v6424, 0.0
          %v6457 = vmax.f32 %v6425, 0.0
          %v6458 = vmax.f32 %v6426, 0.0
          %v6459 = vmax.f32 %v6427, 0.0
          %v6460 = vmax.f32 %v6428, 0.0
          %v6461 = vmax.f32 %v6429, 0.0
          %v6462 = vmax.f32 %v6430, 0.0
          %v6463 = vmax.f32 %v6431, 0.0
          %v6464 = vmax.f32 %v6432, 0.0
          %v6465 = vmax.f32 %v6433, 0.0
          %v6466 = vpack.c.bf16 %v6434, %v6434
          %v6467 = vpack.c.bf16 %v6435, %v6435
          %v6468 = vpack.c.bf16 %v6436, %v6436
          %v6469 = vpack.c.bf16 %v6437, %v6437
          %v6470 = vpack.c.bf16 %v6438, %v6438
          %v6471 = vpack.c.bf16 %v6439, %v6439
          %v6472 = vpack.c.bf16 %v6440, %v6440
          %v6473 = vpack.c.bf16 %v6441, %v6441
          %v6474 = vpack.c.bf16 %v6442, %v6442
          %v6475 = vpack.c.bf16 %v6443, %v6443
          %v6476 = vpack.c.bf16 %v6444, %v6444
          %v6477 = vpack.c.bf16 %v6445, %v6445
          %v6478 = vpack.c.bf16 %v6446, %v6446
          %v6479 = vpack.c.bf16 %v6447, %v6447
          %v6480 = vpack.c.bf16 %v6448, %v6448
          %v6481 = vpack.c.bf16 %v6449, %v6449
          %v6482 = vpack.c.bf16 %v6450, %v6450
          %v6483 = vpack.c.bf16 %v6451, %v6451
          %v6484 = vpack.c.bf16 %v6452, %v6452
          %v6485 = vpack.c.bf16 %v6453, %v6453
          %v6486 = vpack.c.bf16 %v6454, %v6454
          %v6487 = vpack.c.bf16 %v6455, %v6455
          %v6488 = vpack.c.bf16 %v6456, %v6456
          %v6489 = vpack.c.bf16 %v6457, %v6457
          %v6490 = vpack.c.bf16 %v6458, %v6458
          %v6491 = vpack.c.bf16 %v6459, %v6459
          %v6492 = vpack.c.bf16 %v6460, %v6460
          %v6493 = vpack.c.bf16 %v6461, %v6461
          %v6494 = vpack.c.bf16 %v6462, %v6462
          %v6495 = vpack.c.bf16 %v6463, %v6463
          %v6496 = vpack.c.bf16 %v6464, %v6464
          %v6497 = vpack.c.bf16 %v6465, %v6465
          %v6499 = vshrl.u32 %v6466, 16
          %v6501 = vrot.slane %v6499, 7
          %v6502 = vshll.u32 %v6466, 16
          %v6504 = vor.u32 %v6501, %v6502
          %v6506 = vshrl.u32 %v6467, 16
          %v6508 = vrot.slane %v6506, 7
          %v6509 = vshll.u32 %v6467, 16
          %v6511 = vor.u32 %v6508, %v6509
          %v6513 = vshrl.u32 %v6468, 16
          %v6515 = vrot.slane %v6513, 7
          %v6516 = vshll.u32 %v6468, 16
          %v6518 = vor.u32 %v6515, %v6516
          %v6520 = vshrl.u32 %v6469, 16
          %v6522 = vrot.slane %v6520, 7
          %v6523 = vshll.u32 %v6469, 16
          %v6525 = vor.u32 %v6522, %v6523
          %v6527 = vshrl.u32 %v6470, 16
          %v6529 = vrot.slane %v6527, 7
          %v6530 = vshll.u32 %v6470, 16
          %v6532 = vor.u32 %v6529, %v6530
          %v6534 = vshrl.u32 %v6471, 16
          %v6536 = vrot.slane %v6534, 7
          %v6537 = vshll.u32 %v6471, 16
          %v6539 = vor.u32 %v6536, %v6537
          %v6541 = vshrl.u32 %v6472, 16
          %v6543 = vrot.slane %v6541, 7
          %v6544 = vshll.u32 %v6472, 16
          %v6546 = vor.u32 %v6543, %v6544
          %v6548 = vshrl.u32 %v6473, 16
          %v6550 = vrot.slane %v6548, 7
          %v6551 = vshll.u32 %v6473, 16
          %v6553 = vor.u32 %v6550, %v6551
          %v6555 = vshrl.u32 %v6474, 16
          %v6557 = vrot.slane %v6555, 7
          %v6558 = vshll.u32 %v6474, 16
          %v6560 = vor.u32 %v6557, %v6558
          %v6562 = vshrl.u32 %v6475, 16
          %v6564 = vrot.slane %v6562, 7
          %v6565 = vshll.u32 %v6475, 16
          %v6567 = vor.u32 %v6564, %v6565
          %v6569 = vshrl.u32 %v6476, 16
          %v6571 = vrot.slane %v6569, 7
          %v6572 = vshll.u32 %v6476, 16
          %v6574 = vor.u32 %v6571, %v6572
          %v6576 = vshrl.u32 %v6477, 16
          %v6578 = vrot.slane %v6576, 7
          %v6579 = vshll.u32 %v6477, 16
          %v6581 = vor.u32 %v6578, %v6579
          %v6583 = vshrl.u32 %v6478, 16
          %v6585 = vrot.slane %v6583, 7
          %v6586 = vshll.u32 %v6478, 16
          %v6588 = vor.u32 %v6585, %v6586
          %v6590 = vshrl.u32 %v6479, 16
          %v6592 = vrot.slane %v6590, 7
          %v6593 = vshll.u32 %v6479, 16
          %v6595 = vor.u32 %v6592, %v6593
          %v6597 = vshrl.u32 %v6480, 16
          %v6599 = vrot.slane %v6597, 7
          %v6600 = vshll.u32 %v6480, 16
          %v6602 = vor.u32 %v6599, %v6600
          %v6604 = vshrl.u32 %v6481, 16
          %v6606 = vrot.slane %v6604, 7
          %v6607 = vshll.u32 %v6481, 16
          %v6609 = vor.u32 %v6606, %v6607
          %v6611 = vshrl.u32 %v6482, 16
          %v6613 = vrot.slane %v6611, 7
          %v6614 = vshll.u32 %v6482, 16
          %v6616 = vor.u32 %v6613, %v6614
          %v6618 = vshrl.u32 %v6483, 16
          %v6620 = vrot.slane %v6618, 7
          %v6621 = vshll.u32 %v6483, 16
          %v6623 = vor.u32 %v6620, %v6621
          %v6625 = vshrl.u32 %v6484, 16
          %v6627 = vrot.slane %v6625, 7
          %v6628 = vshll.u32 %v6484, 16
          %v6630 = vor.u32 %v6627, %v6628
          %v6632 = vshrl.u32 %v6485, 16
          %v6634 = vrot.slane %v6632, 7
          %v6635 = vshll.u32 %v6485, 16
          %v6637 = vor.u32 %v6634, %v6635
          %v6639 = vshrl.u32 %v6486, 16
          %v6641 = vrot.slane %v6639, 7
          %v6642 = vshll.u32 %v6486, 16
          %v6644 = vor.u32 %v6641, %v6642
          %v6646 = vshrl.u32 %v6487, 16
          %v6648 = vrot.slane %v6646, 7
          %v6649 = vshll.u32 %v6487, 16
          %v6651 = vor.u32 %v6648, %v6649
          %v6653 = vshrl.u32 %v6488, 16
          %v6655 = vrot.slane %v6653, 7
          %v6656 = vshll.u32 %v6488, 16
          %v6658 = vor.u32 %v6655, %v6656
          %v6660 = vshrl.u32 %v6489, 16
          %v6662 = vrot.slane %v6660, 7
          %v6663 = vshll.u32 %v6489, 16
          %v6665 = vor.u32 %v6662, %v6663
          %v6667 = vshrl.u32 %v6490, 16
          %v6669 = vrot.slane %v6667, 7
          %v6670 = vshll.u32 %v6490, 16
          %v6672 = vor.u32 %v6669, %v6670
          %v6674 = vshrl.u32 %v6491, 16
          %v6676 = vrot.slane %v6674, 7
          %v6677 = vshll.u32 %v6491, 16
          %v6679 = vor.u32 %v6676, %v6677
          %v6681 = vshrl.u32 %v6492, 16
          %v6683 = vrot.slane %v6681, 7
          %v6684 = vshll.u32 %v6492, 16
          %v6686 = vor.u32 %v6683, %v6684
          %v6688 = vshrl.u32 %v6493, 16
          %v6690 = vrot.slane %v6688, 7
          %v6691 = vshll.u32 %v6493, 16
          %v6693 = vor.u32 %v6690, %v6691
          %v6695 = vshrl.u32 %v6494, 16
          %v6697 = vrot.slane %v6695, 7
          %v6698 = vshll.u32 %v6494, 16
          %v6700 = vor.u32 %v6697, %v6698
          %v6702 = vshrl.u32 %v6495, 16
          %v6704 = vrot.slane %v6702, 7
          %v6705 = vshll.u32 %v6495, 16
          %v6707 = vor.u32 %v6704, %v6705
          %v6709 = vshrl.u32 %v6496, 16
          %v6711 = vrot.slane %v6709, 7
          %v6712 = vshll.u32 %v6496, 16
          %v6714 = vor.u32 %v6711, %v6712
          %v6716 = vshrl.u32 %v6497, 16
          %v6718 = vrot.slane %v6716, 7
          %v6719 = vshll.u32 %v6497, 16
          %v6721 = vor.u32 %v6718, %v6719
          %vm6754 = vcmask 1044480
          %vm6755 = vsmask.f32 4354
          %vm6756 = vmand %vm6754, %vm6755
          %v6757 = vsel %vm6756, %v6504, %v3104
          %6758 = vst [vmem:[%s2638] sm:$0x1f] %v6757
          %v6759 = vld [vmem:[%s2638 + $0x8] sm:$0x1f]
          %v6760 = vsel %vm6756, %v6511, %v6759
          %6761 = vst [vmem:[%s2638 + $0x8] sm:$0x1f] %v6760
          %v6762 = vld [vmem:[%s2638 + $0x10] sm:$0x1f]
          %v6763 = vsel %vm6756, %v6518, %v6762
          %6764 = vst [vmem:[%s2638 + $0x10] sm:$0x1f] %v6763
          %v6765 = vld [vmem:[%s2638 + $0x18] sm:$0x1f]
          %v6766 = vsel %vm6756, %v6525, %v6765
          %6767 = vst [vmem:[%s2638 + $0x18] sm:$0x1f] %v6766
          %v6768 = vld [vmem:[%s2638 + $0x20] sm:$0x1f]
          %v6769 = vsel %vm6756, %v6532, %v6768
          %6770 = vst [vmem:[%s2638 + $0x20] sm:$0x1f] %v6769
          %v6771 = vld [vmem:[%s2638 + $0x28] sm:$0x1f]
          %v6772 = vsel %vm6756, %v6539, %v6771
          %6773 = vst [vmem:[%s2638 + $0x28] sm:$0x1f] %v6772
          %v6774 = vld [vmem:[%s2638 + $0x30] sm:$0x1f]
          %v6775 = vsel %vm6756, %v6546, %v6774
          %6776 = vst [vmem:[%s2638 + $0x30] sm:$0x1f] %v6775
          %v6777 = vld [vmem:[%s2638 + $0x38] sm:$0x1f]
          %v6778 = vsel %vm6756, %v6553, %v6777
          %6779 = vst [vmem:[%s2638 + $0x38] sm:$0x1f] %v6778
          %v6780 = vld [vmem:[%s2638 + $0x40] sm:$0x1f]
          %v6781 = vsel %vm6756, %v6560, %v6780
          %6782 = vst [vmem:[%s2638 + $0x40] sm:$0x1f] %v6781
          %v6783 = vld [vmem:[%s2638 + $0x48] sm:$0x1f]
          %v6784 = vsel %vm6756, %v6567, %v6783
          %6785 = vst [vmem:[%s2638 + $0x48] sm:$0x1f] %v6784
          %v6786 = vld [vmem:[%s2638 + $0x50] sm:$0x1f]
          %v6787 = vsel %vm6756, %v6574, %v6786
          %6788 = vst [vmem:[%s2638 + $0x50] sm:$0x1f] %v6787
          %v6789 = vld [vmem:[%s2638 + $0x58] sm:$0x1f]
          %v6790 = vsel %vm6756, %v6581, %v6789
          %6791 = vst [vmem:[%s2638 + $0x58] sm:$0x1f] %v6790
          %v6792 = vld [vmem:[%s2638 + $0x60] sm:$0x1f]
          %v6793 = vsel %vm6756, %v6588, %v6792
          %6794 = vst [vmem:[%s2638 + $0x60] sm:$0x1f] %v6793
          %v6795 = vld [vmem:[%s2638 + $0x68] sm:$0x1f]
          %v6796 = vsel %vm6756, %v6595, %v6795
          %6797 = vst [vmem:[%s2638 + $0x68] sm:$0x1f] %v6796
          %v6798 = vld [vmem:[%s2638 + $0x70] sm:$0x1f]
          %v6799 = vsel %vm6756, %v6602, %v6798
          %6800 = vst [vmem:[%s2638 + $0x70] sm:$0x1f] %v6799
          %v6801 = vld [vmem:[%s2638 + $0x78] sm:$0x1f]
          %v6802 = vsel %vm6756, %v6609, %v6801
          %6803 = vst [vmem:[%s2638 + $0x78] sm:$0x1f] %v6802
          %v6804 = vld [vmem:[%s2638 + $0xa0] sm:$0x1f]
          %v6805 = vsel %vm6756, %v6616, %v6804
          %6806 = vst [vmem:[%s2638 + $0xa0] sm:$0x1f] %v6805
          %v6807 = vld [vmem:[%s2638 + $0xa8] sm:$0x1f]
          %v6808 = vsel %vm6756, %v6623, %v6807
          %6809 = vst [vmem:[%s2638 + $0xa8] sm:$0x1f] %v6808
          %v6810 = vld [vmem:[%s2638 + $0xb0] sm:$0x1f]
          %v6811 = vsel %vm6756, %v6630, %v6810
          %6812 = vst [vmem:[%s2638 + $0xb0] sm:$0x1f] %v6811
          %v6813 = vld [vmem:[%s2638 + $0xb8] sm:$0x1f]
          %v6814 = vsel %vm6756, %v6637, %v6813
          %6815 = vst [vmem:[%s2638 + $0xb8] sm:$0x1f] %v6814
          %v6816 = vld [vmem:[%s2638 + $0xc0] sm:$0x1f]
          %v6817 = vsel %vm6756, %v6644, %v6816
          %6818 = vst [vmem:[%s2638 + $0xc0] sm:$0x1f] %v6817
          %v6819 = vld [vmem:[%s2638 + $0xc8] sm:$0x1f]
          %v6820 = vsel %vm6756, %v6651, %v6819
          %6821 = vst [vmem:[%s2638 + $0xc8] sm:$0x1f] %v6820
          %v6822 = vld [vmem:[%s2638 + $0xd0] sm:$0x1f]
          %v6823 = vsel %vm6756, %v6658, %v6822
          %6824 = vst [vmem:[%s2638 + $0xd0] sm:$0x1f] %v6823
          %v6825 = vld [vmem:[%s2638 + $0xd8] sm:$0x1f]
          %v6826 = vsel %vm6756, %v6665, %v6825
          %6827 = vst [vmem:[%s2638 + $0xd8] sm:$0x1f] %v6826
          %v6828 = vld [vmem:[%s2638 + $0xe0] sm:$0x1f]
          %v6829 = vsel %vm6756, %v6672, %v6828
          %6830 = vst [vmem:[%s2638 + $0xe0] sm:$0x1f] %v6829
          %v6831 = vld [vmem:[%s2638 + $0xe8] sm:$0x1f]
          %v6832 = vsel %vm6756, %v6679, %v6831
          %6833 = vst [vmem:[%s2638 + $0xe8] sm:$0x1f] %v6832
          %v6834 = vld [vmem:[%s2638 + $0xf0] sm:$0x1f]
          %v6835 = vsel %vm6756, %v6686, %v6834
          %6836 = vst [vmem:[%s2638 + $0xf0] sm:$0x1f] %v6835
          %v6837 = vld [vmem:[%s2638 + $0xf8] sm:$0x1f]
          %v6838 = vsel %vm6756, %v6693, %v6837
          %6839 = vst [vmem:[%s2638 + $0xf8] sm:$0x1f] %v6838
          %v6840 = vld [vmem:[%s2638 + $0x100] sm:$0x1f]
          %v6841 = vsel %vm6756, %v6700, %v6840
          %6842 = vst [vmem:[%s2638 + $0x100] sm:$0x1f] %v6841
          %v6843 = vld [vmem:[%s2638 + $0x108] sm:$0x1f]
          %v6844 = vsel %vm6756, %v6707, %v6843
          %6845 = vst [vmem:[%s2638 + $0x108] sm:$0x1f] %v6844
          %v6846 = vld [vmem:[%s2638 + $0x110] sm:$0x1f]
          %v6847 = vsel %vm6756, %v6714, %v6846
          %6848 = vst [vmem:[%s2638 + $0x110] sm:$0x1f] %v6847
          %v6849 = vld [vmem:[%s2638 + $0x118] sm:$0x1f]
          %v6850 = vsel %vm6756, %v6721, %v6849
          %6851 = vst [vmem:[%s2638 + $0x118] sm:$0x1f] %v6850
        $region68: #{tpu_custom_call.1} parent=39 // pred_fallthru
          _
        %p6852 = scmp.eq.s32.totalorder %s27, 4
        // Predicated region
        $region69: #{tpu_custom_call.1} parent=39 // pred_check
          %p6853 = pneg %p6852
        $region70: #{tpu_custom_call.1} parent=39 // pred_check_branch
          %6855 = sbr.rel (%p6853) target = $region72
        $region71: #{tpu_custom_call.1} parent=39 // pred_region
          %v6856 = vld [vmem:[#allocation2] sm:$0xf]
          %v6857 = vld [vmem:[#allocation2 + $0x8] sm:$0xf]
          %v6858 = vld [vmem:[#allocation2 + $0x10] sm:$0xf]
          %v6859 = vld [vmem:[#allocation2 + $0x18] sm:$0xf]
          %v6860 = vld [vmem:[#allocation2 + $0x20] sm:$0xf]
          %v6861 = vld [vmem:[#allocation2 + $0x28] sm:$0xf]
          %v6862 = vld [vmem:[#allocation2 + $0x30] sm:$0xf]
          %v6863 = vld [vmem:[#allocation2 + $0x38] sm:$0xf]
          %v6864 = vld [vmem:[#allocation2 + $0x40] sm:$0xf]
          %v6865 = vld [vmem:[#allocation2 + $0x48] sm:$0xf]
          %v6866 = vld [vmem:[#allocation2 + $0x50] sm:$0xf]
          %v6867 = vld [vmem:[#allocation2 + $0x58] sm:$0xf]
          %v6868 = vld [vmem:[#allocation2 + $0x60] sm:$0xf]
          %v6869 = vld [vmem:[#allocation2 + $0x68] sm:$0xf]
          %v6870 = vld [vmem:[#allocation2 + $0x70] sm:$0xf]
          %v6871 = vld [vmem:[#allocation2 + $0x78] sm:$0xf]
          %v6872 = vld [vmem:[#allocation2 + $0xa0] sm:$0xf]
          %v6873 = vld [vmem:[#allocation2 + $0xa8] sm:$0xf]
          %v6874 = vld [vmem:[#allocation2 + $0xb0] sm:$0xf]
          %v6875 = vld [vmem:[#allocation2 + $0xb8] sm:$0xf]
          %v6876 = vld [vmem:[#allocation2 + $0xc0] sm:$0xf]
          %v6877 = vld [vmem:[#allocation2 + $0xc8] sm:$0xf]
          %v6878 = vld [vmem:[#allocation2 + $0xd0] sm:$0xf]
          %v6879 = vld [vmem:[#allocation2 + $0xd8] sm:$0xf]
          %v6880 = vld [vmem:[#allocation2 + $0xe0] sm:$0xf]
          %v6881 = vld [vmem:[#allocation2 + $0xe8] sm:$0xf]
          %v6882 = vld [vmem:[#allocation2 + $0xf0] sm:$0xf]
          %v6883 = vld [vmem:[#allocation2 + $0xf8] sm:$0xf]
          %v6884 = vld [vmem:[#allocation2 + $0x100] sm:$0xf]
          %v6885 = vld [vmem:[#allocation2 + $0x108] sm:$0xf]
          %v6886 = vld [vmem:[#allocation2 + $0x110] sm:$0xf]
          %v6887 = vld [vmem:[#allocation2 + $0x118] sm:$0xf]
          %v6920 = vunpack.c.l.b16 %v6856
          %v6921 = vunpack.c.l.b16 %v6857
          %v6922 = vunpack.c.l.b16 %v6858
          %v6923 = vunpack.c.l.b16 %v6859
          %v6924 = vunpack.c.l.b16 %v6860
          %v6925 = vunpack.c.l.b16 %v6861
          %v6926 = vunpack.c.l.b16 %v6862
          %v6927 = vunpack.c.l.b16 %v6863
          %v6928 = vunpack.c.l.b16 %v6864
          %v6929 = vunpack.c.l.b16 %v6865
          %v6930 = vunpack.c.l.b16 %v6866
          %v6931 = vunpack.c.l.b16 %v6867
          %v6932 = vunpack.c.l.b16 %v6868
          %v6933 = vunpack.c.l.b16 %v6869
          %v6934 = vunpack.c.l.b16 %v6870
          %v6935 = vunpack.c.l.b16 %v6871
          %v6936 = vunpack.c.l.b16 %v6872
          %v6937 = vunpack.c.l.b16 %v6873
          %v6938 = vunpack.c.l.b16 %v6874
          %v6939 = vunpack.c.l.b16 %v6875
          %v6940 = vunpack.c.l.b16 %v6876
          %v6941 = vunpack.c.l.b16 %v6877
          %v6942 = vunpack.c.l.b16 %v6878
          %v6943 = vunpack.c.l.b16 %v6879
          %v6944 = vunpack.c.l.b16 %v6880
          %v6945 = vunpack.c.l.b16 %v6881
          %v6946 = vunpack.c.l.b16 %v6882
          %v6947 = vunpack.c.l.b16 %v6883
          %v6948 = vunpack.c.l.b16 %v6884
          %v6949 = vunpack.c.l.b16 %v6885
          %v6950 = vunpack.c.l.b16 %v6886
          %v6951 = vunpack.c.l.b16 %v6887
          %v6952 = vld [vmem:[#allocation9] sm:$0xf]
          %v6953 = vld [vmem:[#allocation9 + $0x4] sm:$0xf]
          %v6954 = vld [vmem:[#allocation9 + $0x8] sm:$0xf]
          %v6955 = vld [vmem:[#allocation9 + $0xc] sm:$0xf]
          %v6956 = vld [vmem:[#allocation9 + $0x10] sm:$0xf]
          %v6957 = vld [vmem:[#allocation9 + $0x14] sm:$0xf]
          %v6958 = vld [vmem:[#allocation9 + $0x18] sm:$0xf]
          %v6959 = vld [vmem:[#allocation9 + $0x1c] sm:$0xf]
          %v6960 = vld [vmem:[#allocation9 + $0x20] sm:$0xf]
          %v6961 = vld [vmem:[#allocation9 + $0x24] sm:$0xf]
          %v6962 = vld [vmem:[#allocation9 + $0x28] sm:$0xf]
          %v6963 = vld [vmem:[#allocation9 + $0x2c] sm:$0xf]
          %v6964 = vld [vmem:[#allocation9 + $0x30] sm:$0xf]
          %v6965 = vld [vmem:[#allocation9 + $0x34] sm:$0xf]
          %v6966 = vld [vmem:[#allocation9 + $0x38] sm:$0xf]
          %v6967 = vld [vmem:[#allocation9 + $0x3c] sm:$0xf]
          %v6968 = vld [vmem:[#allocation9 + $0x40] sm:$0xf]
          %v6969 = vld [vmem:[#allocation9 + $0x44] sm:$0xf]
          %v6970 = vld [vmem:[#allocation9 + $0x48] sm:$0xf]
          %v6971 = vld [vmem:[#allocation9 + $0x4c] sm:$0xf]
          %v6972 = vld [vmem:[#allocation9 + $0x50] sm:$0xf]
          %v6973 = vld [vmem:[#allocation9 + $0x54] sm:$0xf]
          %v6974 = vld [vmem:[#allocation9 + $0x58] sm:$0xf]
          %v6975 = vld [vmem:[#allocation9 + $0x5c] sm:$0xf]
          %v6976 = vld [vmem:[#allocation9 + $0x60] sm:$0xf]
          %v6977 = vld [vmem:[#allocation9 + $0x64] sm:$0xf]
          %v6978 = vld [vmem:[#allocation9 + $0x68] sm:$0xf]
          %v6979 = vld [vmem:[#allocation9 + $0x6c] sm:$0xf]
          %v6980 = vld [vmem:[#allocation9 + $0x70] sm:$0xf]
          %v6981 = vld [vmem:[#allocation9 + $0x74] sm:$0xf]
          %v6982 = vld [vmem:[#allocation9 + $0x78] sm:$0xf]
          %v6983 = vld [vmem:[#allocation9 + $0x7c] sm:$0xf]
          %v6984 = vld [vmem:[#allocation2] sm:$0x1f]
          %v6985 = vld [vmem:[#allocation2 + $0x8] sm:$0x1f]
          %v6986 = vld [vmem:[#allocation2 + $0x10] sm:$0x1f]
          %v6987 = vld [vmem:[#allocation2 + $0x18] sm:$0x1f]
          %v6988 = vld [vmem:[#allocation2 + $0x20] sm:$0x1f]
          %v6989 = vld [vmem:[#allocation2 + $0x28] sm:$0x1f]
          %v6990 = vld [vmem:[#allocation2 + $0x30] sm:$0x1f]
          %v6991 = vld [vmem:[#allocation2 + $0x38] sm:$0x1f]
          %v6992 = vld [vmem:[#allocation2 + $0x40] sm:$0x1f]
          %v6993 = vld [vmem:[#allocation2 + $0x48] sm:$0x1f]
          %v6994 = vld [vmem:[#allocation2 + $0x50] sm:$0x1f]
          %v6995 = vld [vmem:[#allocation2 + $0x58] sm:$0x1f]
          %v6996 = vld [vmem:[#allocation2 + $0x60] sm:$0x1f]
          %v6997 = vld [vmem:[#allocation2 + $0x68] sm:$0x1f]
          %v6998 = vld [vmem:[#allocation2 + $0x70] sm:$0x1f]
          %v6999 = vld [vmem:[#allocation2 + $0x78] sm:$0x1f]
          %v7000 = vld [vmem:[#allocation2 + $0xa0] sm:$0x1f]
          %v7001 = vld [vmem:[#allocation2 + $0xa8] sm:$0x1f]
          %v7002 = vld [vmem:[#allocation2 + $0xb0] sm:$0x1f]
          %v7003 = vld [vmem:[#allocation2 + $0xb8] sm:$0x1f]
          %v7004 = vld [vmem:[#allocation2 + $0xc0] sm:$0x1f]
          %v7005 = vld [vmem:[#allocation2 + $0xc8] sm:$0x1f]
          %v7006 = vld [vmem:[#allocation2 + $0xd0] sm:$0x1f]
          %v7007 = vld [vmem:[#allocation2 + $0xd8] sm:$0x1f]
          %v7008 = vld [vmem:[#allocation2 + $0xe0] sm:$0x1f]
          %v7009 = vld [vmem:[#allocation2 + $0xe8] sm:$0x1f]
          %v7010 = vld [vmem:[#allocation2 + $0xf0] sm:$0x1f]
          %v7011 = vld [vmem:[#allocation2 + $0xf8] sm:$0x1f]
          %v7012 = vld [vmem:[#allocation2 + $0x100] sm:$0x1f]
          %v7013 = vld [vmem:[#allocation2 + $0x108] sm:$0x1f]
          %v7014 = vld [vmem:[#allocation2 + $0x110] sm:$0x1f]
          %v7015 = vld [vmem:[#allocation2 + $0x118] sm:$0x1f]
          %v7048 = vunpack.c.l.b16 %v6984
          %v7049 = vunpack.c.l.b16 %v6985
          %v7050 = vunpack.c.h.b16 %v6984
          %v7051 = vunpack.c.h.b16 %v6985
          %v7052 = vunpack.c.l.b16 %v6986
          %v7053 = vunpack.c.l.b16 %v6987
          %v7054 = vunpack.c.h.b16 %v6986
          %v7055 = vunpack.c.h.b16 %v6987
          %v7056 = vunpack.c.l.b16 %v6988
          %v7057 = vunpack.c.l.b16 %v6989
          %v7058 = vunpack.c.h.b16 %v6988
          %v7059 = vunpack.c.h.b16 %v6989
          %v7060 = vunpack.c.l.b16 %v6990
          %v7061 = vunpack.c.l.b16 %v6991
          %v7062 = vunpack.c.h.b16 %v6990
          %v7063 = vunpack.c.h.b16 %v6991
          %v7064 = vunpack.c.l.b16 %v6992
          %v7065 = vunpack.c.l.b16 %v6993
          %v7066 = vunpack.c.h.b16 %v6992
          %v7067 = vunpack.c.h.b16 %v6993
          %v7068 = vunpack.c.l.b16 %v6994
          %v7069 = vunpack.c.l.b16 %v6995
          %v7070 = vunpack.c.h.b16 %v6994
          %v7071 = vunpack.c.h.b16 %v6995
          %v7072 = vunpack.c.l.b16 %v6996
          %v7073 = vunpack.c.l.b16 %v6997
          %v7074 = vunpack.c.h.b16 %v6996
          %v7075 = vunpack.c.h.b16 %v6997
          %v7076 = vunpack.c.l.b16 %v6998
          %v7077 = vunpack.c.l.b16 %v6999
          %v7078 = vunpack.c.h.b16 %v6998
          %v7079 = vunpack.c.h.b16 %v6999
          %v7080 = vunpack.c.l.b16 %v7000
          %v7081 = vunpack.c.l.b16 %v7001
          %v7082 = vunpack.c.h.b16 %v7000
          %v7083 = vunpack.c.h.b16 %v7001
          %v7084 = vunpack.c.l.b16 %v7002
          %v7085 = vunpack.c.l.b16 %v7003
          %v7086 = vunpack.c.h.b16 %v7002
          %v7087 = vunpack.c.h.b16 %v7003
          %v7088 = vunpack.c.l.b16 %v7004
          %v7089 = vunpack.c.l.b16 %v7005
          %v7090 = vunpack.c.h.b16 %v7004
          %v7091 = vunpack.c.h.b16 %v7005
          %v7092 = vunpack.c.l.b16 %v7006
          %v7093 = vunpack.c.l.b16 %v7007
          %v7094 = vunpack.c.h.b16 %v7006
          %v7095 = vunpack.c.h.b16 %v7007
          %v7096 = vunpack.c.l.b16 %v7008
          %v7097 = vunpack.c.l.b16 %v7009
          %v7098 = vunpack.c.h.b16 %v7008
          %v7099 = vunpack.c.h.b16 %v7009
          %v7100 = vunpack.c.l.b16 %v7010
          %v7101 = vunpack.c.l.b16 %v7011
          %v7102 = vunpack.c.h.b16 %v7010
          %v7103 = vunpack.c.h.b16 %v7011
          %v7104 = vunpack.c.l.b16 %v7012
          %v7105 = vunpack.c.l.b16 %v7013
          %v7106 = vunpack.c.h.b16 %v7012
          %v7107 = vunpack.c.h.b16 %v7013
          %v7108 = vunpack.c.l.b16 %v7014
          %v7109 = vunpack.c.l.b16 %v7015
          %v7110 = vunpack.c.h.b16 %v7014
          %v7111 = vunpack.c.h.b16 %v7015
          %v7112 = vpack.c.b16 %v7049, %v7048
          %v7113 = vpack.c.b16 %v7051, %v7050
          %v7114 = vpack.c.b16 %v7053, %v7052
          %v7115 = vpack.c.b16 %v7055, %v7054
          %v7116 = vpack.c.b16 %v7057, %v7056
          %v7117 = vpack.c.b16 %v7059, %v7058
          %v7118 = vpack.c.b16 %v7061, %v7060
          %v7119 = vpack.c.b16 %v7063, %v7062
          %v7120 = vpack.c.b16 %v7065, %v7064
          %v7121 = vpack.c.b16 %v7067, %v7066
          %v7122 = vpack.c.b16 %v7069, %v7068
          %v7123 = vpack.c.b16 %v7071, %v7070
          %v7124 = vpack.c.b16 %v7073, %v7072
          %v7125 = vpack.c.b16 %v7075, %v7074
          %v7126 = vpack.c.b16 %v7077, %v7076
          %v7127 = vpack.c.b16 %v7079, %v7078
          %v7128 = vpack.c.b16 %v7081, %v7080
          %v7129 = vpack.c.b16 %v7083, %v7082
          %v7130 = vpack.c.b16 %v7085, %v7084
          %v7131 = vpack.c.b16 %v7087, %v7086
          %v7132 = vpack.c.b16 %v7089, %v7088
          %v7133 = vpack.c.b16 %v7091, %v7090
          %v7134 = vpack.c.b16 %v7093, %v7092
          %v7135 = vpack.c.b16 %v7095, %v7094
          %v7136 = vpack.c.b16 %v7097, %v7096
          %v7137 = vpack.c.b16 %v7099, %v7098
          %v7138 = vpack.c.b16 %v7101, %v7100
          %v7139 = vpack.c.b16 %v7103, %v7102
          %v7140 = vpack.c.b16 %v7105, %v7104
          %v7141 = vpack.c.b16 %v7107, %v7106
          %v7142 = vpack.c.b16 %v7109, %v7108
          %v7143 = vpack.c.b16 %v7111, %v7110
          %vm7144 = vsmask.f32 3328
          %vm7145 = vsmask.f32 7440
          %vm7146 = vmor %vm7144, %vm7145
          %v7148 = vshrl.u32 %v7112, 16
          %v7150 = vrot.slane %v7148, 4
          %v7151 = vshll.u32 %v7112, 16
          %v7153 = vrot.slane %v7151, 5
          %v7154 = vor.u32 %v7150, %v7153
          %v7155 = vrot.slane %v7154, 4
          %v7157 = vshll.u32 %v7113, 16
          %v7159 = vrot.slane %v7157, 5
          %v7160 = vsel %vm7146, %v7155, %v7159
          %v7162 = vshrl.u32 %v7114, 16
          %v7164 = vrot.slane %v7162, 4
          %v7165 = vshll.u32 %v7114, 16
          %v7167 = vrot.slane %v7165, 5
          %v7168 = vor.u32 %v7164, %v7167
          %v7169 = vrot.slane %v7168, 4
          %v7171 = vshll.u32 %v7115, 16
          %v7173 = vrot.slane %v7171, 5
          %v7174 = vsel %vm7146, %v7169, %v7173
          %v7176 = vshrl.u32 %v7116, 16
          %v7178 = vrot.slane %v7176, 4
          %v7179 = vshll.u32 %v7116, 16
          %v7181 = vrot.slane %v7179, 5
          %v7182 = vor.u32 %v7178, %v7181
          %v7183 = vrot.slane %v7182, 4
          %v7185 = vshll.u32 %v7117, 16
          %v7187 = vrot.slane %v7185, 5
          %v7188 = vsel %vm7146, %v7183, %v7187
          %v7190 = vshrl.u32 %v7118, 16
          %v7192 = vrot.slane %v7190, 4
          %v7193 = vshll.u32 %v7118, 16
          %v7195 = vrot.slane %v7193, 5
          %v7196 = vor.u32 %v7192, %v7195
          %v7197 = vrot.slane %v7196, 4
          %v7199 = vshll.u32 %v7119, 16
          %v7201 = vrot.slane %v7199, 5
          %v7202 = vsel %vm7146, %v7197, %v7201
          %v7204 = vshrl.u32 %v7120, 16
          %v7206 = vrot.slane %v7204, 4
          %v7207 = vshll.u32 %v7120, 16
          %v7209 = vrot.slane %v7207, 5
          %v7210 = vor.u32 %v7206, %v7209
          %v7211 = vrot.slane %v7210, 4
          %v7213 = vshll.u32 %v7121, 16
          %v7215 = vrot.slane %v7213, 5
          %v7216 = vsel %vm7146, %v7211, %v7215
          %v7218 = vshrl.u32 %v7122, 16
          %v7220 = vrot.slane %v7218, 4
          %v7221 = vshll.u32 %v7122, 16
          %v7223 = vrot.slane %v7221, 5
          %v7224 = vor.u32 %v7220, %v7223
          %v7225 = vrot.slane %v7224, 4
          %v7227 = vshll.u32 %v7123, 16
          %v7229 = vrot.slane %v7227, 5
          %v7230 = vsel %vm7146, %v7225, %v7229
          %v7232 = vshrl.u32 %v7124, 16
          %v7234 = vrot.slane %v7232, 4
          %v7235 = vshll.u32 %v7124, 16
          %v7237 = vrot.slane %v7235, 5
          %v7238 = vor.u32 %v7234, %v7237
          %v7239 = vrot.slane %v7238, 4
          %v7241 = vshll.u32 %v7125, 16
          %v7243 = vrot.slane %v7241, 5
          %v7244 = vsel %vm7146, %v7239, %v7243
          %v7246 = vshrl.u32 %v7126, 16
          %v7248 = vrot.slane %v7246, 4
          %v7249 = vshll.u32 %v7126, 16
          %v7251 = vrot.slane %v7249, 5
          %v7252 = vor.u32 %v7248, %v7251
          %v7253 = vrot.slane %v7252, 4
          %v7255 = vshll.u32 %v7127, 16
          %v7257 = vrot.slane %v7255, 5
          %v7258 = vsel %vm7146, %v7253, %v7257
          %v7260 = vshrl.u32 %v7128, 16
          %v7262 = vrot.slane %v7260, 4
          %v7263 = vshll.u32 %v7128, 16
          %v7265 = vrot.slane %v7263, 5
          %v7266 = vor.u32 %v7262, %v7265
          %v7267 = vrot.slane %v7266, 4
          %v7269 = vshll.u32 %v7129, 16
          %v7271 = vrot.slane %v7269, 5
          %v7272 = vsel %vm7146, %v7267, %v7271
          %v7274 = vshrl.u32 %v7130, 16
          %v7276 = vrot.slane %v7274, 4
          %v7277 = vshll.u32 %v7130, 16
          %v7279 = vrot.slane %v7277, 5
          %v7280 = vor.u32 %v7276, %v7279
          %v7281 = vrot.slane %v7280, 4
          %v7283 = vshll.u32 %v7131, 16
          %v7285 = vrot.slane %v7283, 5
          %v7286 = vsel %vm7146, %v7281, %v7285
          %v7288 = vshrl.u32 %v7132, 16
          %v7290 = vrot.slane %v7288, 4
          %v7291 = vshll.u32 %v7132, 16
          %v7293 = vrot.slane %v7291, 5
          %v7294 = vor.u32 %v7290, %v7293
          %v7295 = vrot.slane %v7294, 4
          %v7297 = vshll.u32 %v7133, 16
          %v7299 = vrot.slane %v7297, 5
          %v7300 = vsel %vm7146, %v7295, %v7299
          %v7302 = vshrl.u32 %v7134, 16
          %v7304 = vrot.slane %v7302, 4
          %v7305 = vshll.u32 %v7134, 16
          %v7307 = vrot.slane %v7305, 5
          %v7308 = vor.u32 %v7304, %v7307
          %v7309 = vrot.slane %v7308, 4
          %v7311 = vshll.u32 %v7135, 16
          %v7313 = vrot.slane %v7311, 5
          %v7314 = vsel %vm7146, %v7309, %v7313
          %v7316 = vshrl.u32 %v7136, 16
          %v7318 = vrot.slane %v7316, 4
          %v7319 = vshll.u32 %v7136, 16
          %v7321 = vrot.slane %v7319, 5
          %v7322 = vor.u32 %v7318, %v7321
          %v7323 = vrot.slane %v7322, 4
          %v7325 = vshll.u32 %v7137, 16
          %v7327 = vrot.slane %v7325, 5
          %v7328 = vsel %vm7146, %v7323, %v7327
          %v7330 = vshrl.u32 %v7138, 16
          %v7332 = vrot.slane %v7330, 4
          %v7333 = vshll.u32 %v7138, 16
          %v7335 = vrot.slane %v7333, 5
          %v7336 = vor.u32 %v7332, %v7335
          %v7337 = vrot.slane %v7336, 4
          %v7339 = vshll.u32 %v7139, 16
          %v7341 = vrot.slane %v7339, 5
          %v7342 = vsel %vm7146, %v7337, %v7341
          %v7344 = vshrl.u32 %v7140, 16
          %v7346 = vrot.slane %v7344, 4
          %v7347 = vshll.u32 %v7140, 16
          %v7349 = vrot.slane %v7347, 5
          %v7350 = vor.u32 %v7346, %v7349
          %v7351 = vrot.slane %v7350, 4
          %v7353 = vshll.u32 %v7141, 16
          %v7355 = vrot.slane %v7353, 5
          %v7356 = vsel %vm7146, %v7351, %v7355
          %v7358 = vshrl.u32 %v7142, 16
          %v7360 = vrot.slane %v7358, 4
          %v7361 = vshll.u32 %v7142, 16
          %v7363 = vrot.slane %v7361, 5
          %v7364 = vor.u32 %v7360, %v7363
          %v7365 = vrot.slane %v7364, 4
          %v7367 = vshll.u32 %v7143, 16
          %v7369 = vrot.slane %v7367, 5
          %v7370 = vsel %vm7146, %v7365, %v7369
          %v7371 = vld [vmem:[#allocation9 + $0x80] sm:$0xf]
          %v7372 = vld [vmem:[#allocation9 + $0x84] sm:$0xf]
          %v7373 = vld [vmem:[#allocation9 + $0x88] sm:$0xf]
          %v7374 = vld [vmem:[#allocation9 + $0x8c] sm:$0xf]
          %v7375 = vld [vmem:[#allocation9 + $0x90] sm:$0xf]
          %v7376 = vld [vmem:[#allocation9 + $0x94] sm:$0xf]
          %v7377 = vld [vmem:[#allocation9 + $0x98] sm:$0xf]
          %v7378 = vld [vmem:[#allocation9 + $0x9c] sm:$0xf]
          %v7379 = vld [vmem:[#allocation9 + $0xa0] sm:$0xf]
          %v7380 = vld [vmem:[#allocation9 + $0xa4] sm:$0xf]
          %v7381 = vld [vmem:[#allocation9 + $0xa8] sm:$0xf]
          %v7382 = vld [vmem:[#allocation9 + $0xac] sm:$0xf]
          %v7383 = vld [vmem:[#allocation9 + $0xb0] sm:$0xf]
          %v7384 = vld [vmem:[#allocation9 + $0xb4] sm:$0xf]
          %v7385 = vld [vmem:[#allocation9 + $0xb8] sm:$0xf]
          %v7386 = vld [vmem:[#allocation9 + $0xbc] sm:$0xf]
          %v7387 = vld [vmem:[#allocation9 + $0xc0] sm:$0xf]
          %v7388 = vld [vmem:[#allocation9 + $0xc4] sm:$0xf]
          %v7389 = vld [vmem:[#allocation9 + $0xc8] sm:$0xf]
          %v7390 = vld [vmem:[#allocation9 + $0xcc] sm:$0xf]
          %v7391 = vld [vmem:[#allocation9 + $0xd0] sm:$0xf]
          %v7392 = vld [vmem:[#allocation9 + $0xd4] sm:$0xf]
          %v7393 = vld [vmem:[#allocation9 + $0xd8] sm:$0xf]
          %v7394 = vld [vmem:[#allocation9 + $0xdc] sm:$0xf]
          %v7395 = vld [vmem:[#allocation9 + $0xe0] sm:$0xf]
          %v7396 = vld [vmem:[#allocation9 + $0xe4] sm:$0xf]
          %v7397 = vld [vmem:[#allocation9 + $0xe8] sm:$0xf]
          %v7398 = vld [vmem:[#allocation9 + $0xec] sm:$0xf]
          %v7399 = vld [vmem:[#allocation9 + $0xf0] sm:$0xf]
          %v7400 = vld [vmem:[#allocation9 + $0xf4] sm:$0xf]
          %v7401 = vld [vmem:[#allocation9 + $0xf8] sm:$0xf]
          %v7402 = vld [vmem:[#allocation9 + $0xfc] sm:$0xf]
          %v7403 = vunpack.c.l.b16 %v7160
          %v7404 = vunpack.c.h.b16 %v7160
          %v7405 = vunpack.c.l.b16 %v7174
          %v7406 = vunpack.c.h.b16 %v7174
          %v7407 = vunpack.c.l.b16 %v7188
          %v7408 = vunpack.c.h.b16 %v7188
          %v7409 = vunpack.c.l.b16 %v7202
          %v7410 = vunpack.c.h.b16 %v7202
          %v7411 = vunpack.c.l.b16 %v7216
          %v7412 = vunpack.c.h.b16 %v7216
          %v7413 = vunpack.c.l.b16 %v7230
          %v7414 = vunpack.c.h.b16 %v7230
          %v7415 = vunpack.c.l.b16 %v7244
          %v7416 = vunpack.c.h.b16 %v7244
          %v7417 = vunpack.c.l.b16 %v7258
          %v7418 = vunpack.c.h.b16 %v7258
          %v7419 = vunpack.c.l.b16 %v7272
          %v7420 = vunpack.c.h.b16 %v7272
          %v7421 = vunpack.c.l.b16 %v7286
          %v7422 = vunpack.c.h.b16 %v7286
          %v7423 = vunpack.c.l.b16 %v7300
          %v7424 = vunpack.c.h.b16 %v7300
          %v7425 = vunpack.c.l.b16 %v7314
          %v7426 = vunpack.c.h.b16 %v7314
          %v7427 = vunpack.c.l.b16 %v7328
          %v7428 = vunpack.c.h.b16 %v7328
          %v7429 = vunpack.c.l.b16 %v7342
          %v7430 = vunpack.c.h.b16 %v7342
          %v7431 = vunpack.c.l.b16 %v7356
          %v7432 = vunpack.c.h.b16 %v7356
          %v7433 = vunpack.c.l.b16 %v7370
          %v7434 = vunpack.c.h.b16 %v7370
          %v7435 = vpack.c.b16 %v7405, %v7403
          %v7436 = vpack.c.b16 %v7406, %v7404
          %v7437 = vpack.c.b16 %v7409, %v7407
          %v7438 = vpack.c.b16 %v7410, %v7408
          %v7439 = vpack.c.b16 %v7413, %v7411
          %v7440 = vpack.c.b16 %v7414, %v7412
          %v7441 = vpack.c.b16 %v7417, %v7415
          %v7442 = vpack.c.b16 %v7418, %v7416
          %v7443 = vpack.c.b16 %v7421, %v7419
          %v7444 = vpack.c.b16 %v7422, %v7420
          %v7445 = vpack.c.b16 %v7425, %v7423
          %v7446 = vpack.c.b16 %v7426, %v7424
          %v7447 = vpack.c.b16 %v7429, %v7427
          %v7448 = vpack.c.b16 %v7430, %v7428
          %v7449 = vpack.c.b16 %v7433, %v7431
          %v7450 = vpack.c.b16 %v7434, %v7432
          %v7499 = vunpack.c.l.b16 %v7371
          %v7500 = vunpack.c.l.b16 %v7372
          %v7501 = vunpack.c.l.b16 %v7373
          %v7502 = vunpack.c.l.b16 %v7374
          %v7503 = vunpack.c.l.b16 %v7375
          %v7504 = vunpack.c.l.b16 %v7376
          %v7505 = vunpack.c.l.b16 %v7377
          %v7506 = vunpack.c.l.b16 %v7378
          %v7507 = vunpack.c.l.b16 %v7379
          %v7508 = vunpack.c.l.b16 %v7380
          %v7509 = vunpack.c.l.b16 %v7381
          %v7510 = vunpack.c.l.b16 %v7382
          %v7511 = vunpack.c.l.b16 %v7383
          %v7512 = vunpack.c.l.b16 %v7384
          %v7513 = vunpack.c.l.b16 %v7385
          %v7514 = vunpack.c.l.b16 %v7386
          %v7515 = vunpack.c.l.b16 %v7387
          %v7516 = vunpack.c.l.b16 %v7388
          %v7517 = vunpack.c.l.b16 %v7389
          %v7518 = vunpack.c.l.b16 %v7390
          %v7519 = vunpack.c.l.b16 %v7391
          %v7520 = vunpack.c.l.b16 %v7392
          %v7521 = vunpack.c.l.b16 %v7393
          %v7522 = vunpack.c.l.b16 %v7394
          %v7523 = vunpack.c.l.b16 %v7395
          %v7524 = vunpack.c.l.b16 %v7396
          %v7525 = vunpack.c.l.b16 %v7397
          %v7526 = vunpack.c.l.b16 %v7398
          %v7527 = vunpack.c.l.b16 %v7399
          %v7528 = vunpack.c.l.b16 %v7400
          %v7529 = vunpack.c.l.b16 %v7401
          %v7530 = vunpack.c.l.b16 %v7402
          %v7531 = vpack.c.b16 %v7500, %v7499
          %v7532 = vpack.c.b16 %v7502, %v7501
          %v7533 = vpack.c.b16 %v7504, %v7503
          %v7534 = vpack.c.b16 %v7506, %v7505
          %v7535 = vpack.c.b16 %v7508, %v7507
          %v7536 = vpack.c.b16 %v7510, %v7509
          %v7537 = vpack.c.b16 %v7512, %v7511
          %v7538 = vpack.c.b16 %v7514, %v7513
          %v7539 = vpack.c.b16 %v7516, %v7515
          %v7540 = vpack.c.b16 %v7518, %v7517
          %v7541 = vpack.c.b16 %v7520, %v7519
          %v7542 = vpack.c.b16 %v7522, %v7521
          %v7543 = vpack.c.b16 %v7524, %v7523
          %v7544 = vpack.c.b16 %v7526, %v7525
          %v7545 = vpack.c.b16 %v7528, %v7527
          %v7546 = vpack.c.b16 %v7530, %v7529
          %7563 = vmatprep.subr.bf16.mxu0 0
          %7564 = vmatpush1.bf16.msra.mxu0 %v7531
          %7565 = vmatprep.subr.bf16.mxu0 0
          %7566 = vmatpush1.bf16.msra.mxu0 %v7532
          %7567 = vmatprep.subr.bf16.mxu0 0
          %7568 = vmatpush1.bf16.msra.mxu0 %v7533
          %7569 = vmatprep.subr.bf16.mxu0 0
          %7570 = vmatpush1.bf16.msra.mxu0 %v7534
          %7571 = vmatprep.subr.bf16.mxu0 0
          %7572 = vmatpush1.bf16.msra.mxu0 %v7535
          %7573 = vmatprep.subr.bf16.mxu0 0
          %7574 = vmatpush1.bf16.msra.mxu0 %v7536
          %7575 = vmatprep.subr.bf16.mxu0 0
          %7576 = vmatpush1.bf16.msra.mxu0 %v7537
          %7577 = vmatprep.subr.bf16.mxu0 0
          %7578 = vmatpush1.bf16.msra.mxu0 %v7538
          %7579 = vmatprep.subr.bf16.mxu0 0
          %7580 = vmatpush1.bf16.msra.mxu0 %v7539
          %7581 = vmatprep.subr.bf16.mxu0 0
          %7582 = vmatpush1.bf16.msra.mxu0 %v7540
          %7583 = vmatprep.subr.bf16.mxu0 0
          %7584 = vmatpush1.bf16.msra.mxu0 %v7541
          %7585 = vmatprep.subr.bf16.mxu0 0
          %7586 = vmatpush1.bf16.msra.mxu0 %v7542
          %7587 = vmatprep.subr.bf16.mxu0 0
          %7588 = vmatpush1.bf16.msra.mxu0 %v7543
          %7589 = vmatprep.subr.bf16.mxu0 0
          %7590 = vmatpush1.bf16.msra.mxu0 %v7544
          %7591 = vmatprep.subr.bf16.mxu0 0
          %7592 = vmatpush1.bf16.msra.mxu0 %v7545
          %7593 = vmatprep.subr.bf16.mxu0 0
          %7594 = vmatpush1.bf16.msra.mxu0 %v7546
          %7595 = vmatprep.mubr.bf16.mxu0 %v7436
          %7596 = vmatmul.mubr.bf16.gmra.mrb[0].mxu0 %v7435
          %v7597 = vpop.f32.mrb[0].mxu0
          %v7598 = vadd.f32 0.0, %v7597
          %v7599 = vpop.f32.mrb[0].mxu0
          %v7600 = vpop.f32.mrb[0].mxu0
          %v7601 = vadd.f32 0.0, %v7600
          %v7602 = vpop.f32.mrb[0].mxu0
          %7603 = vmatprep.mubr.bf16.mxu0 %v7438
          %7604 = vmatmul.mubr.bf16.gmra.mrb[0].mxu0 %v7437
          %v7605 = vpop.f32.mrb[0].mxu0
          %v7606 = vadd.f32 0.0, %v7605
          %v7607 = vpop.f32.mrb[0].mxu0
          %v7608 = vpop.f32.mrb[0].mxu0
          %v7609 = vadd.f32 0.0, %v7608
          %v7610 = vpop.f32.mrb[0].mxu0
          %7611 = vmatprep.mubr.bf16.mxu0 %v7440
          %7612 = vmatmul.mubr.bf16.gmra.mrb[0].mxu0 %v7439
          %v7613 = vpop.f32.mrb[0].mxu0
          %v7614 = vadd.f32 0.0, %v7613
          %v7615 = vpop.f32.mrb[0].mxu0
          %v7616 = vpop.f32.mrb[0].mxu0
          %v7617 = vadd.f32 0.0, %v7616
          %v7618 = vpop.f32.mrb[0].mxu0
          %7619 = vmatprep.mubr.bf16.mxu0 %v7442
          %7620 = vmatmul.mubr.bf16.gmra.mrb[0].mxu0 %v7441
          %v7621 = vpop.f32.mrb[0].mxu0
          %v7622 = vadd.f32 0.0, %v7621
          %v7623 = vpop.f32.mrb[0].mxu0
          %v7624 = vpop.f32.mrb[0].mxu0
          %v7625 = vadd.f32 0.0, %v7624
          %v7626 = vpop.f32.mrb[0].mxu0
          %7627 = vmatprep.mubr.bf16.mxu0 %v7444
          %7628 = vmatmul.mubr.bf16.gmra.mrb[0].mxu0 %v7443
          %v7629 = vpop.f32.mrb[0].mxu0
          %v7630 = vadd.f32 0.0, %v7629
          %v7631 = vpop.f32.mrb[0].mxu0
          %v7632 = vpop.f32.mrb[0].mxu0
          %v7633 = vadd.f32 0.0, %v7632
          %v7634 = vpop.f32.mrb[0].mxu0
          %7635 = vmatprep.mubr.bf16.mxu0 %v7446
          %7636 = vmatmul.mubr.bf16.gmra.mrb[0].mxu0 %v7445
          %v7637 = vpop.f32.mrb[0].mxu0
          %v7638 = vadd.f32 0.0, %v7637
          %v7639 = vpop.f32.mrb[0].mxu0
          %v7640 = vpop.f32.mrb[0].mxu0
          %v7641 = vadd.f32 0.0, %v7640
          %v7642 = vpop.f32.mrb[0].mxu0
          %7643 = vmatprep.mubr.bf16.mxu0 %v7448
          %7644 = vmatmul.mubr.bf16.gmra.mrb[0].mxu0 %v7447
          %v7645 = vpop.f32.mrb[0].mxu0
          %v7646 = vadd.f32 0.0, %v7645
          %v7647 = vpop.f32.mrb[0].mxu0
          %v7648 = vpop.f32.mrb[0].mxu0
          %v7649 = vadd.f32 0.0, %v7648
          %v7650 = vpop.f32.mrb[0].mxu0
          %7651 = vmatprep.mubr.bf16.mxu0 %v7450
          %7652 = vmatmul.mubr.bf16.gmra.mrb[0].mxu0 %v7449
          %v7653 = vpop.f32.mrb[0].mxu0
          %v7654 = vadd.f32 0.0, %v7653
          %v7655 = vpop.f32.mrb[0].mxu0
          %v7656 = vpop.f32.mrb[0].mxu0
          %v7657 = vadd.f32 0.0, %v7656
          %v7658 = vpop.f32.mrb[0].mxu0
          %7659 = vdwg.mxu0
          %v7660 = vpack.c.b16 %v6922, %v6920
          %v7661 = vpack.c.b16 %v6923, %v6921
          %v7662 = vpack.c.b16 %v6926, %v6924
          %v7663 = vpack.c.b16 %v6927, %v6925
          %v7664 = vpack.c.b16 %v6930, %v6928
          %v7665 = vpack.c.b16 %v6931, %v6929
          %v7666 = vpack.c.b16 %v6934, %v6932
          %v7667 = vpack.c.b16 %v6935, %v6933
          %v7668 = vpack.c.b16 %v6938, %v6936
          %v7669 = vpack.c.b16 %v6939, %v6937
          %v7670 = vpack.c.b16 %v6942, %v6940
          %v7671 = vpack.c.b16 %v6943, %v6941
          %v7672 = vpack.c.b16 %v6946, %v6944
          %v7673 = vpack.c.b16 %v6947, %v6945
          %v7674 = vpack.c.b16 %v6950, %v6948
          %v7675 = vpack.c.b16 %v6951, %v6949
          %v7724 = vunpack.c.l.b16 %v6952
          %v7725 = vunpack.c.l.b16 %v6953
          %v7726 = vunpack.c.l.b16 %v6954
          %v7727 = vunpack.c.l.b16 %v6955
          %v7728 = vunpack.c.l.b16 %v6956
          %v7729 = vunpack.c.l.b16 %v6957
          %v7730 = vunpack.c.l.b16 %v6958
          %v7731 = vunpack.c.l.b16 %v6959
          %v7732 = vunpack.c.l.b16 %v6960
          %v7733 = vunpack.c.l.b16 %v6961
          %v7734 = vunpack.c.l.b16 %v6962
          %v7735 = vunpack.c.l.b16 %v6963
          %v7736 = vunpack.c.l.b16 %v6964
          %v7737 = vunpack.c.l.b16 %v6965
          %v7738 = vunpack.c.l.b16 %v6966
          %v7739 = vunpack.c.l.b16 %v6967
          %v7740 = vunpack.c.l.b16 %v6968
          %v7741 = vunpack.c.l.b16 %v6969
          %v7742 = vunpack.c.l.b16 %v6970
          %v7743 = vunpack.c.l.b16 %v6971
          %v7744 = vunpack.c.l.b16 %v6972
          %v7745 = vunpack.c.l.b16 %v6973
          %v7746 = vunpack.c.l.b16 %v6974
          %v7747 = vunpack.c.l.b16 %v6975
          %v7748 = vunpack.c.l.b16 %v6976
          %v7749 = vunpack.c.l.b16 %v6977
          %v7750 = vunpack.c.l.b16 %v6978
          %v7751 = vunpack.c.l.b16 %v6979
          %v7752 = vunpack.c.l.b16 %v6980
          %v7753 = vunpack.c.l.b16 %v6981
          %v7754 = vunpack.c.l.b16 %v6982
          %v7755 = vunpack.c.l.b16 %v6983
          %v7756 = vpack.c.b16 %v7725, %v7724
          %v7757 = vpack.c.b16 %v7727, %v7726
          %v7758 = vpack.c.b16 %v7729, %v7728
          %v7759 = vpack.c.b16 %v7731, %v7730
          %v7760 = vpack.c.b16 %v7733, %v7732
          %v7761 = vpack.c.b16 %v7735, %v7734
          %v7762 = vpack.c.b16 %v7737, %v7736
          %v7763 = vpack.c.b16 %v7739, %v7738
          %v7764 = vpack.c.b16 %v7741, %v7740
          %v7765 = vpack.c.b16 %v7743, %v7742
          %v7766 = vpack.c.b16 %v7745, %v7744
          %v7767 = vpack.c.b16 %v7747, %v7746
          %v7768 = vpack.c.b16 %v7749, %v7748
          %v7769 = vpack.c.b16 %v7751, %v7750
          %v7770 = vpack.c.b16 %v7753, %v7752
          %v7771 = vpack.c.b16 %v7755, %v7754
          %7788 = vmatprep.subr.bf16.mxu0 0
          %7789 = vmatpush1.bf16.msra.mxu0 %v7756
          %7790 = vmatprep.subr.bf16.mxu0 0
          %7791 = vmatpush1.bf16.msra.mxu0 %v7757
          %7792 = vmatprep.subr.bf16.mxu0 0
          %7793 = vmatpush1.bf16.msra.mxu0 %v7758
          %7794 = vmatprep.subr.bf16.mxu0 0
          %7795 = vmatpush1.bf16.msra.mxu0 %v7759
          %7796 = vmatprep.subr.bf16.mxu0 0
          %7797 = vmatpush1.bf16.msra.mxu0 %v7760
          %7798 = vmatprep.subr.bf16.mxu0 0
          %7799 = vmatpush1.bf16.msra.mxu0 %v7761
          %7800 = vmatprep.subr.bf16.mxu0 0
          %7801 = vmatpush1.bf16.msra.mxu0 %v7762
          %7802 = vmatprep.subr.bf16.mxu0 0
          %7803 = vmatpush1.bf16.msra.mxu0 %v7763
          %7804 = vmatprep.subr.bf16.mxu0 0
          %7805 = vmatpush1.bf16.msra.mxu0 %v7764
          %7806 = vmatprep.subr.bf16.mxu0 0
          %7807 = vmatpush1.bf16.msra.mxu0 %v7765
          %7808 = vmatprep.subr.bf16.mxu0 0
          %7809 = vmatpush1.bf16.msra.mxu0 %v7766
          %7810 = vmatprep.subr.bf16.mxu0 0
          %7811 = vmatpush1.bf16.msra.mxu0 %v7767
          %7812 = vmatprep.subr.bf16.mxu0 0
          %7813 = vmatpush1.bf16.msra.mxu0 %v7768
          %7814 = vmatprep.subr.bf16.mxu0 0
          %7815 = vmatpush1.bf16.msra.mxu0 %v7769
          %7816 = vmatprep.subr.bf16.mxu0 0
          %7817 = vmatpush1.bf16.msra.mxu0 %v7770
          %7818 = vmatprep.subr.bf16.mxu0 0
          %7819 = vmatpush1.bf16.msra.mxu0 %v7771
          %7820 = vmatprep.mubr.bf16.mxu0 %v7661
          %7821 = vmatmul.mubr.bf16.gmra.mrb[0].mxu0 %v7660
          %v7822 = vpop.f32.mrb[0].mxu0
          %v7823 = vadd.f32 %v7598, %v7822
          %v7824 = vpop.f32.mrb[0].mxu0
          %v7825 = vpop.f32.mrb[0].mxu0
          %v7826 = vadd.f32 %v7601, %v7825
          %v7827 = vpop.f32.mrb[0].mxu0
          %7828 = vmatprep.mubr.bf16.mxu0 %v7663
          %7829 = vmatmul.mubr.bf16.gmra.mrb[0].mxu0 %v7662
          %v7830 = vpop.f32.mrb[0].mxu0
          %v7831 = vadd.f32 %v7606, %v7830
          %v7832 = vpop.f32.mrb[0].mxu0
          %v7833 = vpop.f32.mrb[0].mxu0
          %v7834 = vadd.f32 %v7609, %v7833
          %v7835 = vpop.f32.mrb[0].mxu0
          %7836 = vmatprep.mubr.bf16.mxu0 %v7665
          %7837 = vmatmul.mubr.bf16.gmra.mrb[0].mxu0 %v7664
          %v7838 = vpop.f32.mrb[0].mxu0
          %v7839 = vadd.f32 %v7614, %v7838
          %v7840 = vpop.f32.mrb[0].mxu0
          %v7841 = vpop.f32.mrb[0].mxu0
          %v7842 = vadd.f32 %v7617, %v7841
          %v7843 = vpop.f32.mrb[0].mxu0
          %7844 = vmatprep.mubr.bf16.mxu0 %v7667
          %7845 = vmatmul.mubr.bf16.gmra.mrb[0].mxu0 %v7666
          %v7846 = vpop.f32.mrb[0].mxu0
          %v7847 = vadd.f32 %v7622, %v7846
          %v7848 = vpop.f32.mrb[0].mxu0
          %v7849 = vpop.f32.mrb[0].mxu0
          %v7850 = vadd.f32 %v7625, %v7849
          %v7851 = vpop.f32.mrb[0].mxu0
          %7852 = vmatprep.mubr.bf16.mxu0 %v7669
          %7853 = vmatmul.mubr.bf16.gmra.mrb[0].mxu0 %v7668
          %v7854 = vpop.f32.mrb[0].mxu0
          %v7855 = vadd.f32 %v7630, %v7854
          %v7856 = vpop.f32.mrb[0].mxu0
          %v7857 = vpop.f32.mrb[0].mxu0
          %v7858 = vadd.f32 %v7633, %v7857
          %v7859 = vpop.f32.mrb[0].mxu0
          %7860 = vmatprep.mubr.bf16.mxu0 %v7671
          %7861 = vmatmul.mubr.bf16.gmra.mrb[0].mxu0 %v7670
          %v7862 = vpop.f32.mrb[0].mxu0
          %v7863 = vadd.f32 %v7638, %v7862
          %v7864 = vpop.f32.mrb[0].mxu0
          %v7865 = vpop.f32.mrb[0].mxu0
          %v7866 = vadd.f32 %v7641, %v7865
          %v7867 = vpop.f32.mrb[0].mxu0
          %7868 = vmatprep.mubr.bf16.mxu0 %v7673
          %7869 = vmatmul.mubr.bf16.gmra.mrb[0].mxu0 %v7672
          %v7870 = vpop.f32.mrb[0].mxu0
          %v7871 = vadd.f32 %v7646, %v7870
          %v7872 = vpop.f32.mrb[0].mxu0
          %v7873 = vpop.f32.mrb[0].mxu0
          %v7874 = vadd.f32 %v7649, %v7873
          %v7875 = vpop.f32.mrb[0].mxu0
          %7876 = vmatprep.mubr.bf16.mxu0 %v7675
          %7877 = vmatmul.mubr.bf16.gmra.mrb[0].mxu0 %v7674
          %v7878 = vpop.f32.mrb[0].mxu0
          %v7879 = vadd.f32 %v7654, %v7878
          %v7880 = vpop.f32.mrb[0].mxu0
          %v7881 = vpop.f32.mrb[0].mxu0
          %v7882 = vadd.f32 %v7657, %v7881
          %v7883 = vpop.f32.mrb[0].mxu0
          %7884 = vdwg.mxu0
          %v7885 = vld [vmem:[#allocation2] sm:$0x1e]
          %v7886 = vld [vmem:[#allocation2 + $0x8] sm:$0x1e]
          %v7887 = vld [vmem:[#allocation2 + $0x10] sm:$0x1e]
          %v7888 = vld [vmem:[#allocation2 + $0x18] sm:$0x1e]
          %v7889 = vld [vmem:[#allocation2 + $0x20] sm:$0x1e]
          %v7890 = vld [vmem:[#allocation2 + $0x28] sm:$0x1e]
          %v7891 = vld [vmem:[#allocation2 + $0x30] sm:$0x1e]
          %v7892 = vld [vmem:[#allocation2 + $0x38] sm:$0x1e]
          %v7893 = vld [vmem:[#allocation2 + $0x40] sm:$0x1e]
          %v7894 = vld [vmem:[#allocation2 + $0x48] sm:$0x1e]
          %v7895 = vld [vmem:[#allocation2 + $0x50] sm:$0x1e]
          %v7896 = vld [vmem:[#allocation2 + $0x58] sm:$0x1e]
          %v7897 = vld [vmem:[#allocation2 + $0x60] sm:$0x1e]
          %v7898 = vld [vmem:[#allocation2 + $0x68] sm:$0x1e]
          %v7899 = vld [vmem:[#allocation2 + $0x70] sm:$0x1e]
          %v7900 = vld [vmem:[#allocation2 + $0x78] sm:$0x1e]
          %v7901 = vld [vmem:[#allocation2 + $0xa0] sm:$0x1e]
          %v7902 = vld [vmem:[#allocation2 + $0xa8] sm:$0x1e]
          %v7903 = vld [vmem:[#allocation2 + $0xb0] sm:$0x1e]
          %v7904 = vld [vmem:[#allocation2 + $0xb8] sm:$0x1e]
          %v7905 = vld [vmem:[#allocation2 + $0xc0] sm:$0x1e]
          %v7906 = vld [vmem:[#allocation2 + $0xc8] sm:$0x1e]
          %v7907 = vld [vmem:[#allocation2 + $0xd0] sm:$0x1e]
          %v7908 = vld [vmem:[#allocation2 + $0xd8] sm:$0x1e]
          %v7909 = vld [vmem:[#allocation2 + $0xe0] sm:$0x1e]
          %v7910 = vld [vmem:[#allocation2 + $0xe8] sm:$0x1e]
          %v7911 = vld [vmem:[#allocation2 + $0xf0] sm:$0x1e]
          %v7912 = vld [vmem:[#allocation2 + $0xf8] sm:$0x1e]
          %v7913 = vld [vmem:[#allocation2 + $0x100] sm:$0x1e]
          %v7914 = vld [vmem:[#allocation2 + $0x108] sm:$0x1e]
          %v7915 = vld [vmem:[#allocation2 + $0x110] sm:$0x1e]
          %v7916 = vld [vmem:[#allocation2 + $0x118] sm:$0x1e]
          %v7949 = vunpack.c.l.b16 %v7885
          %v7950 = vunpack.c.l.b16 %v7886
          %v7951 = vunpack.c.h.b16 %v7885
          %v7952 = vunpack.c.h.b16 %v7886
          %v7953 = vunpack.c.l.b16 %v7887
          %v7954 = vunpack.c.l.b16 %v7888
          %v7955 = vunpack.c.h.b16 %v7887
          %v7956 = vunpack.c.h.b16 %v7888
          %v7957 = vunpack.c.l.b16 %v7889
          %v7958 = vunpack.c.l.b16 %v7890
          %v7959 = vunpack.c.h.b16 %v7889
          %v7960 = vunpack.c.h.b16 %v7890
          %v7961 = vunpack.c.l.b16 %v7891
          %v7962 = vunpack.c.l.b16 %v7892
          %v7963 = vunpack.c.h.b16 %v7891
          %v7964 = vunpack.c.h.b16 %v7892
          %v7965 = vunpack.c.l.b16 %v7893
          %v7966 = vunpack.c.l.b16 %v7894
          %v7967 = vunpack.c.h.b16 %v7893
          %v7968 = vunpack.c.h.b16 %v7894
          %v7969 = vunpack.c.l.b16 %v7895
          %v7970 = vunpack.c.l.b16 %v7896
          %v7971 = vunpack.c.h.b16 %v7895
          %v7972 = vunpack.c.h.b16 %v7896
          %v7973 = vunpack.c.l.b16 %v7897
          %v7974 = vunpack.c.l.b16 %v7898
          %v7975 = vunpack.c.h.b16 %v7897
          %v7976 = vunpack.c.h.b16 %v7898
          %v7977 = vunpack.c.l.b16 %v7899
          %v7978 = vunpack.c.l.b16 %v7900
          %v7979 = vunpack.c.h.b16 %v7899
          %v7980 = vunpack.c.h.b16 %v7900
          %v7981 = vunpack.c.l.b16 %v7901
          %v7982 = vunpack.c.l.b16 %v7902
          %v7983 = vunpack.c.h.b16 %v7901
          %v7984 = vunpack.c.h.b16 %v7902
          %v7985 = vunpack.c.l.b16 %v7903
          %v7986 = vunpack.c.l.b16 %v7904
          %v7987 = vunpack.c.h.b16 %v7903
          %v7988 = vunpack.c.h.b16 %v7904
          %v7989 = vunpack.c.l.b16 %v7905
          %v7990 = vunpack.c.l.b16 %v7906
          %v7991 = vunpack.c.h.b16 %v7905
          %v7992 = vunpack.c.h.b16 %v7906
          %v7993 = vunpack.c.l.b16 %v7907
          %v7994 = vunpack.c.l.b16 %v7908
          %v7995 = vunpack.c.h.b16 %v7907
          %v7996 = vunpack.c.h.b16 %v7908
          %v7997 = vunpack.c.l.b16 %v7909
          %v7998 = vunpack.c.l.b16 %v7910
          %v7999 = vunpack.c.h.b16 %v7909
          %v8000 = vunpack.c.h.b16 %v7910
          %v8001 = vunpack.c.l.b16 %v7911
          %v8002 = vunpack.c.l.b16 %v7912
          %v8003 = vunpack.c.h.b16 %v7911
          %v8004 = vunpack.c.h.b16 %v7912
          %v8005 = vunpack.c.l.b16 %v7913
          %v8006 = vunpack.c.l.b16 %v7914
          %v8007 = vunpack.c.h.b16 %v7913
          %v8008 = vunpack.c.h.b16 %v7914
          %v8009 = vunpack.c.l.b16 %v7915
          %v8010 = vunpack.c.l.b16 %v7916
          %v8011 = vunpack.c.h.b16 %v7915
          %v8012 = vunpack.c.h.b16 %v7916
          %v8013 = vpack.c.b16 %v7950, %v7949
          %v8014 = vpack.c.b16 %v7952, %v7951
          %v8015 = vpack.c.b16 %v7954, %v7953
          %v8016 = vpack.c.b16 %v7956, %v7955
          %v8017 = vpack.c.b16 %v7958, %v7957
          %v8018 = vpack.c.b16 %v7960, %v7959
          %v8019 = vpack.c.b16 %v7962, %v7961
          %v8020 = vpack.c.b16 %v7964, %v7963
          %v8021 = vpack.c.b16 %v7966, %v7965
          %v8022 = vpack.c.b16 %v7968, %v7967
          %v8023 = vpack.c.b16 %v7970, %v7969
          %v8024 = vpack.c.b16 %v7972, %v7971
          %v8025 = vpack.c.b16 %v7974, %v7973
          %v8026 = vpack.c.b16 %v7976, %v7975
          %v8027 = vpack.c.b16 %v7978, %v7977
          %v8028 = vpack.c.b16 %v7980, %v7979
          %v8029 = vpack.c.b16 %v7982, %v7981
          %v8030 = vpack.c.b16 %v7984, %v7983
          %v8031 = vpack.c.b16 %v7986, %v7985
          %v8032 = vpack.c.b16 %v7988, %v7987
          %v8033 = vpack.c.b16 %v7990, %v7989
          %v8034 = vpack.c.b16 %v7992, %v7991
          %v8035 = vpack.c.b16 %v7994, %v7993
          %v8036 = vpack.c.b16 %v7996, %v7995
          %v8037 = vpack.c.b16 %v7998, %v7997
          %v8038 = vpack.c.b16 %v8000, %v7999
          %v8039 = vpack.c.b16 %v8002, %v8001
          %v8040 = vpack.c.b16 %v8004, %v8003
          %v8041 = vpack.c.b16 %v8006, %v8005
          %v8042 = vpack.c.b16 %v8008, %v8007
          %v8043 = vpack.c.b16 %v8010, %v8009
          %v8044 = vpack.c.b16 %v8012, %v8011
          %vm8045 = vcmask 1042432
          %vm8046 = vcmask 1046532
          %vm8047 = vmor %vm8045, %vm8046
          %v8048 = vrot.slane %v8013, 5
          %v8049 = vrot.slane %v8048, 4
          %v8050 = vrot.slane %v8014, 5
          %v8051 = vsel %vm8047, %v8049, %v8050
          %v8052 = vrot.slane %v8015, 5
          %v8053 = vrot.slane %v8052, 4
          %v8054 = vrot.slane %v8016, 5
          %v8055 = vsel %vm8047, %v8053, %v8054
          %v8056 = vrot.slane %v8017, 5
          %v8057 = vrot.slane %v8056, 4
          %v8058 = vrot.slane %v8018, 5
          %v8059 = vsel %vm8047, %v8057, %v8058
          %v8060 = vrot.slane %v8019, 5
          %v8061 = vrot.slane %v8060, 4
          %v8062 = vrot.slane %v8020, 5
          %v8063 = vsel %vm8047, %v8061, %v8062
          %v8064 = vrot.slane %v8021, 5
          %v8065 = vrot.slane %v8064, 4
          %v8066 = vrot.slane %v8022, 5
          %v8067 = vsel %vm8047, %v8065, %v8066
          %v8068 = vrot.slane %v8023, 5
          %v8069 = vrot.slane %v8068, 4
          %v8070 = vrot.slane %v8024, 5
          %v8071 = vsel %vm8047, %v8069, %v8070
          %v8072 = vrot.slane %v8025, 5
          %v8073 = vrot.slane %v8072, 4
          %v8074 = vrot.slane %v8026, 5
          %v8075 = vsel %vm8047, %v8073, %v8074
          %v8076 = vrot.slane %v8027, 5
          %v8077 = vrot.slane %v8076, 4
          %v8078 = vrot.slane %v8028, 5
          %v8079 = vsel %vm8047, %v8077, %v8078
          %v8080 = vrot.slane %v8029, 5
          %v8081 = vrot.slane %v8080, 4
          %v8082 = vrot.slane %v8030, 5
          %v8083 = vsel %vm8047, %v8081, %v8082
          %v8084 = vrot.slane %v8031, 5
          %v8085 = vrot.slane %v8084, 4
          %v8086 = vrot.slane %v8032, 5
          %v8087 = vsel %vm8047, %v8085, %v8086
          %v8088 = vrot.slane %v8033, 5
          %v8089 = vrot.slane %v8088, 4
          %v8090 = vrot.slane %v8034, 5
          %v8091 = vsel %vm8047, %v8089, %v8090
          %v8092 = vrot.slane %v8035, 5
          %v8093 = vrot.slane %v8092, 4
          %v8094 = vrot.slane %v8036, 5
          %v8095 = vsel %vm8047, %v8093, %v8094
          %v8096 = vrot.slane %v8037, 5
          %v8097 = vrot.slane %v8096, 4
          %v8098 = vrot.slane %v8038, 5
          %v8099 = vsel %vm8047, %v8097, %v8098
          %v8100 = vrot.slane %v8039, 5
          %v8101 = vrot.slane %v8100, 4
          %v8102 = vrot.slane %v8040, 5
          %v8103 = vsel %vm8047, %v8101, %v8102
          %v8104 = vrot.slane %v8041, 5
          %v8105 = vrot.slane %v8104, 4
          %v8106 = vrot.slane %v8042, 5
          %v8107 = vsel %vm8047, %v8105, %v8106
          %v8108 = vrot.slane %v8043, 5
          %v8109 = vrot.slane %v8108, 4
          %v8110 = vrot.slane %v8044, 5
          %v8111 = vsel %vm8047, %v8109, %v8110
          %v8112 = vld [vmem:[#allocation9 + $0x100] sm:$0xf]
          %v8113 = vld [vmem:[#allocation9 + $0x104] sm:$0xf]
          %v8114 = vld [vmem:[#allocation9 + $0x108] sm:$0xf]
          %v8115 = vld [vmem:[#allocation9 + $0x10c] sm:$0xf]
          %v8116 = vld [vmem:[#allocation9 + $0x110] sm:$0xf]
          %v8117 = vld [vmem:[#allocation9 + $0x114] sm:$0xf]
          %v8118 = vld [vmem:[#allocation9 + $0x118] sm:$0xf]
          %v8119 = vld [vmem:[#allocation9 + $0x11c] sm:$0xf]
          %v8120 = vld [vmem:[#allocation9 + $0x120] sm:$0xf]
          %v8121 = vld [vmem:[#allocation9 + $0x124] sm:$0xf]
          %v8122 = vld [vmem:[#allocation9 + $0x128] sm:$0xf]
          %v8123 = vld [vmem:[#allocation9 + $0x12c] sm:$0xf]
          %v8124 = vld [vmem:[#allocation9 + $0x130] sm:$0xf]
          %v8125 = vld [vmem:[#allocation9 + $0x134] sm:$0xf]
          %v8126 = vld [vmem:[#allocation9 + $0x138] sm:$0xf]
          %v8127 = vld [vmem:[#allocation9 + $0x13c] sm:$0xf]
          %v8128 = vld [vmem:[#allocation9 + $0x140] sm:$0xf]
          %v8129 = vld [vmem:[#allocation9 + $0x144] sm:$0xf]
          %v8130 = vld [vmem:[#allocation9 + $0x148] sm:$0xf]
          %v8131 = vld [vmem:[#allocation9 + $0x14c] sm:$0xf]
          %v8132 = vld [vmem:[#allocation9 + $0x150] sm:$0xf]
          %v8133 = vld [vmem:[#allocation9 + $0x154] sm:$0xf]
          %v8134 = vld [vmem:[#allocation9 + $0x158] sm:$0xf]
          %v8135 = vld [vmem:[#allocation9 + $0x15c] sm:$0xf]
          %v8136 = vld [vmem:[#allocation9 + $0x160] sm:$0xf]
          %v8137 = vld [vmem:[#allocation9 + $0x164] sm:$0xf]
          %v8138 = vld [vmem:[#allocation9 + $0x168] sm:$0xf]
          %v8139 = vld [vmem:[#allocation9 + $0x16c] sm:$0xf]
          %v8140 = vld [vmem:[#allocation9 + $0x170] sm:$0xf]
          %v8141 = vld [vmem:[#allocation9 + $0x174] sm:$0xf]
          %v8142 = vld [vmem:[#allocation9 + $0x178] sm:$0xf]
          %v8143 = vld [vmem:[#allocation9 + $0x17c] sm:$0xf]
          %v8144 = vunpack.c.l.b16 %v8051
          %v8145 = vunpack.c.h.b16 %v8051
          %v8146 = vunpack.c.l.b16 %v8055
          %v8147 = vunpack.c.h.b16 %v8055
          %v8148 = vunpack.c.l.b16 %v8059
          %v8149 = vunpack.c.h.b16 %v8059
          %v8150 = vunpack.c.l.b16 %v8063
          %v8151 = vunpack.c.h.b16 %v8063
          %v8152 = vunpack.c.l.b16 %v8067
          %v8153 = vunpack.c.h.b16 %v8067
          %v8154 = vunpack.c.l.b16 %v8071
          %v8155 = vunpack.c.h.b16 %v8071
          %v8156 = vunpack.c.l.b16 %v8075
          %v8157 = vunpack.c.h.b16 %v8075
          %v8158 = vunpack.c.l.b16 %v8079
          %v8159 = vunpack.c.h.b16 %v8079
          %v8160 = vunpack.c.l.b16 %v8083
          %v8161 = vunpack.c.h.b16 %v8083
          %v8162 = vunpack.c.l.b16 %v8087
          %v8163 = vunpack.c.h.b16 %v8087
          %v8164 = vunpack.c.l.b16 %v8091
          %v8165 = vunpack.c.h.b16 %v8091
          %v8166 = vunpack.c.l.b16 %v8095
          %v8167 = vunpack.c.h.b16 %v8095
          %v8168 = vunpack.c.l.b16 %v8099
          %v8169 = vunpack.c.h.b16 %v8099
          %v8170 = vunpack.c.l.b16 %v8103
          %v8171 = vunpack.c.h.b16 %v8103
          %v8172 = vunpack.c.l.b16 %v8107
          %v8173 = vunpack.c.h.b16 %v8107
          %v8174 = vunpack.c.l.b16 %v8111
          %v8175 = vunpack.c.h.b16 %v8111
          %v8176 = vpack.c.b16 %v8146, %v8144
          %v8177 = vpack.c.b16 %v8147, %v8145
          %v8178 = vpack.c.b16 %v8150, %v8148
          %v8179 = vpack.c.b16 %v8151, %v8149
          %v8180 = vpack.c.b16 %v8154, %v8152
          %v8181 = vpack.c.b16 %v8155, %v8153
          %v8182 = vpack.c.b16 %v8158, %v8156
          %v8183 = vpack.c.b16 %v8159, %v8157
          %v8184 = vpack.c.b16 %v8162, %v8160
          %v8185 = vpack.c.b16 %v8163, %v8161
          %v8186 = vpack.c.b16 %v8166, %v8164
          %v8187 = vpack.c.b16 %v8167, %v8165
          %v8188 = vpack.c.b16 %v8170, %v8168
          %v8189 = vpack.c.b16 %v8171, %v8169
          %v8190 = vpack.c.b16 %v8174, %v8172
          %v8191 = vpack.c.b16 %v8175, %v8173
          %v8240 = vunpack.c.l.b16 %v8112
          %v8241 = vunpack.c.l.b16 %v8113
          %v8242 = vunpack.c.l.b16 %v8114
          %v8243 = vunpack.c.l.b16 %v8115
          %v8244 = vunpack.c.l.b16 %v8116
          %v8245 = vunpack.c.l.b16 %v8117
          %v8246 = vunpack.c.l.b16 %v8118
          %v8247 = vunpack.c.l.b16 %v8119
          %v8248 = vunpack.c.l.b16 %v8120
          %v8249 = vunpack.c.l.b16 %v8121
          %v8250 = vunpack.c.l.b16 %v8122
          %v8251 = vunpack.c.l.b16 %v8123
          %v8252 = vunpack.c.l.b16 %v8124
          %v8253 = vunpack.c.l.b16 %v8125
          %v8254 = vunpack.c.l.b16 %v8126
          %v8255 = vunpack.c.l.b16 %v8127
          %v8256 = vunpack.c.l.b16 %v8128
          %v8257 = vunpack.c.l.b16 %v8129
          %v8258 = vunpack.c.l.b16 %v8130
          %v8259 = vunpack.c.l.b16 %v8131
          %v8260 = vunpack.c.l.b16 %v8132
          %v8261 = vunpack.c.l.b16 %v8133
          %v8262 = vunpack.c.l.b16 %v8134
          %v8263 = vunpack.c.l.b16 %v8135
          %v8264 = vunpack.c.l.b16 %v8136
          %v8265 = vunpack.c.l.b16 %v8137
          %v8266 = vunpack.c.l.b16 %v8138
          %v8267 = vunpack.c.l.b16 %v8139
          %v8268 = vunpack.c.l.b16 %v8140
          %v8269 = vunpack.c.l.b16 %v8141
          %v8270 = vunpack.c.l.b16 %v8142
          %v8271 = vunpack.c.l.b16 %v8143
          %v8272 = vpack.c.b16 %v8241, %v8240
          %v8273 = vpack.c.b16 %v8243, %v8242
          %v8274 = vpack.c.b16 %v8245, %v8244
          %v8275 = vpack.c.b16 %v8247, %v8246
          %v8276 = vpack.c.b16 %v8249, %v8248
          %v8277 = vpack.c.b16 %v8251, %v8250
          %v8278 = vpack.c.b16 %v8253, %v8252
          %v8279 = vpack.c.b16 %v8255, %v8254
          %v8280 = vpack.c.b16 %v8257, %v8256
          %v8281 = vpack.c.b16 %v8259, %v8258
          %v8282 = vpack.c.b16 %v8261, %v8260
          %v8283 = vpack.c.b16 %v8263, %v8262
          %v8284 = vpack.c.b16 %v8265, %v8264
          %v8285 = vpack.c.b16 %v8267, %v8266
          %v8286 = vpack.c.b16 %v8269, %v8268
          %v8287 = vpack.c.b16 %v8271, %v8270
          %8304 = vmatprep.subr.bf16.mxu0 0
          %8305 = vmatpush1.bf16.msra.mxu0 %v8272
          %8306 = vmatprep.subr.bf16.mxu0 0
          %8307 = vmatpush1.bf16.msra.mxu0 %v8273
          %8308 = vmatprep.subr.bf16.mxu0 0
          %8309 = vmatpush1.bf16.msra.mxu0 %v8274
          %8310 = vmatprep.subr.bf16.mxu0 0
          %8311 = vmatpush1.bf16.msra.mxu0 %v8275
          %8312 = vmatprep.subr.bf16.mxu0 0
          %8313 = vmatpush1.bf16.msra.mxu0 %v8276
          %8314 = vmatprep.subr.bf16.mxu0 0
          %8315 = vmatpush1.bf16.msra.mxu0 %v8277
          %8316 = vmatprep.subr.bf16.mxu0 0
          %8317 = vmatpush1.bf16.msra.mxu0 %v8278
          %8318 = vmatprep.subr.bf16.mxu0 0
          %8319 = vmatpush1.bf16.msra.mxu0 %v8279
          %8320 = vmatprep.subr.bf16.mxu0 0
          %8321 = vmatpush1.bf16.msra.mxu0 %v8280
          %8322 = vmatprep.subr.bf16.mxu0 0
          %8323 = vmatpush1.bf16.msra.mxu0 %v8281
          %8324 = vmatprep.subr.bf16.mxu0 0
          %8325 = vmatpush1.bf16.msra.mxu0 %v8282
          %8326 = vmatprep.subr.bf16.mxu0 0
          %8327 = vmatpush1.bf16.msra.mxu0 %v8283
          %8328 = vmatprep.subr.bf16.mxu0 0
          %8329 = vmatpush1.bf16.msra.mxu0 %v8284
          %8330 = vmatprep.subr.bf16.mxu0 0
          %8331 = vmatpush1.bf16.msra.mxu0 %v8285
          %8332 = vmatprep.subr.bf16.mxu0 0
          %8333 = vmatpush1.bf16.msra.mxu0 %v8286
          %8334 = vmatprep.subr.bf16.mxu0 0
          %8335 = vmatpush1.bf16.msra.mxu0 %v8287
          %8336 = vmatprep.mubr.bf16.mxu0 %v8177
          %8337 = vmatmul.mubr.bf16.gmra.mrb[0].mxu0 %v8176
          %v8338 = vpop.f32.mrb[0].mxu0
          %v8339 = vadd.f32 0.0, %v8338
          %v8340 = vpop.f32.mrb[0].mxu0
          %v8341 = vpop.f32.mrb[0].mxu0
          %v8342 = vadd.f32 0.0, %v8341
          %v8343 = vpop.f32.mrb[0].mxu0
          %8344 = vmatprep.mubr.bf16.mxu0 %v8179
          %8345 = vmatmul.mubr.bf16.gmra.mrb[0].mxu0 %v8178
          %v8346 = vpop.f32.mrb[0].mxu0
          %v8347 = vadd.f32 0.0, %v8346
          %v8348 = vpop.f32.mrb[0].mxu0
          %v8349 = vpop.f32.mrb[0].mxu0
          %v8350 = vadd.f32 0.0, %v8349
          %v8351 = vpop.f32.mrb[0].mxu0
          %8352 = vmatprep.mubr.bf16.mxu0 %v8181
          %8353 = vmatmul.mubr.bf16.gmra.mrb[0].mxu0 %v8180
          %v8354 = vpop.f32.mrb[0].mxu0
          %v8355 = vadd.f32 0.0, %v8354
          %v8356 = vpop.f32.mrb[0].mxu0
          %v8357 = vpop.f32.mrb[0].mxu0
          %v8358 = vadd.f32 0.0, %v8357
          %v8359 = vpop.f32.mrb[0].mxu0
          %8360 = vmatprep.mubr.bf16.mxu0 %v8183
          %8361 = vmatmul.mubr.bf16.gmra.mrb[0].mxu0 %v8182
          %v8362 = vpop.f32.mrb[0].mxu0
          %v8363 = vadd.f32 0.0, %v8362
          %v8364 = vpop.f32.mrb[0].mxu0
          %v8365 = vpop.f32.mrb[0].mxu0
          %v8366 = vadd.f32 0.0, %v8365
          %v8367 = vpop.f32.mrb[0].mxu0
          %8368 = vmatprep.mubr.bf16.mxu0 %v8185
          %8369 = vmatmul.mubr.bf16.gmra.mrb[0].mxu0 %v8184
          %v8370 = vpop.f32.mrb[0].mxu0
          %v8371 = vadd.f32 0.0, %v8370
          %v8372 = vpop.f32.mrb[0].mxu0
          %v8373 = vpop.f32.mrb[0].mxu0
          %v8374 = vadd.f32 0.0, %v8373
          %v8375 = vpop.f32.mrb[0].mxu0
          %8376 = vmatprep.mubr.bf16.mxu0 %v8187
          %8377 = vmatmul.mubr.bf16.gmra.mrb[0].mxu0 %v8186
          %v8378 = vpop.f32.mrb[0].mxu0
          %v8379 = vadd.f32 0.0, %v8378
          %v8380 = vpop.f32.mrb[0].mxu0
          %v8381 = vpop.f32.mrb[0].mxu0
          %v8382 = vadd.f32 0.0, %v8381
          %v8383 = vpop.f32.mrb[0].mxu0
          %8384 = vmatprep.mubr.bf16.mxu0 %v8189
          %8385 = vmatmul.mubr.bf16.gmra.mrb[0].mxu0 %v8188
          %v8386 = vpop.f32.mrb[0].mxu0
          %v8387 = vadd.f32 0.0, %v8386
          %v8388 = vpop.f32.mrb[0].mxu0
          %v8389 = vpop.f32.mrb[0].mxu0
          %v8390 = vadd.f32 0.0, %v8389
          %v8391 = vpop.f32.mrb[0].mxu0
          %8392 = vmatprep.mubr.bf16.mxu0 %v8191
          %8393 = vmatmul.mubr.bf16.gmra.mrb[0].mxu0 %v8190
          %v8394 = vpop.f32.mrb[0].mxu0
          %v8395 = vadd.f32 0.0, %v8394
          %v8396 = vpop.f32.mrb[0].mxu0
          %v8397 = vpop.f32.mrb[0].mxu0
          %v8398 = vadd.f32 0.0, %v8397
          %v8399 = vpop.f32.mrb[0].mxu0
          %8400 = vdwg.mxu0
          %v8401 = vadd.f32 %v7823, %v8339
          %v8402 = vadd.f32 %v7826, %v8342
          %v8403 = vadd.f32 %v7831, %v8347
          %v8404 = vadd.f32 %v7834, %v8350
          %v8405 = vadd.f32 %v7839, %v8355
          %v8406 = vadd.f32 %v7842, %v8358
          %v8407 = vadd.f32 %v7847, %v8363
          %v8408 = vadd.f32 %v7850, %v8366
          %v8409 = vadd.f32 %v7855, %v8371
          %v8410 = vadd.f32 %v7858, %v8374
          %v8411 = vadd.f32 %v7863, %v8379
          %v8412 = vadd.f32 %v7866, %v8382
          %v8413 = vadd.f32 %v7871, %v8387
          %v8414 = vadd.f32 %v7874, %v8390
          %v8415 = vadd.f32 %v7879, %v8395
          %v8416 = vadd.f32 %v7882, %v8398
          %s8417 = scalar_lea.vmem [#allocation2], 16
          %v8418 = vld [vmem:[%s8417] sm:$0xf]
          %v8419 = vld [vmem:[%s8417 + $0x8] sm:$0xf]
          %v8420 = vld [vmem:[%s8417 + $0x10] sm:$0xf]
          %v8421 = vld [vmem:[%s8417 + $0x18] sm:$0xf]
          %v8422 = vld [vmem:[%s8417 + $0x20] sm:$0xf]
          %v8423 = vld [vmem:[%s8417 + $0x28] sm:$0xf]
          %v8424 = vld [vmem:[%s8417 + $0x30] sm:$0xf]
          %v8425 = vld [vmem:[%s8417 + $0x38] sm:$0xf]
          %v8426 = vld [vmem:[%s8417 + $0x40] sm:$0xf]
          %v8427 = vld [vmem:[%s8417 + $0x48] sm:$0xf]
          %v8428 = vld [vmem:[%s8417 + $0x50] sm:$0xf]
          %v8429 = vld [vmem:[%s8417 + $0x58] sm:$0xf]
          %v8430 = vld [vmem:[%s8417 + $0x60] sm:$0xf]
          %v8431 = vld [vmem:[%s8417 + $0x68] sm:$0xf]
          %v8432 = vld [vmem:[%s8417 + $0x70] sm:$0xf]
          %v8433 = vld [vmem:[%s8417 + $0x78] sm:$0xf]
          %v8434 = vld [vmem:[%s8417 + $0xa0] sm:$0xf]
          %v8435 = vld [vmem:[%s8417 + $0xa8] sm:$0xf]
          %v8436 = vld [vmem:[%s8417 + $0xb0] sm:$0xf]
          %v8437 = vld [vmem:[%s8417 + $0xb8] sm:$0xf]
          %v8438 = vld [vmem:[%s8417 + $0xc0] sm:$0xf]
          %v8439 = vld [vmem:[%s8417 + $0xc8] sm:$0xf]
          %v8440 = vld [vmem:[%s8417 + $0xd0] sm:$0xf]
          %v8441 = vld [vmem:[%s8417 + $0xd8] sm:$0xf]
          %v8442 = vld [vmem:[%s8417 + $0xe0] sm:$0xf]
          %v8443 = vld [vmem:[%s8417 + $0xe8] sm:$0xf]
          %v8444 = vld [vmem:[%s8417 + $0xf0] sm:$0xf]
          %v8445 = vld [vmem:[%s8417 + $0xf8] sm:$0xf]
          %v8446 = vld [vmem:[%s8417 + $0x100] sm:$0xf]
          %v8447 = vld [vmem:[%s8417 + $0x108] sm:$0xf]
          %v8448 = vld [vmem:[%s8417 + $0x110] sm:$0xf]
          %v8449 = vld [vmem:[%s8417 + $0x118] sm:$0xf]
          %v8482 = vunpack.c.l.b16 %v8418
          %v8483 = vunpack.c.l.b16 %v8419
          %v8484 = vunpack.c.l.b16 %v8420
          %v8485 = vunpack.c.l.b16 %v8421
          %v8486 = vunpack.c.l.b16 %v8422
          %v8487 = vunpack.c.l.b16 %v8423
          %v8488 = vunpack.c.l.b16 %v8424
          %v8489 = vunpack.c.l.b16 %v8425
          %v8490 = vunpack.c.l.b16 %v8426
          %v8491 = vunpack.c.l.b16 %v8427
          %v8492 = vunpack.c.l.b16 %v8428
          %v8493 = vunpack.c.l.b16 %v8429
          %v8494 = vunpack.c.l.b16 %v8430
          %v8495 = vunpack.c.l.b16 %v8431
          %v8496 = vunpack.c.l.b16 %v8432
          %v8497 = vunpack.c.l.b16 %v8433
          %v8498 = vunpack.c.l.b16 %v8434
          %v8499 = vunpack.c.l.b16 %v8435
          %v8500 = vunpack.c.l.b16 %v8436
          %v8501 = vunpack.c.l.b16 %v8437
          %v8502 = vunpack.c.l.b16 %v8438
          %v8503 = vunpack.c.l.b16 %v8439
          %v8504 = vunpack.c.l.b16 %v8440
          %v8505 = vunpack.c.l.b16 %v8441
          %v8506 = vunpack.c.l.b16 %v8442
          %v8507 = vunpack.c.l.b16 %v8443
          %v8508 = vunpack.c.l.b16 %v8444
          %v8509 = vunpack.c.l.b16 %v8445
          %v8510 = vunpack.c.l.b16 %v8446
          %v8511 = vunpack.c.l.b16 %v8447
          %v8512 = vunpack.c.l.b16 %v8448
          %v8513 = vunpack.c.l.b16 %v8449
          %v8514 = vld [vmem:[#allocation9 + $0x180] sm:$0xf]
          %v8515 = vld [vmem:[#allocation9 + $0x184] sm:$0xf]
          %v8516 = vld [vmem:[#allocation9 + $0x188] sm:$0xf]
          %v8517 = vld [vmem:[#allocation9 + $0x18c] sm:$0xf]
          %v8518 = vld [vmem:[#allocation9 + $0x190] sm:$0xf]
          %v8519 = vld [vmem:[#allocation9 + $0x194] sm:$0xf]
          %v8520 = vld [vmem:[#allocation9 + $0x198] sm:$0xf]
          %v8521 = vld [vmem:[#allocation9 + $0x19c] sm:$0xf]
          %v8522 = vld [vmem:[#allocation9 + $0x1a0] sm:$0xf]
          %v8523 = vld [vmem:[#allocation9 + $0x1a4] sm:$0xf]
          %v8524 = vld [vmem:[#allocation9 + $0x1a8] sm:$0xf]
          %v8525 = vld [vmem:[#allocation9 + $0x1ac] sm:$0xf]
          %v8526 = vld [vmem:[#allocation9 + $0x1b0] sm:$0xf]
          %v8527 = vld [vmem:[#allocation9 + $0x1b4] sm:$0xf]
          %v8528 = vld [vmem:[#allocation9 + $0x1b8] sm:$0xf]
          %v8529 = vld [vmem:[#allocation9 + $0x1bc] sm:$0xf]
          %v8530 = vld [vmem:[#allocation9 + $0x1c0] sm:$0xf]
          %v8531 = vld [vmem:[#allocation9 + $0x1c4] sm:$0xf]
          %v8532 = vld [vmem:[#allocation9 + $0x1c8] sm:$0xf]
          %v8533 = vld [vmem:[#allocation9 + $0x1cc] sm:$0xf]
          %v8534 = vld [vmem:[#allocation9 + $0x1d0] sm:$0xf]
          %v8535 = vld [vmem:[#allocation9 + $0x1d4] sm:$0xf]
          %v8536 = vld [vmem:[#allocation9 + $0x1d8] sm:$0xf]
          %v8537 = vld [vmem:[#allocation9 + $0x1dc] sm:$0xf]
          %v8538 = vld [vmem:[#allocation9 + $0x1e0] sm:$0xf]
          %v8539 = vld [vmem:[#allocation9 + $0x1e4] sm:$0xf]
          %v8540 = vld [vmem:[#allocation9 + $0x1e8] sm:$0xf]
          %v8541 = vld [vmem:[#allocation9 + $0x1ec] sm:$0xf]
          %v8542 = vld [vmem:[#allocation9 + $0x1f0] sm:$0xf]
          %v8543 = vld [vmem:[#allocation9 + $0x1f4] sm:$0xf]
          %v8544 = vld [vmem:[#allocation9 + $0x1f8] sm:$0xf]
          %v8545 = vld [vmem:[#allocation9 + $0x1fc] sm:$0xf]
          %v8546 = vpack.c.b16 %v8484, %v8482
          %v8547 = vpack.c.b16 %v8485, %v8483
          %v8548 = vpack.c.b16 %v8488, %v8486
          %v8549 = vpack.c.b16 %v8489, %v8487
          %v8550 = vpack.c.b16 %v8492, %v8490
          %v8551 = vpack.c.b16 %v8493, %v8491
          %v8552 = vpack.c.b16 %v8496, %v8494
          %v8553 = vpack.c.b16 %v8497, %v8495
          %v8554 = vpack.c.b16 %v8500, %v8498
          %v8555 = vpack.c.b16 %v8501, %v8499
          %v8556 = vpack.c.b16 %v8504, %v8502
          %v8557 = vpack.c.b16 %v8505, %v8503
          %v8558 = vpack.c.b16 %v8508, %v8506
          %v8559 = vpack.c.b16 %v8509, %v8507
          %v8560 = vpack.c.b16 %v8512, %v8510
          %v8561 = vpack.c.b16 %v8513, %v8511
          %v8610 = vunpack.c.l.b16 %v8514
          %v8611 = vunpack.c.l.b16 %v8515
          %v8612 = vunpack.c.l.b16 %v8516
          %v8613 = vunpack.c.l.b16 %v8517
          %v8614 = vunpack.c.l.b16 %v8518
          %v8615 = vunpack.c.l.b16 %v8519
          %v8616 = vunpack.c.l.b16 %v8520
          %v8617 = vunpack.c.l.b16 %v8521
          %v8618 = vunpack.c.l.b16 %v8522
          %v8619 = vunpack.c.l.b16 %v8523
          %v8620 = vunpack.c.l.b16 %v8524
          %v8621 = vunpack.c.l.b16 %v8525
          %v8622 = vunpack.c.l.b16 %v8526
          %v8623 = vunpack.c.l.b16 %v8527
          %v8624 = vunpack.c.l.b16 %v8528
          %v8625 = vunpack.c.l.b16 %v8529
          %v8626 = vunpack.c.l.b16 %v8530
          %v8627 = vunpack.c.l.b16 %v8531
          %v8628 = vunpack.c.l.b16 %v8532
          %v8629 = vunpack.c.l.b16 %v8533
          %v8630 = vunpack.c.l.b16 %v8534
          %v8631 = vunpack.c.l.b16 %v8535
          %v8632 = vunpack.c.l.b16 %v8536
          %v8633 = vunpack.c.l.b16 %v8537
          %v8634 = vunpack.c.l.b16 %v8538
          %v8635 = vunpack.c.l.b16 %v8539
          %v8636 = vunpack.c.l.b16 %v8540
          %v8637 = vunpack.c.l.b16 %v8541
          %v8638 = vunpack.c.l.b16 %v8542
          %v8639 = vunpack.c.l.b16 %v8543
          %v8640 = vunpack.c.l.b16 %v8544
          %v8641 = vunpack.c.l.b16 %v8545
          %v8642 = vpack.c.b16 %v8611, %v8610
          %v8643 = vpack.c.b16 %v8613, %v8612
          %v8644 = vpack.c.b16 %v8615, %v8614
          %v8645 = vpack.c.b16 %v8617, %v8616
          %v8646 = vpack.c.b16 %v8619, %v8618
          %v8647 = vpack.c.b16 %v8621, %v8620
          %v8648 = vpack.c.b16 %v8623, %v8622
          %v8649 = vpack.c.b16 %v8625, %v8624
          %v8650 = vpack.c.b16 %v8627, %v8626
          %v8651 = vpack.c.b16 %v8629, %v8628
          %v8652 = vpack.c.b16 %v8631, %v8630
          %v8653 = vpack.c.b16 %v8633, %v8632
          %v8654 = vpack.c.b16 %v8635, %v8634
          %v8655 = vpack.c.b16 %v8637, %v8636
          %v8656 = vpack.c.b16 %v8639, %v8638
          %v8657 = vpack.c.b16 %v8641, %v8640
          %8674 = vmatprep.subr.bf16.mxu0 0
          %8675 = vmatpush1.bf16.msra.mxu0 %v8642
          %8676 = vmatprep.subr.bf16.mxu0 0
          %8677 = vmatpush1.bf16.msra.mxu0 %v8643
          %8678 = vmatprep.subr.bf16.mxu0 0
          %8679 = vmatpush1.bf16.msra.mxu0 %v8644
          %8680 = vmatprep.subr.bf16.mxu0 0
          %8681 = vmatpush1.bf16.msra.mxu0 %v8645
          %8682 = vmatprep.subr.bf16.mxu0 0
          %8683 = vmatpush1.bf16.msra.mxu0 %v8646
          %8684 = vmatprep.subr.bf16.mxu0 0
          %8685 = vmatpush1.bf16.msra.mxu0 %v8647
          %8686 = vmatprep.subr.bf16.mxu0 0
          %8687 = vmatpush1.bf16.msra.mxu0 %v8648
          %8688 = vmatprep.subr.bf16.mxu0 0
          %8689 = vmatpush1.bf16.msra.mxu0 %v8649
          %8690 = vmatprep.subr.bf16.mxu0 0
          %8691 = vmatpush1.bf16.msra.mxu0 %v8650
          %8692 = vmatprep.subr.bf16.mxu0 0
          %8693 = vmatpush1.bf16.msra.mxu0 %v8651
          %8694 = vmatprep.subr.bf16.mxu0 0
          %8695 = vmatpush1.bf16.msra.mxu0 %v8652
          %8696 = vmatprep.subr.bf16.mxu0 0
          %8697 = vmatpush1.bf16.msra.mxu0 %v8653
          %8698 = vmatprep.subr.bf16.mxu0 0
          %8699 = vmatpush1.bf16.msra.mxu0 %v8654
          %8700 = vmatprep.subr.bf16.mxu0 0
          %8701 = vmatpush1.bf16.msra.mxu0 %v8655
          %8702 = vmatprep.subr.bf16.mxu0 0
          %8703 = vmatpush1.bf16.msra.mxu0 %v8656
          %8704 = vmatprep.subr.bf16.mxu0 0
          %8705 = vmatpush1.bf16.msra.mxu0 %v8657
          %8706 = vmatprep.mubr.bf16.mxu0 %v8547
          %8707 = vmatmul.mubr.bf16.gmra.mrb[0].mxu0 %v8546
          %v8708 = vpop.f32.mrb[0].mxu0
          %v8709 = vadd.f32 0.0, %v8708
          %v8710 = vpop.f32.mrb[0].mxu0
          %v8711 = vpop.f32.mrb[0].mxu0
          %v8712 = vadd.f32 0.0, %v8711
          %v8713 = vpop.f32.mrb[0].mxu0
          %8714 = vmatprep.mubr.bf16.mxu0 %v8549
          %8715 = vmatmul.mubr.bf16.gmra.mrb[0].mxu0 %v8548
          %v8716 = vpop.f32.mrb[0].mxu0
          %v8717 = vadd.f32 0.0, %v8716
          %v8718 = vpop.f32.mrb[0].mxu0
          %v8719 = vpop.f32.mrb[0].mxu0
          %v8720 = vadd.f32 0.0, %v8719
          %v8721 = vpop.f32.mrb[0].mxu0
          %8722 = vmatprep.mubr.bf16.mxu0 %v8551
          %8723 = vmatmul.mubr.bf16.gmra.mrb[0].mxu0 %v8550
          %v8724 = vpop.f32.mrb[0].mxu0
          %v8725 = vadd.f32 0.0, %v8724
          %v8726 = vpop.f32.mrb[0].mxu0
          %v8727 = vpop.f32.mrb[0].mxu0
          %v8728 = vadd.f32 0.0, %v8727
          %v8729 = vpop.f32.mrb[0].mxu0
          %8730 = vmatprep.mubr.bf16.mxu0 %v8553
          %8731 = vmatmul.mubr.bf16.gmra.mrb[0].mxu0 %v8552
          %v8732 = vpop.f32.mrb[0].mxu0
          %v8733 = vadd.f32 0.0, %v8732
          %v8734 = vpop.f32.mrb[0].mxu0
          %v8735 = vpop.f32.mrb[0].mxu0
          %v8736 = vadd.f32 0.0, %v8735
          %v8737 = vpop.f32.mrb[0].mxu0
          %8738 = vmatprep.mubr.bf16.mxu0 %v8555
          %8739 = vmatmul.mubr.bf16.gmra.mrb[0].mxu0 %v8554
          %v8740 = vpop.f32.mrb[0].mxu0
          %v8741 = vadd.f32 0.0, %v8740
          %v8742 = vpop.f32.mrb[0].mxu0
          %v8743 = vpop.f32.mrb[0].mxu0
          %v8744 = vadd.f32 0.0, %v8743
          %v8745 = vpop.f32.mrb[0].mxu0
          %8746 = vmatprep.mubr.bf16.mxu0 %v8557
          %8747 = vmatmul.mubr.bf16.gmra.mrb[0].mxu0 %v8556
          %v8748 = vpop.f32.mrb[0].mxu0
          %v8749 = vadd.f32 0.0, %v8748
          %v8750 = vpop.f32.mrb[0].mxu0
          %v8751 = vpop.f32.mrb[0].mxu0
          %v8752 = vadd.f32 0.0, %v8751
          %v8753 = vpop.f32.mrb[0].mxu0
          %8754 = vmatprep.mubr.bf16.mxu0 %v8559
          %8755 = vmatmul.mubr.bf16.gmra.mrb[0].mxu0 %v8558
          %v8756 = vpop.f32.mrb[0].mxu0
          %v8757 = vadd.f32 0.0, %v8756
          %v8758 = vpop.f32.mrb[0].mxu0
          %v8759 = vpop.f32.mrb[0].mxu0
          %v8760 = vadd.f32 0.0, %v8759
          %v8761 = vpop.f32.mrb[0].mxu0
          %8762 = vmatprep.mubr.bf16.mxu0 %v8561
          %8763 = vmatmul.mubr.bf16.gmra.mrb[0].mxu0 %v8560
          %v8764 = vpop.f32.mrb[0].mxu0
          %v8765 = vadd.f32 0.0, %v8764
          %v8766 = vpop.f32.mrb[0].mxu0
          %v8767 = vpop.f32.mrb[0].mxu0
          %v8768 = vadd.f32 0.0, %v8767
          %v8769 = vpop.f32.mrb[0].mxu0
          %8770 = vdwg.mxu0
          %v8771 = vadd.f32 %v8401, %v8709
          %v8772 = vadd.f32 %v8402, %v8712
          %v8773 = vadd.f32 %v8403, %v8717
          %v8774 = vadd.f32 %v8404, %v8720
          %v8775 = vadd.f32 %v8405, %v8725
          %v8776 = vadd.f32 %v8406, %v8728
          %v8777 = vadd.f32 %v8407, %v8733
          %v8778 = vadd.f32 %v8408, %v8736
          %v8779 = vadd.f32 %v8409, %v8741
          %v8780 = vadd.f32 %v8410, %v8744
          %v8781 = vadd.f32 %v8411, %v8749
          %v8782 = vadd.f32 %v8412, %v8752
          %v8783 = vadd.f32 %v8413, %v8757
          %v8784 = vadd.f32 %v8414, %v8760
          %v8785 = vadd.f32 %v8415, %v8765
          %v8786 = vadd.f32 %v8416, %v8768
          %v8787 = vld [vmem:[%s8417] sm:$0x1f]
          %v8788 = vld [vmem:[%s8417 + $0x8] sm:$0x1f]
          %v8789 = vld [vmem:[%s8417 + $0x10] sm:$0x1f]
          %v8790 = vld [vmem:[%s8417 + $0x18] sm:$0x1f]
          %v8791 = vld [vmem:[%s8417 + $0x20] sm:$0x1f]
          %v8792 = vld [vmem:[%s8417 + $0x28] sm:$0x1f]
          %v8793 = vld [vmem:[%s8417 + $0x30] sm:$0x1f]
          %v8794 = vld [vmem:[%s8417 + $0x38] sm:$0x1f]
          %v8795 = vld [vmem:[%s8417 + $0x40] sm:$0x1f]
          %v8796 = vld [vmem:[%s8417 + $0x48] sm:$0x1f]
          %v8797 = vld [vmem:[%s8417 + $0x50] sm:$0x1f]
          %v8798 = vld [vmem:[%s8417 + $0x58] sm:$0x1f]
          %v8799 = vld [vmem:[%s8417 + $0x60] sm:$0x1f]
          %v8800 = vld [vmem:[%s8417 + $0x68] sm:$0x1f]
          %v8801 = vld [vmem:[%s8417 + $0x70] sm:$0x1f]
          %v8802 = vld [vmem:[%s8417 + $0x78] sm:$0x1f]
          %v8803 = vld [vmem:[%s8417 + $0xa0] sm:$0x1f]
          %v8804 = vld [vmem:[%s8417 + $0xa8] sm:$0x1f]
          %v8805 = vld [vmem:[%s8417 + $0xb0] sm:$0x1f]
          %v8806 = vld [vmem:[%s8417 + $0xb8] sm:$0x1f]
          %v8807 = vld [vmem:[%s8417 + $0xc0] sm:$0x1f]
          %v8808 = vld [vmem:[%s8417 + $0xc8] sm:$0x1f]
          %v8809 = vld [vmem:[%s8417 + $0xd0] sm:$0x1f]
          %v8810 = vld [vmem:[%s8417 + $0xd8] sm:$0x1f]
          %v8811 = vld [vmem:[%s8417 + $0xe0] sm:$0x1f]
          %v8812 = vld [vmem:[%s8417 + $0xe8] sm:$0x1f]
          %v8813 = vld [vmem:[%s8417 + $0xf0] sm:$0x1f]
          %v8814 = vld [vmem:[%s8417 + $0xf8] sm:$0x1f]
          %v8815 = vld [vmem:[%s8417 + $0x100] sm:$0x1f]
          %v8816 = vld [vmem:[%s8417 + $0x108] sm:$0x1f]
          %v8817 = vld [vmem:[%s8417 + $0x110] sm:$0x1f]
          %v8818 = vld [vmem:[%s8417 + $0x118] sm:$0x1f]
          %v8851 = vunpack.c.l.b16 %v8787
          %v8852 = vunpack.c.l.b16 %v8788
          %v8853 = vunpack.c.h.b16 %v8787
          %v8854 = vunpack.c.h.b16 %v8788
          %v8855 = vunpack.c.l.b16 %v8789
          %v8856 = vunpack.c.l.b16 %v8790
          %v8857 = vunpack.c.h.b16 %v8789
          %v8858 = vunpack.c.h.b16 %v8790
          %v8859 = vunpack.c.l.b16 %v8791
          %v8860 = vunpack.c.l.b16 %v8792
          %v8861 = vunpack.c.h.b16 %v8791
          %v8862 = vunpack.c.h.b16 %v8792
          %v8863 = vunpack.c.l.b16 %v8793
          %v8864 = vunpack.c.l.b16 %v8794
          %v8865 = vunpack.c.h.b16 %v8793
          %v8866 = vunpack.c.h.b16 %v8794
          %v8867 = vunpack.c.l.b16 %v8795
          %v8868 = vunpack.c.l.b16 %v8796
          %v8869 = vunpack.c.h.b16 %v8795
          %v8870 = vunpack.c.h.b16 %v8796
          %v8871 = vunpack.c.l.b16 %v8797
          %v8872 = vunpack.c.l.b16 %v8798
          %v8873 = vunpack.c.h.b16 %v8797
          %v8874 = vunpack.c.h.b16 %v8798
          %v8875 = vunpack.c.l.b16 %v8799
          %v8876 = vunpack.c.l.b16 %v8800
          %v8877 = vunpack.c.h.b16 %v8799
          %v8878 = vunpack.c.h.b16 %v8800
          %v8879 = vunpack.c.l.b16 %v8801
          %v8880 = vunpack.c.l.b16 %v8802
          %v8881 = vunpack.c.h.b16 %v8801
          %v8882 = vunpack.c.h.b16 %v8802
          %v8883 = vunpack.c.l.b16 %v8803
          %v8884 = vunpack.c.l.b16 %v8804
          %v8885 = vunpack.c.h.b16 %v8803
          %v8886 = vunpack.c.h.b16 %v8804
          %v8887 = vunpack.c.l.b16 %v8805
          %v8888 = vunpack.c.l.b16 %v8806
          %v8889 = vunpack.c.h.b16 %v8805
          %v8890 = vunpack.c.h.b16 %v8806
          %v8891 = vunpack.c.l.b16 %v8807
          %v8892 = vunpack.c.l.b16 %v8808
          %v8893 = vunpack.c.h.b16 %v8807
          %v8894 = vunpack.c.h.b16 %v8808
          %v8895 = vunpack.c.l.b16 %v8809
          %v8896 = vunpack.c.l.b16 %v8810
          %v8897 = vunpack.c.h.b16 %v8809
          %v8898 = vunpack.c.h.b16 %v8810
          %v8899 = vunpack.c.l.b16 %v8811
          %v8900 = vunpack.c.l.b16 %v8812
          %v8901 = vunpack.c.h.b16 %v8811
          %v8902 = vunpack.c.h.b16 %v8812
          %v8903 = vunpack.c.l.b16 %v8813
          %v8904 = vunpack.c.l.b16 %v8814
          %v8905 = vunpack.c.h.b16 %v8813
          %v8906 = vunpack.c.h.b16 %v8814
          %v8907 = vunpack.c.l.b16 %v8815
          %v8908 = vunpack.c.l.b16 %v8816
          %v8909 = vunpack.c.h.b16 %v8815
          %v8910 = vunpack.c.h.b16 %v8816
          %v8911 = vunpack.c.l.b16 %v8817
          %v8912 = vunpack.c.l.b16 %v8818
          %v8913 = vunpack.c.h.b16 %v8817
          %v8914 = vunpack.c.h.b16 %v8818
          %v8915 = vpack.c.b16 %v8852, %v8851
          %v8916 = vpack.c.b16 %v8854, %v8853
          %v8917 = vpack.c.b16 %v8856, %v8855
          %v8918 = vpack.c.b16 %v8858, %v8857
          %v8919 = vpack.c.b16 %v8860, %v8859
          %v8920 = vpack.c.b16 %v8862, %v8861
          %v8921 = vpack.c.b16 %v8864, %v8863
          %v8922 = vpack.c.b16 %v8866, %v8865
          %v8923 = vpack.c.b16 %v8868, %v8867
          %v8924 = vpack.c.b16 %v8870, %v8869
          %v8925 = vpack.c.b16 %v8872, %v8871
          %v8926 = vpack.c.b16 %v8874, %v8873
          %v8927 = vpack.c.b16 %v8876, %v8875
          %v8928 = vpack.c.b16 %v8878, %v8877
          %v8929 = vpack.c.b16 %v8880, %v8879
          %v8930 = vpack.c.b16 %v8882, %v8881
          %v8931 = vpack.c.b16 %v8884, %v8883
          %v8932 = vpack.c.b16 %v8886, %v8885
          %v8933 = vpack.c.b16 %v8888, %v8887
          %v8934 = vpack.c.b16 %v8890, %v8889
          %v8935 = vpack.c.b16 %v8892, %v8891
          %v8936 = vpack.c.b16 %v8894, %v8893
          %v8937 = vpack.c.b16 %v8896, %v8895
          %v8938 = vpack.c.b16 %v8898, %v8897
          %v8939 = vpack.c.b16 %v8900, %v8899
          %v8940 = vpack.c.b16 %v8902, %v8901
          %v8941 = vpack.c.b16 %v8904, %v8903
          %v8942 = vpack.c.b16 %v8906, %v8905
          %v8943 = vpack.c.b16 %v8908, %v8907
          %v8944 = vpack.c.b16 %v8910, %v8909
          %v8945 = vpack.c.b16 %v8912, %v8911
          %v8946 = vpack.c.b16 %v8914, %v8913
          %v8948 = vshrl.u32 %v8915, 16
          %v8950 = vrot.slane %v8948, 4
          %v8951 = vshll.u32 %v8915, 16
          %v8953 = vrot.slane %v8951, 5
          %v8954 = vor.u32 %v8950, %v8953
          %v8955 = vrot.slane %v8954, 4
          %v8957 = vshll.u32 %v8916, 16
          %v8959 = vrot.slane %v8957, 5
          %v8960 = vsel %vm7146, %v8955, %v8959
          %v8962 = vshrl.u32 %v8917, 16
          %v8964 = vrot.slane %v8962, 4
          %v8965 = vshll.u32 %v8917, 16
          %v8967 = vrot.slane %v8965, 5
          %v8968 = vor.u32 %v8964, %v8967
          %v8969 = vrot.slane %v8968, 4
          %v8971 = vshll.u32 %v8918, 16
          %v8973 = vrot.slane %v8971, 5
          %v8974 = vsel %vm7146, %v8969, %v8973
          %v8976 = vshrl.u32 %v8919, 16
          %v8978 = vrot.slane %v8976, 4
          %v8979 = vshll.u32 %v8919, 16
          %v8981 = vrot.slane %v8979, 5
          %v8982 = vor.u32 %v8978, %v8981
          %v8983 = vrot.slane %v8982, 4
          %v8985 = vshll.u32 %v8920, 16
          %v8987 = vrot.slane %v8985, 5
          %v8988 = vsel %vm7146, %v8983, %v8987
          %v8990 = vshrl.u32 %v8921, 16
          %v8992 = vrot.slane %v8990, 4
          %v8993 = vshll.u32 %v8921, 16
          %v8995 = vrot.slane %v8993, 5
          %v8996 = vor.u32 %v8992, %v8995
          %v8997 = vrot.slane %v8996, 4
          %v8999 = vshll.u32 %v8922, 16
          %v9001 = vrot.slane %v8999, 5
          %v9002 = vsel %vm7146, %v8997, %v9001
          %v9004 = vshrl.u32 %v8923, 16
          %v9006 = vrot.slane %v9004, 4
          %v9007 = vshll.u32 %v8923, 16
          %v9009 = vrot.slane %v9007, 5
          %v9010 = vor.u32 %v9006, %v9009
          %v9011 = vrot.slane %v9010, 4
          %v9013 = vshll.u32 %v8924, 16
          %v9015 = vrot.slane %v9013, 5
          %v9016 = vsel %vm7146, %v9011, %v9015
          %v9018 = vshrl.u32 %v8925, 16
          %v9020 = vrot.slane %v9018, 4
          %v9021 = vshll.u32 %v8925, 16
          %v9023 = vrot.slane %v9021, 5
          %v9024 = vor.u32 %v9020, %v9023
          %v9025 = vrot.slane %v9024, 4
          %v9027 = vshll.u32 %v8926, 16
          %v9029 = vrot.slane %v9027, 5
          %v9030 = vsel %vm7146, %v9025, %v9029
          %v9032 = vshrl.u32 %v8927, 16
          %v9034 = vrot.slane %v9032, 4
          %v9035 = vshll.u32 %v8927, 16
          %v9037 = vrot.slane %v9035, 5
          %v9038 = vor.u32 %v9034, %v9037
          %v9039 = vrot.slane %v9038, 4
          %v9041 = vshll.u32 %v8928, 16
          %v9043 = vrot.slane %v9041, 5
          %v9044 = vsel %vm7146, %v9039, %v9043
          %v9046 = vshrl.u32 %v8929, 16
          %v9048 = vrot.slane %v9046, 4
          %v9049 = vshll.u32 %v8929, 16
          %v9051 = vrot.slane %v9049, 5
          %v9052 = vor.u32 %v9048, %v9051
          %v9053 = vrot.slane %v9052, 4
          %v9055 = vshll.u32 %v8930, 16
          %v9057 = vrot.slane %v9055, 5
          %v9058 = vsel %vm7146, %v9053, %v9057
          %v9060 = vshrl.u32 %v8931, 16
          %v9062 = vrot.slane %v9060, 4
          %v9063 = vshll.u32 %v8931, 16
          %v9065 = vrot.slane %v9063, 5
          %v9066 = vor.u32 %v9062, %v9065
          %v9067 = vrot.slane %v9066, 4
          %v9069 = vshll.u32 %v8932, 16
          %v9071 = vrot.slane %v9069, 5
          %v9072 = vsel %vm7146, %v9067, %v9071
          %v9074 = vshrl.u32 %v8933, 16
          %v9076 = vrot.slane %v9074, 4
          %v9077 = vshll.u32 %v8933, 16
          %v9079 = vrot.slane %v9077, 5
          %v9080 = vor.u32 %v9076, %v9079
          %v9081 = vrot.slane %v9080, 4
          %v9083 = vshll.u32 %v8934, 16
          %v9085 = vrot.slane %v9083, 5
          %v9086 = vsel %vm7146, %v9081, %v9085
          %v9088 = vshrl.u32 %v8935, 16
          %v9090 = vrot.slane %v9088, 4
          %v9091 = vshll.u32 %v8935, 16
          %v9093 = vrot.slane %v9091, 5
          %v9094 = vor.u32 %v9090, %v9093
          %v9095 = vrot.slane %v9094, 4
          %v9097 = vshll.u32 %v8936, 16
          %v9099 = vrot.slane %v9097, 5
          %v9100 = vsel %vm7146, %v9095, %v9099
          %v9102 = vshrl.u32 %v8937, 16
          %v9104 = vrot.slane %v9102, 4
          %v9105 = vshll.u32 %v8937, 16
          %v9107 = vrot.slane %v9105, 5
          %v9108 = vor.u32 %v9104, %v9107
          %v9109 = vrot.slane %v9108, 4
          %v9111 = vshll.u32 %v8938, 16
          %v9113 = vrot.slane %v9111, 5
          %v9114 = vsel %vm7146, %v9109, %v9113
          %v9116 = vshrl.u32 %v8939, 16
          %v9118 = vrot.slane %v9116, 4
          %v9119 = vshll.u32 %v8939, 16
          %v9121 = vrot.slane %v9119, 5
          %v9122 = vor.u32 %v9118, %v9121
          %v9123 = vrot.slane %v9122, 4
          %v9125 = vshll.u32 %v8940, 16
          %v9127 = vrot.slane %v9125, 5
          %v9128 = vsel %vm7146, %v9123, %v9127
          %v9130 = vshrl.u32 %v8941, 16
          %v9132 = vrot.slane %v9130, 4
          %v9133 = vshll.u32 %v8941, 16
          %v9135 = vrot.slane %v9133, 5
          %v9136 = vor.u32 %v9132, %v9135
          %v9137 = vrot.slane %v9136, 4
          %v9139 = vshll.u32 %v8942, 16
          %v9141 = vrot.slane %v9139, 5
          %v9142 = vsel %vm7146, %v9137, %v9141
          %v9144 = vshrl.u32 %v8943, 16
          %v9146 = vrot.slane %v9144, 4
          %v9147 = vshll.u32 %v8943, 16
          %v9149 = vrot.slane %v9147, 5
          %v9150 = vor.u32 %v9146, %v9149
          %v9151 = vrot.slane %v9150, 4
          %v9153 = vshll.u32 %v8944, 16
          %v9155 = vrot.slane %v9153, 5
          %v9156 = vsel %vm7146, %v9151, %v9155
          %v9158 = vshrl.u32 %v8945, 16
          %v9160 = vrot.slane %v9158, 4
          %v9161 = vshll.u32 %v8945, 16
          %v9163 = vrot.slane %v9161, 5
          %v9164 = vor.u32 %v9160, %v9163
          %v9165 = vrot.slane %v9164, 4
          %v9167 = vshll.u32 %v8946, 16
          %v9169 = vrot.slane %v9167, 5
          %v9170 = vsel %vm7146, %v9165, %v9169
          %v9171 = vld [vmem:[#allocation9 + $0x200] sm:$0xf]
          %v9172 = vld [vmem:[#allocation9 + $0x204] sm:$0xf]
          %v9173 = vld [vmem:[#allocation9 + $0x208] sm:$0xf]
          %v9174 = vld [vmem:[#allocation9 + $0x20c] sm:$0xf]
          %v9175 = vld [vmem:[#allocation9 + $0x210] sm:$0xf]
          %v9176 = vld [vmem:[#allocation9 + $0x214] sm:$0xf]
          %v9177 = vld [vmem:[#allocation9 + $0x218] sm:$0xf]
          %v9178 = vld [vmem:[#allocation9 + $0x21c] sm:$0xf]
          %v9179 = vld [vmem:[#allocation9 + $0x220] sm:$0xf]
          %v9180 = vld [vmem:[#allocation9 + $0x224] sm:$0xf]
          %v9181 = vld [vmem:[#allocation9 + $0x228] sm:$0xf]
          %v9182 = vld [vmem:[#allocation9 + $0x22c] sm:$0xf]
          %v9183 = vld [vmem:[#allocation9 + $0x230] sm:$0xf]
          %v9184 = vld [vmem:[#allocation9 + $0x234] sm:$0xf]
          %v9185 = vld [vmem:[#allocation9 + $0x238] sm:$0xf]
          %v9186 = vld [vmem:[#allocation9 + $0x23c] sm:$0xf]
          %v9187 = vld [vmem:[#allocation9 + $0x240] sm:$0xf]
          %v9188 = vld [vmem:[#allocation9 + $0x244] sm:$0xf]
          %v9189 = vld [vmem:[#allocation9 + $0x248] sm:$0xf]
          %v9190 = vld [vmem:[#allocation9 + $0x24c] sm:$0xf]
          %v9191 = vld [vmem:[#allocation9 + $0x250] sm:$0xf]
          %v9192 = vld [vmem:[#allocation9 + $0x254] sm:$0xf]
          %v9193 = vld [vmem:[#allocation9 + $0x258] sm:$0xf]
          %v9194 = vld [vmem:[#allocation9 + $0x25c] sm:$0xf]
          %v9195 = vld [vmem:[#allocation9 + $0x260] sm:$0xf]
          %v9196 = vld [vmem:[#allocation9 + $0x264] sm:$0xf]
          %v9197 = vld [vmem:[#allocation9 + $0x268] sm:$0xf]
          %v9198 = vld [vmem:[#allocation9 + $0x26c] sm:$0xf]
          %v9199 = vld [vmem:[#allocation9 + $0x270] sm:$0xf]
          %v9200 = vld [vmem:[#allocation9 + $0x274] sm:$0xf]
          %v9201 = vld [vmem:[#allocation9 + $0x278] sm:$0xf]
          %v9202 = vld [vmem:[#allocation9 + $0x27c] sm:$0xf]
          %v9203 = vunpack.c.l.b16 %v8960
          %v9204 = vunpack.c.h.b16 %v8960
          %v9205 = vunpack.c.l.b16 %v8974
          %v9206 = vunpack.c.h.b16 %v8974
          %v9207 = vunpack.c.l.b16 %v8988
          %v9208 = vunpack.c.h.b16 %v8988
          %v9209 = vunpack.c.l.b16 %v9002
          %v9210 = vunpack.c.h.b16 %v9002
          %v9211 = vunpack.c.l.b16 %v9016
          %v9212 = vunpack.c.h.b16 %v9016
          %v9213 = vunpack.c.l.b16 %v9030
          %v9214 = vunpack.c.h.b16 %v9030
          %v9215 = vunpack.c.l.b16 %v9044
          %v9216 = vunpack.c.h.b16 %v9044
          %v9217 = vunpack.c.l.b16 %v9058
          %v9218 = vunpack.c.h.b16 %v9058
          %v9219 = vunpack.c.l.b16 %v9072
          %v9220 = vunpack.c.h.b16 %v9072
          %v9221 = vunpack.c.l.b16 %v9086
          %v9222 = vunpack.c.h.b16 %v9086
          %v9223 = vunpack.c.l.b16 %v9100
          %v9224 = vunpack.c.h.b16 %v9100
          %v9225 = vunpack.c.l.b16 %v9114
          %v9226 = vunpack.c.h.b16 %v9114
          %v9227 = vunpack.c.l.b16 %v9128
          %v9228 = vunpack.c.h.b16 %v9128
          %v9229 = vunpack.c.l.b16 %v9142
          %v9230 = vunpack.c.h.b16 %v9142
          %v9231 = vunpack.c.l.b16 %v9156
          %v9232 = vunpack.c.h.b16 %v9156
          %v9233 = vunpack.c.l.b16 %v9170
          %v9234 = vunpack.c.h.b16 %v9170
          %v9235 = vpack.c.b16 %v9205, %v9203
          %v9236 = vpack.c.b16 %v9206, %v9204
          %v9237 = vpack.c.b16 %v9209, %v9207
          %v9238 = vpack.c.b16 %v9210, %v9208
          %v9239 = vpack.c.b16 %v9213, %v9211
          %v9240 = vpack.c.b16 %v9214, %v9212
          %v9241 = vpack.c.b16 %v9217, %v9215
          %v9242 = vpack.c.b16 %v9218, %v9216
          %v9243 = vpack.c.b16 %v9221, %v9219
          %v9244 = vpack.c.b16 %v9222, %v9220
          %v9245 = vpack.c.b16 %v9225, %v9223
          %v9246 = vpack.c.b16 %v9226, %v9224
          %v9247 = vpack.c.b16 %v9229, %v9227
          %v9248 = vpack.c.b16 %v9230, %v9228
          %v9249 = vpack.c.b16 %v9233, %v9231
          %v9250 = vpack.c.b16 %v9234, %v9232
          %v9299 = vunpack.c.l.b16 %v9171
          %v9300 = vunpack.c.l.b16 %v9172
          %v9301 = vunpack.c.l.b16 %v9173
          %v9302 = vunpack.c.l.b16 %v9174
          %v9303 = vunpack.c.l.b16 %v9175
          %v9304 = vunpack.c.l.b16 %v9176
          %v9305 = vunpack.c.l.b16 %v9177
          %v9306 = vunpack.c.l.b16 %v9178
          %v9307 = vunpack.c.l.b16 %v9179
          %v9308 = vunpack.c.l.b16 %v9180
          %v9309 = vunpack.c.l.b16 %v9181
          %v9310 = vunpack.c.l.b16 %v9182
          %v9311 = vunpack.c.l.b16 %v9183
          %v9312 = vunpack.c.l.b16 %v9184
          %v9313 = vunpack.c.l.b16 %v9185
          %v9314 = vunpack.c.l.b16 %v9186
          %v9315 = vunpack.c.l.b16 %v9187
          %v9316 = vunpack.c.l.b16 %v9188
          %v9317 = vunpack.c.l.b16 %v9189
          %v9318 = vunpack.c.l.b16 %v9190
          %v9319 = vunpack.c.l.b16 %v9191
          %v9320 = vunpack.c.l.b16 %v9192
          %v9321 = vunpack.c.l.b16 %v9193
          %v9322 = vunpack.c.l.b16 %v9194
          %v9323 = vunpack.c.l.b16 %v9195
          %v9324 = vunpack.c.l.b16 %v9196
          %v9325 = vunpack.c.l.b16 %v9197
          %v9326 = vunpack.c.l.b16 %v9198
          %v9327 = vunpack.c.l.b16 %v9199
          %v9328 = vunpack.c.l.b16 %v9200
          %v9329 = vunpack.c.l.b16 %v9201
          %v9330 = vunpack.c.l.b16 %v9202
          %v9331 = vpack.c.b16 %v9300, %v9299
          %v9332 = vpack.c.b16 %v9302, %v9301
          %v9333 = vpack.c.b16 %v9304, %v9303
          %v9334 = vpack.c.b16 %v9306, %v9305
          %v9335 = vpack.c.b16 %v9308, %v9307
          %v9336 = vpack.c.b16 %v9310, %v9309
          %v9337 = vpack.c.b16 %v9312, %v9311
          %v9338 = vpack.c.b16 %v9314, %v9313
          %v9339 = vpack.c.b16 %v9316, %v9315
          %v9340 = vpack.c.b16 %v9318, %v9317
          %v9341 = vpack.c.b16 %v9320, %v9319
          %v9342 = vpack.c.b16 %v9322, %v9321
          %v9343 = vpack.c.b16 %v9324, %v9323
          %v9344 = vpack.c.b16 %v9326, %v9325
          %v9345 = vpack.c.b16 %v9328, %v9327
          %v9346 = vpack.c.b16 %v9330, %v9329
          %9363 = vmatprep.subr.bf16.mxu0 0
          %9364 = vmatpush1.bf16.msra.mxu0 %v9331
          %9365 = vmatprep.subr.bf16.mxu0 0
          %9366 = vmatpush1.bf16.msra.mxu0 %v9332
          %9367 = vmatprep.subr.bf16.mxu0 0
          %9368 = vmatpush1.bf16.msra.mxu0 %v9333
          %9369 = vmatprep.subr.bf16.mxu0 0
          %9370 = vmatpush1.bf16.msra.mxu0 %v9334
          %9371 = vmatprep.subr.bf16.mxu0 0
          %9372 = vmatpush1.bf16.msra.mxu0 %v9335
          %9373 = vmatprep.subr.bf16.mxu0 0
          %9374 = vmatpush1.bf16.msra.mxu0 %v9336
          %9375 = vmatprep.subr.bf16.mxu0 0
          %9376 = vmatpush1.bf16.msra.mxu0 %v9337
          %9377 = vmatprep.subr.bf16.mxu0 0
          %9378 = vmatpush1.bf16.msra.mxu0 %v9338
          %9379 = vmatprep.subr.bf16.mxu0 0
          %9380 = vmatpush1.bf16.msra.mxu0 %v9339
          %9381 = vmatprep.subr.bf16.mxu0 0
          %9382 = vmatpush1.bf16.msra.mxu0 %v9340
          %9383 = vmatprep.subr.bf16.mxu0 0
          %9384 = vmatpush1.bf16.msra.mxu0 %v9341
          %9385 = vmatprep.subr.bf16.mxu0 0
          %9386 = vmatpush1.bf16.msra.mxu0 %v9342
          %9387 = vmatprep.subr.bf16.mxu0 0
          %9388 = vmatpush1.bf16.msra.mxu0 %v9343
          %9389 = vmatprep.subr.bf16.mxu0 0
          %9390 = vmatpush1.bf16.msra.mxu0 %v9344
          %9391 = vmatprep.subr.bf16.mxu0 0
          %9392 = vmatpush1.bf16.msra.mxu0 %v9345
          %9393 = vmatprep.subr.bf16.mxu0 0
          %9394 = vmatpush1.bf16.msra.mxu0 %v9346
          %9395 = vmatprep.mubr.bf16.mxu0 %v9236
          %9396 = vmatmul.mubr.bf16.gmra.mrb[0].mxu0 %v9235
          %v9397 = vpop.f32.mrb[0].mxu0
          %v9398 = vadd.f32 0.0, %v9397
          %v9399 = vpop.f32.mrb[0].mxu0
          %v9400 = vpop.f32.mrb[0].mxu0
          %v9401 = vadd.f32 0.0, %v9400
          %v9402 = vpop.f32.mrb[0].mxu0
          %9403 = vmatprep.mubr.bf16.mxu0 %v9238
          %9404 = vmatmul.mubr.bf16.gmra.mrb[0].mxu0 %v9237
          %v9405 = vpop.f32.mrb[0].mxu0
          %v9406 = vadd.f32 0.0, %v9405
          %v9407 = vpop.f32.mrb[0].mxu0
          %v9408 = vpop.f32.mrb[0].mxu0
          %v9409 = vadd.f32 0.0, %v9408
          %v9410 = vpop.f32.mrb[0].mxu0
          %9411 = vmatprep.mubr.bf16.mxu0 %v9240
          %9412 = vmatmul.mubr.bf16.gmra.mrb[0].mxu0 %v9239
          %v9413 = vpop.f32.mrb[0].mxu0
          %v9414 = vadd.f32 0.0, %v9413
          %v9415 = vpop.f32.mrb[0].mxu0
          %v9416 = vpop.f32.mrb[0].mxu0
          %v9417 = vadd.f32 0.0, %v9416
          %v9418 = vpop.f32.mrb[0].mxu0
          %9419 = vmatprep.mubr.bf16.mxu0 %v9242
          %9420 = vmatmul.mubr.bf16.gmra.mrb[0].mxu0 %v9241
          %v9421 = vpop.f32.mrb[0].mxu0
          %v9422 = vadd.f32 0.0, %v9421
          %v9423 = vpop.f32.mrb[0].mxu0
          %v9424 = vpop.f32.mrb[0].mxu0
          %v9425 = vadd.f32 0.0, %v9424
          %v9426 = vpop.f32.mrb[0].mxu0
          %9427 = vmatprep.mubr.bf16.mxu0 %v9244
          %9428 = vmatmul.mubr.bf16.gmra.mrb[0].mxu0 %v9243
          %v9429 = vpop.f32.mrb[0].mxu0
          %v9430 = vadd.f32 0.0, %v9429
          %v9431 = vpop.f32.mrb[0].mxu0
          %v9432 = vpop.f32.mrb[0].mxu0
          %v9433 = vadd.f32 0.0, %v9432
          %v9434 = vpop.f32.mrb[0].mxu0
          %9435 = vmatprep.mubr.bf16.mxu0 %v9246
          %9436 = vmatmul.mubr.bf16.gmra.mrb[0].mxu0 %v9245
          %v9437 = vpop.f32.mrb[0].mxu0
          %v9438 = vadd.f32 0.0, %v9437
          %v9439 = vpop.f32.mrb[0].mxu0
          %v9440 = vpop.f32.mrb[0].mxu0
          %v9441 = vadd.f32 0.0, %v9440
          %v9442 = vpop.f32.mrb[0].mxu0
          %9443 = vmatprep.mubr.bf16.mxu0 %v9248
          %9444 = vmatmul.mubr.bf16.gmra.mrb[0].mxu0 %v9247
          %v9445 = vpop.f32.mrb[0].mxu0
          %v9446 = vadd.f32 0.0, %v9445
          %v9447 = vpop.f32.mrb[0].mxu0
          %v9448 = vpop.f32.mrb[0].mxu0
          %v9449 = vadd.f32 0.0, %v9448
          %v9450 = vpop.f32.mrb[0].mxu0
          %9451 = vmatprep.mubr.bf16.mxu0 %v9250
          %9452 = vmatmul.mubr.bf16.gmra.mrb[0].mxu0 %v9249
          %v9453 = vpop.f32.mrb[0].mxu0
          %v9454 = vadd.f32 0.0, %v9453
          %v9455 = vpop.f32.mrb[0].mxu0
          %v9456 = vpop.f32.mrb[0].mxu0
          %v9457 = vadd.f32 0.0, %v9456
          %v9458 = vpop.f32.mrb[0].mxu0
          %9459 = vdwg.mxu0
          %v9460 = vadd.f32 %v8771, %v9398
          %v9461 = vadd.f32 %v8772, %v9401
          %v9462 = vadd.f32 %v8773, %v9406
          %v9463 = vadd.f32 %v8774, %v9409
          %v9464 = vadd.f32 %v8775, %v9414
          %v9465 = vadd.f32 %v8776, %v9417
          %v9466 = vadd.f32 %v8777, %v9422
          %v9467 = vadd.f32 %v8778, %v9425
          %v9468 = vadd.f32 %v8779, %v9430
          %v9469 = vadd.f32 %v8780, %v9433
          %v9470 = vadd.f32 %v8781, %v9438
          %v9471 = vadd.f32 %v8782, %v9441
          %v9472 = vadd.f32 %v8783, %v9446
          %v9473 = vadd.f32 %v8784, %v9449
          %v9474 = vadd.f32 %v8785, %v9454
          %v9475 = vadd.f32 %v8786, %v9457
          %v9476 = vld [vmem:[%s8417] sm:$0x1e]
          %v9477 = vld [vmem:[%s8417 + $0x8] sm:$0x1e]
          %v9478 = vld [vmem:[%s8417 + $0x10] sm:$0x1e]
          %v9479 = vld [vmem:[%s8417 + $0x18] sm:$0x1e]
          %v9480 = vld [vmem:[%s8417 + $0x20] sm:$0x1e]
          %v9481 = vld [vmem:[%s8417 + $0x28] sm:$0x1e]
          %v9482 = vld [vmem:[%s8417 + $0x30] sm:$0x1e]
          %v9483 = vld [vmem:[%s8417 + $0x38] sm:$0x1e]
          %v9484 = vld [vmem:[%s8417 + $0x40] sm:$0x1e]
          %v9485 = vld [vmem:[%s8417 + $0x48] sm:$0x1e]
          %v9486 = vld [vmem:[%s8417 + $0x50] sm:$0x1e]
          %v9487 = vld [vmem:[%s8417 + $0x58] sm:$0x1e]
          %v9488 = vld [vmem:[%s8417 + $0x60] sm:$0x1e]
          %v9489 = vld [vmem:[%s8417 + $0x68] sm:$0x1e]
          %v9490 = vld [vmem:[%s8417 + $0x70] sm:$0x1e]
          %v9491 = vld [vmem:[%s8417 + $0x78] sm:$0x1e]
          %v9492 = vld [vmem:[%s8417 + $0xa0] sm:$0x1e]
          %v9493 = vld [vmem:[%s8417 + $0xa8] sm:$0x1e]
          %v9494 = vld [vmem:[%s8417 + $0xb0] sm:$0x1e]
          %v9495 = vld [vmem:[%s8417 + $0xb8] sm:$0x1e]
          %v9496 = vld [vmem:[%s8417 + $0xc0] sm:$0x1e]
          %v9497 = vld [vmem:[%s8417 + $0xc8] sm:$0x1e]
          %v9498 = vld [vmem:[%s8417 + $0xd0] sm:$0x1e]
          %v9499 = vld [vmem:[%s8417 + $0xd8] sm:$0x1e]
          %v9500 = vld [vmem:[%s8417 + $0xe0] sm:$0x1e]
          %v9501 = vld [vmem:[%s8417 + $0xe8] sm:$0x1e]
          %v9502 = vld [vmem:[%s8417 + $0xf0] sm:$0x1e]
          %v9503 = vld [vmem:[%s8417 + $0xf8] sm:$0x1e]
          %v9504 = vld [vmem:[%s8417 + $0x100] sm:$0x1e]
          %v9505 = vld [vmem:[%s8417 + $0x108] sm:$0x1e]
          %v9506 = vld [vmem:[%s8417 + $0x110] sm:$0x1e]
          %v9507 = vld [vmem:[%s8417 + $0x118] sm:$0x1e]
          %v9540 = vunpack.c.l.b16 %v9476
          %v9541 = vunpack.c.l.b16 %v9477
          %v9542 = vunpack.c.h.b16 %v9476
          %v9543 = vunpack.c.h.b16 %v9477
          %v9544 = vunpack.c.l.b16 %v9478
          %v9545 = vunpack.c.l.b16 %v9479
          %v9546 = vunpack.c.h.b16 %v9478
          %v9547 = vunpack.c.h.b16 %v9479
          %v9548 = vunpack.c.l.b16 %v9480
          %v9549 = vunpack.c.l.b16 %v9481
          %v9550 = vunpack.c.h.b16 %v9480
          %v9551 = vunpack.c.h.b16 %v9481
          %v9552 = vunpack.c.l.b16 %v9482
          %v9553 = vunpack.c.l.b16 %v9483
          %v9554 = vunpack.c.h.b16 %v9482
          %v9555 = vunpack.c.h.b16 %v9483
          %v9556 = vunpack.c.l.b16 %v9484
          %v9557 = vunpack.c.l.b16 %v9485
          %v9558 = vunpack.c.h.b16 %v9484
          %v9559 = vunpack.c.h.b16 %v9485
          %v9560 = vunpack.c.l.b16 %v9486
          %v9561 = vunpack.c.l.b16 %v9487
          %v9562 = vunpack.c.h.b16 %v9486
          %v9563 = vunpack.c.h.b16 %v9487
          %v9564 = vunpack.c.l.b16 %v9488
          %v9565 = vunpack.c.l.b16 %v9489
          %v9566 = vunpack.c.h.b16 %v9488
          %v9567 = vunpack.c.h.b16 %v9489
          %v9568 = vunpack.c.l.b16 %v9490
          %v9569 = vunpack.c.l.b16 %v9491
          %v9570 = vunpack.c.h.b16 %v9490
          %v9571 = vunpack.c.h.b16 %v9491
          %v9572 = vunpack.c.l.b16 %v9492
          %v9573 = vunpack.c.l.b16 %v9493
          %v9574 = vunpack.c.h.b16 %v9492
          %v9575 = vunpack.c.h.b16 %v9493
          %v9576 = vunpack.c.l.b16 %v9494
          %v9577 = vunpack.c.l.b16 %v9495
          %v9578 = vunpack.c.h.b16 %v9494
          %v9579 = vunpack.c.h.b16 %v9495
          %v9580 = vunpack.c.l.b16 %v9496
          %v9581 = vunpack.c.l.b16 %v9497
          %v9582 = vunpack.c.h.b16 %v9496
          %v9583 = vunpack.c.h.b16 %v9497
          %v9584 = vunpack.c.l.b16 %v9498
          %v9585 = vunpack.c.l.b16 %v9499
          %v9586 = vunpack.c.h.b16 %v9498
          %v9587 = vunpack.c.h.b16 %v9499
          %v9588 = vunpack.c.l.b16 %v9500
          %v9589 = vunpack.c.l.b16 %v9501
          %v9590 = vunpack.c.h.b16 %v9500
          %v9591 = vunpack.c.h.b16 %v9501
          %v9592 = vunpack.c.l.b16 %v9502
          %v9593 = vunpack.c.l.b16 %v9503
          %v9594 = vunpack.c.h.b16 %v9502
          %v9595 = vunpack.c.h.b16 %v9503
          %v9596 = vunpack.c.l.b16 %v9504
          %v9597 = vunpack.c.l.b16 %v9505
          %v9598 = vunpack.c.h.b16 %v9504
          %v9599 = vunpack.c.h.b16 %v9505
          %v9600 = vunpack.c.l.b16 %v9506
          %v9601 = vunpack.c.l.b16 %v9507
          %v9602 = vunpack.c.h.b16 %v9506
          %v9603 = vunpack.c.h.b16 %v9507
          %v9604 = vpack.c.b16 %v9541, %v9540
          %v9605 = vpack.c.b16 %v9543, %v9542
          %v9606 = vpack.c.b16 %v9545, %v9544
          %v9607 = vpack.c.b16 %v9547, %v9546
          %v9608 = vpack.c.b16 %v9549, %v9548
          %v9609 = vpack.c.b16 %v9551, %v9550
          %v9610 = vpack.c.b16 %v9553, %v9552
          %v9611 = vpack.c.b16 %v9555, %v9554
          %v9612 = vpack.c.b16 %v9557, %v9556
          %v9613 = vpack.c.b16 %v9559, %v9558
          %v9614 = vpack.c.b16 %v9561, %v9560
          %v9615 = vpack.c.b16 %v9563, %v9562
          %v9616 = vpack.c.b16 %v9565, %v9564
          %v9617 = vpack.c.b16 %v9567, %v9566
          %v9618 = vpack.c.b16 %v9569, %v9568
          %v9619 = vpack.c.b16 %v9571, %v9570
          %v9620 = vpack.c.b16 %v9573, %v9572
          %v9621 = vpack.c.b16 %v9575, %v9574
          %v9622 = vpack.c.b16 %v9577, %v9576
          %v9623 = vpack.c.b16 %v9579, %v9578
          %v9624 = vpack.c.b16 %v9581, %v9580
          %v9625 = vpack.c.b16 %v9583, %v9582
          %v9626 = vpack.c.b16 %v9585, %v9584
          %v9627 = vpack.c.b16 %v9587, %v9586
          %v9628 = vpack.c.b16 %v9589, %v9588
          %v9629 = vpack.c.b16 %v9591, %v9590
          %v9630 = vpack.c.b16 %v9593, %v9592
          %v9631 = vpack.c.b16 %v9595, %v9594
          %v9632 = vpack.c.b16 %v9597, %v9596
          %v9633 = vpack.c.b16 %v9599, %v9598
          %v9634 = vpack.c.b16 %v9601, %v9600
          %v9635 = vpack.c.b16 %v9603, %v9602
          %v9636 = vrot.slane %v9604, 5
          %v9637 = vrot.slane %v9636, 4
          %v9638 = vrot.slane %v9605, 5
          %v9639 = vsel %vm8047, %v9637, %v9638
          %v9640 = vrot.slane %v9606, 5
          %v9641 = vrot.slane %v9640, 4
          %v9642 = vrot.slane %v9607, 5
          %v9643 = vsel %vm8047, %v9641, %v9642
          %v9644 = vrot.slane %v9608, 5
          %v9645 = vrot.slane %v9644, 4
          %v9646 = vrot.slane %v9609, 5
          %v9647 = vsel %vm8047, %v9645, %v9646
          %v9648 = vrot.slane %v9610, 5
          %v9649 = vrot.slane %v9648, 4
          %v9650 = vrot.slane %v9611, 5
          %v9651 = vsel %vm8047, %v9649, %v9650
          %v9652 = vrot.slane %v9612, 5
          %v9653 = vrot.slane %v9652, 4
          %v9654 = vrot.slane %v9613, 5
          %v9655 = vsel %vm8047, %v9653, %v9654
          %v9656 = vrot.slane %v9614, 5
          %v9657 = vrot.slane %v9656, 4
          %v9658 = vrot.slane %v9615, 5
          %v9659 = vsel %vm8047, %v9657, %v9658
          %v9660 = vrot.slane %v9616, 5
          %v9661 = vrot.slane %v9660, 4
          %v9662 = vrot.slane %v9617, 5
          %v9663 = vsel %vm8047, %v9661, %v9662
          %v9664 = vrot.slane %v9618, 5
          %v9665 = vrot.slane %v9664, 4
          %v9666 = vrot.slane %v9619, 5
          %v9667 = vsel %vm8047, %v9665, %v9666
          %v9668 = vrot.slane %v9620, 5
          %v9669 = vrot.slane %v9668, 4
          %v9670 = vrot.slane %v9621, 5
          %v9671 = vsel %vm8047, %v9669, %v9670
          %v9672 = vrot.slane %v9622, 5
          %v9673 = vrot.slane %v9672, 4
          %v9674 = vrot.slane %v9623, 5
          %v9675 = vsel %vm8047, %v9673, %v9674
          %v9676 = vrot.slane %v9624, 5
          %v9677 = vrot.slane %v9676, 4
          %v9678 = vrot.slane %v9625, 5
          %v9679 = vsel %vm8047, %v9677, %v9678
          %v9680 = vrot.slane %v9626, 5
          %v9681 = vrot.slane %v9680, 4
          %v9682 = vrot.slane %v9627, 5
          %v9683 = vsel %vm8047, %v9681, %v9682
          %v9684 = vrot.slane %v9628, 5
          %v9685 = vrot.slane %v9684, 4
          %v9686 = vrot.slane %v9629, 5
          %v9687 = vsel %vm8047, %v9685, %v9686
          %v9688 = vrot.slane %v9630, 5
          %v9689 = vrot.slane %v9688, 4
          %v9690 = vrot.slane %v9631, 5
          %v9691 = vsel %vm8047, %v9689, %v9690
          %v9692 = vrot.slane %v9632, 5
          %v9693 = vrot.slane %v9692, 4
          %v9694 = vrot.slane %v9633, 5
          %v9695 = vsel %vm8047, %v9693, %v9694
          %v9696 = vrot.slane %v9634, 5
          %v9697 = vrot.slane %v9696, 4
          %v9698 = vrot.slane %v9635, 5
          %v9699 = vsel %vm8047, %v9697, %v9698
          %v9700 = vld [vmem:[#allocation9 + $0x280] sm:$0xf]
          %v9701 = vld [vmem:[#allocation9 + $0x284] sm:$0xf]
          %v9702 = vld [vmem:[#allocation9 + $0x288] sm:$0xf]
          %v9703 = vld [vmem:[#allocation9 + $0x28c] sm:$0xf]
          %v9704 = vld [vmem:[#allocation9 + $0x290] sm:$0xf]
          %v9705 = vld [vmem:[#allocation9 + $0x294] sm:$0xf]
          %v9706 = vld [vmem:[#allocation9 + $0x298] sm:$0xf]
          %v9707 = vld [vmem:[#allocation9 + $0x29c] sm:$0xf]
          %v9708 = vld [vmem:[#allocation9 + $0x2a0] sm:$0xf]
          %v9709 = vld [vmem:[#allocation9 + $0x2a4] sm:$0xf]
          %v9710 = vld [vmem:[#allocation9 + $0x2a8] sm:$0xf]
          %v9711 = vld [vmem:[#allocation9 + $0x2ac] sm:$0xf]
          %v9712 = vld [vmem:[#allocation9 + $0x2b0] sm:$0xf]
          %v9713 = vld [vmem:[#allocation9 + $0x2b4] sm:$0xf]
          %v9714 = vld [vmem:[#allocation9 + $0x2b8] sm:$0xf]
          %v9715 = vld [vmem:[#allocation9 + $0x2bc] sm:$0xf]
          %v9716 = vld [vmem:[#allocation9 + $0x2c0] sm:$0xf]
          %v9717 = vld [vmem:[#allocation9 + $0x2c4] sm:$0xf]
          %v9718 = vld [vmem:[#allocation9 + $0x2c8] sm:$0xf]
          %v9719 = vld [vmem:[#allocation9 + $0x2cc] sm:$0xf]
          %v9720 = vld [vmem:[#allocation9 + $0x2d0] sm:$0xf]
          %v9721 = vld [vmem:[#allocation9 + $0x2d4] sm:$0xf]
          %v9722 = vld [vmem:[#allocation9 + $0x2d8] sm:$0xf]
          %v9723 = vld [vmem:[#allocation9 + $0x2dc] sm:$0xf]
          %v9724 = vld [vmem:[#allocation9 + $0x2e0] sm:$0xf]
          %v9725 = vld [vmem:[#allocation9 + $0x2e4] sm:$0xf]
          %v9726 = vld [vmem:[#allocation9 + $0x2e8] sm:$0xf]
          %v9727 = vld [vmem:[#allocation9 + $0x2ec] sm:$0xf]
          %v9728 = vld [vmem:[#allocation9 + $0x2f0] sm:$0xf]
          %v9729 = vld [vmem:[#allocation9 + $0x2f4] sm:$0xf]
          %v9730 = vld [vmem:[#allocation9 + $0x2f8] sm:$0xf]
          %v9731 = vld [vmem:[#allocation9 + $0x2fc] sm:$0xf]
          %v9732 = vunpack.c.l.b16 %v9639
          %v9733 = vunpack.c.h.b16 %v9639
          %v9734 = vunpack.c.l.b16 %v9643
          %v9735 = vunpack.c.h.b16 %v9643
          %v9736 = vunpack.c.l.b16 %v9647
          %v9737 = vunpack.c.h.b16 %v9647
          %v9738 = vunpack.c.l.b16 %v9651
          %v9739 = vunpack.c.h.b16 %v9651
          %v9740 = vunpack.c.l.b16 %v9655
          %v9741 = vunpack.c.h.b16 %v9655
          %v9742 = vunpack.c.l.b16 %v9659
          %v9743 = vunpack.c.h.b16 %v9659
          %v9744 = vunpack.c.l.b16 %v9663
          %v9745 = vunpack.c.h.b16 %v9663
          %v9746 = vunpack.c.l.b16 %v9667
          %v9747 = vunpack.c.h.b16 %v9667
          %v9748 = vunpack.c.l.b16 %v9671
          %v9749 = vunpack.c.h.b16 %v9671
          %v9750 = vunpack.c.l.b16 %v9675
          %v9751 = vunpack.c.h.b16 %v9675
          %v9752 = vunpack.c.l.b16 %v9679
          %v9753 = vunpack.c.h.b16 %v9679
          %v9754 = vunpack.c.l.b16 %v9683
          %v9755 = vunpack.c.h.b16 %v9683
          %v9756 = vunpack.c.l.b16 %v9687
          %v9757 = vunpack.c.h.b16 %v9687
          %v9758 = vunpack.c.l.b16 %v9691
          %v9759 = vunpack.c.h.b16 %v9691
          %v9760 = vunpack.c.l.b16 %v9695
          %v9761 = vunpack.c.h.b16 %v9695
          %v9762 = vunpack.c.l.b16 %v9699
          %v9763 = vunpack.c.h.b16 %v9699
          %v9764 = vpack.c.b16 %v9734, %v9732
          %v9765 = vpack.c.b16 %v9735, %v9733
          %v9766 = vpack.c.b16 %v9738, %v9736
          %v9767 = vpack.c.b16 %v9739, %v9737
          %v9768 = vpack.c.b16 %v9742, %v9740
          %v9769 = vpack.c.b16 %v9743, %v9741
          %v9770 = vpack.c.b16 %v9746, %v9744
          %v9771 = vpack.c.b16 %v9747, %v9745
          %v9772 = vpack.c.b16 %v9750, %v9748
          %v9773 = vpack.c.b16 %v9751, %v9749
          %v9774 = vpack.c.b16 %v9754, %v9752
          %v9775 = vpack.c.b16 %v9755, %v9753
          %v9776 = vpack.c.b16 %v9758, %v9756
          %v9777 = vpack.c.b16 %v9759, %v9757
          %v9778 = vpack.c.b16 %v9762, %v9760
          %v9779 = vpack.c.b16 %v9763, %v9761
          %v9828 = vunpack.c.l.b16 %v9700
          %v9829 = vunpack.c.l.b16 %v9701
          %v9830 = vunpack.c.l.b16 %v9702
          %v9831 = vunpack.c.l.b16 %v9703
          %v9832 = vunpack.c.l.b16 %v9704
          %v9833 = vunpack.c.l.b16 %v9705
          %v9834 = vunpack.c.l.b16 %v9706
          %v9835 = vunpack.c.l.b16 %v9707
          %v9836 = vunpack.c.l.b16 %v9708
          %v9837 = vunpack.c.l.b16 %v9709
          %v9838 = vunpack.c.l.b16 %v9710
          %v9839 = vunpack.c.l.b16 %v9711
          %v9840 = vunpack.c.l.b16 %v9712
          %v9841 = vunpack.c.l.b16 %v9713
          %v9842 = vunpack.c.l.b16 %v9714
          %v9843 = vunpack.c.l.b16 %v9715
          %v9844 = vunpack.c.l.b16 %v9716
          %v9845 = vunpack.c.l.b16 %v9717
          %v9846 = vunpack.c.l.b16 %v9718
          %v9847 = vunpack.c.l.b16 %v9719
          %v9848 = vunpack.c.l.b16 %v9720
          %v9849 = vunpack.c.l.b16 %v9721
          %v9850 = vunpack.c.l.b16 %v9722
          %v9851 = vunpack.c.l.b16 %v9723
          %v9852 = vunpack.c.l.b16 %v9724
          %v9853 = vunpack.c.l.b16 %v9725
          %v9854 = vunpack.c.l.b16 %v9726
          %v9855 = vunpack.c.l.b16 %v9727
          %v9856 = vunpack.c.l.b16 %v9728
          %v9857 = vunpack.c.l.b16 %v9729
          %v9858 = vunpack.c.l.b16 %v9730
          %v9859 = vunpack.c.l.b16 %v9731
          %v9860 = vpack.c.b16 %v9829, %v9828
          %v9861 = vpack.c.b16 %v9831, %v9830
          %v9862 = vpack.c.b16 %v9833, %v9832
          %v9863 = vpack.c.b16 %v9835, %v9834
          %v9864 = vpack.c.b16 %v9837, %v9836
          %v9865 = vpack.c.b16 %v9839, %v9838
          %v9866 = vpack.c.b16 %v9841, %v9840
          %v9867 = vpack.c.b16 %v9843, %v9842
          %v9868 = vpack.c.b16 %v9845, %v9844
          %v9869 = vpack.c.b16 %v9847, %v9846
          %v9870 = vpack.c.b16 %v9849, %v9848
          %v9871 = vpack.c.b16 %v9851, %v9850
          %v9872 = vpack.c.b16 %v9853, %v9852
          %v9873 = vpack.c.b16 %v9855, %v9854
          %v9874 = vpack.c.b16 %v9857, %v9856
          %v9875 = vpack.c.b16 %v9859, %v9858
          %9892 = vmatprep.subr.bf16.mxu0 0
          %9893 = vmatpush1.bf16.msra.mxu0 %v9860
          %9894 = vmatprep.subr.bf16.mxu0 0
          %9895 = vmatpush1.bf16.msra.mxu0 %v9861
          %9896 = vmatprep.subr.bf16.mxu0 0
          %9897 = vmatpush1.bf16.msra.mxu0 %v9862
          %9898 = vmatprep.subr.bf16.mxu0 0
          %9899 = vmatpush1.bf16.msra.mxu0 %v9863
          %9900 = vmatprep.subr.bf16.mxu0 0
          %9901 = vmatpush1.bf16.msra.mxu0 %v9864
          %9902 = vmatprep.subr.bf16.mxu0 0
          %9903 = vmatpush1.bf16.msra.mxu0 %v9865
          %9904 = vmatprep.subr.bf16.mxu0 0
          %9905 = vmatpush1.bf16.msra.mxu0 %v9866
          %9906 = vmatprep.subr.bf16.mxu0 0
          %9907 = vmatpush1.bf16.msra.mxu0 %v9867
          %9908 = vmatprep.subr.bf16.mxu0 0
          %9909 = vmatpush1.bf16.msra.mxu0 %v9868
          %9910 = vmatprep.subr.bf16.mxu0 0
          %9911 = vmatpush1.bf16.msra.mxu0 %v9869
          %9912 = vmatprep.subr.bf16.mxu0 0
          %9913 = vmatpush1.bf16.msra.mxu0 %v9870
          %9914 = vmatprep.subr.bf16.mxu0 0
          %9915 = vmatpush1.bf16.msra.mxu0 %v9871
          %9916 = vmatprep.subr.bf16.mxu0 0
          %9917 = vmatpush1.bf16.msra.mxu0 %v9872
          %9918 = vmatprep.subr.bf16.mxu0 0
          %9919 = vmatpush1.bf16.msra.mxu0 %v9873
          %9920 = vmatprep.subr.bf16.mxu0 0
          %9921 = vmatpush1.bf16.msra.mxu0 %v9874
          %9922 = vmatprep.subr.bf16.mxu0 0
          %9923 = vmatpush1.bf16.msra.mxu0 %v9875
          %9924 = vmatprep.mubr.bf16.mxu0 %v9765
          %9925 = vmatmul.mubr.bf16.gmra.mrb[0].mxu0 %v9764
          %v9926 = vpop.f32.mrb[0].mxu0
          %v9927 = vadd.f32 0.0, %v9926
          %v9928 = vpop.f32.mrb[0].mxu0
          %v9929 = vpop.f32.mrb[0].mxu0
          %v9930 = vadd.f32 0.0, %v9929
          %v9931 = vpop.f32.mrb[0].mxu0
          %9932 = vmatprep.mubr.bf16.mxu0 %v9767
          %9933 = vmatmul.mubr.bf16.gmra.mrb[0].mxu0 %v9766
          %v9934 = vpop.f32.mrb[0].mxu0
          %v9935 = vadd.f32 0.0, %v9934
          %v9936 = vpop.f32.mrb[0].mxu0
          %v9937 = vpop.f32.mrb[0].mxu0
          %v9938 = vadd.f32 0.0, %v9937
          %v9939 = vpop.f32.mrb[0].mxu0
          %9940 = vmatprep.mubr.bf16.mxu0 %v9769
          %9941 = vmatmul.mubr.bf16.gmra.mrb[0].mxu0 %v9768
          %v9942 = vpop.f32.mrb[0].mxu0
          %v9943 = vadd.f32 0.0, %v9942
          %v9944 = vpop.f32.mrb[0].mxu0
          %v9945 = vpop.f32.mrb[0].mxu0
          %v9946 = vadd.f32 0.0, %v9945
          %v9947 = vpop.f32.mrb[0].mxu0
          %9948 = vmatprep.mubr.bf16.mxu0 %v9771
          %9949 = vmatmul.mubr.bf16.gmra.mrb[0].mxu0 %v9770
          %v9950 = vpop.f32.mrb[0].mxu0
          %v9951 = vadd.f32 0.0, %v9950
          %v9952 = vpop.f32.mrb[0].mxu0
          %v9953 = vpop.f32.mrb[0].mxu0
          %v9954 = vadd.f32 0.0, %v9953
          %v9955 = vpop.f32.mrb[0].mxu0
          %9956 = vmatprep.mubr.bf16.mxu0 %v9773
          %9957 = vmatmul.mubr.bf16.gmra.mrb[0].mxu0 %v9772
          %v9958 = vpop.f32.mrb[0].mxu0
          %v9959 = vadd.f32 0.0, %v9958
          %v9960 = vpop.f32.mrb[0].mxu0
          %v9961 = vpop.f32.mrb[0].mxu0
          %v9962 = vadd.f32 0.0, %v9961
          %v9963 = vpop.f32.mrb[0].mxu0
          %9964 = vmatprep.mubr.bf16.mxu0 %v9775
          %9965 = vmatmul.mubr.bf16.gmra.mrb[0].mxu0 %v9774
          %v9966 = vpop.f32.mrb[0].mxu0
          %v9967 = vadd.f32 0.0, %v9966
          %v9968 = vpop.f32.mrb[0].mxu0
          %v9969 = vpop.f32.mrb[0].mxu0
          %v9970 = vadd.f32 0.0, %v9969
          %v9971 = vpop.f32.mrb[0].mxu0
          %9972 = vmatprep.mubr.bf16.mxu0 %v9777
          %9973 = vmatmul.mubr.bf16.gmra.mrb[0].mxu0 %v9776
          %v9974 = vpop.f32.mrb[0].mxu0
          %v9975 = vadd.f32 0.0, %v9974
          %v9976 = vpop.f32.mrb[0].mxu0
          %v9977 = vpop.f32.mrb[0].mxu0
          %v9978 = vadd.f32 0.0, %v9977
          %v9979 = vpop.f32.mrb[0].mxu0
          %9980 = vmatprep.mubr.bf16.mxu0 %v9779
          %9981 = vmatmul.mubr.bf16.gmra.mrb[0].mxu0 %v9778
          %v9982 = vpop.f32.mrb[0].mxu0
          %v9983 = vadd.f32 0.0, %v9982
          %v9984 = vpop.f32.mrb[0].mxu0
          %v9985 = vpop.f32.mrb[0].mxu0
          %v9986 = vadd.f32 0.0, %v9985
          %v9987 = vpop.f32.mrb[0].mxu0
          %9988 = vdwg.mxu0
          %v9989 = vadd.f32 %v9460, %v9927
          %v9990 = vadd.f32 %v9461, %v9930
          %v9991 = vadd.f32 %v9462, %v9935
          %v9992 = vadd.f32 %v9463, %v9938
          %v9993 = vadd.f32 %v9464, %v9943
          %v9994 = vadd.f32 %v9465, %v9946
          %v9995 = vadd.f32 %v9466, %v9951
          %v9996 = vadd.f32 %v9467, %v9954
          %v9997 = vadd.f32 %v9468, %v9959
          %v9998 = vadd.f32 %v9469, %v9962
          %v9999 = vadd.f32 %v9470, %v9967
          %v10000 = vadd.f32 %v9471, %v9970
          %v10001 = vadd.f32 %v9472, %v9975
          %v10002 = vadd.f32 %v9473, %v9978
          %v10003 = vadd.f32 %v9474, %v9983
          %v10004 = vadd.f32 %v9475, %v9986
          %s10005 = scalar_lea.vmem [#allocation2], 32
          %v10006 = vld [vmem:[%s10005] sm:$0xf]
          %v10007 = vld [vmem:[%s10005 + $0x8] sm:$0xf]
          %v10008 = vld [vmem:[%s10005 + $0x10] sm:$0xf]
          %v10009 = vld [vmem:[%s10005 + $0x18] sm:$0xf]
          %v10010 = vld [vmem:[%s10005 + $0x20] sm:$0xf]
          %v10011 = vld [vmem:[%s10005 + $0x28] sm:$0xf]
          %v10012 = vld [vmem:[%s10005 + $0x30] sm:$0xf]
          %v10013 = vld [vmem:[%s10005 + $0x38] sm:$0xf]
          %v10014 = vld [vmem:[%s10005 + $0x40] sm:$0xf]
          %v10015 = vld [vmem:[%s10005 + $0x48] sm:$0xf]
          %v10016 = vld [vmem:[%s10005 + $0x50] sm:$0xf]
          %v10017 = vld [vmem:[%s10005 + $0x58] sm:$0xf]
          %v10018 = vld [vmem:[%s10005 + $0x60] sm:$0xf]
          %v10019 = vld [vmem:[%s10005 + $0x68] sm:$0xf]
          %v10020 = vld [vmem:[%s10005 + $0x70] sm:$0xf]
          %v10021 = vld [vmem:[%s10005 + $0x78] sm:$0xf]
          %v10022 = vld [vmem:[%s10005 + $0xa0] sm:$0xf]
          %v10023 = vld [vmem:[%s10005 + $0xa8] sm:$0xf]
          %v10024 = vld [vmem:[%s10005 + $0xb0] sm:$0xf]
          %v10025 = vld [vmem:[%s10005 + $0xb8] sm:$0xf]
          %v10026 = vld [vmem:[%s10005 + $0xc0] sm:$0xf]
          %v10027 = vld [vmem:[%s10005 + $0xc8] sm:$0xf]
          %v10028 = vld [vmem:[%s10005 + $0xd0] sm:$0xf]
          %v10029 = vld [vmem:[%s10005 + $0xd8] sm:$0xf]
          %v10030 = vld [vmem:[%s10005 + $0xe0] sm:$0xf]
          %v10031 = vld [vmem:[%s10005 + $0xe8] sm:$0xf]
          %v10032 = vld [vmem:[%s10005 + $0xf0] sm:$0xf]
          %v10033 = vld [vmem:[%s10005 + $0xf8] sm:$0xf]
          %v10034 = vld [vmem:[%s10005 + $0x100] sm:$0xf]
          %v10035 = vld [vmem:[%s10005 + $0x108] sm:$0xf]
          %v10036 = vld [vmem:[%s10005 + $0x110] sm:$0xf]
          %v10037 = vld [vmem:[%s10005 + $0x118] sm:$0xf]
          %v10070 = vunpack.c.l.b16 %v10006
          %v10071 = vunpack.c.l.b16 %v10007
          %v10072 = vunpack.c.l.b16 %v10008
          %v10073 = vunpack.c.l.b16 %v10009
          %v10074 = vunpack.c.l.b16 %v10010
          %v10075 = vunpack.c.l.b16 %v10011
          %v10076 = vunpack.c.l.b16 %v10012
          %v10077 = vunpack.c.l.b16 %v10013
          %v10078 = vunpack.c.l.b16 %v10014
          %v10079 = vunpack.c.l.b16 %v10015
          %v10080 = vunpack.c.l.b16 %v10016
          %v10081 = vunpack.c.l.b16 %v10017
          %v10082 = vunpack.c.l.b16 %v10018
          %v10083 = vunpack.c.l.b16 %v10019
          %v10084 = vunpack.c.l.b16 %v10020
          %v10085 = vunpack.c.l.b16 %v10021
          %v10086 = vunpack.c.l.b16 %v10022
          %v10087 = vunpack.c.l.b16 %v10023
          %v10088 = vunpack.c.l.b16 %v10024
          %v10089 = vunpack.c.l.b16 %v10025
          %v10090 = vunpack.c.l.b16 %v10026
          %v10091 = vunpack.c.l.b16 %v10027
          %v10092 = vunpack.c.l.b16 %v10028
          %v10093 = vunpack.c.l.b16 %v10029
          %v10094 = vunpack.c.l.b16 %v10030
          %v10095 = vunpack.c.l.b16 %v10031
          %v10096 = vunpack.c.l.b16 %v10032
          %v10097 = vunpack.c.l.b16 %v10033
          %v10098 = vunpack.c.l.b16 %v10034
          %v10099 = vunpack.c.l.b16 %v10035
          %v10100 = vunpack.c.l.b16 %v10036
          %v10101 = vunpack.c.l.b16 %v10037
          %v10102 = vld [vmem:[#allocation9 + $0x300] sm:$0xf]
          %v10103 = vld [vmem:[#allocation9 + $0x304] sm:$0xf]
          %v10104 = vld [vmem:[#allocation9 + $0x308] sm:$0xf]
          %v10105 = vld [vmem:[#allocation9 + $0x30c] sm:$0xf]
          %v10106 = vld [vmem:[#allocation9 + $0x310] sm:$0xf]
          %v10107 = vld [vmem:[#allocation9 + $0x314] sm:$0xf]
          %v10108 = vld [vmem:[#allocation9 + $0x318] sm:$0xf]
          %v10109 = vld [vmem:[#allocation9 + $0x31c] sm:$0xf]
          %v10110 = vld [vmem:[#allocation9 + $0x320] sm:$0xf]
          %v10111 = vld [vmem:[#allocation9 + $0x324] sm:$0xf]
          %v10112 = vld [vmem:[#allocation9 + $0x328] sm:$0xf]
          %v10113 = vld [vmem:[#allocation9 + $0x32c] sm:$0xf]
          %v10114 = vld [vmem:[#allocation9 + $0x330] sm:$0xf]
          %v10115 = vld [vmem:[#allocation9 + $0x334] sm:$0xf]
          %v10116 = vld [vmem:[#allocation9 + $0x338] sm:$0xf]
          %v10117 = vld [vmem:[#allocation9 + $0x33c] sm:$0xf]
          %v10118 = vld [vmem:[#allocation9 + $0x340] sm:$0xf]
          %v10119 = vld [vmem:[#allocation9 + $0x344] sm:$0xf]
          %v10120 = vld [vmem:[#allocation9 + $0x348] sm:$0xf]
          %v10121 = vld [vmem:[#allocation9 + $0x34c] sm:$0xf]
          %v10122 = vld [vmem:[#allocation9 + $0x350] sm:$0xf]
          %v10123 = vld [vmem:[#allocation9 + $0x354] sm:$0xf]
          %v10124 = vld [vmem:[#allocation9 + $0x358] sm:$0xf]
          %v10125 = vld [vmem:[#allocation9 + $0x35c] sm:$0xf]
          %v10126 = vld [vmem:[#allocation9 + $0x360] sm:$0xf]
          %v10127 = vld [vmem:[#allocation9 + $0x364] sm:$0xf]
          %v10128 = vld [vmem:[#allocation9 + $0x368] sm:$0xf]
          %v10129 = vld [vmem:[#allocation9 + $0x36c] sm:$0xf]
          %v10130 = vld [vmem:[#allocation9 + $0x370] sm:$0xf]
          %v10131 = vld [vmem:[#allocation9 + $0x374] sm:$0xf]
          %v10132 = vld [vmem:[#allocation9 + $0x378] sm:$0xf]
          %v10133 = vld [vmem:[#allocation9 + $0x37c] sm:$0xf]
          %v10134 = vpack.c.b16 %v10072, %v10070
          %v10135 = vpack.c.b16 %v10073, %v10071
          %v10136 = vpack.c.b16 %v10076, %v10074
          %v10137 = vpack.c.b16 %v10077, %v10075
          %v10138 = vpack.c.b16 %v10080, %v10078
          %v10139 = vpack.c.b16 %v10081, %v10079
          %v10140 = vpack.c.b16 %v10084, %v10082
          %v10141 = vpack.c.b16 %v10085, %v10083
          %v10142 = vpack.c.b16 %v10088, %v10086
          %v10143 = vpack.c.b16 %v10089, %v10087
          %v10144 = vpack.c.b16 %v10092, %v10090
          %v10145 = vpack.c.b16 %v10093, %v10091
          %v10146 = vpack.c.b16 %v10096, %v10094
          %v10147 = vpack.c.b16 %v10097, %v10095
          %v10148 = vpack.c.b16 %v10100, %v10098
          %v10149 = vpack.c.b16 %v10101, %v10099
          %v10198 = vunpack.c.l.b16 %v10102
          %v10199 = vunpack.c.l.b16 %v10103
          %v10200 = vunpack.c.l.b16 %v10104
          %v10201 = vunpack.c.l.b16 %v10105
          %v10202 = vunpack.c.l.b16 %v10106
          %v10203 = vunpack.c.l.b16 %v10107
          %v10204 = vunpack.c.l.b16 %v10108
          %v10205 = vunpack.c.l.b16 %v10109
          %v10206 = vunpack.c.l.b16 %v10110
          %v10207 = vunpack.c.l.b16 %v10111
          %v10208 = vunpack.c.l.b16 %v10112
          %v10209 = vunpack.c.l.b16 %v10113
          %v10210 = vunpack.c.l.b16 %v10114
          %v10211 = vunpack.c.l.b16 %v10115
          %v10212 = vunpack.c.l.b16 %v10116
          %v10213 = vunpack.c.l.b16 %v10117
          %v10214 = vunpack.c.l.b16 %v10118
          %v10215 = vunpack.c.l.b16 %v10119
          %v10216 = vunpack.c.l.b16 %v10120
          %v10217 = vunpack.c.l.b16 %v10121
          %v10218 = vunpack.c.l.b16 %v10122
          %v10219 = vunpack.c.l.b16 %v10123
          %v10220 = vunpack.c.l.b16 %v10124
          %v10221 = vunpack.c.l.b16 %v10125
          %v10222 = vunpack.c.l.b16 %v10126
          %v10223 = vunpack.c.l.b16 %v10127
          %v10224 = vunpack.c.l.b16 %v10128
          %v10225 = vunpack.c.l.b16 %v10129
          %v10226 = vunpack.c.l.b16 %v10130
          %v10227 = vunpack.c.l.b16 %v10131
          %v10228 = vunpack.c.l.b16 %v10132
          %v10229 = vunpack.c.l.b16 %v10133
          %v10230 = vpack.c.b16 %v10199, %v10198
          %v10231 = vpack.c.b16 %v10201, %v10200
          %v10232 = vpack.c.b16 %v10203, %v10202
          %v10233 = vpack.c.b16 %v10205, %v10204
          %v10234 = vpack.c.b16 %v10207, %v10206
          %v10235 = vpack.c.b16 %v10209, %v10208
          %v10236 = vpack.c.b16 %v10211, %v10210
          %v10237 = vpack.c.b16 %v10213, %v10212
          %v10238 = vpack.c.b16 %v10215, %v10214
          %v10239 = vpack.c.b16 %v10217, %v10216
          %v10240 = vpack.c.b16 %v10219, %v10218
          %v10241 = vpack.c.b16 %v10221, %v10220
          %v10242 = vpack.c.b16 %v10223, %v10222
          %v10243 = vpack.c.b16 %v10225, %v10224
          %v10244 = vpack.c.b16 %v10227, %v10226
          %v10245 = vpack.c.b16 %v10229, %v10228
          %10262 = vmatprep.subr.bf16.mxu0 0
          %10263 = vmatpush1.bf16.msra.mxu0 %v10230
          %10264 = vmatprep.subr.bf16.mxu0 0
          %10265 = vmatpush1.bf16.msra.mxu0 %v10231
          %10266 = vmatprep.subr.bf16.mxu0 0
          %10267 = vmatpush1.bf16.msra.mxu0 %v10232
          %10268 = vmatprep.subr.bf16.mxu0 0
          %10269 = vmatpush1.bf16.msra.mxu0 %v10233
          %10270 = vmatprep.subr.bf16.mxu0 0
          %10271 = vmatpush1.bf16.msra.mxu0 %v10234
          %10272 = vmatprep.subr.bf16.mxu0 0
          %10273 = vmatpush1.bf16.msra.mxu0 %v10235
          %10274 = vmatprep.subr.bf16.mxu0 0
          %10275 = vmatpush1.bf16.msra.mxu0 %v10236
          %10276 = vmatprep.subr.bf16.mxu0 0
          %10277 = vmatpush1.bf16.msra.mxu0 %v10237
          %10278 = vmatprep.subr.bf16.mxu0 0
          %10279 = vmatpush1.bf16.msra.mxu0 %v10238
          %10280 = vmatprep.subr.bf16.mxu0 0
          %10281 = vmatpush1.bf16.msra.mxu0 %v10239
          %10282 = vmatprep.subr.bf16.mxu0 0
          %10283 = vmatpush1.bf16.msra.mxu0 %v10240
          %10284 = vmatprep.subr.bf16.mxu0 0
          %10285 = vmatpush1.bf16.msra.mxu0 %v10241
          %10286 = vmatprep.subr.bf16.mxu0 0
          %10287 = vmatpush1.bf16.msra.mxu0 %v10242
          %10288 = vmatprep.subr.bf16.mxu0 0
          %10289 = vmatpush1.bf16.msra.mxu0 %v10243
          %10290 = vmatprep.subr.bf16.mxu0 0
          %10291 = vmatpush1.bf16.msra.mxu0 %v10244
          %10292 = vmatprep.subr.bf16.mxu0 0
          %10293 = vmatpush1.bf16.msra.mxu0 %v10245
          %10294 = vmatprep.mubr.bf16.mxu0 %v10135
          %10295 = vmatmul.mubr.bf16.gmra.mrb[0].mxu0 %v10134
          %v10296 = vpop.f32.mrb[0].mxu0
          %v10297 = vadd.f32 0.0, %v10296
          %v10298 = vpop.f32.mrb[0].mxu0
          %v10299 = vpop.f32.mrb[0].mxu0
          %v10300 = vadd.f32 0.0, %v10299
          %v10301 = vpop.f32.mrb[0].mxu0
          %10302 = vmatprep.mubr.bf16.mxu0 %v10137
          %10303 = vmatmul.mubr.bf16.gmra.mrb[0].mxu0 %v10136
          %v10304 = vpop.f32.mrb[0].mxu0
          %v10305 = vadd.f32 0.0, %v10304
          %v10306 = vpop.f32.mrb[0].mxu0
          %v10307 = vpop.f32.mrb[0].mxu0
          %v10308 = vadd.f32 0.0, %v10307
          %v10309 = vpop.f32.mrb[0].mxu0
          %10310 = vmatprep.mubr.bf16.mxu0 %v10139
          %10311 = vmatmul.mubr.bf16.gmra.mrb[0].mxu0 %v10138
          %v10312 = vpop.f32.mrb[0].mxu0
          %v10313 = vadd.f32 0.0, %v10312
          %v10314 = vpop.f32.mrb[0].mxu0
          %v10315 = vpop.f32.mrb[0].mxu0
          %v10316 = vadd.f32 0.0, %v10315
          %v10317 = vpop.f32.mrb[0].mxu0
          %10318 = vmatprep.mubr.bf16.mxu0 %v10141
          %10319 = vmatmul.mubr.bf16.gmra.mrb[0].mxu0 %v10140
          %v10320 = vpop.f32.mrb[0].mxu0
          %v10321 = vadd.f32 0.0, %v10320
          %v10322 = vpop.f32.mrb[0].mxu0
          %v10323 = vpop.f32.mrb[0].mxu0
          %v10324 = vadd.f32 0.0, %v10323
          %v10325 = vpop.f32.mrb[0].mxu0
          %10326 = vmatprep.mubr.bf16.mxu0 %v10143
          %10327 = vmatmul.mubr.bf16.gmra.mrb[0].mxu0 %v10142
          %v10328 = vpop.f32.mrb[0].mxu0
          %v10329 = vadd.f32 0.0, %v10328
          %v10330 = vpop.f32.mrb[0].mxu0
          %v10331 = vpop.f32.mrb[0].mxu0
          %v10332 = vadd.f32 0.0, %v10331
          %v10333 = vpop.f32.mrb[0].mxu0
          %10334 = vmatprep.mubr.bf16.mxu0 %v10145
          %10335 = vmatmul.mubr.bf16.gmra.mrb[0].mxu0 %v10144
          %v10336 = vpop.f32.mrb[0].mxu0
          %v10337 = vadd.f32 0.0, %v10336
          %v10338 = vpop.f32.mrb[0].mxu0
          %v10339 = vpop.f32.mrb[0].mxu0
          %v10340 = vadd.f32 0.0, %v10339
          %v10341 = vpop.f32.mrb[0].mxu0
          %10342 = vmatprep.mubr.bf16.mxu0 %v10147
          %10343 = vmatmul.mubr.bf16.gmra.mrb[0].mxu0 %v10146
          %v10344 = vpop.f32.mrb[0].mxu0
          %v10345 = vadd.f32 0.0, %v10344
          %v10346 = vpop.f32.mrb[0].mxu0
          %v10347 = vpop.f32.mrb[0].mxu0
          %v10348 = vadd.f32 0.0, %v10347
          %v10349 = vpop.f32.mrb[0].mxu0
          %10350 = vmatprep.mubr.bf16.mxu0 %v10149
          %10351 = vmatmul.mubr.bf16.gmra.mrb[0].mxu0 %v10148
          %v10352 = vpop.f32.mrb[0].mxu0
          %v10353 = vadd.f32 0.0, %v10352
          %v10354 = vpop.f32.mrb[0].mxu0
          %v10355 = vpop.f32.mrb[0].mxu0
          %v10356 = vadd.f32 0.0, %v10355
          %v10357 = vpop.f32.mrb[0].mxu0
          %10358 = vdwg.mxu0
          %v10359 = vadd.f32 %v9989, %v10297
          %v10360 = vadd.f32 %v9990, %v10300
          %v10361 = vadd.f32 %v9991, %v10305
          %v10362 = vadd.f32 %v9992, %v10308
          %v10363 = vadd.f32 %v9993, %v10313
          %v10364 = vadd.f32 %v9994, %v10316
          %v10365 = vadd.f32 %v9995, %v10321
          %v10366 = vadd.f32 %v9996, %v10324
          %v10367 = vadd.f32 %v9997, %v10329
          %v10368 = vadd.f32 %v9998, %v10332
          %v10369 = vadd.f32 %v9999, %v10337
          %v10370 = vadd.f32 %v10000, %v10340
          %v10371 = vadd.f32 %v10001, %v10345
          %v10372 = vadd.f32 %v10002, %v10348
          %v10373 = vadd.f32 %v10003, %v10353
          %v10374 = vadd.f32 %v10004, %v10356
          %v10375 = vld [vmem:[%s10005] sm:$0x1f]
          %v10376 = vld [vmem:[%s10005 + $0x8] sm:$0x1f]
          %v10377 = vld [vmem:[%s10005 + $0x10] sm:$0x1f]
          %v10378 = vld [vmem:[%s10005 + $0x18] sm:$0x1f]
          %v10379 = vld [vmem:[%s10005 + $0x20] sm:$0x1f]
          %v10380 = vld [vmem:[%s10005 + $0x28] sm:$0x1f]
          %v10381 = vld [vmem:[%s10005 + $0x30] sm:$0x1f]
          %v10382 = vld [vmem:[%s10005 + $0x38] sm:$0x1f]
          %v10383 = vld [vmem:[%s10005 + $0x40] sm:$0x1f]
          %v10384 = vld [vmem:[%s10005 + $0x48] sm:$0x1f]
          %v10385 = vld [vmem:[%s10005 + $0x50] sm:$0x1f]
          %v10386 = vld [vmem:[%s10005 + $0x58] sm:$0x1f]
          %v10387 = vld [vmem:[%s10005 + $0x60] sm:$0x1f]
          %v10388 = vld [vmem:[%s10005 + $0x68] sm:$0x1f]
          %v10389 = vld [vmem:[%s10005 + $0x70] sm:$0x1f]
          %v10390 = vld [vmem:[%s10005 + $0x78] sm:$0x1f]
          %v10391 = vld [vmem:[%s10005 + $0xa0] sm:$0x1f]
          %v10392 = vld [vmem:[%s10005 + $0xa8] sm:$0x1f]
          %v10393 = vld [vmem:[%s10005 + $0xb0] sm:$0x1f]
          %v10394 = vld [vmem:[%s10005 + $0xb8] sm:$0x1f]
          %v10395 = vld [vmem:[%s10005 + $0xc0] sm:$0x1f]
          %v10396 = vld [vmem:[%s10005 + $0xc8] sm:$0x1f]
          %v10397 = vld [vmem:[%s10005 + $0xd0] sm:$0x1f]
          %v10398 = vld [vmem:[%s10005 + $0xd8] sm:$0x1f]
          %v10399 = vld [vmem:[%s10005 + $0xe0] sm:$0x1f]
          %v10400 = vld [vmem:[%s10005 + $0xe8] sm:$0x1f]
          %v10401 = vld [vmem:[%s10005 + $0xf0] sm:$0x1f]
          %v10402 = vld [vmem:[%s10005 + $0xf8] sm:$0x1f]
          %v10403 = vld [vmem:[%s10005 + $0x100] sm:$0x1f]
          %v10404 = vld [vmem:[%s10005 + $0x108] sm:$0x1f]
          %v10405 = vld [vmem:[%s10005 + $0x110] sm:$0x1f]
          %v10406 = vld [vmem:[%s10005 + $0x118] sm:$0x1f]
          %v10439 = vunpack.c.l.b16 %v10375
          %v10440 = vunpack.c.l.b16 %v10376
          %v10441 = vunpack.c.h.b16 %v10375
          %v10442 = vunpack.c.h.b16 %v10376
          %v10443 = vunpack.c.l.b16 %v10377
          %v10444 = vunpack.c.l.b16 %v10378
          %v10445 = vunpack.c.h.b16 %v10377
          %v10446 = vunpack.c.h.b16 %v10378
          %v10447 = vunpack.c.l.b16 %v10379
          %v10448 = vunpack.c.l.b16 %v10380
          %v10449 = vunpack.c.h.b16 %v10379
          %v10450 = vunpack.c.h.b16 %v10380
          %v10451 = vunpack.c.l.b16 %v10381
          %v10452 = vunpack.c.l.b16 %v10382
          %v10453 = vunpack.c.h.b16 %v10381
          %v10454 = vunpack.c.h.b16 %v10382
          %v10455 = vunpack.c.l.b16 %v10383
          %v10456 = vunpack.c.l.b16 %v10384
          %v10457 = vunpack.c.h.b16 %v10383
          %v10458 = vunpack.c.h.b16 %v10384
          %v10459 = vunpack.c.l.b16 %v10385
          %v10460 = vunpack.c.l.b16 %v10386
          %v10461 = vunpack.c.h.b16 %v10385
          %v10462 = vunpack.c.h.b16 %v10386
          %v10463 = vunpack.c.l.b16 %v10387
          %v10464 = vunpack.c.l.b16 %v10388
          %v10465 = vunpack.c.h.b16 %v10387
          %v10466 = vunpack.c.h.b16 %v10388
          %v10467 = vunpack.c.l.b16 %v10389
          %v10468 = vunpack.c.l.b16 %v10390
          %v10469 = vunpack.c.h.b16 %v10389
          %v10470 = vunpack.c.h.b16 %v10390
          %v10471 = vunpack.c.l.b16 %v10391
          %v10472 = vunpack.c.l.b16 %v10392
          %v10473 = vunpack.c.h.b16 %v10391
          %v10474 = vunpack.c.h.b16 %v10392
          %v10475 = vunpack.c.l.b16 %v10393
          %v10476 = vunpack.c.l.b16 %v10394
          %v10477 = vunpack.c.h.b16 %v10393
          %v10478 = vunpack.c.h.b16 %v10394
          %v10479 = vunpack.c.l.b16 %v10395
          %v10480 = vunpack.c.l.b16 %v10396
          %v10481 = vunpack.c.h.b16 %v10395
          %v10482 = vunpack.c.h.b16 %v10396
          %v10483 = vunpack.c.l.b16 %v10397
          %v10484 = vunpack.c.l.b16 %v10398
          %v10485 = vunpack.c.h.b16 %v10397
          %v10486 = vunpack.c.h.b16 %v10398
          %v10487 = vunpack.c.l.b16 %v10399
          %v10488 = vunpack.c.l.b16 %v10400
          %v10489 = vunpack.c.h.b16 %v10399
          %v10490 = vunpack.c.h.b16 %v10400
          %v10491 = vunpack.c.l.b16 %v10401
          %v10492 = vunpack.c.l.b16 %v10402
          %v10493 = vunpack.c.h.b16 %v10401
          %v10494 = vunpack.c.h.b16 %v10402
          %v10495 = vunpack.c.l.b16 %v10403
          %v10496 = vunpack.c.l.b16 %v10404
          %v10497 = vunpack.c.h.b16 %v10403
          %v10498 = vunpack.c.h.b16 %v10404
          %v10499 = vunpack.c.l.b16 %v10405
          %v10500 = vunpack.c.l.b16 %v10406
          %v10501 = vunpack.c.h.b16 %v10405
          %v10502 = vunpack.c.h.b16 %v10406
          %v10503 = vpack.c.b16 %v10440, %v10439
          %v10504 = vpack.c.b16 %v10442, %v10441
          %v10505 = vpack.c.b16 %v10444, %v10443
          %v10506 = vpack.c.b16 %v10446, %v10445
          %v10507 = vpack.c.b16 %v10448, %v10447
          %v10508 = vpack.c.b16 %v10450, %v10449
          %v10509 = vpack.c.b16 %v10452, %v10451
          %v10510 = vpack.c.b16 %v10454, %v10453
          %v10511 = vpack.c.b16 %v10456, %v10455
          %v10512 = vpack.c.b16 %v10458, %v10457
          %v10513 = vpack.c.b16 %v10460, %v10459
          %v10514 = vpack.c.b16 %v10462, %v10461
          %v10515 = vpack.c.b16 %v10464, %v10463
          %v10516 = vpack.c.b16 %v10466, %v10465
          %v10517 = vpack.c.b16 %v10468, %v10467
          %v10518 = vpack.c.b16 %v10470, %v10469
          %v10519 = vpack.c.b16 %v10472, %v10471
          %v10520 = vpack.c.b16 %v10474, %v10473
          %v10521 = vpack.c.b16 %v10476, %v10475
          %v10522 = vpack.c.b16 %v10478, %v10477
          %v10523 = vpack.c.b16 %v10480, %v10479
          %v10524 = vpack.c.b16 %v10482, %v10481
          %v10525 = vpack.c.b16 %v10484, %v10483
          %v10526 = vpack.c.b16 %v10486, %v10485
          %v10527 = vpack.c.b16 %v10488, %v10487
          %v10528 = vpack.c.b16 %v10490, %v10489
          %v10529 = vpack.c.b16 %v10492, %v10491
          %v10530 = vpack.c.b16 %v10494, %v10493
          %v10531 = vpack.c.b16 %v10496, %v10495
          %v10532 = vpack.c.b16 %v10498, %v10497
          %v10533 = vpack.c.b16 %v10500, %v10499
          %v10534 = vpack.c.b16 %v10502, %v10501
          %v10536 = vshrl.u32 %v10503, 16
          %v10538 = vrot.slane %v10536, 4
          %v10539 = vshll.u32 %v10503, 16
          %v10541 = vrot.slane %v10539, 5
          %v10542 = vor.u32 %v10538, %v10541
          %v10543 = vrot.slane %v10542, 4
          %v10545 = vshll.u32 %v10504, 16
          %v10547 = vrot.slane %v10545, 5
          %v10548 = vsel %vm7146, %v10543, %v10547
          %v10550 = vshrl.u32 %v10505, 16
          %v10552 = vrot.slane %v10550, 4
          %v10553 = vshll.u32 %v10505, 16
          %v10555 = vrot.slane %v10553, 5
          %v10556 = vor.u32 %v10552, %v10555
          %v10557 = vrot.slane %v10556, 4
          %v10559 = vshll.u32 %v10506, 16
          %v10561 = vrot.slane %v10559, 5
          %v10562 = vsel %vm7146, %v10557, %v10561
          %v10564 = vshrl.u32 %v10507, 16
          %v10566 = vrot.slane %v10564, 4
          %v10567 = vshll.u32 %v10507, 16
          %v10569 = vrot.slane %v10567, 5
          %v10570 = vor.u32 %v10566, %v10569
          %v10571 = vrot.slane %v10570, 4
          %v10573 = vshll.u32 %v10508, 16
          %v10575 = vrot.slane %v10573, 5
          %v10576 = vsel %vm7146, %v10571, %v10575
          %v10578 = vshrl.u32 %v10509, 16
          %v10580 = vrot.slane %v10578, 4
          %v10581 = vshll.u32 %v10509, 16
          %v10583 = vrot.slane %v10581, 5
          %v10584 = vor.u32 %v10580, %v10583
          %v10585 = vrot.slane %v10584, 4
          %v10587 = vshll.u32 %v10510, 16
          %v10589 = vrot.slane %v10587, 5
          %v10590 = vsel %vm7146, %v10585, %v10589
          %v10592 = vshrl.u32 %v10511, 16
          %v10594 = vrot.slane %v10592, 4
          %v10595 = vshll.u32 %v10511, 16
          %v10597 = vrot.slane %v10595, 5
          %v10598 = vor.u32 %v10594, %v10597
          %v10599 = vrot.slane %v10598, 4
          %v10601 = vshll.u32 %v10512, 16
          %v10603 = vrot.slane %v10601, 5
          %v10604 = vsel %vm7146, %v10599, %v10603
          %v10606 = vshrl.u32 %v10513, 16
          %v10608 = vrot.slane %v10606, 4
          %v10609 = vshll.u32 %v10513, 16
          %v10611 = vrot.slane %v10609, 5
          %v10612 = vor.u32 %v10608, %v10611
          %v10613 = vrot.slane %v10612, 4
          %v10615 = vshll.u32 %v10514, 16
          %v10617 = vrot.slane %v10615, 5
          %v10618 = vsel %vm7146, %v10613, %v10617
          %v10620 = vshrl.u32 %v10515, 16
          %v10622 = vrot.slane %v10620, 4
          %v10623 = vshll.u32 %v10515, 16
          %v10625 = vrot.slane %v10623, 5
          %v10626 = vor.u32 %v10622, %v10625
          %v10627 = vrot.slane %v10626, 4
          %v10629 = vshll.u32 %v10516, 16
          %v10631 = vrot.slane %v10629, 5
          %v10632 = vsel %vm7146, %v10627, %v10631
          %v10634 = vshrl.u32 %v10517, 16
          %v10636 = vrot.slane %v10634, 4
          %v10637 = vshll.u32 %v10517, 16
          %v10639 = vrot.slane %v10637, 5
          %v10640 = vor.u32 %v10636, %v10639
          %v10641 = vrot.slane %v10640, 4
          %v10643 = vshll.u32 %v10518, 16
          %v10645 = vrot.slane %v10643, 5
          %v10646 = vsel %vm7146, %v10641, %v10645
          %v10648 = vshrl.u32 %v10519, 16
          %v10650 = vrot.slane %v10648, 4
          %v10651 = vshll.u32 %v10519, 16
          %v10653 = vrot.slane %v10651, 5
          %v10654 = vor.u32 %v10650, %v10653
          %v10655 = vrot.slane %v10654, 4
          %v10657 = vshll.u32 %v10520, 16
          %v10659 = vrot.slane %v10657, 5
          %v10660 = vsel %vm7146, %v10655, %v10659
          %v10662 = vshrl.u32 %v10521, 16
          %v10664 = vrot.slane %v10662, 4
          %v10665 = vshll.u32 %v10521, 16
          %v10667 = vrot.slane %v10665, 5
          %v10668 = vor.u32 %v10664, %v10667
          %v10669 = vrot.slane %v10668, 4
          %v10671 = vshll.u32 %v10522, 16
          %v10673 = vrot.slane %v10671, 5
          %v10674 = vsel %vm7146, %v10669, %v10673
          %v10676 = vshrl.u32 %v10523, 16
          %v10678 = vrot.slane %v10676, 4
          %v10679 = vshll.u32 %v10523, 16
          %v10681 = vrot.slane %v10679, 5
          %v10682 = vor.u32 %v10678, %v10681
          %v10683 = vrot.slane %v10682, 4
          %v10685 = vshll.u32 %v10524, 16
          %v10687 = vrot.slane %v10685, 5
          %v10688 = vsel %vm7146, %v10683, %v10687
          %v10690 = vshrl.u32 %v10525, 16
          %v10692 = vrot.slane %v10690, 4
          %v10693 = vshll.u32 %v10525, 16
          %v10695 = vrot.slane %v10693, 5
          %v10696 = vor.u32 %v10692, %v10695
          %v10697 = vrot.slane %v10696, 4
          %v10699 = vshll.u32 %v10526, 16
          %v10701 = vrot.slane %v10699, 5
          %v10702 = vsel %vm7146, %v10697, %v10701
          %v10704 = vshrl.u32 %v10527, 16
          %v10706 = vrot.slane %v10704, 4
          %v10707 = vshll.u32 %v10527, 16
          %v10709 = vrot.slane %v10707, 5
          %v10710 = vor.u32 %v10706, %v10709
          %v10711 = vrot.slane %v10710, 4
          %v10713 = vshll.u32 %v10528, 16
          %v10715 = vrot.slane %v10713, 5
          %v10716 = vsel %vm7146, %v10711, %v10715
          %v10718 = vshrl.u32 %v10529, 16
          %v10720 = vrot.slane %v10718, 4
          %v10721 = vshll.u32 %v10529, 16
          %v10723 = vrot.slane %v10721, 5
          %v10724 = vor.u32 %v10720, %v10723
          %v10725 = vrot.slane %v10724, 4
          %v10727 = vshll.u32 %v10530, 16
          %v10729 = vrot.slane %v10727, 5
          %v10730 = vsel %vm7146, %v10725, %v10729
          %v10732 = vshrl.u32 %v10531, 16
          %v10734 = vrot.slane %v10732, 4
          %v10735 = vshll.u32 %v10531, 16
          %v10737 = vrot.slane %v10735, 5
          %v10738 = vor.u32 %v10734, %v10737
          %v10739 = vrot.slane %v10738, 4
          %v10741 = vshll.u32 %v10532, 16
          %v10743 = vrot.slane %v10741, 5
          %v10744 = vsel %vm7146, %v10739, %v10743
          %v10746 = vshrl.u32 %v10533, 16
          %v10748 = vrot.slane %v10746, 4
          %v10749 = vshll.u32 %v10533, 16
          %v10751 = vrot.slane %v10749, 5
          %v10752 = vor.u32 %v10748, %v10751
          %v10753 = vrot.slane %v10752, 4
          %v10755 = vshll.u32 %v10534, 16
          %v10757 = vrot.slane %v10755, 5
          %v10758 = vsel %vm7146, %v10753, %v10757
          %v10759 = vld [vmem:[#allocation9 + $0x380] sm:$0xf]
          %v10760 = vld [vmem:[#allocation9 + $0x384] sm:$0xf]
          %v10761 = vld [vmem:[#allocation9 + $0x388] sm:$0xf]
          %v10762 = vld [vmem:[#allocation9 + $0x38c] sm:$0xf]
          %v10763 = vld [vmem:[#allocation9 + $0x390] sm:$0xf]
          %v10764 = vld [vmem:[#allocation9 + $0x394] sm:$0xf]
          %v10765 = vld [vmem:[#allocation9 + $0x398] sm:$0xf]
          %v10766 = vld [vmem:[#allocation9 + $0x39c] sm:$0xf]
          %v10767 = vld [vmem:[#allocation9 + $0x3a0] sm:$0xf]
          %v10768 = vld [vmem:[#allocation9 + $0x3a4] sm:$0xf]
          %v10769 = vld [vmem:[#allocation9 + $0x3a8] sm:$0xf]
          %v10770 = vld [vmem:[#allocation9 + $0x3ac] sm:$0xf]
          %v10771 = vld [vmem:[#allocation9 + $0x3b0] sm:$0xf]
          %v10772 = vld [vmem:[#allocation9 + $0x3b4] sm:$0xf]
          %v10773 = vld [vmem:[#allocation9 + $0x3b8] sm:$0xf]
          %v10774 = vld [vmem:[#allocation9 + $0x3bc] sm:$0xf]
          %v10775 = vld [vmem:[#allocation9 + $0x3c0] sm:$0xf]
          %v10776 = vld [vmem:[#allocation9 + $0x3c4] sm:$0xf]
          %v10777 = vld [vmem:[#allocation9 + $0x3c8] sm:$0xf]
          %v10778 = vld [vmem:[#allocation9 + $0x3cc] sm:$0xf]
          %v10779 = vld [vmem:[#allocation9 + $0x3d0] sm:$0xf]
          %v10780 = vld [vmem:[#allocation9 + $0x3d4] sm:$0xf]
          %v10781 = vld [vmem:[#allocation9 + $0x3d8] sm:$0xf]
          %v10782 = vld [vmem:[#allocation9 + $0x3dc] sm:$0xf]
          %v10783 = vld [vmem:[#allocation9 + $0x3e0] sm:$0xf]
          %v10784 = vld [vmem:[#allocation9 + $0x3e4] sm:$0xf]
          %v10785 = vld [vmem:[#allocation9 + $0x3e8] sm:$0xf]
          %v10786 = vld [vmem:[#allocation9 + $0x3ec] sm:$0xf]
          %v10787 = vld [vmem:[#allocation9 + $0x3f0] sm:$0xf]
          %v10788 = vld [vmem:[#allocation9 + $0x3f4] sm:$0xf]
          %v10789 = vld [vmem:[#allocation9 + $0x3f8] sm:$0xf]
          %v10790 = vld [vmem:[#allocation9 + $0x3fc] sm:$0xf]
          %v10791 = vunpack.c.l.b16 %v10548
          %v10792 = vunpack.c.h.b16 %v10548
          %v10793 = vunpack.c.l.b16 %v10562
          %v10794 = vunpack.c.h.b16 %v10562
          %v10795 = vunpack.c.l.b16 %v10576
          %v10796 = vunpack.c.h.b16 %v10576
          %v10797 = vunpack.c.l.b16 %v10590
          %v10798 = vunpack.c.h.b16 %v10590
          %v10799 = vunpack.c.l.b16 %v10604
          %v10800 = vunpack.c.h.b16 %v10604
          %v10801 = vunpack.c.l.b16 %v10618
          %v10802 = vunpack.c.h.b16 %v10618
          %v10803 = vunpack.c.l.b16 %v10632
          %v10804 = vunpack.c.h.b16 %v10632
          %v10805 = vunpack.c.l.b16 %v10646
          %v10806 = vunpack.c.h.b16 %v10646
          %v10807 = vunpack.c.l.b16 %v10660
          %v10808 = vunpack.c.h.b16 %v10660
          %v10809 = vunpack.c.l.b16 %v10674
          %v10810 = vunpack.c.h.b16 %v10674
          %v10811 = vunpack.c.l.b16 %v10688
          %v10812 = vunpack.c.h.b16 %v10688
          %v10813 = vunpack.c.l.b16 %v10702
          %v10814 = vunpack.c.h.b16 %v10702
          %v10815 = vunpack.c.l.b16 %v10716
          %v10816 = vunpack.c.h.b16 %v10716
          %v10817 = vunpack.c.l.b16 %v10730
          %v10818 = vunpack.c.h.b16 %v10730
          %v10819 = vunpack.c.l.b16 %v10744
          %v10820 = vunpack.c.h.b16 %v10744
          %v10821 = vunpack.c.l.b16 %v10758
          %v10822 = vunpack.c.h.b16 %v10758
          %v10823 = vpack.c.b16 %v10793, %v10791
          %v10824 = vpack.c.b16 %v10794, %v10792
          %v10825 = vpack.c.b16 %v10797, %v10795
          %v10826 = vpack.c.b16 %v10798, %v10796
          %v10827 = vpack.c.b16 %v10801, %v10799
          %v10828 = vpack.c.b16 %v10802, %v10800
          %v10829 = vpack.c.b16 %v10805, %v10803
          %v10830 = vpack.c.b16 %v10806, %v10804
          %v10831 = vpack.c.b16 %v10809, %v10807
          %v10832 = vpack.c.b16 %v10810, %v10808
          %v10833 = vpack.c.b16 %v10813, %v10811
          %v10834 = vpack.c.b16 %v10814, %v10812
          %v10835 = vpack.c.b16 %v10817, %v10815
          %v10836 = vpack.c.b16 %v10818, %v10816
          %v10837 = vpack.c.b16 %v10821, %v10819
          %v10838 = vpack.c.b16 %v10822, %v10820
          %v10887 = vunpack.c.l.b16 %v10759
          %v10888 = vunpack.c.l.b16 %v10760
          %v10889 = vunpack.c.l.b16 %v10761
          %v10890 = vunpack.c.l.b16 %v10762
          %v10891 = vunpack.c.l.b16 %v10763
          %v10892 = vunpack.c.l.b16 %v10764
          %v10893 = vunpack.c.l.b16 %v10765
          %v10894 = vunpack.c.l.b16 %v10766
          %v10895 = vunpack.c.l.b16 %v10767
          %v10896 = vunpack.c.l.b16 %v10768
          %v10897 = vunpack.c.l.b16 %v10769
          %v10898 = vunpack.c.l.b16 %v10770
          %v10899 = vunpack.c.l.b16 %v10771
          %v10900 = vunpack.c.l.b16 %v10772
          %v10901 = vunpack.c.l.b16 %v10773
          %v10902 = vunpack.c.l.b16 %v10774
          %v10903 = vunpack.c.l.b16 %v10775
          %v10904 = vunpack.c.l.b16 %v10776
          %v10905 = vunpack.c.l.b16 %v10777
          %v10906 = vunpack.c.l.b16 %v10778
          %v10907 = vunpack.c.l.b16 %v10779
          %v10908 = vunpack.c.l.b16 %v10780
          %v10909 = vunpack.c.l.b16 %v10781
          %v10910 = vunpack.c.l.b16 %v10782
          %v10911 = vunpack.c.l.b16 %v10783
          %v10912 = vunpack.c.l.b16 %v10784
          %v10913 = vunpack.c.l.b16 %v10785
          %v10914 = vunpack.c.l.b16 %v10786
          %v10915 = vunpack.c.l.b16 %v10787
          %v10916 = vunpack.c.l.b16 %v10788
          %v10917 = vunpack.c.l.b16 %v10789
          %v10918 = vunpack.c.l.b16 %v10790
          %v10919 = vpack.c.b16 %v10888, %v10887
          %v10920 = vpack.c.b16 %v10890, %v10889
          %v10921 = vpack.c.b16 %v10892, %v10891
          %v10922 = vpack.c.b16 %v10894, %v10893
          %v10923 = vpack.c.b16 %v10896, %v10895
          %v10924 = vpack.c.b16 %v10898, %v10897
          %v10925 = vpack.c.b16 %v10900, %v10899
          %v10926 = vpack.c.b16 %v10902, %v10901
          %v10927 = vpack.c.b16 %v10904, %v10903
          %v10928 = vpack.c.b16 %v10906, %v10905
          %v10929 = vpack.c.b16 %v10908, %v10907
          %v10930 = vpack.c.b16 %v10910, %v10909
          %v10931 = vpack.c.b16 %v10912, %v10911
          %v10932 = vpack.c.b16 %v10914, %v10913
          %v10933 = vpack.c.b16 %v10916, %v10915
          %v10934 = vpack.c.b16 %v10918, %v10917
          %10951 = vmatprep.subr.bf16.mxu0 0
          %10952 = vmatpush1.bf16.msra.mxu0 %v10919
          %10953 = vmatprep.subr.bf16.mxu0 0
          %10954 = vmatpush1.bf16.msra.mxu0 %v10920
          %10955 = vmatprep.subr.bf16.mxu0 0
          %10956 = vmatpush1.bf16.msra.mxu0 %v10921
          %10957 = vmatprep.subr.bf16.mxu0 0
          %10958 = vmatpush1.bf16.msra.mxu0 %v10922
          %10959 = vmatprep.subr.bf16.mxu0 0
          %10960 = vmatpush1.bf16.msra.mxu0 %v10923
          %10961 = vmatprep.subr.bf16.mxu0 0
          %10962 = vmatpush1.bf16.msra.mxu0 %v10924
          %10963 = vmatprep.subr.bf16.mxu0 0
          %10964 = vmatpush1.bf16.msra.mxu0 %v10925
          %10965 = vmatprep.subr.bf16.mxu0 0
          %10966 = vmatpush1.bf16.msra.mxu0 %v10926
          %10967 = vmatprep.subr.bf16.mxu0 0
          %10968 = vmatpush1.bf16.msra.mxu0 %v10927
          %10969 = vmatprep.subr.bf16.mxu0 0
          %10970 = vmatpush1.bf16.msra.mxu0 %v10928
          %10971 = vmatprep.subr.bf16.mxu0 0
          %10972 = vmatpush1.bf16.msra.mxu0 %v10929
          %10973 = vmatprep.subr.bf16.mxu0 0
          %10974 = vmatpush1.bf16.msra.mxu0 %v10930
          %10975 = vmatprep.subr.bf16.mxu0 0
          %10976 = vmatpush1.bf16.msra.mxu0 %v10931
          %10977 = vmatprep.subr.bf16.mxu0 0
          %10978 = vmatpush1.bf16.msra.mxu0 %v10932
          %10979 = vmatprep.subr.bf16.mxu0 0
          %10980 = vmatpush1.bf16.msra.mxu0 %v10933
          %10981 = vmatprep.subr.bf16.mxu0 0
          %10982 = vmatpush1.bf16.msra.mxu0 %v10934
          %10983 = vmatprep.mubr.bf16.mxu0 %v10824
          %10984 = vmatmul.mubr.bf16.gmra.mrb[0].mxu0 %v10823
          %v10985 = vpop.f32.mrb[0].mxu0
          %v10986 = vadd.f32 0.0, %v10985
          %v10987 = vpop.f32.mrb[0].mxu0
          %v10988 = vpop.f32.mrb[0].mxu0
          %v10989 = vadd.f32 0.0, %v10988
          %v10990 = vpop.f32.mrb[0].mxu0
          %10991 = vmatprep.mubr.bf16.mxu0 %v10826
          %10992 = vmatmul.mubr.bf16.gmra.mrb[0].mxu0 %v10825
          %v10993 = vpop.f32.mrb[0].mxu0
          %v10994 = vadd.f32 0.0, %v10993
          %v10995 = vpop.f32.mrb[0].mxu0
          %v10996 = vpop.f32.mrb[0].mxu0
          %v10997 = vadd.f32 0.0, %v10996
          %v10998 = vpop.f32.mrb[0].mxu0
          %10999 = vmatprep.mubr.bf16.mxu0 %v10828
          %11000 = vmatmul.mubr.bf16.gmra.mrb[0].mxu0 %v10827
          %v11001 = vpop.f32.mrb[0].mxu0
          %v11002 = vadd.f32 0.0, %v11001
          %v11003 = vpop.f32.mrb[0].mxu0
          %v11004 = vpop.f32.mrb[0].mxu0
          %v11005 = vadd.f32 0.0, %v11004
          %v11006 = vpop.f32.mrb[0].mxu0
          %11007 = vmatprep.mubr.bf16.mxu0 %v10830
          %11008 = vmatmul.mubr.bf16.gmra.mrb[0].mxu0 %v10829
          %v11009 = vpop.f32.mrb[0].mxu0
          %v11010 = vadd.f32 0.0, %v11009
          %v11011 = vpop.f32.mrb[0].mxu0
          %v11012 = vpop.f32.mrb[0].mxu0
          %v11013 = vadd.f32 0.0, %v11012
          %v11014 = vpop.f32.mrb[0].mxu0
          %11015 = vmatprep.mubr.bf16.mxu0 %v10832
          %11016 = vmatmul.mubr.bf16.gmra.mrb[0].mxu0 %v10831
          %v11017 = vpop.f32.mrb[0].mxu0
          %v11018 = vadd.f32 0.0, %v11017
          %v11019 = vpop.f32.mrb[0].mxu0
          %v11020 = vpop.f32.mrb[0].mxu0
          %v11021 = vadd.f32 0.0, %v11020
          %v11022 = vpop.f32.mrb[0].mxu0
          %11023 = vmatprep.mubr.bf16.mxu0 %v10834
          %11024 = vmatmul.mubr.bf16.gmra.mrb[0].mxu0 %v10833
          %v11025 = vpop.f32.mrb[0].mxu0
          %v11026 = vadd.f32 0.0, %v11025
          %v11027 = vpop.f32.mrb[0].mxu0
          %v11028 = vpop.f32.mrb[0].mxu0
          %v11029 = vadd.f32 0.0, %v11028
          %v11030 = vpop.f32.mrb[0].mxu0
          %11031 = vmatprep.mubr.bf16.mxu0 %v10836
          %11032 = vmatmul.mubr.bf16.gmra.mrb[0].mxu0 %v10835
          %v11033 = vpop.f32.mrb[0].mxu0
          %v11034 = vadd.f32 0.0, %v11033
          %v11035 = vpop.f32.mrb[0].mxu0
          %v11036 = vpop.f32.mrb[0].mxu0
          %v11037 = vadd.f32 0.0, %v11036
          %v11038 = vpop.f32.mrb[0].mxu0
          %11039 = vmatprep.mubr.bf16.mxu0 %v10838
          %11040 = vmatmul.mubr.bf16.gmra.mrb[0].mxu0 %v10837
          %v11041 = vpop.f32.mrb[0].mxu0
          %v11042 = vadd.f32 0.0, %v11041
          %v11043 = vpop.f32.mrb[0].mxu0
          %v11044 = vpop.f32.mrb[0].mxu0
          %v11045 = vadd.f32 0.0, %v11044
          %v11046 = vpop.f32.mrb[0].mxu0
          %11047 = vdwg.mxu0
          %v11048 = vadd.f32 %v10359, %v10986
          %v11049 = vadd.f32 %v10360, %v10989
          %v11050 = vadd.f32 %v10361, %v10994
          %v11051 = vadd.f32 %v10362, %v10997
          %v11052 = vadd.f32 %v10363, %v11002
          %v11053 = vadd.f32 %v10364, %v11005
          %v11054 = vadd.f32 %v10365, %v11010
          %v11055 = vadd.f32 %v10366, %v11013
          %v11056 = vadd.f32 %v10367, %v11018
          %v11057 = vadd.f32 %v10368, %v11021
          %v11058 = vadd.f32 %v10369, %v11026
          %v11059 = vadd.f32 %v10370, %v11029
          %v11060 = vadd.f32 %v10371, %v11034
          %v11061 = vadd.f32 %v10372, %v11037
          %v11062 = vadd.f32 %v10373, %v11042
          %v11063 = vadd.f32 %v10374, %v11045
          %v11064 = vld [vmem:[%s10005] sm:$0x1e]
          %v11065 = vld [vmem:[%s10005 + $0x8] sm:$0x1e]
          %v11066 = vld [vmem:[%s10005 + $0x10] sm:$0x1e]
          %v11067 = vld [vmem:[%s10005 + $0x18] sm:$0x1e]
          %v11068 = vld [vmem:[%s10005 + $0x20] sm:$0x1e]
          %v11069 = vld [vmem:[%s10005 + $0x28] sm:$0x1e]
          %v11070 = vld [vmem:[%s10005 + $0x30] sm:$0x1e]
          %v11071 = vld [vmem:[%s10005 + $0x38] sm:$0x1e]
          %v11072 = vld [vmem:[%s10005 + $0x40] sm:$0x1e]
          %v11073 = vld [vmem:[%s10005 + $0x48] sm:$0x1e]
          %v11074 = vld [vmem:[%s10005 + $0x50] sm:$0x1e]
          %v11075 = vld [vmem:[%s10005 + $0x58] sm:$0x1e]
          %v11076 = vld [vmem:[%s10005 + $0x60] sm:$0x1e]
          %v11077 = vld [vmem:[%s10005 + $0x68] sm:$0x1e]
          %v11078 = vld [vmem:[%s10005 + $0x70] sm:$0x1e]
          %v11079 = vld [vmem:[%s10005 + $0x78] sm:$0x1e]
          %v11080 = vld [vmem:[%s10005 + $0xa0] sm:$0x1e]
          %v11081 = vld [vmem:[%s10005 + $0xa8] sm:$0x1e]
          %v11082 = vld [vmem:[%s10005 + $0xb0] sm:$0x1e]
          %v11083 = vld [vmem:[%s10005 + $0xb8] sm:$0x1e]
          %v11084 = vld [vmem:[%s10005 + $0xc0] sm:$0x1e]
          %v11085 = vld [vmem:[%s10005 + $0xc8] sm:$0x1e]
          %v11086 = vld [vmem:[%s10005 + $0xd0] sm:$0x1e]
          %v11087 = vld [vmem:[%s10005 + $0xd8] sm:$0x1e]
          %v11088 = vld [vmem:[%s10005 + $0xe0] sm:$0x1e]
          %v11089 = vld [vmem:[%s10005 + $0xe8] sm:$0x1e]
          %v11090 = vld [vmem:[%s10005 + $0xf0] sm:$0x1e]
          %v11091 = vld [vmem:[%s10005 + $0xf8] sm:$0x1e]
          %v11092 = vld [vmem:[%s10005 + $0x100] sm:$0x1e]
          %v11093 = vld [vmem:[%s10005 + $0x108] sm:$0x1e]
          %v11094 = vld [vmem:[%s10005 + $0x110] sm:$0x1e]
          %v11095 = vld [vmem:[%s10005 + $0x118] sm:$0x1e]
          %v11128 = vunpack.c.l.b16 %v11064
          %v11129 = vunpack.c.l.b16 %v11065
          %v11130 = vunpack.c.h.b16 %v11064
          %v11131 = vunpack.c.h.b16 %v11065
          %v11132 = vunpack.c.l.b16 %v11066
          %v11133 = vunpack.c.l.b16 %v11067
          %v11134 = vunpack.c.h.b16 %v11066
          %v11135 = vunpack.c.h.b16 %v11067
          %v11136 = vunpack.c.l.b16 %v11068
          %v11137 = vunpack.c.l.b16 %v11069
          %v11138 = vunpack.c.h.b16 %v11068
          %v11139 = vunpack.c.h.b16 %v11069
          %v11140 = vunpack.c.l.b16 %v11070
          %v11141 = vunpack.c.l.b16 %v11071
          %v11142 = vunpack.c.h.b16 %v11070
          %v11143 = vunpack.c.h.b16 %v11071
          %v11144 = vunpack.c.l.b16 %v11072
          %v11145 = vunpack.c.l.b16 %v11073
          %v11146 = vunpack.c.h.b16 %v11072
          %v11147 = vunpack.c.h.b16 %v11073
          %v11148 = vunpack.c.l.b16 %v11074
          %v11149 = vunpack.c.l.b16 %v11075
          %v11150 = vunpack.c.h.b16 %v11074
          %v11151 = vunpack.c.h.b16 %v11075
          %v11152 = vunpack.c.l.b16 %v11076
          %v11153 = vunpack.c.l.b16 %v11077
          %v11154 = vunpack.c.h.b16 %v11076
          %v11155 = vunpack.c.h.b16 %v11077
          %v11156 = vunpack.c.l.b16 %v11078
          %v11157 = vunpack.c.l.b16 %v11079
          %v11158 = vunpack.c.h.b16 %v11078
          %v11159 = vunpack.c.h.b16 %v11079
          %v11160 = vunpack.c.l.b16 %v11080
          %v11161 = vunpack.c.l.b16 %v11081
          %v11162 = vunpack.c.h.b16 %v11080
          %v11163 = vunpack.c.h.b16 %v11081
          %v11164 = vunpack.c.l.b16 %v11082
          %v11165 = vunpack.c.l.b16 %v11083
          %v11166 = vunpack.c.h.b16 %v11082
          %v11167 = vunpack.c.h.b16 %v11083
          %v11168 = vunpack.c.l.b16 %v11084
          %v11169 = vunpack.c.l.b16 %v11085
          %v11170 = vunpack.c.h.b16 %v11084
          %v11171 = vunpack.c.h.b16 %v11085
          %v11172 = vunpack.c.l.b16 %v11086
          %v11173 = vunpack.c.l.b16 %v11087
          %v11174 = vunpack.c.h.b16 %v11086
          %v11175 = vunpack.c.h.b16 %v11087
          %v11176 = vunpack.c.l.b16 %v11088
          %v11177 = vunpack.c.l.b16 %v11089
          %v11178 = vunpack.c.h.b16 %v11088
          %v11179 = vunpack.c.h.b16 %v11089
          %v11180 = vunpack.c.l.b16 %v11090
          %v11181 = vunpack.c.l.b16 %v11091
          %v11182 = vunpack.c.h.b16 %v11090
          %v11183 = vunpack.c.h.b16 %v11091
          %v11184 = vunpack.c.l.b16 %v11092
          %v11185 = vunpack.c.l.b16 %v11093
          %v11186 = vunpack.c.h.b16 %v11092
          %v11187 = vunpack.c.h.b16 %v11093
          %v11188 = vunpack.c.l.b16 %v11094
          %v11189 = vunpack.c.l.b16 %v11095
          %v11190 = vunpack.c.h.b16 %v11094
          %v11191 = vunpack.c.h.b16 %v11095
          %v11192 = vpack.c.b16 %v11129, %v11128
          %v11193 = vpack.c.b16 %v11131, %v11130
          %v11194 = vpack.c.b16 %v11133, %v11132
          %v11195 = vpack.c.b16 %v11135, %v11134
          %v11196 = vpack.c.b16 %v11137, %v11136
          %v11197 = vpack.c.b16 %v11139, %v11138
          %v11198 = vpack.c.b16 %v11141, %v11140
          %v11199 = vpack.c.b16 %v11143, %v11142
          %v11200 = vpack.c.b16 %v11145, %v11144
          %v11201 = vpack.c.b16 %v11147, %v11146
          %v11202 = vpack.c.b16 %v11149, %v11148
          %v11203 = vpack.c.b16 %v11151, %v11150
          %v11204 = vpack.c.b16 %v11153, %v11152
          %v11205 = vpack.c.b16 %v11155, %v11154
          %v11206 = vpack.c.b16 %v11157, %v11156
          %v11207 = vpack.c.b16 %v11159, %v11158
          %v11208 = vpack.c.b16 %v11161, %v11160
          %v11209 = vpack.c.b16 %v11163, %v11162
          %v11210 = vpack.c.b16 %v11165, %v11164
          %v11211 = vpack.c.b16 %v11167, %v11166
          %v11212 = vpack.c.b16 %v11169, %v11168
          %v11213 = vpack.c.b16 %v11171, %v11170
          %v11214 = vpack.c.b16 %v11173, %v11172
          %v11215 = vpack.c.b16 %v11175, %v11174
          %v11216 = vpack.c.b16 %v11177, %v11176
          %v11217 = vpack.c.b16 %v11179, %v11178
          %v11218 = vpack.c.b16 %v11181, %v11180
          %v11219 = vpack.c.b16 %v11183, %v11182
          %v11220 = vpack.c.b16 %v11185, %v11184
          %v11221 = vpack.c.b16 %v11187, %v11186
          %v11222 = vpack.c.b16 %v11189, %v11188
          %v11223 = vpack.c.b16 %v11191, %v11190
          %v11224 = vrot.slane %v11192, 5
          %v11225 = vrot.slane %v11224, 4
          %v11226 = vrot.slane %v11193, 5
          %v11227 = vsel %vm8047, %v11225, %v11226
          %v11228 = vrot.slane %v11194, 5
          %v11229 = vrot.slane %v11228, 4
          %v11230 = vrot.slane %v11195, 5
          %v11231 = vsel %vm8047, %v11229, %v11230
          %v11232 = vrot.slane %v11196, 5
          %v11233 = vrot.slane %v11232, 4
          %v11234 = vrot.slane %v11197, 5
          %v11235 = vsel %vm8047, %v11233, %v11234
          %v11236 = vrot.slane %v11198, 5
          %v11237 = vrot.slane %v11236, 4
          %v11238 = vrot.slane %v11199, 5
          %v11239 = vsel %vm8047, %v11237, %v11238
          %v11240 = vrot.slane %v11200, 5
          %v11241 = vrot.slane %v11240, 4
          %v11242 = vrot.slane %v11201, 5
          %v11243 = vsel %vm8047, %v11241, %v11242
          %v11244 = vrot.slane %v11202, 5
          %v11245 = vrot.slane %v11244, 4
          %v11246 = vrot.slane %v11203, 5
          %v11247 = vsel %vm8047, %v11245, %v11246
          %v11248 = vrot.slane %v11204, 5
          %v11249 = vrot.slane %v11248, 4
          %v11250 = vrot.slane %v11205, 5
          %v11251 = vsel %vm8047, %v11249, %v11250
          %v11252 = vrot.slane %v11206, 5
          %v11253 = vrot.slane %v11252, 4
          %v11254 = vrot.slane %v11207, 5
          %v11255 = vsel %vm8047, %v11253, %v11254
          %v11256 = vrot.slane %v11208, 5
          %v11257 = vrot.slane %v11256, 4
          %v11258 = vrot.slane %v11209, 5
          %v11259 = vsel %vm8047, %v11257, %v11258
          %v11260 = vrot.slane %v11210, 5
          %v11261 = vrot.slane %v11260, 4
          %v11262 = vrot.slane %v11211, 5
          %v11263 = vsel %vm8047, %v11261, %v11262
          %v11264 = vrot.slane %v11212, 5
          %v11265 = vrot.slane %v11264, 4
          %v11266 = vrot.slane %v11213, 5
          %v11267 = vsel %vm8047, %v11265, %v11266
          %v11268 = vrot.slane %v11214, 5
          %v11269 = vrot.slane %v11268, 4
          %v11270 = vrot.slane %v11215, 5
          %v11271 = vsel %vm8047, %v11269, %v11270
          %v11272 = vrot.slane %v11216, 5
          %v11273 = vrot.slane %v11272, 4
          %v11274 = vrot.slane %v11217, 5
          %v11275 = vsel %vm8047, %v11273, %v11274
          %v11276 = vrot.slane %v11218, 5
          %v11277 = vrot.slane %v11276, 4
          %v11278 = vrot.slane %v11219, 5
          %v11279 = vsel %vm8047, %v11277, %v11278
          %v11280 = vrot.slane %v11220, 5
          %v11281 = vrot.slane %v11280, 4
          %v11282 = vrot.slane %v11221, 5
          %v11283 = vsel %vm8047, %v11281, %v11282
          %v11284 = vrot.slane %v11222, 5
          %v11285 = vrot.slane %v11284, 4
          %v11286 = vrot.slane %v11223, 5
          %v11287 = vsel %vm8047, %v11285, %v11286
          %v11288 = vld [vmem:[#allocation9 + $0x400] sm:$0xf]
          %v11289 = vld [vmem:[#allocation9 + $0x404] sm:$0xf]
          %v11290 = vld [vmem:[#allocation9 + $0x408] sm:$0xf]
          %v11291 = vld [vmem:[#allocation9 + $0x40c] sm:$0xf]
          %v11292 = vld [vmem:[#allocation9 + $0x410] sm:$0xf]
          %v11293 = vld [vmem:[#allocation9 + $0x414] sm:$0xf]
          %v11294 = vld [vmem:[#allocation9 + $0x418] sm:$0xf]
          %v11295 = vld [vmem:[#allocation9 + $0x41c] sm:$0xf]
          %v11296 = vld [vmem:[#allocation9 + $0x420] sm:$0xf]
          %v11297 = vld [vmem:[#allocation9 + $0x424] sm:$0xf]
          %v11298 = vld [vmem:[#allocation9 + $0x428] sm:$0xf]
          %v11299 = vld [vmem:[#allocation9 + $0x42c] sm:$0xf]
          %v11300 = vld [vmem:[#allocation9 + $0x430] sm:$0xf]
          %v11301 = vld [vmem:[#allocation9 + $0x434] sm:$0xf]
          %v11302 = vld [vmem:[#allocation9 + $0x438] sm:$0xf]
          %v11303 = vld [vmem:[#allocation9 + $0x43c] sm:$0xf]
          %v11304 = vld [vmem:[#allocation9 + $0x440] sm:$0xf]
          %v11305 = vld [vmem:[#allocation9 + $0x444] sm:$0xf]
          %v11306 = vld [vmem:[#allocation9 + $0x448] sm:$0xf]
          %v11307 = vld [vmem:[#allocation9 + $0x44c] sm:$0xf]
          %v11308 = vld [vmem:[#allocation9 + $0x450] sm:$0xf]
          %v11309 = vld [vmem:[#allocation9 + $0x454] sm:$0xf]
          %v11310 = vld [vmem:[#allocation9 + $0x458] sm:$0xf]
          %v11311 = vld [vmem:[#allocation9 + $0x45c] sm:$0xf]
          %v11312 = vld [vmem:[#allocation9 + $0x460] sm:$0xf]
          %v11313 = vld [vmem:[#allocation9 + $0x464] sm:$0xf]
          %v11314 = vld [vmem:[#allocation9 + $0x468] sm:$0xf]
          %v11315 = vld [vmem:[#allocation9 + $0x46c] sm:$0xf]
          %v11316 = vld [vmem:[#allocation9 + $0x470] sm:$0xf]
          %v11317 = vld [vmem:[#allocation9 + $0x474] sm:$0xf]
          %v11318 = vld [vmem:[#allocation9 + $0x478] sm:$0xf]
          %v11319 = vld [vmem:[#allocation9 + $0x47c] sm:$0xf]
          %v11320 = vunpack.c.l.b16 %v11227
          %v11321 = vunpack.c.h.b16 %v11227
          %v11322 = vunpack.c.l.b16 %v11231
          %v11323 = vunpack.c.h.b16 %v11231
          %v11324 = vunpack.c.l.b16 %v11235
          %v11325 = vunpack.c.h.b16 %v11235
          %v11326 = vunpack.c.l.b16 %v11239
          %v11327 = vunpack.c.h.b16 %v11239
          %v11328 = vunpack.c.l.b16 %v11243
          %v11329 = vunpack.c.h.b16 %v11243
          %v11330 = vunpack.c.l.b16 %v11247
          %v11331 = vunpack.c.h.b16 %v11247
          %v11332 = vunpack.c.l.b16 %v11251
          %v11333 = vunpack.c.h.b16 %v11251
          %v11334 = vunpack.c.l.b16 %v11255
          %v11335 = vunpack.c.h.b16 %v11255
          %v11336 = vunpack.c.l.b16 %v11259
          %v11337 = vunpack.c.h.b16 %v11259
          %v11338 = vunpack.c.l.b16 %v11263
          %v11339 = vunpack.c.h.b16 %v11263
          %v11340 = vunpack.c.l.b16 %v11267
          %v11341 = vunpack.c.h.b16 %v11267
          %v11342 = vunpack.c.l.b16 %v11271
          %v11343 = vunpack.c.h.b16 %v11271
          %v11344 = vunpack.c.l.b16 %v11275
          %v11345 = vunpack.c.h.b16 %v11275
          %v11346 = vunpack.c.l.b16 %v11279
          %v11347 = vunpack.c.h.b16 %v11279
          %v11348 = vunpack.c.l.b16 %v11283
          %v11349 = vunpack.c.h.b16 %v11283
          %v11350 = vunpack.c.l.b16 %v11287
          %v11351 = vunpack.c.h.b16 %v11287
          %v11352 = vpack.c.b16 %v11322, %v11320
          %v11353 = vpack.c.b16 %v11323, %v11321
          %v11354 = vpack.c.b16 %v11326, %v11324
          %v11355 = vpack.c.b16 %v11327, %v11325
          %v11356 = vpack.c.b16 %v11330, %v11328
          %v11357 = vpack.c.b16 %v11331, %v11329
          %v11358 = vpack.c.b16 %v11334, %v11332
          %v11359 = vpack.c.b16 %v11335, %v11333
          %v11360 = vpack.c.b16 %v11338, %v11336
          %v11361 = vpack.c.b16 %v11339, %v11337
          %v11362 = vpack.c.b16 %v11342, %v11340
          %v11363 = vpack.c.b16 %v11343, %v11341
          %v11364 = vpack.c.b16 %v11346, %v11344
          %v11365 = vpack.c.b16 %v11347, %v11345
          %v11366 = vpack.c.b16 %v11350, %v11348
          %v11367 = vpack.c.b16 %v11351, %v11349
          %v11416 = vunpack.c.l.b16 %v11288
          %v11417 = vunpack.c.l.b16 %v11289
          %v11418 = vunpack.c.l.b16 %v11290
          %v11419 = vunpack.c.l.b16 %v11291
          %v11420 = vunpack.c.l.b16 %v11292
          %v11421 = vunpack.c.l.b16 %v11293
          %v11422 = vunpack.c.l.b16 %v11294
          %v11423 = vunpack.c.l.b16 %v11295
          %v11424 = vunpack.c.l.b16 %v11296
          %v11425 = vunpack.c.l.b16 %v11297
          %v11426 = vunpack.c.l.b16 %v11298
          %v11427 = vunpack.c.l.b16 %v11299
          %v11428 = vunpack.c.l.b16 %v11300
          %v11429 = vunpack.c.l.b16 %v11301
          %v11430 = vunpack.c.l.b16 %v11302
          %v11431 = vunpack.c.l.b16 %v11303
          %v11432 = vunpack.c.l.b16 %v11304
          %v11433 = vunpack.c.l.b16 %v11305
          %v11434 = vunpack.c.l.b16 %v11306
          %v11435 = vunpack.c.l.b16 %v11307
          %v11436 = vunpack.c.l.b16 %v11308
          %v11437 = vunpack.c.l.b16 %v11309
          %v11438 = vunpack.c.l.b16 %v11310
          %v11439 = vunpack.c.l.b16 %v11311
          %v11440 = vunpack.c.l.b16 %v11312
          %v11441 = vunpack.c.l.b16 %v11313
          %v11442 = vunpack.c.l.b16 %v11314
          %v11443 = vunpack.c.l.b16 %v11315
          %v11444 = vunpack.c.l.b16 %v11316
          %v11445 = vunpack.c.l.b16 %v11317
          %v11446 = vunpack.c.l.b16 %v11318
          %v11447 = vunpack.c.l.b16 %v11319
          %v11448 = vpack.c.b16 %v11417, %v11416
          %v11449 = vpack.c.b16 %v11419, %v11418
          %v11450 = vpack.c.b16 %v11421, %v11420
          %v11451 = vpack.c.b16 %v11423, %v11422
          %v11452 = vpack.c.b16 %v11425, %v11424
          %v11453 = vpack.c.b16 %v11427, %v11426
          %v11454 = vpack.c.b16 %v11429, %v11428
          %v11455 = vpack.c.b16 %v11431, %v11430
          %v11456 = vpack.c.b16 %v11433, %v11432
          %v11457 = vpack.c.b16 %v11435, %v11434
          %v11458 = vpack.c.b16 %v11437, %v11436
          %v11459 = vpack.c.b16 %v11439, %v11438
          %v11460 = vpack.c.b16 %v11441, %v11440
          %v11461 = vpack.c.b16 %v11443, %v11442
          %v11462 = vpack.c.b16 %v11445, %v11444
          %v11463 = vpack.c.b16 %v11447, %v11446
          %11480 = vmatprep.subr.bf16.mxu0 0
          %11481 = vmatpush1.bf16.msra.mxu0 %v11448
          %11482 = vmatprep.subr.bf16.mxu0 0
          %11483 = vmatpush1.bf16.msra.mxu0 %v11449
          %11484 = vmatprep.subr.bf16.mxu0 0
          %11485 = vmatpush1.bf16.msra.mxu0 %v11450
          %11486 = vmatprep.subr.bf16.mxu0 0
          %11487 = vmatpush1.bf16.msra.mxu0 %v11451
          %11488 = vmatprep.subr.bf16.mxu0 0
          %11489 = vmatpush1.bf16.msra.mxu0 %v11452
          %11490 = vmatprep.subr.bf16.mxu0 0
          %11491 = vmatpush1.bf16.msra.mxu0 %v11453
          %11492 = vmatprep.subr.bf16.mxu0 0
          %11493 = vmatpush1.bf16.msra.mxu0 %v11454
          %11494 = vmatprep.subr.bf16.mxu0 0
          %11495 = vmatpush1.bf16.msra.mxu0 %v11455
          %11496 = vmatprep.subr.bf16.mxu0 0
          %11497 = vmatpush1.bf16.msra.mxu0 %v11456
          %11498 = vmatprep.subr.bf16.mxu0 0
          %11499 = vmatpush1.bf16.msra.mxu0 %v11457
          %11500 = vmatprep.subr.bf16.mxu0 0
          %11501 = vmatpush1.bf16.msra.mxu0 %v11458
          %11502 = vmatprep.subr.bf16.mxu0 0
          %11503 = vmatpush1.bf16.msra.mxu0 %v11459
          %11504 = vmatprep.subr.bf16.mxu0 0
          %11505 = vmatpush1.bf16.msra.mxu0 %v11460
          %11506 = vmatprep.subr.bf16.mxu0 0
          %11507 = vmatpush1.bf16.msra.mxu0 %v11461
          %11508 = vmatprep.subr.bf16.mxu0 0
          %11509 = vmatpush1.bf16.msra.mxu0 %v11462
          %11510 = vmatprep.subr.bf16.mxu0 0
          %11511 = vmatpush1.bf16.msra.mxu0 %v11463
          %11512 = vmatprep.mubr.bf16.mxu0 %v11353
          %11513 = vmatmul.mubr.bf16.gmra.mrb[0].mxu0 %v11352
          %v11514 = vpop.f32.mrb[0].mxu0
          %v11515 = vadd.f32 0.0, %v11514
          %v11516 = vpop.f32.mrb[0].mxu0
          %v11517 = vpop.f32.mrb[0].mxu0
          %v11518 = vadd.f32 0.0, %v11517
          %v11519 = vpop.f32.mrb[0].mxu0
          %11520 = vmatprep.mubr.bf16.mxu0 %v11355
          %11521 = vmatmul.mubr.bf16.gmra.mrb[0].mxu0 %v11354
          %v11522 = vpop.f32.mrb[0].mxu0
          %v11523 = vadd.f32 0.0, %v11522
          %v11524 = vpop.f32.mrb[0].mxu0
          %v11525 = vpop.f32.mrb[0].mxu0
          %v11526 = vadd.f32 0.0, %v11525
          %v11527 = vpop.f32.mrb[0].mxu0
          %11528 = vmatprep.mubr.bf16.mxu0 %v11357
          %11529 = vmatmul.mubr.bf16.gmra.mrb[0].mxu0 %v11356
          %v11530 = vpop.f32.mrb[0].mxu0
          %v11531 = vadd.f32 0.0, %v11530
          %v11532 = vpop.f32.mrb[0].mxu0
          %v11533 = vpop.f32.mrb[0].mxu0
          %v11534 = vadd.f32 0.0, %v11533
          %v11535 = vpop.f32.mrb[0].mxu0
          %11536 = vmatprep.mubr.bf16.mxu0 %v11359
          %11537 = vmatmul.mubr.bf16.gmra.mrb[0].mxu0 %v11358
          %v11538 = vpop.f32.mrb[0].mxu0
          %v11539 = vadd.f32 0.0, %v11538
          %v11540 = vpop.f32.mrb[0].mxu0
          %v11541 = vpop.f32.mrb[0].mxu0
          %v11542 = vadd.f32 0.0, %v11541
          %v11543 = vpop.f32.mrb[0].mxu0
          %11544 = vmatprep.mubr.bf16.mxu0 %v11361
          %11545 = vmatmul.mubr.bf16.gmra.mrb[0].mxu0 %v11360
          %v11546 = vpop.f32.mrb[0].mxu0
          %v11547 = vadd.f32 0.0, %v11546
          %v11548 = vpop.f32.mrb[0].mxu0
          %v11549 = vpop.f32.mrb[0].mxu0
          %v11550 = vadd.f32 0.0, %v11549
          %v11551 = vpop.f32.mrb[0].mxu0
          %11552 = vmatprep.mubr.bf16.mxu0 %v11363
          %11553 = vmatmul.mubr.bf16.gmra.mrb[0].mxu0 %v11362
          %v11554 = vpop.f32.mrb[0].mxu0
          %v11555 = vadd.f32 0.0, %v11554
          %v11556 = vpop.f32.mrb[0].mxu0
          %v11557 = vpop.f32.mrb[0].mxu0
          %v11558 = vadd.f32 0.0, %v11557
          %v11559 = vpop.f32.mrb[0].mxu0
          %11560 = vmatprep.mubr.bf16.mxu0 %v11365
          %11561 = vmatmul.mubr.bf16.gmra.mrb[0].mxu0 %v11364
          %v11562 = vpop.f32.mrb[0].mxu0
          %v11563 = vadd.f32 0.0, %v11562
          %v11564 = vpop.f32.mrb[0].mxu0
          %v11565 = vpop.f32.mrb[0].mxu0
          %v11566 = vadd.f32 0.0, %v11565
          %v11567 = vpop.f32.mrb[0].mxu0
          %11568 = vmatprep.mubr.bf16.mxu0 %v11367
          %11569 = vmatmul.mubr.bf16.gmra.mrb[0].mxu0 %v11366
          %v11570 = vpop.f32.mrb[0].mxu0
          %v11571 = vadd.f32 0.0, %v11570
          %v11572 = vpop.f32.mrb[0].mxu0
          %v11573 = vpop.f32.mrb[0].mxu0
          %v11574 = vadd.f32 0.0, %v11573
          %v11575 = vpop.f32.mrb[0].mxu0
          %11576 = vdwg.mxu0
          %v11577 = vadd.f32 %v11048, %v11515
          %v11578 = vadd.f32 %v11049, %v11518
          %v11579 = vadd.f32 %v11050, %v11523
          %v11580 = vadd.f32 %v11051, %v11526
          %v11581 = vadd.f32 %v11052, %v11531
          %v11582 = vadd.f32 %v11053, %v11534
          %v11583 = vadd.f32 %v11054, %v11539
          %v11584 = vadd.f32 %v11055, %v11542
          %v11585 = vadd.f32 %v11056, %v11547
          %v11586 = vadd.f32 %v11057, %v11550
          %v11587 = vadd.f32 %v11058, %v11555
          %v11588 = vadd.f32 %v11059, %v11558
          %v11589 = vadd.f32 %v11060, %v11563
          %v11590 = vadd.f32 %v11061, %v11566
          %v11591 = vadd.f32 %v11062, %v11571
          %v11592 = vadd.f32 %v11063, %v11574
          %v11593 = vld [vmem:[#allocation11] sm:$0x1]
          %v11595 = vlaneseq
          %v11596 = vshrl.u32 %v11595, 7
          %v11597 = vsub.s32 0, %v11596
          %v11598 = vrot.slane %v11593, %v11597
          %v11600 = vadd.f32 %v11577, %v11598
          %v11601 = vadd.f32 %v11578, %v11598
          %v11602 = vadd.f32 %v11579, %v11598
          %v11603 = vadd.f32 %v11580, %v11598
          %v11604 = vadd.f32 %v11581, %v11598
          %v11605 = vadd.f32 %v11582, %v11598
          %v11606 = vadd.f32 %v11583, %v11598
          %v11607 = vadd.f32 %v11584, %v11598
          %v11608 = vadd.f32 %v11585, %v11598
          %v11609 = vadd.f32 %v11586, %v11598
          %v11610 = vadd.f32 %v11587, %v11598
          %v11611 = vadd.f32 %v11588, %v11598
          %v11612 = vadd.f32 %v11589, %v11598
          %v11613 = vadd.f32 %v11590, %v11598
          %v11614 = vadd.f32 %v11591, %v11598
          %v11615 = vadd.f32 %v11592, %v11598
          %11616 = vst [vmem:[#allocation12] sm:$0xff] %v11600
          %11617 = vst [vmem:[#allocation12 + $0x8] sm:$0xff] %v11601
          %11618 = vst [vmem:[#allocation12 + $0x10] sm:$0xff] %v11602
          %11619 = vst [vmem:[#allocation12 + $0x18] sm:$0xff] %v11603
          %11620 = vst [vmem:[#allocation12 + $0x20] sm:$0xff] %v11604
          %11621 = vst [vmem:[#allocation12 + $0x28] sm:$0xff] %v11605
          %11622 = vst [vmem:[#allocation12 + $0x30] sm:$0xff] %v11606
          %11623 = vst [vmem:[#allocation12 + $0x38] sm:$0xff] %v11607
          %11624 = vst [vmem:[#allocation12 + $0x40] sm:$0xff] %v11608
          %11625 = vst [vmem:[#allocation12 + $0x48] sm:$0xff] %v11609
          %11626 = vst [vmem:[#allocation12 + $0x50] sm:$0xff] %v11610
          %11627 = vst [vmem:[#allocation12 + $0x58] sm:$0xff] %v11611
          %11628 = vst [vmem:[#allocation12 + $0x60] sm:$0xff] %v11612
          %11629 = vst [vmem:[#allocation12 + $0x68] sm:$0xff] %v11613
          %11630 = vst [vmem:[#allocation12 + $0x70] sm:$0xff] %v11614
          %11631 = vst [vmem:[#allocation12 + $0x78] sm:$0xff] %v11615
        $region72: #{tpu_custom_call.1} parent=39 // pred_fallthru
          _
        // Predicated region
        $region73: #{tpu_custom_call.1} parent=39 // pred_check
          %p11632 = pneg %p180
        $region74: #{tpu_custom_call.1} parent=39 // pred_check_branch
          %11634 = sbr.rel (%p11632) target = $region76
        $region75: #{tpu_custom_call.1} parent=39 // pred_region
          %s11635 = smul.u32 16, %s26
          %s11637 = ssub.s32 2048, 2048
          %11638 = vsyncadd [#allocation5], %s11637
          %s11639 = smul.addr %s11635, 128
          %s11640 = scalar_lea.hbm %s5, %s11639
          %s11641 = sshll.u32 [#allocation12], 4
          %s11642 = int_to_ptr.vmem [resolvable:$true] %s11641
          %11647 = dma.vmem_to_hbm [thread:$0]  %s11642, 2048, %s11640, [#allocation5], 128, 128, 8
        $region76: #{tpu_custom_call.1} parent=39 // pred_fallthru
          _
        // Predicated region
        $region77: #{tpu_custom_call.1} parent=39 // pred_check
          %p11648 = pneg %p180
        $region78: #{tpu_custom_call.1} parent=39 // pred_check_branch
          %11650 = sbr.rel (%p11648) target = $region80
        $region79: #{tpu_custom_call.1} parent=39 // pred_region
          %11651 = dma.done [#allocation5], 2048
        $region80: #{tpu_custom_call.1} parent=39 // pred_fallthru
          _
      $region40: #{tpu_custom_call.1} parent=5 // pred_fallthru
        _
      %p11652 = scmp.le.s32.totalorder 2, %s17
      // Predicated region
      $region81: #{tpu_custom_call.1} parent=5 // pred_check
        %p11653 = pneg %p11652
      $region82: #{tpu_custom_call.1} parent=5 // pred_check_branch
        %11655 = sbr.rel (%p11653) target = $region84
      $region83: #{tpu_custom_call.1} parent=5 // pred_region
        %s11656 = ssub.s32 %s17, 2
      $region84: #{tpu_custom_call.1} parent=5 // pred_fallthru
        _
    $region6: #{tpu_custom_call.1} parent=1 // loop_footer
      %s21 = sadd.s32 1, %s17
    $region7: #{tpu_custom_call.1} parent=1 // loop_footer_branch
      %16 = sbr.rel target = $region3
    $region8: #{tpu_custom_call.1} parent=1 // loop_exit
      _
    %11657 = vsyncpa [#allocation4], 1
    %s11658 = scalar_lea.sflag [#allocation4], 1
    %11659 = vsyncpa %s11658, 1
    %11660 = vsyncpa [#allocation7], 1
    %s11661 = scalar_lea.sflag [#allocation7], 1
    %11662 = vsyncpa %s11661, 1
    %11663 = vsyncpa [#allocation10], 1
    %11664 = vsyncpa [#allocation5], 1
    %s11665 = scalar_lea.sflag [#allocation5], 1
    %11666 = vsyncpa %s11665, 1

</llo_original>
